<compile_context>
chip_gen: v6e
topology: v6e:2x2x1
jax: 0.10.0
libtpu: 0.0.40
codegen_flags: <defaults>
</compile_context>

<pallas_src>
import functools

import jax
import jax.numpy as jnp
from jax.experimental import pallas as pl
from jax.experimental.pallas import tpu as pltpu


# ----------------------------------------------------------------------------
# Static tables
# ----------------------------------------------------------------------------
# ConvTranspose2d(k=4, s=2, p=1): output parity a -> ((kernel_index, input_offset), ...)
_CT_TAPS = {0: ((1, 0), (3, -1)), 1: ((0, 1), (2, 0))}

# Non-center 3x3 tap offsets, fixed row order used by the host mask tables.
_OFFSETS = tuple((dy, dx) for dy in (-1, 0, 1) for dx in (-1, 0, 1)
                 if not (dy == 0 and dx == 0))

_W_ORDER = (
    "enc1_w1", "enc1_t1", "enc1_w2", "enc1_t2",
    "enc2_w1", "enc2_t1", "enc2_w2", "enc2_t2",
    "enc3_w1", "enc3_t1", "enc3_w2", "enc3_t2",
    "red_w", "red_t",
    "up1_w", "up1_t",
    "red1_wa", "red1_wb", "red1_t",
    "dec1_w1", "dec1_t1", "dec1_w2", "dec1_t2",
    "up2_w", "up2_t",
    "red2_wa", "red2_wb", "red2_t",
    "dec2_w1", "dec2_t1", "dec2_w2", "dec2_t2",
    "fin_w", "fin_t",
)

_AUX_ORDER = ("mask_a", "mask_b", "mask_c", "pool_a", "pool_b", "up_c", "up_b")


# ----------------------------------------------------------------------------
# In-kernel activation
# ----------------------------------------------------------------------------
def _act(y, act):
    if act == "lrelu":
        return jnp.where(y >= 0, y, 0.2 * y)
    if act == "relu":
        return jnp.maximum(y, 0.0)
    if act == "sigmoid":
        # exp goes to the EUP; approximate reciprocal does too (frees the VALU divide)
        return pl.reciprocal(1.0 + jnp.exp(-y), approx=True)
    return y  # 'none'


# ----------------------------------------------------------------------------
# Host-precomputed constant tables (tiny; DMA'd once, VMEM resident)
# ----------------------------------------------------------------------------
def _tap_masks(H, W):
    """(8, H*W) f32 0/1: row k masks tap _OFFSETS[k] (in-bounds pixels only)."""
    S = H * W
    idx = jnp.arange(S)
    ri, rj = idx // W, idx % W
    rows = []
    for dy, dx in _OFFSETS:
        ok = (ri + dy >= 0) & (ri + dy < H) & (rj + dx >= 0) & (rj + dx < W)
        rows.append(ok)
    return jnp.stack(rows, 0).astype(jnp.float32)


def _pool_matrix(H, W):
    """(H*W, H*W/4) bf16: selects the top-left pixel of every 2x2 window."""
    S, So, Wo = H * W, (H // 2) * (W // 2), W // 2
    s, o = jnp.arange(S), jnp.arange(So)
    si, sj = s // W, s % W
    oi, oj = o // Wo, o % Wo
    m = (si[:, None] == 2 * oi[None, :]) & (sj[:, None] == 2 * oj[None, :])
    return m.astype(jnp.bfloat16)


def _up_matrices(H, W):
    """(4, H*W, 4*H*W) bf16: phase (a,b) -> scatter low-res pixels to output parity."""
    S, So, Wo = H * W, 4 * H * W, 2 * W
    s, o = jnp.arange(S), jnp.arange(So)
    si, sj = s // W, s % W
    oi, oj = o // Wo, o % Wo
    mats = []
    for a in (0, 1):
        for b in (0, 1):
            m = (oi[None, :] == 2 * si[:, None] + a) & (oj[None, :] == 2 * sj[:, None] + b)
            mats.append(m)
    return jnp.stack(mats, 0).astype(jnp.bfloat16)


# ----------------------------------------------------------------------------
# In-kernel compute helpers (activations are (C, S) f32 with S = H*W in lanes)
# ----------------------------------------------------------------------------
def _tap(x, lvl, dy, dx):
    """tap[r] = x[r + (dy, dx)] (zero-filled at the image boundary)."""
    if dy == 0 and dx == 0:
        return x
    S = x.shape[-1]
    d = dy * lvl["W"] + dx
    rolled = jnp.roll(x, (-d) % S, axis=1)          # rolled[r] = x[(r + d) mod S]
    return rolled * lvl["mask"][_OFFSETS.index((dy, dx))]


def _conv3x3(x, w_ref, t_ref, lvl, act):
    """3x3 conv (pad=1) + folded bias/BN + activation.

    w_ref: (Co, 9*Ci) bf16 with k = (ky*3+kx)*Ci + ci.  One stacked-K matmul.
    """
    taps = jnp.concatenate(
        [_tap(x, lvl, dy, dx) for dy in (-1, 0, 1) for dx in (-1, 0, 1)], axis=0)
    y = jnp.dot(w_ref[...], taps.astype(jnp.bfloat16),
                preferred_element_type=jnp.float32)
    return _act(y + t_ref[...], act)


def _conv1x1(x, w_ref, t_ref, act):
    y = jnp.dot(w_ref[...], x.astype(jnp.bfloat16),
                preferred_element_type=jnp.float32)
    return _act(y + t_ref[...], act)


def _conv1x1_pair(xa, xb, wa_ref, wb_ref, t_ref, act):
    """1x1 conv of concat([xa, xb]) without materializing the concat."""
    y = jnp.dot(wa_ref[...], xa.astype(jnp.bfloat16),
                preferred_element_type=jnp.float32)
    y = y + jnp.dot(wb_ref[...], xb.astype(jnp.bfloat16),
                    preferred_element_type=jnp.float32)
    return _act(y + t_ref[...], act)


def _maxpool2x2(x, lvl, pool_ref):
    m = x
    for dy, dx in ((0, 1), (1, 0), (1, 1)):
        m = jnp.maximum(m, _tap(x, lvl, dy, dx))
    return jnp.dot(m.astype(jnp.bfloat16), pool_ref[...],
                   preferred_element_type=jnp.float32)


def _conv_transpose(x, w_ref, t_ref, lvl, up_ref):
    """ConvTranspose2d(k=4, s=2, p=1, bias=False) + BN + ReLU (4-phase form).

    w_ref:  (4, Co, 4*Ci) bf16 — phase 2a+b, k = (2*ti+tj)*Ci + ci (BN scale folded).
    up_ref: (4, S_lo, 4*S_lo) bf16 — phase scatter matrices (host precomputed).
    """
    co = w_ref.shape[1]
    s_lo = x.shape[1]
    out = jnp.zeros((co, 4 * s_lo), jnp.float32)
    for a in (0, 1):
        for b in (0, 1):
            taps = jnp.concatenate(
                [_tap(x, lvl, dy, dx)
                 for (_, dy) in _CT_TAPS[a] for (_, dx) in _CT_TAPS[b]], axis=0)
            ph = jnp.dot(w_ref[2 * a + b], taps.astype(jnp.bfloat16),
                         preferred_element_type=jnp.float32)
            out = out + jnp.dot(ph.astype(jnp.bfloat16), up_ref[2 * a + b],
                                preferred_element_type=jnp.float32)
    return jnp.maximum(out + t_ref[...], 0.0)


# ----------------------------------------------------------------------------
# The fused UNet kernel (one grid step == one image)
# ----------------------------------------------------------------------------
def _unet_kernel(*refs, W):
    x_ref, o_ref = refs[0], refs[-1]
    mid = refs[1:-1]
    assert len(mid) == len(_W_ORDER) + len(_AUX_ORDER)
    w = dict(zip(_W_ORDER, mid[:len(_W_ORDER)]))
    aux = dict(zip(_AUX_ORDER, mid[len(_W_ORDER):]))

    # Per-level tap boundary masks (host precomputed, loaded once per step).
    lvl_a = {"W": W,      "mask": aux["mask_a"][...]}   # 16x16
    lvl_b = {"W": W // 2, "mask": aux["mask_b"][...]}   # 8x8
    lvl_c = {"W": W // 4, "mask": aux["mask_c"][...]}   # 4x4

    x = x_ref[0].astype(jnp.float32)                                   # (Cin, H*W)

    # ----- encoder -----
    h = _conv3x3(x, w["enc1_w1"], w["enc1_t1"], lvl_a, "lrelu")
    x1 = _conv3x3(h, w["enc1_w2"], w["enc1_t2"], lvl_a, "lrelu")        # (8, 256)
    p1 = _maxpool2x2(x1, lvl_a, aux["pool_a"])                          # (8, 64)
    h = _conv3x3(p1, w["enc2_w1"], w["enc2_t1"], lvl_b, "lrelu")
    x2 = _conv3x3(h, w["enc2_w2"], w["enc2_t2"], lvl_b, "lrelu")        # (16, 64)
    p2 = _maxpool2x2(x2, lvl_b, aux["pool_b"])                          # (16, 16)
    h = _conv3x3(p2, w["enc3_w1"], w["enc3_t1"], lvl_c, "lrelu")
    x3 = _conv3x3(h, w["enc3_w2"], w["enc3_t2"], lvl_c, "lrelu")        # (32, 16)
    x3 = _conv1x1(x3, w["red_w"], w["red_t"], "none")                   # (16, 16)

    # ----- decoder -----
    up1 = _conv_transpose(x3, w["up1_w"], w["up1_t"], lvl_c, aux["up_c"])   # (16, 64)
    # TODO(synk): Dropout(0.5) after up1/up2 is identity (eval-mode forward).
    c1 = _conv1x1_pair(up1, x2, w["red1_wa"], w["red1_wb"], w["red1_t"], "none")
    h = _conv3x3(c1, w["dec1_w1"], w["dec1_t1"], lvl_b, "relu")
    d1 = _conv3x3(h, w["dec1_w2"], w["dec1_t2"], lvl_b, "relu")         # (32, 64)
    up2 = _conv_transpose(d1, w["up2_w"], w["up2_t"], lvl_b, aux["up_b"])   # (8, 256)
    c2 = _conv1x1_pair(up2, x1, w["red2_wa"], w["red2_wb"], w["red2_t"], "none")
    h = _conv3x3(c2, w["dec2_w1"], w["dec2_t1"], lvl_a, "relu")
    d2 = _conv3x3(h, w["dec2_w2"], w["dec2_t2"], lvl_a, "relu")         # (16, 256)
    out = _conv1x1(d2, w["fin_w"], w["fin_t"], "sigmoid")               # (1, 256)

    o_ref[0] = out.astype(o_ref.dtype)


def _zero_map(ndim, n):
    return (0,) * ndim


def unet_forward_pallas(prep, x_nchw):
    """x_nchw: (N, C, H, W) f32 -> (N, 1, H, W) f32."""
    N, C, H, W = x_nchw.shape
    assert H % 4 == 0 and W % 4 == 0
    S = H * W
    x = x_nchw.reshape(N, C, S)

    aux = {
        "mask_a": _tap_masks(H, W),
        "mask_b": _tap_masks(H // 2, W // 2),
        "mask_c": _tap_masks(H // 4, W // 4),
        "pool_a": _pool_matrix(H, W),
        "pool_b": _pool_matrix(H // 2, W // 2),
        "up_c": _up_matrices(H // 4, W // 4),   # 4x4 -> 8x8
        "up_b": _up_matrices(H // 2, W // 2),   # 8x8 -> 16x16
    }
    args = [prep[k] for k in _W_ORDER] + [aux[k] for k in _AUX_ORDER]

    in_specs = [pl.BlockSpec((1, C, S), lambda n: (n, 0, 0))]
    for a in args:
        # constant index_map -> block never changes across grid steps (no re-DMA)
        in_specs.append(pl.BlockSpec(a.shape, functools.partial(_zero_map, a.ndim)))

    out = pl.pallas_call(
        functools.partial(_unet_kernel, W=W),
        out_shape=jax.ShapeDtypeStruct((N, 1, S), jnp.float32),
        grid=(N,),
        in_specs=in_specs,
        out_specs=pl.BlockSpec((1, 1, S), lambda n: (n, 0, 0)),
        compiler_params=pltpu.CompilerParams(dimension_semantics=("parallel",)),
    )(x, *args)
    return out.reshape(N, 1, H, W)


# ----------------------------------------------------------------------------
# Host-side weight preparation (fold bias+BN, lane-dense stacked-K repack)
# ----------------------------------------------------------------------------
def _prep_conv3(wb, bn):
    w, b = wb
    scale, shift = bn
    co, ci = w.shape[0], w.shape[1]
    wf = w * scale.reshape(co, 1, 1, 1)
    # (Co, Ci, ky, kx) -> (Co, ky, kx, Ci) -> (Co, 9*Ci) with k = (ky*3+kx)*Ci + ci
    w_r = jnp.transpose(wf, (0, 2, 3, 1)).reshape(co, 9 * ci).astype(jnp.bfloat16)
    t = (b * scale + shift).reshape(co, 1).astype(jnp.float32)
    return w_r, t


def _prep_conv1(wb, bn):
    w, b = wb
    scale, shift = bn
    co = w.shape[0]
    w1 = (w[:, :, 0, 0] * scale[:, None]).astype(jnp.bfloat16)
    t = (b * scale + shift).reshape(co, 1).astype(jnp.float32)
    return w1, t


def _prep_convT(wt, bn):
    scale, shift = bn
    co = wt.shape[1]
    phases = []
    for a in (0, 1):
        for b in (0, 1):
            blocks = []
            for (ky, _dy) in _CT_TAPS[a]:
                for (kx, _dx) in _CT_TAPS[b]:
                    blocks.append(wt[:, :, ky, kx].T * scale[:, None])   # (Co, Ci)
            phases.append(jnp.concatenate(blocks, axis=1))               # (Co, 4*Ci)
    w_r = jnp.stack(phases, 0).astype(jnp.bfloat16)                      # (4, Co, 4*Ci)
    t = shift.reshape(co, 1).astype(jnp.float32)
    return w_r, t


def prepare_params(p):
    d = {}
    d["enc1_w1"], d["enc1_t1"] = _prep_conv3(p["enc1_c1"], p["enc1_bn1"])
    d["enc1_w2"], d["enc1_t2"] = _prep_conv3(p["enc1_c2"], p["enc1_bn2"])
    d["enc2_w1"], d["enc2_t1"] = _prep_conv3(p["enc2_c1"], p["enc2_bn1"])
    d["enc2_w2"], d["enc2_t2"] = _prep_conv3(p["enc2_c2"], p["enc2_bn2"])
    d["enc3_w1"], d["enc3_t1"] = _prep_conv3(p["enc3_c1"], p["enc3_bn1"])
    d["enc3_w2"], d["enc3_t2"] = _prep_conv3(p["enc3_c2"], p["enc3_bn2"])
    d["red_w"], d["red_t"] = _prep_conv1(p["reduce"], p["reduce_bn"])
    d["up1_w"], d["up1_t"] = _prep_convT(p["up1_w"], p["up1_bn"])
    wa, t = _prep_conv1(p["reduce1"], p["reduce1_bn"])
    c_up1 = d["up1_t"].shape[0]
    d["red1_wa"], d["red1_wb"], d["red1_t"] = wa[:, :c_up1], wa[:, c_up1:], t
    d["dec1_w1"], d["dec1_t1"] = _prep_conv3(p["dec1_c1"], p["dec1_bn1"])
    d["dec1_w2"], d["dec1_t2"] = _prep_conv3(p["dec1_c2"], p["dec1_bn2"])
    d["up2_w"], d["up2_t"] = _prep_convT(p["up2_w"], p["up2_bn"])
    wa, t = _prep_conv1(p["reduce2"], p["reduce2_bn"])
    c_up2 = d["up2_t"].shape[0]
    d["red2_wa"], d["red2_wb"], d["red2_t"] = wa[:, :c_up2], wa[:, c_up2:], t
    d["dec2_w1"], d["dec2_t1"] = _prep_conv3(p["dec2_c1"], p["dec2_bn1"])
    d["dec2_w2"], d["dec2_t2"] = _prep_conv3(p["dec2_c2"], p["dec2_bn2"])
    d["fin_w"], d["fin_t"] = _prep_conv1(p["final"], p["final_bn"])
    return d


# ----------------------------------------------------------------------------
# Pure-JAX f32 reference (NHWC) for correctness checking
# ----------------------------------------------------------------------------
def _act_ref(y, act):
    if act == "lrelu":
        return jnp.where(y >= 0, y, 0.2 * y)
    if act == "relu":
        return jnp.maximum(y, 0.0)
    if act == "sigmoid":
        return jax.nn.sigmoid(y)
    return y


def _ref_conv(x, w_oihw, b, scale, shift, pad, act, lhs_dilation=(1, 1)):
    w = jnp.transpose(w_oihw, (2, 3, 1, 0))  # HWIO
    y = jax.lax.conv_general_dilated(
        x, w, window_strides=(1, 1), padding=[(pad, pad), (pad, pad)],
        lhs_dilation=lhs_dilation,
        dimension_numbers=("NHWC", "HWIO", "NHWC"),
        precision=jax.lax.Precision.HIGHEST)
    y = y + b.reshape(1, 1, 1, -1)
    y = y * scale.reshape(1, 1, 1, -1) + shift.reshape(1, 1, 1, -1)
    return _act_ref(y, act)


def _ref_convT(x, w_t, scale, shift):
    cout = w_t.shape[1]
    w_conv = jnp.transpose(jnp.flip(w_t, axis=(2, 3)), (1, 0, 2, 3))
    zero_b = jnp.zeros((cout,), jnp.float32)
    return _ref_conv(x, w_conv, zero_b, scale, shift, 2, "relu", lhs_dilation=(2, 2))


def _ref_pool(x):
    N, H, W, C = x.shape
    return x.reshape(N, H // 2, 2, W // 2, 2, C).max(axis=(2, 4))


def unet_reference(p, x_nhwc):
    def conv(h, wb, bn, pad, act):
        return _ref_conv(h, wb[0], wb[1], bn[0], bn[1], pad, act)

    def block(h, c1, bn1, c2, bn2, act):
        h = conv(h, c1, bn1, 1, act)
        return conv(h, c2, bn2, 1, act)

    x1 = block(x_nhwc, p["enc1_c1"], p["enc1_bn1"], p["enc1_c2"], p["enc1_bn2"], "lrelu")
    p1 = _ref_pool(x1)
    x2 = block(p1, p["enc2_c1"], p["enc2_bn1"], p["enc2_c2"], p["enc2_bn2"], "lrelu")
    p2 = _ref_pool(x2)
    x3 = block(p2, p["enc3_c1"], p["enc3_bn1"], p["enc3_c2"], p["enc3_bn2"], "lrelu")
    x3 = conv(x3, p["reduce"], p["reduce_bn"], 0, "none")
    up1 = _ref_convT(x3, p["up1_w"], p["up1_bn"][0], p["up1_bn"][1])
    cat1 = jnp.concatenate([up1, x2], axis=-1)
    cat1 = conv(cat1, p["reduce1"], p["reduce1_bn"], 0, "none")
    dec1 = block(cat1, p["dec1_c1"], p["dec1_bn1"], p["dec1_c2"], p["dec1_bn2"], "relu")
    up2 = _ref_convT(dec1, p["up2_w"], p["up2_bn"][0], p["up2_bn"][1])
    cat2 = jnp.concatenate([up2, x1], axis=-1)
    cat2 = conv(cat2, p["reduce2"], p["reduce2_bn"], 0, "none")
    dec2 = block(cat2, p["dec2_c1"], p["dec2_bn1"], p["dec2_c2"], p["dec2_bn2"], "relu")
    out = conv(dec2, p["final"], p["final_bn"], 0, "sigmoid")
    return out


# ----------------------------------------------------------------------------
# Parameters (deterministic init; BN folded to scale/shift, eval mode)
# ----------------------------------------------------------------------------
def init_params():
    key = jax.random.PRNGKey(42)
    cnt = [0]

    def nrm(shape, std=0.1):
        cnt[0] += 1
        return (std * jax.random.normal(jax.random.fold_in(key, cnt[0]), shape)).astype(jnp.float32)

    def conv_p(cin, cout, k):
        return nrm((cout, cin, k, k)), nrm((cout,))

    def bn_p(c, eps=1e-5):
        gamma = 1.0 + nrm((c,))
        beta = nrm((c,))
        mean = nrm((c,))
        var = 0.5 + jnp.abs(nrm((c,)))
        scale = gamma / jnp.sqrt(var + eps)
        shift = beta - mean * scale
        return scale, shift

    def ident(c):
        return jnp.ones((c,), jnp.float32), jnp.zeros((c,), jnp.float32)

    p = {}
    p["enc1_c1"] = conv_p(1, 4, 3);   p["enc1_bn1"] = ident(4)     # use_batchnorm=False
    p["enc1_c2"] = conv_p(4, 8, 3);   p["enc1_bn2"] = ident(8)
    p["enc2_c1"] = conv_p(8, 8, 3);   p["enc2_bn1"] = bn_p(8)
    p["enc2_c2"] = conv_p(8, 16, 3);  p["enc2_bn2"] = bn_p(16)
    p["enc3_c1"] = conv_p(16, 16, 3); p["enc3_bn1"] = bn_p(16)
    p["enc3_c2"] = conv_p(16, 32, 3); p["enc3_bn2"] = bn_p(32)
    p["reduce"] = conv_p(32, 16, 1);  p["reduce_bn"] = ident(16)
    p["up1_w"] = nrm((16, 16, 4, 4)); p["up1_bn"] = bn_p(16)       # ConvTranspose2d weight (Cin,Cout,4,4)
    p["reduce1"] = conv_p(32, 16, 1); p["reduce1_bn"] = ident(16)
    p["dec1_c1"] = conv_p(16, 16, 3); p["dec1_bn1"] = bn_p(16)
    p["dec1_c2"] = conv_p(16, 32, 3); p["dec1_bn2"] = bn_p(32)
    p["up2_w"] = nrm((32, 8, 4, 4));  p["up2_bn"] = bn_p(8)
    p["reduce2"] = conv_p(16, 8, 1);  p["reduce2_bn"] = ident(8)
    p["dec2_c1"] = conv_p(8, 8, 3);   p["dec2_bn1"] = bn_p(8)
    p["dec2_c2"] = conv_p(8, 16, 3);  p["dec2_bn2"] = bn_p(16)
    p["final"] = conv_p(16, 1, 1);    p["final_bn"] = ident(1)
    return p


# ----------------------------------------------------------------------------
# Main
# ----------------------------------------------------------------------------
if __name__ == "__main__":
    params = init_params()
    prep = prepare_params(params)

    # PyTorch NCHW convention: (batch=2, channels=1, H=16, W=16)
    x_nchw = jax.random.normal(jax.random.PRNGKey(0), (2, 1, 16, 16), jnp.float32)

    fwd = jax.jit(lambda xx: unet_forward_pallas(prep, xx))
    out = fwd(x_nchw)                       # (2, 1, 16, 16) NCHW
    jax.block_until_ready(out)

    # correctness check against a pure-JAX f32 reference of the same forward
    x_nhwc = jnp.transpose(x_nchw, (0, 2, 3, 1))
    ref = jnp.transpose(unet_reference(params, x_nhwc), (0, 3, 1, 2))

    assert out.shape == (2, 1, 16, 16), out.shape
    assert bool(jnp.all(jnp.isfinite(out)))
    # bf16 MXU inputs / f32 accumulation vs. full-f32 reference
    assert float(jnp.max(jnp.abs(out - ref))) < 3e-2
    print("KERNEL_OK")
</pallas_src>

<mosaic_0001>
module attributes {stable_mosaic.version = 11 : i64} {
  func.func @_unet_kernel(%arg0: i32, %arg1: memref<1x1x256xf32, #tpu.memory_space<vmem>>, %arg2: memref<4x9xbf16, #tpu.memory_space<vmem>>, %arg3: memref<4x1xf32, #tpu.memory_space<vmem>>, %arg4: memref<8x36xbf16, #tpu.memory_space<vmem>>, %arg5: memref<8x1xf32, #tpu.memory_space<vmem>>, %arg6: memref<8x72xbf16, #tpu.memory_space<vmem>>, %arg7: memref<8x1xf32, #tpu.memory_space<vmem>>, %arg8: memref<16x72xbf16, #tpu.memory_space<vmem>>, %arg9: memref<16x1xf32, #tpu.memory_space<vmem>>, %arg10: memref<16x144xbf16, #tpu.memory_space<vmem>>, %arg11: memref<16x1xf32, #tpu.memory_space<vmem>>, %arg12: memref<32x144xbf16, #tpu.memory_space<vmem>>, %arg13: memref<32x1xf32, #tpu.memory_space<vmem>>, %arg14: memref<16x32xbf16, #tpu.memory_space<vmem>>, %arg15: memref<16x1xf32, #tpu.memory_space<vmem>>, %arg16: memref<4x16x64xbf16, #tpu.memory_space<vmem>>, %arg17: memref<16x1xf32, #tpu.memory_space<vmem>>, %arg18: memref<16x16xbf16, #tpu.memory_space<vmem>>, %arg19: memref<16x16xbf16, #tpu.memory_space<vmem>>, %arg20: memref<16x1xf32, #tpu.memory_space<vmem>>, %arg21: memref<16x144xbf16, #tpu.memory_space<vmem>>, %arg22: memref<16x1xf32, #tpu.memory_space<vmem>>, %arg23: memref<32x144xbf16, #tpu.memory_space<vmem>>, %arg24: memref<32x1xf32, #tpu.memory_space<vmem>>, %arg25: memref<4x8x128xbf16, #tpu.memory_space<vmem>>, %arg26: memref<8x1xf32, #tpu.memory_space<vmem>>, %arg27: memref<8x8xbf16, #tpu.memory_space<vmem>>, %arg28: memref<8x8xbf16, #tpu.memory_space<vmem>>, %arg29: memref<8x1xf32, #tpu.memory_space<vmem>>, %arg30: memref<8x72xbf16, #tpu.memory_space<vmem>>, %arg31: memref<8x1xf32, #tpu.memory_space<vmem>>, %arg32: memref<16x72xbf16, #tpu.memory_space<vmem>>, %arg33: memref<16x1xf32, #tpu.memory_space<vmem>>, %arg34: memref<1x16xbf16, #tpu.memory_space<vmem>>, %arg35: memref<1x1xf32, #tpu.memory_space<vmem>>, %arg36: memref<8x256xf32, #tpu.memory_space<vmem>>, %arg37: memref<8x64xf32, #tpu.memory_space<vmem>>, %arg38: memref<8x16xf32, #tpu.memory_space<vmem>>, %arg39: memref<256x64xbf16, #tpu.memory_space<vmem>>, %arg40: memref<64x16xbf16, #tpu.memory_space<vmem>>, %arg41: memref<4x16x64xbf16, #tpu.memory_space<vmem>>, %arg42: memref<4x64x256xbf16, #tpu.memory_space<vmem>>, %arg43: memref<1x1x256xf32, #tpu.memory_space<vmem>>) attributes {dimension_semantics = [#tpu.dimension_semantics<parallel>], iteration_bounds = array<i64: 2>, scalar_prefetch = 0 : i64, scratch_operands = 0 : i64, tpu.core_type = #tpu.core_type<tc>, window_params = [{transform_indices = @transform_0, window_bounds = array<i64: 1, 1, 256>}, {pipeline_mode = #tpu.pipeline_mode<synchronous>, transform_indices = @transform_1, window_bounds = array<i64: 4, 9>}, {pipeline_mode = #tpu.pipeline_mode<synchronous>, transform_indices = @transform_2, window_bounds = array<i64: 4, 1>}, {pipeline_mode = #tpu.pipeline_mode<synchronous>, transform_indices = @transform_3, window_bounds = array<i64: 8, 36>}, {pipeline_mode = #tpu.pipeline_mode<synchronous>, transform_indices = @transform_4, window_bounds = array<i64: 8, 1>}, {pipeline_mode = #tpu.pipeline_mode<synchronous>, transform_indices = @transform_5, window_bounds = array<i64: 8, 72>}, {pipeline_mode = #tpu.pipeline_mode<synchronous>, transform_indices = @transform_6, window_bounds = array<i64: 8, 1>}, {pipeline_mode = #tpu.pipeline_mode<synchronous>, transform_indices = @transform_7, window_bounds = array<i64: 16, 72>}, {pipeline_mode = #tpu.pipeline_mode<synchronous>, transform_indices = @transform_8, window_bounds = array<i64: 16, 1>}, {pipeline_mode = #tpu.pipeline_mode<synchronous>, transform_indices = @transform_9, window_bounds = array<i64: 16, 144>}, {pipeline_mode = #tpu.pipeline_mode<synchronous>, transform_indices = @transform_10, window_bounds = array<i64: 16, 1>}, {pipeline_mode = #tpu.pipeline_mode<synchronous>, transform_indices = @transform_11, window_bounds = array<i64: 32, 144>}, {pipeline_mode = #tpu.pipeline_mode<synchronous>, transform_indices = @transform_12, window_bounds = array<i64: 32, 1>}, {pipeline_mode = #tpu.pipeline_mode<synchronous>, transform_indices = @transform_13, window_bounds = array<i64: 16, 32>}, {pipeline_mode = #tpu.pipeline_mode<synchronous>, transform_indices = @transform_14, window_bounds = array<i64: 16, 1>}, {pipeline_mode = #tpu.pipeline_mode<synchronous>, transform_indices = @transform_15, window_bounds = array<i64: 4, 16, 64>}, {pipeline_mode = #tpu.pipeline_mode<synchronous>, transform_indices = @transform_16, window_bounds = array<i64: 16, 1>}, {pipeline_mode = #tpu.pipeline_mode<synchronous>, transform_indices = @transform_17, window_bounds = array<i64: 16, 16>}, {pipeline_mode = #tpu.pipeline_mode<synchronous>, transform_indices = @transform_18, window_bounds = array<i64: 16, 16>}, {pipeline_mode = #tpu.pipeline_mode<synchronous>, transform_indices = @transform_19, window_bounds = array<i64: 16, 1>}, {pipeline_mode = #tpu.pipeline_mode<synchronous>, transform_indices = @transform_20, window_bounds = array<i64: 16, 144>}, {pipeline_mode = #tpu.pipeline_mode<synchronous>, transform_indices = @transform_21, window_bounds = array<i64: 16, 1>}, {pipeline_mode = #tpu.pipeline_mode<synchronous>, transform_indices = @transform_22, window_bounds = array<i64: 32, 144>}, {pipeline_mode = #tpu.pipeline_mode<synchronous>, transform_indices = @transform_23, window_bounds = array<i64: 32, 1>}, {pipeline_mode = #tpu.pipeline_mode<synchronous>, transform_indices = @transform_24, window_bounds = array<i64: 4, 8, 128>}, {pipeline_mode = #tpu.pipeline_mode<synchronous>, transform_indices = @transform_25, window_bounds = array<i64: 8, 1>}, {pipeline_mode = #tpu.pipeline_mode<synchronous>, transform_indices = @transform_26, window_bounds = array<i64: 8, 8>}, {pipeline_mode = #tpu.pipeline_mode<synchronous>, transform_indices = @transform_27, window_bounds = array<i64: 8, 8>}, {pipeline_mode = #tpu.pipeline_mode<synchronous>, transform_indices = @transform_28, window_bounds = array<i64: 8, 1>}, {pipeline_mode = #tpu.pipeline_mode<synchronous>, transform_indices = @transform_29, window_bounds = array<i64: 8, 72>}, {pipeline_mode = #tpu.pipeline_mode<synchronous>, transform_indices = @transform_30, window_bounds = array<i64: 8, 1>}, {pipeline_mode = #tpu.pipeline_mode<synchronous>, transform_indices = @transform_31, window_bounds = array<i64: 16, 72>}, {pipeline_mode = #tpu.pipeline_mode<synchronous>, transform_indices = @transform_32, window_bounds = array<i64: 16, 1>}, {pipeline_mode = #tpu.pipeline_mode<synchronous>, transform_indices = @transform_33, window_bounds = array<i64: 1, 16>}, {pipeline_mode = #tpu.pipeline_mode<synchronous>, transform_indices = @transform_34, window_bounds = array<i64: 1, 1>}, {pipeline_mode = #tpu.pipeline_mode<synchronous>, transform_indices = @transform_35, window_bounds = array<i64: 8, 256>}, {pipeline_mode = #tpu.pipeline_mode<synchronous>, transform_indices = @transform_36, window_bounds = array<i64: 8, 64>}, {pipeline_mode = #tpu.pipeline_mode<synchronous>, transform_indices = @transform_37, window_bounds = array<i64: 8, 16>}, {pipeline_mode = #tpu.pipeline_mode<synchronous>, transform_indices = @transform_38, window_bounds = array<i64: 256, 64>}, {pipeline_mode = #tpu.pipeline_mode<synchronous>, transform_indices = @transform_39, window_bounds = array<i64: 64, 16>}, {pipeline_mode = #tpu.pipeline_mode<synchronous>, transform_indices = @transform_40, window_bounds = array<i64: 4, 16, 64>}, {pipeline_mode = #tpu.pipeline_mode<synchronous>, transform_indices = @transform_41, window_bounds = array<i64: 4, 64, 256>}, {transform_indices = @transform_42, window_bounds = array<i64: 1, 1, 256>}]} {
    %c0 = arith.constant 0 : index
    %c0_0 = arith.constant 0 : index
    %0 = vector.load %arg36[%c0, %c0_0] : memref<8x256xf32, #tpu.memory_space<vmem>>, vector<8x256xf32>
    %c0_1 = arith.constant 0 : index
    %c0_2 = arith.constant 0 : index
    %1 = vector.load %arg37[%c0_1, %c0_2] : memref<8x64xf32, #tpu.memory_space<vmem>>, vector<8x64xf32>
    %c0_3 = arith.constant 0 : index
    %c0_4 = arith.constant 0 : index
    %2 = vector.load %arg38[%c0_3, %c0_4] : memref<8x16xf32, #tpu.memory_space<vmem>>, vector<8x16xf32>
    %c0_5 = arith.constant 0 : index
    %c0_6 = arith.constant 0 : index
    %c0_7 = arith.constant 0 : index
    %3 = vector.load %arg1[%c0_5, %c0_6, %c0_7] : memref<1x1x256xf32, #tpu.memory_space<vmem>>, vector<1x1x256xf32>
    %4 = vector.shape_cast %3 : vector<1x1x256xf32> to vector<1x256xf32>
    %5 = vector.extract_strided_slice %4 {offsets = [0, 239], sizes = [1, 17], strides = [1, 1]} : vector<1x256xf32> to vector<1x17xf32>
    %6 = vector.extract_strided_slice %4 {offsets = [0, 0], sizes = [1, 239], strides = [1, 1]} : vector<1x256xf32> to vector<1x239xf32>
    %7 = tpu.concatenate %5, %6 in 1 : vector<1x17xf32>, vector<1x239xf32> -> vector<1x256xf32>
    %8 = vector.extract_strided_slice %0 {offsets = [0, 0], sizes = [1, 256], strides = [1, 1]} : vector<8x256xf32> to vector<1x256xf32>
    %9 = vector.shape_cast %8 : vector<1x256xf32> to vector<256xf32>
    %10 = vector.shape_cast %9 : vector<256xf32> to vector<1x256xf32>
    %11 = arith.mulf %7, %10 : vector<1x256xf32>
    %12 = vector.extract_strided_slice %4 {offsets = [0, 240], sizes = [1, 16], strides = [1, 1]} : vector<1x256xf32> to vector<1x16xf32>
    %13 = vector.extract_strided_slice %4 {offsets = [0, 0], sizes = [1, 240], strides = [1, 1]} : vector<1x256xf32> to vector<1x240xf32>
    %14 = tpu.concatenate %12, %13 in 1 : vector<1x16xf32>, vector<1x240xf32> -> vector<1x256xf32>
    %15 = vector.extract_strided_slice %0 {offsets = [1, 0], sizes = [1, 256], strides = [1, 1]} : vector<8x256xf32> to vector<1x256xf32>
    %16 = vector.shape_cast %15 : vector<1x256xf32> to vector<256xf32>
    %17 = vector.shape_cast %16 : vector<256xf32> to vector<1x256xf32>
    %18 = arith.mulf %14, %17 : vector<1x256xf32>
    %19 = vector.extract_strided_slice %4 {offsets = [0, 241], sizes = [1, 15], strides = [1, 1]} : vector<1x256xf32> to vector<1x15xf32>
    %20 = vector.extract_strided_slice %4 {offsets = [0, 0], sizes = [1, 241], strides = [1, 1]} : vector<1x256xf32> to vector<1x241xf32>
    %21 = tpu.concatenate %19, %20 in 1 : vector<1x15xf32>, vector<1x241xf32> -> vector<1x256xf32>
    %22 = vector.extract_strided_slice %0 {offsets = [2, 0], sizes = [1, 256], strides = [1, 1]} : vector<8x256xf32> to vector<1x256xf32>
    %23 = vector.shape_cast %22 : vector<1x256xf32> to vector<256xf32>
    %24 = vector.shape_cast %23 : vector<256xf32> to vector<1x256xf32>
    %25 = arith.mulf %21, %24 : vector<1x256xf32>
    %26 = vector.extract_strided_slice %4 {offsets = [0, 255], sizes = [1, 1], strides = [1, 1]} : vector<1x256xf32> to vector<1x1xf32>
    %27 = vector.extract_strided_slice %4 {offsets = [0, 0], sizes = [1, 255], strides = [1, 1]} : vector<1x256xf32> to vector<1x255xf32>
    %28 = tpu.concatenate %26, %27 in 1 : vector<1x1xf32>, vector<1x255xf32> -> vector<1x256xf32>
    %29 = vector.extract_strided_slice %0 {offsets = [3, 0], sizes = [1, 256], strides = [1, 1]} : vector<8x256xf32> to vector<1x256xf32>
    %30 = vector.shape_cast %29 : vector<1x256xf32> to vector<256xf32>
    %31 = vector.shape_cast %30 : vector<256xf32> to vector<1x256xf32>
    %32 = arith.mulf %28, %31 : vector<1x256xf32>
    %33 = vector.extract_strided_slice %4 {offsets = [0, 1], sizes = [1, 255], strides = [1, 1]} : vector<1x256xf32> to vector<1x255xf32>
    %34 = vector.extract_strided_slice %4 {offsets = [0, 0], sizes = [1, 1], strides = [1, 1]} : vector<1x256xf32> to vector<1x1xf32>
    %35 = tpu.concatenate %33, %34 in 1 : vector<1x255xf32>, vector<1x1xf32> -> vector<1x256xf32>
    %36 = vector.extract_strided_slice %0 {offsets = [4, 0], sizes = [1, 256], strides = [1, 1]} : vector<8x256xf32> to vector<1x256xf32>
    %37 = vector.shape_cast %36 : vector<1x256xf32> to vector<256xf32>
    %38 = vector.shape_cast %37 : vector<256xf32> to vector<1x256xf32>
    %39 = arith.mulf %35, %38 : vector<1x256xf32>
    %40 = vector.extract_strided_slice %4 {offsets = [0, 15], sizes = [1, 241], strides = [1, 1]} : vector<1x256xf32> to vector<1x241xf32>
    %41 = vector.extract_strided_slice %4 {offsets = [0, 0], sizes = [1, 15], strides = [1, 1]} : vector<1x256xf32> to vector<1x15xf32>
    %42 = tpu.concatenate %40, %41 in 1 : vector<1x241xf32>, vector<1x15xf32> -> vector<1x256xf32>
    %43 = vector.extract_strided_slice %0 {offsets = [5, 0], sizes = [1, 256], strides = [1, 1]} : vector<8x256xf32> to vector<1x256xf32>
    %44 = vector.shape_cast %43 : vector<1x256xf32> to vector<256xf32>
    %45 = vector.shape_cast %44 : vector<256xf32> to vector<1x256xf32>
    %46 = arith.mulf %42, %45 : vector<1x256xf32>
    %47 = vector.extract_strided_slice %4 {offsets = [0, 16], sizes = [1, 240], strides = [1, 1]} : vector<1x256xf32> to vector<1x240xf32>
    %48 = vector.extract_strided_slice %4 {offsets = [0, 0], sizes = [1, 16], strides = [1, 1]} : vector<1x256xf32> to vector<1x16xf32>
    %49 = tpu.concatenate %47, %48 in 1 : vector<1x240xf32>, vector<1x16xf32> -> vector<1x256xf32>
    %50 = vector.extract_strided_slice %0 {offsets = [6, 0], sizes = [1, 256], strides = [1, 1]} : vector<8x256xf32> to vector<1x256xf32>
    %51 = vector.shape_cast %50 : vector<1x256xf32> to vector<256xf32>
    %52 = vector.shape_cast %51 : vector<256xf32> to vector<1x256xf32>
    %53 = arith.mulf %49, %52 : vector<1x256xf32>
    %54 = vector.extract_strided_slice %4 {offsets = [0, 17], sizes = [1, 239], strides = [1, 1]} : vector<1x256xf32> to vector<1x239xf32>
    %55 = vector.extract_strided_slice %4 {offsets = [0, 0], sizes = [1, 17], strides = [1, 1]} : vector<1x256xf32> to vector<1x17xf32>
    %56 = tpu.concatenate %54, %55 in 1 : vector<1x239xf32>, vector<1x17xf32> -> vector<1x256xf32>
    %57 = vector.extract_strided_slice %0 {offsets = [7, 0], sizes = [1, 256], strides = [1, 1]} : vector<8x256xf32> to vector<1x256xf32>
    %58 = vector.shape_cast %57 : vector<1x256xf32> to vector<256xf32>
    %59 = vector.shape_cast %58 : vector<256xf32> to vector<1x256xf32>
    %60 = arith.mulf %56, %59 : vector<1x256xf32>
    %61 = tpu.concatenate %11, %18, %25, %32, %4, %39, %46, %53, %60 in 0 : vector<1x256xf32>, vector<1x256xf32>, vector<1x256xf32>, vector<1x256xf32>, vector<1x256xf32>, vector<1x256xf32>, vector<1x256xf32>, vector<1x256xf32>, vector<1x256xf32> -> vector<9x256xf32>
    %c0_8 = arith.constant 0 : index
    %c0_9 = arith.constant 0 : index
    %62 = vector.load %arg2[%c0_8, %c0_9] : memref<4x9xbf16, #tpu.memory_space<vmem>>, vector<4x9xbf16>
    %63 = arith.truncf %61 : vector<9x256xf32> to vector<9x256xbf16>
    %cst = arith.constant dense<0.000000e+00> : vector<4x256xf32>
    %64 = tpu.matmul %62, %63, %cst {dimension_numbers = #tpu.dot_dimension_numbers<[1], [0], [0], [1], [0, 0, 1, 1], [], []>} : vector<4x9xbf16>, vector<9x256xbf16>, vector<4x256xf32> -> vector<4x256xf32>
    %c0_10 = arith.constant 0 : index
    %c0_11 = arith.constant 0 : index
    %65 = vector.load %arg3[%c0_10, %c0_11] : memref<4x1xf32, #tpu.memory_space<vmem>>, vector<4x1xf32>
    %66 = vector.broadcast %65 : vector<4x1xf32> to vector<4x256xf32>
    %67 = arith.addf %64, %66 : vector<4x256xf32>
    %cst_12 = arith.constant 0.000000e+00 : f32
    %68 = vector.broadcast %cst_12 : f32 to vector<4x256xf32>
    %69 = arith.cmpf oge, %67, %68 : vector<4x256xf32>
    %cst_13 = arith.constant 2.000000e-01 : f32
    %70 = vector.broadcast %cst_13 : f32 to vector<4x256xf32>
    %71 = arith.mulf %70, %67 : vector<4x256xf32>
    %72 = arith.select %69, %67, %71 : vector<4x256xi1>, vector<4x256xf32>
    %73 = vector.extract_strided_slice %72 {offsets = [0, 239], sizes = [4, 17], strides = [1, 1]} : vector<4x256xf32> to vector<4x17xf32>
    %74 = vector.extract_strided_slice %72 {offsets = [0, 0], sizes = [4, 239], strides = [1, 1]} : vector<4x256xf32> to vector<4x239xf32>
    %75 = tpu.concatenate %73, %74 in 1 : vector<4x17xf32>, vector<4x239xf32> -> vector<4x256xf32>
    %76 = vector.extract_strided_slice %0 {offsets = [0, 0], sizes = [1, 256], strides = [1, 1]} : vector<8x256xf32> to vector<1x256xf32>
    %77 = vector.shape_cast %76 : vector<1x256xf32> to vector<256xf32>
    %78 = vector.shape_cast %77 : vector<256xf32> to vector<1x256xf32>
    %79 = vector.broadcast %78 : vector<1x256xf32> to vector<4x256xf32>
    %80 = arith.mulf %75, %79 : vector<4x256xf32>
    %81 = vector.extract_strided_slice %72 {offsets = [0, 240], sizes = [4, 16], strides = [1, 1]} : vector<4x256xf32> to vector<4x16xf32>
    %82 = vector.extract_strided_slice %72 {offsets = [0, 0], sizes = [4, 240], strides = [1, 1]} : vector<4x256xf32> to vector<4x240xf32>
    %83 = tpu.concatenate %81, %82 in 1 : vector<4x16xf32>, vector<4x240xf32> -> vector<4x256xf32>
    %84 = vector.extract_strided_slice %0 {offsets = [1, 0], sizes = [1, 256], strides = [1, 1]} : vector<8x256xf32> to vector<1x256xf32>
    %85 = vector.shape_cast %84 : vector<1x256xf32> to vector<256xf32>
    %86 = vector.shape_cast %85 : vector<256xf32> to vector<1x256xf32>
    %87 = vector.broadcast %86 : vector<1x256xf32> to vector<4x256xf32>
    %88 = arith.mulf %83, %87 : vector<4x256xf32>
    %89 = vector.extract_strided_slice %72 {offsets = [0, 241], sizes = [4, 15], strides = [1, 1]} : vector<4x256xf32> to vector<4x15xf32>
    %90 = vector.extract_strided_slice %72 {offsets = [0, 0], sizes = [4, 241], strides = [1, 1]} : vector<4x256xf32> to vector<4x241xf32>
    %91 = tpu.concatenate %89, %90 in 1 : vector<4x15xf32>, vector<4x241xf32> -> vector<4x256xf32>
    %92 = vector.extract_strided_slice %0 {offsets = [2, 0], sizes = [1, 256], strides = [1, 1]} : vector<8x256xf32> to vector<1x256xf32>
    %93 = vector.shape_cast %92 : vector<1x256xf32> to vector<256xf32>
    %94 = vector.shape_cast %93 : vector<256xf32> to vector<1x256xf32>
    %95 = vector.broadcast %94 : vector<1x256xf32> to vector<4x256xf32>
    %96 = arith.mulf %91, %95 : vector<4x256xf32>
    %97 = vector.extract_strided_slice %72 {offsets = [0, 255], sizes = [4, 1], strides = [1, 1]} : vector<4x256xf32> to vector<4x1xf32>
    %98 = vector.extract_strided_slice %72 {offsets = [0, 0], sizes = [4, 255], strides = [1, 1]} : vector<4x256xf32> to vector<4x255xf32>
    %99 = tpu.concatenate %97, %98 in 1 : vector<4x1xf32>, vector<4x255xf32> -> vector<4x256xf32>
    %100 = vector.extract_strided_slice %0 {offsets = [3, 0], sizes = [1, 256], strides = [1, 1]} : vector<8x256xf32> to vector<1x256xf32>
    %101 = vector.shape_cast %100 : vector<1x256xf32> to vector<256xf32>
    %102 = vector.shape_cast %101 : vector<256xf32> to vector<1x256xf32>
    %103 = vector.broadcast %102 : vector<1x256xf32> to vector<4x256xf32>
    %104 = arith.mulf %99, %103 : vector<4x256xf32>
    %105 = vector.extract_strided_slice %72 {offsets = [0, 1], sizes = [4, 255], strides = [1, 1]} : vector<4x256xf32> to vector<4x255xf32>
    %106 = vector.extract_strided_slice %72 {offsets = [0, 0], sizes = [4, 1], strides = [1, 1]} : vector<4x256xf32> to vector<4x1xf32>
    %107 = tpu.concatenate %105, %106 in 1 : vector<4x255xf32>, vector<4x1xf32> -> vector<4x256xf32>
    %108 = vector.extract_strided_slice %0 {offsets = [4, 0], sizes = [1, 256], strides = [1, 1]} : vector<8x256xf32> to vector<1x256xf32>
    %109 = vector.shape_cast %108 : vector<1x256xf32> to vector<256xf32>
    %110 = vector.shape_cast %109 : vector<256xf32> to vector<1x256xf32>
    %111 = vector.broadcast %110 : vector<1x256xf32> to vector<4x256xf32>
    %112 = arith.mulf %107, %111 : vector<4x256xf32>
    %113 = vector.extract_strided_slice %72 {offsets = [0, 15], sizes = [4, 241], strides = [1, 1]} : vector<4x256xf32> to vector<4x241xf32>
    %114 = vector.extract_strided_slice %72 {offsets = [0, 0], sizes = [4, 15], strides = [1, 1]} : vector<4x256xf32> to vector<4x15xf32>
    %115 = tpu.concatenate %113, %114 in 1 : vector<4x241xf32>, vector<4x15xf32> -> vector<4x256xf32>
    %116 = vector.extract_strided_slice %0 {offsets = [5, 0], sizes = [1, 256], strides = [1, 1]} : vector<8x256xf32> to vector<1x256xf32>
    %117 = vector.shape_cast %116 : vector<1x256xf32> to vector<256xf32>
    %118 = vector.shape_cast %117 : vector<256xf32> to vector<1x256xf32>
    %119 = vector.broadcast %118 : vector<1x256xf32> to vector<4x256xf32>
    %120 = arith.mulf %115, %119 : vector<4x256xf32>
    %121 = vector.extract_strided_slice %72 {offsets = [0, 16], sizes = [4, 240], strides = [1, 1]} : vector<4x256xf32> to vector<4x240xf32>
    %122 = vector.extract_strided_slice %72 {offsets = [0, 0], sizes = [4, 16], strides = [1, 1]} : vector<4x256xf32> to vector<4x16xf32>
    %123 = tpu.concatenate %121, %122 in 1 : vector<4x240xf32>, vector<4x16xf32> -> vector<4x256xf32>
    %124 = vector.extract_strided_slice %0 {offsets = [6, 0], sizes = [1, 256], strides = [1, 1]} : vector<8x256xf32> to vector<1x256xf32>
    %125 = vector.shape_cast %124 : vector<1x256xf32> to vector<256xf32>
    %126 = vector.shape_cast %125 : vector<256xf32> to vector<1x256xf32>
    %127 = vector.broadcast %126 : vector<1x256xf32> to vector<4x256xf32>
    %128 = arith.mulf %123, %127 : vector<4x256xf32>
    %129 = vector.extract_strided_slice %72 {offsets = [0, 17], sizes = [4, 239], strides = [1, 1]} : vector<4x256xf32> to vector<4x239xf32>
    %130 = vector.extract_strided_slice %72 {offsets = [0, 0], sizes = [4, 17], strides = [1, 1]} : vector<4x256xf32> to vector<4x17xf32>
    %131 = tpu.concatenate %129, %130 in 1 : vector<4x239xf32>, vector<4x17xf32> -> vector<4x256xf32>
    %132 = vector.extract_strided_slice %0 {offsets = [7, 0], sizes = [1, 256], strides = [1, 1]} : vector<8x256xf32> to vector<1x256xf32>
    %133 = vector.shape_cast %132 : vector<1x256xf32> to vector<256xf32>
    %134 = vector.shape_cast %133 : vector<256xf32> to vector<1x256xf32>
    %135 = vector.broadcast %134 : vector<1x256xf32> to vector<4x256xf32>
    %136 = arith.mulf %131, %135 : vector<4x256xf32>
    %137 = tpu.concatenate %80, %88, %96, %104, %72, %112, %120, %128, %136 in 0 : vector<4x256xf32>, vector<4x256xf32>, vector<4x256xf32>, vector<4x256xf32>, vector<4x256xf32>, vector<4x256xf32>, vector<4x256xf32>, vector<4x256xf32>, vector<4x256xf32> -> vector<36x256xf32>
    %c0_14 = arith.constant 0 : index
    %c0_15 = arith.constant 0 : index
    %138 = vector.load %arg4[%c0_14, %c0_15] : memref<8x36xbf16, #tpu.memory_space<vmem>>, vector<8x36xbf16>
    %139 = arith.truncf %137 : vector<36x256xf32> to vector<36x256xbf16>
    %cst_16 = arith.constant dense<0.000000e+00> : vector<8x256xf32>
    %140 = tpu.matmul %138, %139, %cst_16 {dimension_numbers = #tpu.dot_dimension_numbers<[1], [0], [0], [1], [0, 0, 1, 1], [], []>} : vector<8x36xbf16>, vector<36x256xbf16>, vector<8x256xf32> -> vector<8x256xf32>
    %c0_17 = arith.constant 0 : index
    %c0_18 = arith.constant 0 : index
    %141 = vector.load %arg5[%c0_17, %c0_18] : memref<8x1xf32, #tpu.memory_space<vmem>>, vector<8x1xf32>
    %142 = vector.broadcast %141 : vector<8x1xf32> to vector<8x256xf32>
    %143 = arith.addf %140, %142 : vector<8x256xf32>
    %cst_19 = arith.constant 0.000000e+00 : f32
    %144 = vector.broadcast %cst_19 : f32 to vector<8x256xf32>
    %145 = arith.cmpf oge, %143, %144 : vector<8x256xf32>
    %cst_20 = arith.constant 2.000000e-01 : f32
    %146 = vector.broadcast %cst_20 : f32 to vector<8x256xf32>
    %147 = arith.mulf %146, %143 : vector<8x256xf32>
    %148 = arith.select %145, %143, %147 : vector<8x256xi1>, vector<8x256xf32>
    %149 = vector.extract_strided_slice %148 {offsets = [0, 1], sizes = [8, 255], strides = [1, 1]} : vector<8x256xf32> to vector<8x255xf32>
    %150 = vector.extract_strided_slice %148 {offsets = [0, 0], sizes = [8, 1], strides = [1, 1]} : vector<8x256xf32> to vector<8x1xf32>
    %151 = tpu.concatenate %149, %150 in 1 : vector<8x255xf32>, vector<8x1xf32> -> vector<8x256xf32>
    %152 = vector.extract_strided_slice %0 {offsets = [4, 0], sizes = [1, 256], strides = [1, 1]} : vector<8x256xf32> to vector<1x256xf32>
    %153 = vector.shape_cast %152 : vector<1x256xf32> to vector<256xf32>
    %154 = vector.shape_cast %153 : vector<256xf32> to vector<1x256xf32>
    %155 = vector.broadcast %154 : vector<1x256xf32> to vector<8x256xf32>
    %156 = arith.mulf %151, %155 : vector<8x256xf32>
    %157 = arith.maximumf %148, %156 : vector<8x256xf32>
    %158 = vector.extract_strided_slice %148 {offsets = [0, 16], sizes = [8, 240], strides = [1, 1]} : vector<8x256xf32> to vector<8x240xf32>
    %159 = vector.extract_strided_slice %148 {offsets = [0, 0], sizes = [8, 16], strides = [1, 1]} : vector<8x256xf32> to vector<8x16xf32>
    %160 = tpu.concatenate %158, %159 in 1 : vector<8x240xf32>, vector<8x16xf32> -> vector<8x256xf32>
    %161 = vector.extract_strided_slice %0 {offsets = [6, 0], sizes = [1, 256], strides = [1, 1]} : vector<8x256xf32> to vector<1x256xf32>
    %162 = vector.shape_cast %161 : vector<1x256xf32> to vector<256xf32>
    %163 = vector.shape_cast %162 : vector<256xf32> to vector<1x256xf32>
    %164 = vector.broadcast %163 : vector<1x256xf32> to vector<8x256xf32>
    %165 = arith.mulf %160, %164 : vector<8x256xf32>
    %166 = arith.maximumf %157, %165 : vector<8x256xf32>
    %167 = vector.extract_strided_slice %148 {offsets = [0, 17], sizes = [8, 239], strides = [1, 1]} : vector<8x256xf32> to vector<8x239xf32>
    %168 = vector.extract_strided_slice %148 {offsets = [0, 0], sizes = [8, 17], strides = [1, 1]} : vector<8x256xf32> to vector<8x17xf32>
    %169 = tpu.concatenate %167, %168 in 1 : vector<8x239xf32>, vector<8x17xf32> -> vector<8x256xf32>
    %170 = vector.extract_strided_slice %0 {offsets = [7, 0], sizes = [1, 256], strides = [1, 1]} : vector<8x256xf32> to vector<1x256xf32>
    %171 = vector.shape_cast %170 : vector<1x256xf32> to vector<256xf32>
    %172 = vector.shape_cast %171 : vector<256xf32> to vector<1x256xf32>
    %173 = vector.broadcast %172 : vector<1x256xf32> to vector<8x256xf32>
    %174 = arith.mulf %169, %173 : vector<8x256xf32>
    %175 = arith.maximumf %166, %174 : vector<8x256xf32>
    %176 = arith.truncf %175 : vector<8x256xf32> to vector<8x256xbf16>
    %c0_21 = arith.constant 0 : index
    %c0_22 = arith.constant 0 : index
    %177 = vector.load %arg39[%c0_21, %c0_22] : memref<256x64xbf16, #tpu.memory_space<vmem>>, vector<256x64xbf16>
    %cst_23 = arith.constant dense<0.000000e+00> : vector<8x64xf32>
    %178 = tpu.matmul %176, %177, %cst_23 {dimension_numbers = #tpu.dot_dimension_numbers<[1], [0], [0], [1], [0, 0, 1, 1], [], []>} : vector<8x256xbf16>, vector<256x64xbf16>, vector<8x64xf32> -> vector<8x64xf32>
    %179 = vector.extract_strided_slice %178 {offsets = [0, 55], sizes = [8, 9], strides = [1, 1]} : vector<8x64xf32> to vector<8x9xf32>
    %180 = vector.extract_strided_slice %178 {offsets = [0, 0], sizes = [8, 55], strides = [1, 1]} : vector<8x64xf32> to vector<8x55xf32>
    %181 = tpu.concatenate %179, %180 in 1 : vector<8x9xf32>, vector<8x55xf32> -> vector<8x64xf32>
    %182 = vector.extract_strided_slice %1 {offsets = [0, 0], sizes = [1, 64], strides = [1, 1]} : vector<8x64xf32> to vector<1x64xf32>
    %183 = vector.shape_cast %182 : vector<1x64xf32> to vector<64xf32>
    %184 = vector.shape_cast %183 : vector<64xf32> to vector<1x64xf32>
    %185 = vector.broadcast %184 : vector<1x64xf32> to vector<8x64xf32>
    %186 = arith.mulf %181, %185 : vector<8x64xf32>
    %187 = vector.extract_strided_slice %178 {offsets = [0, 56], sizes = [8, 8], strides = [1, 1]} : vector<8x64xf32> to vector<8x8xf32>
    %188 = vector.extract_strided_slice %178 {offsets = [0, 0], sizes = [8, 56], strides = [1, 1]} : vector<8x64xf32> to vector<8x56xf32>
    %189 = tpu.concatenate %187, %188 in 1 : vector<8x8xf32>, vector<8x56xf32> -> vector<8x64xf32>
    %190 = vector.extract_strided_slice %1 {offsets = [1, 0], sizes = [1, 64], strides = [1, 1]} : vector<8x64xf32> to vector<1x64xf32>
    %191 = vector.shape_cast %190 : vector<1x64xf32> to vector<64xf32>
    %192 = vector.shape_cast %191 : vector<64xf32> to vector<1x64xf32>
    %193 = vector.broadcast %192 : vector<1x64xf32> to vector<8x64xf32>
    %194 = arith.mulf %189, %193 : vector<8x64xf32>
    %195 = vector.extract_strided_slice %178 {offsets = [0, 57], sizes = [8, 7], strides = [1, 1]} : vector<8x64xf32> to vector<8x7xf32>
    %196 = vector.extract_strided_slice %178 {offsets = [0, 0], sizes = [8, 57], strides = [1, 1]} : vector<8x64xf32> to vector<8x57xf32>
    %197 = tpu.concatenate %195, %196 in 1 : vector<8x7xf32>, vector<8x57xf32> -> vector<8x64xf32>
    %198 = vector.extract_strided_slice %1 {offsets = [2, 0], sizes = [1, 64], strides = [1, 1]} : vector<8x64xf32> to vector<1x64xf32>
    %199 = vector.shape_cast %198 : vector<1x64xf32> to vector<64xf32>
    %200 = vector.shape_cast %199 : vector<64xf32> to vector<1x64xf32>
    %201 = vector.broadcast %200 : vector<1x64xf32> to vector<8x64xf32>
    %202 = arith.mulf %197, %201 : vector<8x64xf32>
    %203 = vector.extract_strided_slice %178 {offsets = [0, 63], sizes = [8, 1], strides = [1, 1]} : vector<8x64xf32> to vector<8x1xf32>
    %204 = vector.extract_strided_slice %178 {offsets = [0, 0], sizes = [8, 63], strides = [1, 1]} : vector<8x64xf32> to vector<8x63xf32>
    %205 = tpu.concatenate %203, %204 in 1 : vector<8x1xf32>, vector<8x63xf32> -> vector<8x64xf32>
    %206 = vector.extract_strided_slice %1 {offsets = [3, 0], sizes = [1, 64], strides = [1, 1]} : vector<8x64xf32> to vector<1x64xf32>
    %207 = vector.shape_cast %206 : vector<1x64xf32> to vector<64xf32>
    %208 = vector.shape_cast %207 : vector<64xf32> to vector<1x64xf32>
    %209 = vector.broadcast %208 : vector<1x64xf32> to vector<8x64xf32>
    %210 = arith.mulf %205, %209 : vector<8x64xf32>
    %211 = vector.extract_strided_slice %178 {offsets = [0, 1], sizes = [8, 63], strides = [1, 1]} : vector<8x64xf32> to vector<8x63xf32>
    %212 = vector.extract_strided_slice %178 {offsets = [0, 0], sizes = [8, 1], strides = [1, 1]} : vector<8x64xf32> to vector<8x1xf32>
    %213 = tpu.concatenate %211, %212 in 1 : vector<8x63xf32>, vector<8x1xf32> -> vector<8x64xf32>
    %214 = vector.extract_strided_slice %1 {offsets = [4, 0], sizes = [1, 64], strides = [1, 1]} : vector<8x64xf32> to vector<1x64xf32>
    %215 = vector.shape_cast %214 : vector<1x64xf32> to vector<64xf32>
    %216 = vector.shape_cast %215 : vector<64xf32> to vector<1x64xf32>
    %217 = vector.broadcast %216 : vector<1x64xf32> to vector<8x64xf32>
    %218 = arith.mulf %213, %217 : vector<8x64xf32>
    %219 = vector.extract_strided_slice %178 {offsets = [0, 7], sizes = [8, 57], strides = [1, 1]} : vector<8x64xf32> to vector<8x57xf32>
    %220 = vector.extract_strided_slice %178 {offsets = [0, 0], sizes = [8, 7], strides = [1, 1]} : vector<8x64xf32> to vector<8x7xf32>
    %221 = tpu.concatenate %219, %220 in 1 : vector<8x57xf32>, vector<8x7xf32> -> vector<8x64xf32>
    %222 = vector.extract_strided_slice %1 {offsets = [5, 0], sizes = [1, 64], strides = [1, 1]} : vector<8x64xf32> to vector<1x64xf32>
    %223 = vector.shape_cast %222 : vector<1x64xf32> to vector<64xf32>
    %224 = vector.shape_cast %223 : vector<64xf32> to vector<1x64xf32>
    %225 = vector.broadcast %224 : vector<1x64xf32> to vector<8x64xf32>
    %226 = arith.mulf %221, %225 : vector<8x64xf32>
    %227 = vector.extract_strided_slice %178 {offsets = [0, 8], sizes = [8, 56], strides = [1, 1]} : vector<8x64xf32> to vector<8x56xf32>
    %228 = vector.extract_strided_slice %178 {offsets = [0, 0], sizes = [8, 8], strides = [1, 1]} : vector<8x64xf32> to vector<8x8xf32>
    %229 = tpu.concatenate %227, %228 in 1 : vector<8x56xf32>, vector<8x8xf32> -> vector<8x64xf32>
    %230 = vector.extract_strided_slice %1 {offsets = [6, 0], sizes = [1, 64], strides = [1, 1]} : vector<8x64xf32> to vector<1x64xf32>
    %231 = vector.shape_cast %230 : vector<1x64xf32> to vector<64xf32>
    %232 = vector.shape_cast %231 : vector<64xf32> to vector<1x64xf32>
    %233 = vector.broadcast %232 : vector<1x64xf32> to vector<8x64xf32>
    %234 = arith.mulf %229, %233 : vector<8x64xf32>
    %235 = vector.extract_strided_slice %178 {offsets = [0, 9], sizes = [8, 55], strides = [1, 1]} : vector<8x64xf32> to vector<8x55xf32>
    %236 = vector.extract_strided_slice %178 {offsets = [0, 0], sizes = [8, 9], strides = [1, 1]} : vector<8x64xf32> to vector<8x9xf32>
    %237 = tpu.concatenate %235, %236 in 1 : vector<8x55xf32>, vector<8x9xf32> -> vector<8x64xf32>
    %238 = vector.extract_strided_slice %1 {offsets = [7, 0], sizes = [1, 64], strides = [1, 1]} : vector<8x64xf32> to vector<1x64xf32>
    %239 = vector.shape_cast %238 : vector<1x64xf32> to vector<64xf32>
    %240 = vector.shape_cast %239 : vector<64xf32> to vector<1x64xf32>
    %241 = vector.broadcast %240 : vector<1x64xf32> to vector<8x64xf32>
    %242 = arith.mulf %237, %241 : vector<8x64xf32>
    %243 = tpu.concatenate %186, %194, %202, %210, %178, %218, %226, %234, %242 in 0 : vector<8x64xf32>, vector<8x64xf32>, vector<8x64xf32>, vector<8x64xf32>, vector<8x64xf32>, vector<8x64xf32>, vector<8x64xf32>, vector<8x64xf32>, vector<8x64xf32> -> vector<72x64xf32>
    %c0_24 = arith.constant 0 : index
    %c0_25 = arith.constant 0 : index
    %244 = vector.load %arg6[%c0_24, %c0_25] : memref<8x72xbf16, #tpu.memory_space<vmem>>, vector<8x72xbf16>
    %245 = arith.truncf %243 : vector<72x64xf32> to vector<72x64xbf16>
    %cst_26 = arith.constant dense<0.000000e+00> : vector<8x64xf32>
    %246 = tpu.matmul %244, %245, %cst_26 {dimension_numbers = #tpu.dot_dimension_numbers<[1], [0], [0], [1], [0, 0, 1, 1], [], []>} : vector<8x72xbf16>, vector<72x64xbf16>, vector<8x64xf32> -> vector<8x64xf32>
    %c0_27 = arith.constant 0 : index
    %c0_28 = arith.constant 0 : index
    %247 = vector.load %arg7[%c0_27, %c0_28] : memref<8x1xf32, #tpu.memory_space<vmem>>, vector<8x1xf32>
    %248 = vector.broadcast %247 : vector<8x1xf32> to vector<8x64xf32>
    %249 = arith.addf %246, %248 : vector<8x64xf32>
    %cst_29 = arith.constant 0.000000e+00 : f32
    %250 = vector.broadcast %cst_29 : f32 to vector<8x64xf32>
    %251 = arith.cmpf oge, %249, %250 : vector<8x64xf32>
    %cst_30 = arith.constant 2.000000e-01 : f32
    %252 = vector.broadcast %cst_30 : f32 to vector<8x64xf32>
    %253 = arith.mulf %252, %249 : vector<8x64xf32>
    %254 = arith.select %251, %249, %253 : vector<8x64xi1>, vector<8x64xf32>
    %255 = vector.extract_strided_slice %254 {offsets = [0, 55], sizes = [8, 9], strides = [1, 1]} : vector<8x64xf32> to vector<8x9xf32>
    %256 = vector.extract_strided_slice %254 {offsets = [0, 0], sizes = [8, 55], strides = [1, 1]} : vector<8x64xf32> to vector<8x55xf32>
    %257 = tpu.concatenate %255, %256 in 1 : vector<8x9xf32>, vector<8x55xf32> -> vector<8x64xf32>
    %258 = vector.extract_strided_slice %1 {offsets = [0, 0], sizes = [1, 64], strides = [1, 1]} : vector<8x64xf32> to vector<1x64xf32>
    %259 = vector.shape_cast %258 : vector<1x64xf32> to vector<64xf32>
    %260 = vector.shape_cast %259 : vector<64xf32> to vector<1x64xf32>
    %261 = vector.broadcast %260 : vector<1x64xf32> to vector<8x64xf32>
    %262 = arith.mulf %257, %261 : vector<8x64xf32>
    %263 = vector.extract_strided_slice %254 {offsets = [0, 56], sizes = [8, 8], strides = [1, 1]} : vector<8x64xf32> to vector<8x8xf32>
    %264 = vector.extract_strided_slice %254 {offsets = [0, 0], sizes = [8, 56], strides = [1, 1]} : vector<8x64xf32> to vector<8x56xf32>
    %265 = tpu.concatenate %263, %264 in 1 : vector<8x8xf32>, vector<8x56xf32> -> vector<8x64xf32>
    %266 = vector.extract_strided_slice %1 {offsets = [1, 0], sizes = [1, 64], strides = [1, 1]} : vector<8x64xf32> to vector<1x64xf32>
    %267 = vector.shape_cast %266 : vector<1x64xf32> to vector<64xf32>
    %268 = vector.shape_cast %267 : vector<64xf32> to vector<1x64xf32>
    %269 = vector.broadcast %268 : vector<1x64xf32> to vector<8x64xf32>
    %270 = arith.mulf %265, %269 : vector<8x64xf32>
    %271 = vector.extract_strided_slice %254 {offsets = [0, 57], sizes = [8, 7], strides = [1, 1]} : vector<8x64xf32> to vector<8x7xf32>
    %272 = vector.extract_strided_slice %254 {offsets = [0, 0], sizes = [8, 57], strides = [1, 1]} : vector<8x64xf32> to vector<8x57xf32>
    %273 = tpu.concatenate %271, %272 in 1 : vector<8x7xf32>, vector<8x57xf32> -> vector<8x64xf32>
    %274 = vector.extract_strided_slice %1 {offsets = [2, 0], sizes = [1, 64], strides = [1, 1]} : vector<8x64xf32> to vector<1x64xf32>
    %275 = vector.shape_cast %274 : vector<1x64xf32> to vector<64xf32>
    %276 = vector.shape_cast %275 : vector<64xf32> to vector<1x64xf32>
    %277 = vector.broadcast %276 : vector<1x64xf32> to vector<8x64xf32>
    %278 = arith.mulf %273, %277 : vector<8x64xf32>
    %279 = vector.extract_strided_slice %254 {offsets = [0, 63], sizes = [8, 1], strides = [1, 1]} : vector<8x64xf32> to vector<8x1xf32>
    %280 = vector.extract_strided_slice %254 {offsets = [0, 0], sizes = [8, 63], strides = [1, 1]} : vector<8x64xf32> to vector<8x63xf32>
    %281 = tpu.concatenate %279, %280 in 1 : vector<8x1xf32>, vector<8x63xf32> -> vector<8x64xf32>
    %282 = vector.extract_strided_slice %1 {offsets = [3, 0], sizes = [1, 64], strides = [1, 1]} : vector<8x64xf32> to vector<1x64xf32>
    %283 = vector.shape_cast %282 : vector<1x64xf32> to vector<64xf32>
    %284 = vector.shape_cast %283 : vector<64xf32> to vector<1x64xf32>
    %285 = vector.broadcast %284 : vector<1x64xf32> to vector<8x64xf32>
    %286 = arith.mulf %281, %285 : vector<8x64xf32>
    %287 = vector.extract_strided_slice %254 {offsets = [0, 1], sizes = [8, 63], strides = [1, 1]} : vector<8x64xf32> to vector<8x63xf32>
    %288 = vector.extract_strided_slice %254 {offsets = [0, 0], sizes = [8, 1], strides = [1, 1]} : vector<8x64xf32> to vector<8x1xf32>
    %289 = tpu.concatenate %287, %288 in 1 : vector<8x63xf32>, vector<8x1xf32> -> vector<8x64xf32>
    %290 = vector.extract_strided_slice %1 {offsets = [4, 0], sizes = [1, 64], strides = [1, 1]} : vector<8x64xf32> to vector<1x64xf32>
    %291 = vector.shape_cast %290 : vector<1x64xf32> to vector<64xf32>
    %292 = vector.shape_cast %291 : vector<64xf32> to vector<1x64xf32>
    %293 = vector.broadcast %292 : vector<1x64xf32> to vector<8x64xf32>
    %294 = arith.mulf %289, %293 : vector<8x64xf32>
    %295 = vector.extract_strided_slice %254 {offsets = [0, 7], sizes = [8, 57], strides = [1, 1]} : vector<8x64xf32> to vector<8x57xf32>
    %296 = vector.extract_strided_slice %254 {offsets = [0, 0], sizes = [8, 7], strides = [1, 1]} : vector<8x64xf32> to vector<8x7xf32>
    %297 = tpu.concatenate %295, %296 in 1 : vector<8x57xf32>, vector<8x7xf32> -> vector<8x64xf32>
    %298 = vector.extract_strided_slice %1 {offsets = [5, 0], sizes = [1, 64], strides = [1, 1]} : vector<8x64xf32> to vector<1x64xf32>
    %299 = vector.shape_cast %298 : vector<1x64xf32> to vector<64xf32>
    %300 = vector.shape_cast %299 : vector<64xf32> to vector<1x64xf32>
    %301 = vector.broadcast %300 : vector<1x64xf32> to vector<8x64xf32>
    %302 = arith.mulf %297, %301 : vector<8x64xf32>
    %303 = vector.extract_strided_slice %254 {offsets = [0, 8], sizes = [8, 56], strides = [1, 1]} : vector<8x64xf32> to vector<8x56xf32>
    %304 = vector.extract_strided_slice %254 {offsets = [0, 0], sizes = [8, 8], strides = [1, 1]} : vector<8x64xf32> to vector<8x8xf32>
    %305 = tpu.concatenate %303, %304 in 1 : vector<8x56xf32>, vector<8x8xf32> -> vector<8x64xf32>
    %306 = vector.extract_strided_slice %1 {offsets = [6, 0], sizes = [1, 64], strides = [1, 1]} : vector<8x64xf32> to vector<1x64xf32>
    %307 = vector.shape_cast %306 : vector<1x64xf32> to vector<64xf32>
    %308 = vector.shape_cast %307 : vector<64xf32> to vector<1x64xf32>
    %309 = vector.broadcast %308 : vector<1x64xf32> to vector<8x64xf32>
    %310 = arith.mulf %305, %309 : vector<8x64xf32>
    %311 = vector.extract_strided_slice %254 {offsets = [0, 9], sizes = [8, 55], strides = [1, 1]} : vector<8x64xf32> to vector<8x55xf32>
    %312 = vector.extract_strided_slice %254 {offsets = [0, 0], sizes = [8, 9], strides = [1, 1]} : vector<8x64xf32> to vector<8x9xf32>
    %313 = tpu.concatenate %311, %312 in 1 : vector<8x55xf32>, vector<8x9xf32> -> vector<8x64xf32>
    %314 = vector.extract_strided_slice %1 {offsets = [7, 0], sizes = [1, 64], strides = [1, 1]} : vector<8x64xf32> to vector<1x64xf32>
    %315 = vector.shape_cast %314 : vector<1x64xf32> to vector<64xf32>
    %316 = vector.shape_cast %315 : vector<64xf32> to vector<1x64xf32>
    %317 = vector.broadcast %316 : vector<1x64xf32> to vector<8x64xf32>
    %318 = arith.mulf %313, %317 : vector<8x64xf32>
    %319 = tpu.concatenate %262, %270, %278, %286, %254, %294, %302, %310, %318 in 0 : vector<8x64xf32>, vector<8x64xf32>, vector<8x64xf32>, vector<8x64xf32>, vector<8x64xf32>, vector<8x64xf32>, vector<8x64xf32>, vector<8x64xf32>, vector<8x64xf32> -> vector<72x64xf32>
    %c0_31 = arith.constant 0 : index
    %c0_32 = arith.constant 0 : index
    %320 = vector.load %arg8[%c0_31, %c0_32] : memref<16x72xbf16, #tpu.memory_space<vmem>>, vector<16x72xbf16>
    %321 = arith.truncf %319 : vector<72x64xf32> to vector<72x64xbf16>
    %cst_33 = arith.constant dense<0.000000e+00> : vector<16x64xf32>
    %322 = tpu.matmul %320, %321, %cst_33 {dimension_numbers = #tpu.dot_dimension_numbers<[1], [0], [0], [1], [0, 0, 1, 1], [], []>} : vector<16x72xbf16>, vector<72x64xbf16>, vector<16x64xf32> -> vector<16x64xf32>
    %c0_34 = arith.constant 0 : index
    %c0_35 = arith.constant 0 : index
    %323 = vector.load %arg9[%c0_34, %c0_35] : memref<16x1xf32, #tpu.memory_space<vmem>>, vector<16x1xf32>
    %324 = vector.broadcast %323 : vector<16x1xf32> to vector<16x64xf32>
    %325 = arith.addf %322, %324 : vector<16x64xf32>
    %cst_36 = arith.constant 0.000000e+00 : f32
    %326 = vector.broadcast %cst_36 : f32 to vector<16x64xf32>
    %327 = arith.cmpf oge, %325, %326 : vector<16x64xf32>
    %cst_37 = arith.constant 2.000000e-01 : f32
    %328 = vector.broadcast %cst_37 : f32 to vector<16x64xf32>
    %329 = arith.mulf %328, %325 : vector<16x64xf32>
    %330 = arith.select %327, %325, %329 : vector<16x64xi1>, vector<16x64xf32>
    %331 = vector.extract_strided_slice %330 {offsets = [0, 1], sizes = [16, 63], strides = [1, 1]} : vector<16x64xf32> to vector<16x63xf32>
    %332 = vector.extract_strided_slice %330 {offsets = [0, 0], sizes = [16, 1], strides = [1, 1]} : vector<16x64xf32> to vector<16x1xf32>
    %333 = tpu.concatenate %331, %332 in 1 : vector<16x63xf32>, vector<16x1xf32> -> vector<16x64xf32>
    %334 = vector.extract_strided_slice %1 {offsets = [4, 0], sizes = [1, 64], strides = [1, 1]} : vector<8x64xf32> to vector<1x64xf32>
    %335 = vector.shape_cast %334 : vector<1x64xf32> to vector<64xf32>
    %336 = vector.shape_cast %335 : vector<64xf32> to vector<1x64xf32>
    %337 = vector.broadcast %336 : vector<1x64xf32> to vector<16x64xf32>
    %338 = arith.mulf %333, %337 : vector<16x64xf32>
    %339 = arith.maximumf %330, %338 : vector<16x64xf32>
    %340 = vector.extract_strided_slice %330 {offsets = [0, 8], sizes = [16, 56], strides = [1, 1]} : vector<16x64xf32> to vector<16x56xf32>
    %341 = vector.extract_strided_slice %330 {offsets = [0, 0], sizes = [16, 8], strides = [1, 1]} : vector<16x64xf32> to vector<16x8xf32>
    %342 = tpu.concatenate %340, %341 in 1 : vector<16x56xf32>, vector<16x8xf32> -> vector<16x64xf32>
    %343 = vector.extract_strided_slice %1 {offsets = [6, 0], sizes = [1, 64], strides = [1, 1]} : vector<8x64xf32> to vector<1x64xf32>
    %344 = vector.shape_cast %343 : vector<1x64xf32> to vector<64xf32>
    %345 = vector.shape_cast %344 : vector<64xf32> to vector<1x64xf32>
    %346 = vector.broadcast %345 : vector<1x64xf32> to vector<16x64xf32>
    %347 = arith.mulf %342, %346 : vector<16x64xf32>
    %348 = arith.maximumf %339, %347 : vector<16x64xf32>
    %349 = vector.extract_strided_slice %330 {offsets = [0, 9], sizes = [16, 55], strides = [1, 1]} : vector<16x64xf32> to vector<16x55xf32>
    %350 = vector.extract_strided_slice %330 {offsets = [0, 0], sizes = [16, 9], strides = [1, 1]} : vector<16x64xf32> to vector<16x9xf32>
    %351 = tpu.concatenate %349, %350 in 1 : vector<16x55xf32>, vector<16x9xf32> -> vector<16x64xf32>
    %352 = vector.extract_strided_slice %1 {offsets = [7, 0], sizes = [1, 64], strides = [1, 1]} : vector<8x64xf32> to vector<1x64xf32>
    %353 = vector.shape_cast %352 : vector<1x64xf32> to vector<64xf32>
    %354 = vector.shape_cast %353 : vector<64xf32> to vector<1x64xf32>
    %355 = vector.broadcast %354 : vector<1x64xf32> to vector<16x64xf32>
    %356 = arith.mulf %351, %355 : vector<16x64xf32>
    %357 = arith.maximumf %348, %356 : vector<16x64xf32>
    %358 = arith.truncf %357 : vector<16x64xf32> to vector<16x64xbf16>
    %c0_38 = arith.constant 0 : index
    %c0_39 = arith.constant 0 : index
    %359 = vector.load %arg40[%c0_38, %c0_39] : memref<64x16xbf16, #tpu.memory_space<vmem>>, vector<64x16xbf16>
    %cst_40 = arith.constant dense<0.000000e+00> : vector<16x16xf32>
    %360 = tpu.matmul %358, %359, %cst_40 {dimension_numbers = #tpu.dot_dimension_numbers<[1], [0], [0], [1], [0, 0, 1, 1], [], []>} : vector<16x64xbf16>, vector<64x16xbf16>, vector<16x16xf32> -> vector<16x16xf32>
    %361 = vector.extract_strided_slice %360 {offsets = [0, 11], sizes = [16, 5], strides = [1, 1]} : vector<16x16xf32> to vector<16x5xf32>
    %362 = vector.extract_strided_slice %360 {offsets = [0, 0], sizes = [16, 11], strides = [1, 1]} : vector<16x16xf32> to vector<16x11xf32>
    %363 = tpu.concatenate %361, %362 in 1 : vector<16x5xf32>, vector<16x11xf32> -> vector<16x16xf32>
    %364 = vector.extract_strided_slice %2 {offsets = [0, 0], sizes = [1, 16], strides = [1, 1]} : vector<8x16xf32> to vector<1x16xf32>
    %365 = vector.shape_cast %364 : vector<1x16xf32> to vector<16xf32>
    %366 = vector.shape_cast %365 : vector<16xf32> to vector<1x16xf32>
    %367 = vector.broadcast %366 : vector<1x16xf32> to vector<16x16xf32>
    %368 = arith.mulf %363, %367 : vector<16x16xf32>
    %369 = vector.extract_strided_slice %360 {offsets = [0, 12], sizes = [16, 4], strides = [1, 1]} : vector<16x16xf32> to vector<16x4xf32>
    %370 = vector.extract_strided_slice %360 {offsets = [0, 0], sizes = [16, 12], strides = [1, 1]} : vector<16x16xf32> to vector<16x12xf32>
    %371 = tpu.concatenate %369, %370 in 1 : vector<16x4xf32>, vector<16x12xf32> -> vector<16x16xf32>
    %372 = vector.extract_strided_slice %2 {offsets = [1, 0], sizes = [1, 16], strides = [1, 1]} : vector<8x16xf32> to vector<1x16xf32>
    %373 = vector.shape_cast %372 : vector<1x16xf32> to vector<16xf32>
    %374 = vector.shape_cast %373 : vector<16xf32> to vector<1x16xf32>
    %375 = vector.broadcast %374 : vector<1x16xf32> to vector<16x16xf32>
    %376 = arith.mulf %371, %375 : vector<16x16xf32>
    %377 = vector.extract_strided_slice %360 {offsets = [0, 13], sizes = [16, 3], strides = [1, 1]} : vector<16x16xf32> to vector<16x3xf32>
    %378 = vector.extract_strided_slice %360 {offsets = [0, 0], sizes = [16, 13], strides = [1, 1]} : vector<16x16xf32> to vector<16x13xf32>
    %379 = tpu.concatenate %377, %378 in 1 : vector<16x3xf32>, vector<16x13xf32> -> vector<16x16xf32>
    %380 = vector.extract_strided_slice %2 {offsets = [2, 0], sizes = [1, 16], strides = [1, 1]} : vector<8x16xf32> to vector<1x16xf32>
    %381 = vector.shape_cast %380 : vector<1x16xf32> to vector<16xf32>
    %382 = vector.shape_cast %381 : vector<16xf32> to vector<1x16xf32>
    %383 = vector.broadcast %382 : vector<1x16xf32> to vector<16x16xf32>
    %384 = arith.mulf %379, %383 : vector<16x16xf32>
    %385 = vector.extract_strided_slice %360 {offsets = [0, 15], sizes = [16, 1], strides = [1, 1]} : vector<16x16xf32> to vector<16x1xf32>
    %386 = vector.extract_strided_slice %360 {offsets = [0, 0], sizes = [16, 15], strides = [1, 1]} : vector<16x16xf32> to vector<16x15xf32>
    %387 = tpu.concatenate %385, %386 in 1 : vector<16x1xf32>, vector<16x15xf32> -> vector<16x16xf32>
    %388 = vector.extract_strided_slice %2 {offsets = [3, 0], sizes = [1, 16], strides = [1, 1]} : vector<8x16xf32> to vector<1x16xf32>
    %389 = vector.shape_cast %388 : vector<1x16xf32> to vector<16xf32>
    %390 = vector.shape_cast %389 : vector<16xf32> to vector<1x16xf32>
    %391 = vector.broadcast %390 : vector<1x16xf32> to vector<16x16xf32>
    %392 = arith.mulf %387, %391 : vector<16x16xf32>
    %393 = vector.extract_strided_slice %360 {offsets = [0, 1], sizes = [16, 15], strides = [1, 1]} : vector<16x16xf32> to vector<16x15xf32>
    %394 = vector.extract_strided_slice %360 {offsets = [0, 0], sizes = [16, 1], strides = [1, 1]} : vector<16x16xf32> to vector<16x1xf32>
    %395 = tpu.concatenate %393, %394 in 1 : vector<16x15xf32>, vector<16x1xf32> -> vector<16x16xf32>
    %396 = vector.extract_strided_slice %2 {offsets = [4, 0], sizes = [1, 16], strides = [1, 1]} : vector<8x16xf32> to vector<1x16xf32>
    %397 = vector.shape_cast %396 : vector<1x16xf32> to vector<16xf32>
    %398 = vector.shape_cast %397 : vector<16xf32> to vector<1x16xf32>
    %399 = vector.broadcast %398 : vector<1x16xf32> to vector<16x16xf32>
    %400 = arith.mulf %395, %399 : vector<16x16xf32>
    %401 = vector.extract_strided_slice %360 {offsets = [0, 3], sizes = [16, 13], strides = [1, 1]} : vector<16x16xf32> to vector<16x13xf32>
    %402 = vector.extract_strided_slice %360 {offsets = [0, 0], sizes = [16, 3], strides = [1, 1]} : vector<16x16xf32> to vector<16x3xf32>
    %403 = tpu.concatenate %401, %402 in 1 : vector<16x13xf32>, vector<16x3xf32> -> vector<16x16xf32>
    %404 = vector.extract_strided_slice %2 {offsets = [5, 0], sizes = [1, 16], strides = [1, 1]} : vector<8x16xf32> to vector<1x16xf32>
    %405 = vector.shape_cast %404 : vector<1x16xf32> to vector<16xf32>
    %406 = vector.shape_cast %405 : vector<16xf32> to vector<1x16xf32>
    %407 = vector.broadcast %406 : vector<1x16xf32> to vector<16x16xf32>
    %408 = arith.mulf %403, %407 : vector<16x16xf32>
    %409 = vector.extract_strided_slice %360 {offsets = [0, 4], sizes = [16, 12], strides = [1, 1]} : vector<16x16xf32> to vector<16x12xf32>
    %410 = vector.extract_strided_slice %360 {offsets = [0, 0], sizes = [16, 4], strides = [1, 1]} : vector<16x16xf32> to vector<16x4xf32>
    %411 = tpu.concatenate %409, %410 in 1 : vector<16x12xf32>, vector<16x4xf32> -> vector<16x16xf32>
    %412 = vector.extract_strided_slice %2 {offsets = [6, 0], sizes = [1, 16], strides = [1, 1]} : vector<8x16xf32> to vector<1x16xf32>
    %413 = vector.shape_cast %412 : vector<1x16xf32> to vector<16xf32>
    %414 = vector.shape_cast %413 : vector<16xf32> to vector<1x16xf32>
    %415 = vector.broadcast %414 : vector<1x16xf32> to vector<16x16xf32>
    %416 = arith.mulf %411, %415 : vector<16x16xf32>
    %417 = vector.extract_strided_slice %360 {offsets = [0, 5], sizes = [16, 11], strides = [1, 1]} : vector<16x16xf32> to vector<16x11xf32>
    %418 = vector.extract_strided_slice %360 {offsets = [0, 0], sizes = [16, 5], strides = [1, 1]} : vector<16x16xf32> to vector<16x5xf32>
    %419 = tpu.concatenate %417, %418 in 1 : vector<16x11xf32>, vector<16x5xf32> -> vector<16x16xf32>
    %420 = vector.extract_strided_slice %2 {offsets = [7, 0], sizes = [1, 16], strides = [1, 1]} : vector<8x16xf32> to vector<1x16xf32>
    %421 = vector.shape_cast %420 : vector<1x16xf32> to vector<16xf32>
    %422 = vector.shape_cast %421 : vector<16xf32> to vector<1x16xf32>
    %423 = vector.broadcast %422 : vector<1x16xf32> to vector<16x16xf32>
    %424 = arith.mulf %419, %423 : vector<16x16xf32>
    %425 = tpu.concatenate %368, %376, %384, %392, %360, %400, %408, %416, %424 in 0 : vector<16x16xf32>, vector<16x16xf32>, vector<16x16xf32>, vector<16x16xf32>, vector<16x16xf32>, vector<16x16xf32>, vector<16x16xf32>, vector<16x16xf32>, vector<16x16xf32> -> vector<144x16xf32>
    %c0_41 = arith.constant 0 : index
    %c0_42 = arith.constant 0 : index
    %426 = vector.load %arg10[%c0_41, %c0_42] : memref<16x144xbf16, #tpu.memory_space<vmem>>, vector<16x144xbf16>
    %427 = arith.truncf %425 : vector<144x16xf32> to vector<144x16xbf16>
    %cst_43 = arith.constant dense<0.000000e+00> : vector<16x16xf32>
    %428 = tpu.matmul %426, %427, %cst_43 {dimension_numbers = #tpu.dot_dimension_numbers<[1], [0], [0], [1], [0, 0, 1, 1], [], []>} : vector<16x144xbf16>, vector<144x16xbf16>, vector<16x16xf32> -> vector<16x16xf32>
    %c0_44 = arith.constant 0 : index
    %c0_45 = arith.constant 0 : index
    %429 = vector.load %arg11[%c0_44, %c0_45] : memref<16x1xf32, #tpu.memory_space<vmem>>, vector<16x1xf32>
    %430 = vector.broadcast %429 : vector<16x1xf32> to vector<16x16xf32>
    %431 = arith.addf %428, %430 : vector<16x16xf32>
    %cst_46 = arith.constant 0.000000e+00 : f32
    %432 = vector.broadcast %cst_46 : f32 to vector<16x16xf32>
    %433 = arith.cmpf oge, %431, %432 : vector<16x16xf32>
    %cst_47 = arith.constant 2.000000e-01 : f32
    %434 = vector.broadcast %cst_47 : f32 to vector<16x16xf32>
    %435 = arith.mulf %434, %431 : vector<16x16xf32>
    %436 = arith.select %433, %431, %435 : vector<16x16xi1>, vector<16x16xf32>
    %437 = vector.extract_strided_slice %436 {offsets = [0, 11], sizes = [16, 5], strides = [1, 1]} : vector<16x16xf32> to vector<16x5xf32>
    %438 = vector.extract_strided_slice %436 {offsets = [0, 0], sizes = [16, 11], strides = [1, 1]} : vector<16x16xf32> to vector<16x11xf32>
    %439 = tpu.concatenate %437, %438 in 1 : vector<16x5xf32>, vector<16x11xf32> -> vector<16x16xf32>
    %440 = vector.extract_strided_slice %2 {offsets = [0, 0], sizes = [1, 16], strides = [1, 1]} : vector<8x16xf32> to vector<1x16xf32>
    %441 = vector.shape_cast %440 : vector<1x16xf32> to vector<16xf32>
    %442 = vector.shape_cast %441 : vector<16xf32> to vector<1x16xf32>
    %443 = vector.broadcast %442 : vector<1x16xf32> to vector<16x16xf32>
    %444 = arith.mulf %439, %443 : vector<16x16xf32>
    %445 = vector.extract_strided_slice %436 {offsets = [0, 12], sizes = [16, 4], strides = [1, 1]} : vector<16x16xf32> to vector<16x4xf32>
    %446 = vector.extract_strided_slice %436 {offsets = [0, 0], sizes = [16, 12], strides = [1, 1]} : vector<16x16xf32> to vector<16x12xf32>
    %447 = tpu.concatenate %445, %446 in 1 : vector<16x4xf32>, vector<16x12xf32> -> vector<16x16xf32>
    %448 = vector.extract_strided_slice %2 {offsets = [1, 0], sizes = [1, 16], strides = [1, 1]} : vector<8x16xf32> to vector<1x16xf32>
    %449 = vector.shape_cast %448 : vector<1x16xf32> to vector<16xf32>
    %450 = vector.shape_cast %449 : vector<16xf32> to vector<1x16xf32>
    %451 = vector.broadcast %450 : vector<1x16xf32> to vector<16x16xf32>
    %452 = arith.mulf %447, %451 : vector<16x16xf32>
    %453 = vector.extract_strided_slice %436 {offsets = [0, 13], sizes = [16, 3], strides = [1, 1]} : vector<16x16xf32> to vector<16x3xf32>
    %454 = vector.extract_strided_slice %436 {offsets = [0, 0], sizes = [16, 13], strides = [1, 1]} : vector<16x16xf32> to vector<16x13xf32>
    %455 = tpu.concatenate %453, %454 in 1 : vector<16x3xf32>, vector<16x13xf32> -> vector<16x16xf32>
    %456 = vector.extract_strided_slice %2 {offsets = [2, 0], sizes = [1, 16], strides = [1, 1]} : vector<8x16xf32> to vector<1x16xf32>
    %457 = vector.shape_cast %456 : vector<1x16xf32> to vector<16xf32>
    %458 = vector.shape_cast %457 : vector<16xf32> to vector<1x16xf32>
    %459 = vector.broadcast %458 : vector<1x16xf32> to vector<16x16xf32>
    %460 = arith.mulf %455, %459 : vector<16x16xf32>
    %461 = vector.extract_strided_slice %436 {offsets = [0, 15], sizes = [16, 1], strides = [1, 1]} : vector<16x16xf32> to vector<16x1xf32>
    %462 = vector.extract_strided_slice %436 {offsets = [0, 0], sizes = [16, 15], strides = [1, 1]} : vector<16x16xf32> to vector<16x15xf32>
    %463 = tpu.concatenate %461, %462 in 1 : vector<16x1xf32>, vector<16x15xf32> -> vector<16x16xf32>
    %464 = vector.extract_strided_slice %2 {offsets = [3, 0], sizes = [1, 16], strides = [1, 1]} : vector<8x16xf32> to vector<1x16xf32>
    %465 = vector.shape_cast %464 : vector<1x16xf32> to vector<16xf32>
    %466 = vector.shape_cast %465 : vector<16xf32> to vector<1x16xf32>
    %467 = vector.broadcast %466 : vector<1x16xf32> to vector<16x16xf32>
    %468 = arith.mulf %463, %467 : vector<16x16xf32>
    %469 = vector.extract_strided_slice %436 {offsets = [0, 1], sizes = [16, 15], strides = [1, 1]} : vector<16x16xf32> to vector<16x15xf32>
    %470 = vector.extract_strided_slice %436 {offsets = [0, 0], sizes = [16, 1], strides = [1, 1]} : vector<16x16xf32> to vector<16x1xf32>
    %471 = tpu.concatenate %469, %470 in 1 : vector<16x15xf32>, vector<16x1xf32> -> vector<16x16xf32>
    %472 = vector.extract_strided_slice %2 {offsets = [4, 0], sizes = [1, 16], strides = [1, 1]} : vector<8x16xf32> to vector<1x16xf32>
    %473 = vector.shape_cast %472 : vector<1x16xf32> to vector<16xf32>
    %474 = vector.shape_cast %473 : vector<16xf32> to vector<1x16xf32>
    %475 = vector.broadcast %474 : vector<1x16xf32> to vector<16x16xf32>
    %476 = arith.mulf %471, %475 : vector<16x16xf32>
    %477 = vector.extract_strided_slice %436 {offsets = [0, 3], sizes = [16, 13], strides = [1, 1]} : vector<16x16xf32> to vector<16x13xf32>
    %478 = vector.extract_strided_slice %436 {offsets = [0, 0], sizes = [16, 3], strides = [1, 1]} : vector<16x16xf32> to vector<16x3xf32>
    %479 = tpu.concatenate %477, %478 in 1 : vector<16x13xf32>, vector<16x3xf32> -> vector<16x16xf32>
    %480 = vector.extract_strided_slice %2 {offsets = [5, 0], sizes = [1, 16], strides = [1, 1]} : vector<8x16xf32> to vector<1x16xf32>
    %481 = vector.shape_cast %480 : vector<1x16xf32> to vector<16xf32>
    %482 = vector.shape_cast %481 : vector<16xf32> to vector<1x16xf32>
    %483 = vector.broadcast %482 : vector<1x16xf32> to vector<16x16xf32>
    %484 = arith.mulf %479, %483 : vector<16x16xf32>
    %485 = vector.extract_strided_slice %436 {offsets = [0, 4], sizes = [16, 12], strides = [1, 1]} : vector<16x16xf32> to vector<16x12xf32>
    %486 = vector.extract_strided_slice %436 {offsets = [0, 0], sizes = [16, 4], strides = [1, 1]} : vector<16x16xf32> to vector<16x4xf32>
    %487 = tpu.concatenate %485, %486 in 1 : vector<16x12xf32>, vector<16x4xf32> -> vector<16x16xf32>
    %488 = vector.extract_strided_slice %2 {offsets = [6, 0], sizes = [1, 16], strides = [1, 1]} : vector<8x16xf32> to vector<1x16xf32>
    %489 = vector.shape_cast %488 : vector<1x16xf32> to vector<16xf32>
    %490 = vector.shape_cast %489 : vector<16xf32> to vector<1x16xf32>
    %491 = vector.broadcast %490 : vector<1x16xf32> to vector<16x16xf32>
    %492 = arith.mulf %487, %491 : vector<16x16xf32>
    %493 = vector.extract_strided_slice %436 {offsets = [0, 5], sizes = [16, 11], strides = [1, 1]} : vector<16x16xf32> to vector<16x11xf32>
    %494 = vector.extract_strided_slice %436 {offsets = [0, 0], sizes = [16, 5], strides = [1, 1]} : vector<16x16xf32> to vector<16x5xf32>
    %495 = tpu.concatenate %493, %494 in 1 : vector<16x11xf32>, vector<16x5xf32> -> vector<16x16xf32>
    %496 = vector.extract_strided_slice %2 {offsets = [7, 0], sizes = [1, 16], strides = [1, 1]} : vector<8x16xf32> to vector<1x16xf32>
    %497 = vector.shape_cast %496 : vector<1x16xf32> to vector<16xf32>
    %498 = vector.shape_cast %497 : vector<16xf32> to vector<1x16xf32>
    %499 = vector.broadcast %498 : vector<1x16xf32> to vector<16x16xf32>
    %500 = arith.mulf %495, %499 : vector<16x16xf32>
    %501 = tpu.concatenate %444, %452, %460, %468, %436, %476, %484, %492, %500 in 0 : vector<16x16xf32>, vector<16x16xf32>, vector<16x16xf32>, vector<16x16xf32>, vector<16x16xf32>, vector<16x16xf32>, vector<16x16xf32>, vector<16x16xf32>, vector<16x16xf32> -> vector<144x16xf32>
    %c0_48 = arith.constant 0 : index
    %c0_49 = arith.constant 0 : index
    %502 = vector.load %arg12[%c0_48, %c0_49] : memref<32x144xbf16, #tpu.memory_space<vmem>>, vector<32x144xbf16>
    %503 = arith.truncf %501 : vector<144x16xf32> to vector<144x16xbf16>
    %cst_50 = arith.constant dense<0.000000e+00> : vector<32x16xf32>
    %504 = tpu.matmul %502, %503, %cst_50 {dimension_numbers = #tpu.dot_dimension_numbers<[1], [0], [0], [1], [0, 0, 1, 1], [], []>} : vector<32x144xbf16>, vector<144x16xbf16>, vector<32x16xf32> -> vector<32x16xf32>
    %c0_51 = arith.constant 0 : index
    %c0_52 = arith.constant 0 : index
    %505 = vector.load %arg13[%c0_51, %c0_52] : memref<32x1xf32, #tpu.memory_space<vmem>>, vector<32x1xf32>
    %506 = vector.broadcast %505 : vector<32x1xf32> to vector<32x16xf32>
    %507 = arith.addf %504, %506 : vector<32x16xf32>
    %cst_53 = arith.constant 0.000000e+00 : f32
    %508 = vector.broadcast %cst_53 : f32 to vector<32x16xf32>
    %509 = arith.cmpf oge, %507, %508 : vector<32x16xf32>
    %cst_54 = arith.constant 2.000000e-01 : f32
    %510 = vector.broadcast %cst_54 : f32 to vector<32x16xf32>
    %511 = arith.mulf %510, %507 : vector<32x16xf32>
    %512 = arith.select %509, %507, %511 : vector<32x16xi1>, vector<32x16xf32>
    %c0_55 = arith.constant 0 : index
    %c0_56 = arith.constant 0 : index
    %513 = vector.load %arg14[%c0_55, %c0_56] : memref<16x32xbf16, #tpu.memory_space<vmem>>, vector<16x32xbf16>
    %514 = arith.truncf %512 : vector<32x16xf32> to vector<32x16xbf16>
    %cst_57 = arith.constant dense<0.000000e+00> : vector<16x16xf32>
    %515 = tpu.matmul %513, %514, %cst_57 {dimension_numbers = #tpu.dot_dimension_numbers<[1], [0], [0], [1], [0, 0, 1, 1], [], []>} : vector<16x32xbf16>, vector<32x16xbf16>, vector<16x16xf32> -> vector<16x16xf32>
    %c0_58 = arith.constant 0 : index
    %c0_59 = arith.constant 0 : index
    %516 = vector.load %arg15[%c0_58, %c0_59] : memref<16x1xf32, #tpu.memory_space<vmem>>, vector<16x1xf32>
    %517 = vector.broadcast %516 : vector<16x1xf32> to vector<16x16xf32>
    %518 = arith.addf %515, %517 : vector<16x16xf32>
    %cst_60 = arith.constant 0.000000e+00 : f32
    %519 = vector.broadcast %cst_60 : f32 to vector<16x64xf32>
    %520 = vector.extract_strided_slice %518 {offsets = [0, 15], sizes = [16, 1], strides = [1, 1]} : vector<16x16xf32> to vector<16x1xf32>
    %521 = vector.extract_strided_slice %518 {offsets = [0, 0], sizes = [16, 15], strides = [1, 1]} : vector<16x16xf32> to vector<16x15xf32>
    %522 = tpu.concatenate %520, %521 in 1 : vector<16x1xf32>, vector<16x15xf32> -> vector<16x16xf32>
    %523 = vector.extract_strided_slice %2 {offsets = [3, 0], sizes = [1, 16], strides = [1, 1]} : vector<8x16xf32> to vector<1x16xf32>
    %524 = vector.shape_cast %523 : vector<1x16xf32> to vector<16xf32>
    %525 = vector.shape_cast %524 : vector<16xf32> to vector<1x16xf32>
    %526 = vector.broadcast %525 : vector<1x16xf32> to vector<16x16xf32>
    %527 = arith.mulf %522, %526 : vector<16x16xf32>
    %528 = vector.extract_strided_slice %518 {offsets = [0, 12], sizes = [16, 4], strides = [1, 1]} : vector<16x16xf32> to vector<16x4xf32>
    %529 = vector.extract_strided_slice %518 {offsets = [0, 0], sizes = [16, 12], strides = [1, 1]} : vector<16x16xf32> to vector<16x12xf32>
    %530 = tpu.concatenate %528, %529 in 1 : vector<16x4xf32>, vector<16x12xf32> -> vector<16x16xf32>
    %531 = vector.extract_strided_slice %2 {offsets = [1, 0], sizes = [1, 16], strides = [1, 1]} : vector<8x16xf32> to vector<1x16xf32>
    %532 = vector.shape_cast %531 : vector<1x16xf32> to vector<16xf32>
    %533 = vector.shape_cast %532 : vector<16xf32> to vector<1x16xf32>
    %534 = vector.broadcast %533 : vector<1x16xf32> to vector<16x16xf32>
    %535 = arith.mulf %530, %534 : vector<16x16xf32>
    %536 = vector.extract_strided_slice %518 {offsets = [0, 11], sizes = [16, 5], strides = [1, 1]} : vector<16x16xf32> to vector<16x5xf32>
    %537 = vector.extract_strided_slice %518 {offsets = [0, 0], sizes = [16, 11], strides = [1, 1]} : vector<16x16xf32> to vector<16x11xf32>
    %538 = tpu.concatenate %536, %537 in 1 : vector<16x5xf32>, vector<16x11xf32> -> vector<16x16xf32>
    %539 = vector.extract_strided_slice %2 {offsets = [0, 0], sizes = [1, 16], strides = [1, 1]} : vector<8x16xf32> to vector<1x16xf32>
    %540 = vector.shape_cast %539 : vector<1x16xf32> to vector<16xf32>
    %541 = vector.shape_cast %540 : vector<16xf32> to vector<1x16xf32>
    %542 = vector.broadcast %541 : vector<1x16xf32> to vector<16x16xf32>
    %543 = arith.mulf %538, %542 : vector<16x16xf32>
    %544 = tpu.concatenate %518, %527, %535, %543 in 0 : vector<16x16xf32>, vector<16x16xf32>, vector<16x16xf32>, vector<16x16xf32> -> vector<64x16xf32>
    %c0_61 = arith.constant 0 : index
    %c0_62 = arith.constant 0 : index
    %c0_63 = arith.constant 0 : index
    %545 = vector.load %arg16[%c0_61, %c0_62, %c0_63] : memref<4x16x64xbf16, #tpu.memory_space<vmem>>, vector<1x16x64xbf16>
    %546 = vector.shape_cast %545 : vector<1x16x64xbf16> to vector<16x64xbf16>
    %547 = arith.truncf %544 : vector<64x16xf32> to vector<64x16xbf16>
    %cst_64 = arith.constant dense<0.000000e+00> : vector<16x16xf32>
    %548 = tpu.matmul %546, %547, %cst_64 {dimension_numbers = #tpu.dot_dimension_numbers<[1], [0], [0], [1], [0, 0, 1, 1], [], []>} : vector<16x64xbf16>, vector<64x16xbf16>, vector<16x16xf32> -> vector<16x16xf32>
    %549 = arith.truncf %548 : vector<16x16xf32> to vector<16x16xbf16>
    %c0_65 = arith.constant 0 : index
    %c0_66 = arith.constant 0 : index
    %c0_67 = arith.constant 0 : index
    %550 = vector.load %arg41[%c0_65, %c0_66, %c0_67] : memref<4x16x64xbf16, #tpu.memory_space<vmem>>, vector<1x16x64xbf16>
    %551 = vector.shape_cast %550 : vector<1x16x64xbf16> to vector<16x64xbf16>
    %cst_68 = arith.constant dense<0.000000e+00> : vector<16x64xf32>
    %552 = tpu.matmul %549, %551, %cst_68 {dimension_numbers = #tpu.dot_dimension_numbers<[1], [0], [0], [1], [0, 0, 1, 1], [], []>} : vector<16x16xbf16>, vector<16x64xbf16>, vector<16x64xf32> -> vector<16x64xf32>
    %553 = arith.addf %519, %552 : vector<16x64xf32>
    %554 = vector.extract_strided_slice %518 {offsets = [0, 1], sizes = [16, 15], strides = [1, 1]} : vector<16x16xf32> to vector<16x15xf32>
    %555 = vector.extract_strided_slice %518 {offsets = [0, 0], sizes = [16, 1], strides = [1, 1]} : vector<16x16xf32> to vector<16x1xf32>
    %556 = tpu.concatenate %554, %555 in 1 : vector<16x15xf32>, vector<16x1xf32> -> vector<16x16xf32>
    %557 = vector.extract_strided_slice %2 {offsets = [4, 0], sizes = [1, 16], strides = [1, 1]} : vector<8x16xf32> to vector<1x16xf32>
    %558 = vector.shape_cast %557 : vector<1x16xf32> to vector<16xf32>
    %559 = vector.shape_cast %558 : vector<16xf32> to vector<1x16xf32>
    %560 = vector.broadcast %559 : vector<1x16xf32> to vector<16x16xf32>
    %561 = arith.mulf %556, %560 : vector<16x16xf32>
    %562 = vector.extract_strided_slice %518 {offsets = [0, 13], sizes = [16, 3], strides = [1, 1]} : vector<16x16xf32> to vector<16x3xf32>
    %563 = vector.extract_strided_slice %518 {offsets = [0, 0], sizes = [16, 13], strides = [1, 1]} : vector<16x16xf32> to vector<16x13xf32>
    %564 = tpu.concatenate %562, %563 in 1 : vector<16x3xf32>, vector<16x13xf32> -> vector<16x16xf32>
    %565 = vector.extract_strided_slice %2 {offsets = [2, 0], sizes = [1, 16], strides = [1, 1]} : vector<8x16xf32> to vector<1x16xf32>
    %566 = vector.shape_cast %565 : vector<1x16xf32> to vector<16xf32>
    %567 = vector.shape_cast %566 : vector<16xf32> to vector<1x16xf32>
    %568 = vector.broadcast %567 : vector<1x16xf32> to vector<16x16xf32>
    %569 = arith.mulf %564, %568 : vector<16x16xf32>
    %570 = vector.extract_strided_slice %518 {offsets = [0, 12], sizes = [16, 4], strides = [1, 1]} : vector<16x16xf32> to vector<16x4xf32>
    %571 = vector.extract_strided_slice %518 {offsets = [0, 0], sizes = [16, 12], strides = [1, 1]} : vector<16x16xf32> to vector<16x12xf32>
    %572 = tpu.concatenate %570, %571 in 1 : vector<16x4xf32>, vector<16x12xf32> -> vector<16x16xf32>
    %573 = vector.extract_strided_slice %2 {offsets = [1, 0], sizes = [1, 16], strides = [1, 1]} : vector<8x16xf32> to vector<1x16xf32>
    %574 = vector.shape_cast %573 : vector<1x16xf32> to vector<16xf32>
    %575 = vector.shape_cast %574 : vector<16xf32> to vector<1x16xf32>
    %576 = vector.broadcast %575 : vector<1x16xf32> to vector<16x16xf32>
    %577 = arith.mulf %572, %576 : vector<16x16xf32>
    %578 = tpu.concatenate %561, %518, %569, %577 in 0 : vector<16x16xf32>, vector<16x16xf32>, vector<16x16xf32>, vector<16x16xf32> -> vector<64x16xf32>
    %c1 = arith.constant 1 : index
    %c0_69 = arith.constant 0 : index
    %c0_70 = arith.constant 0 : index
    %579 = vector.load %arg16[%c1, %c0_69, %c0_70] : memref<4x16x64xbf16, #tpu.memory_space<vmem>>, vector<1x16x64xbf16>
    %580 = vector.shape_cast %579 : vector<1x16x64xbf16> to vector<16x64xbf16>
    %581 = arith.truncf %578 : vector<64x16xf32> to vector<64x16xbf16>
    %cst_71 = arith.constant dense<0.000000e+00> : vector<16x16xf32>
    %582 = tpu.matmul %580, %581, %cst_71 {dimension_numbers = #tpu.dot_dimension_numbers<[1], [0], [0], [1], [0, 0, 1, 1], [], []>} : vector<16x64xbf16>, vector<64x16xbf16>, vector<16x16xf32> -> vector<16x16xf32>
    %583 = arith.truncf %582 : vector<16x16xf32> to vector<16x16xbf16>
    %c1_72 = arith.constant 1 : index
    %c0_73 = arith.constant 0 : index
    %c0_74 = arith.constant 0 : index
    %584 = vector.load %arg41[%c1_72, %c0_73, %c0_74] : memref<4x16x64xbf16, #tpu.memory_space<vmem>>, vector<1x16x64xbf16>
    %585 = vector.shape_cast %584 : vector<1x16x64xbf16> to vector<16x64xbf16>
    %cst_75 = arith.constant dense<0.000000e+00> : vector<16x64xf32>
    %586 = tpu.matmul %583, %585, %cst_75 {dimension_numbers = #tpu.dot_dimension_numbers<[1], [0], [0], [1], [0, 0, 1, 1], [], []>} : vector<16x16xbf16>, vector<16x64xbf16>, vector<16x64xf32> -> vector<16x64xf32>
    %587 = arith.addf %553, %586 : vector<16x64xf32>
    %588 = vector.extract_strided_slice %518 {offsets = [0, 4], sizes = [16, 12], strides = [1, 1]} : vector<16x16xf32> to vector<16x12xf32>
    %589 = vector.extract_strided_slice %518 {offsets = [0, 0], sizes = [16, 4], strides = [1, 1]} : vector<16x16xf32> to vector<16x4xf32>
    %590 = tpu.concatenate %588, %589 in 1 : vector<16x12xf32>, vector<16x4xf32> -> vector<16x16xf32>
    %591 = vector.extract_strided_slice %2 {offsets = [6, 0], sizes = [1, 16], strides = [1, 1]} : vector<8x16xf32> to vector<1x16xf32>
    %592 = vector.shape_cast %591 : vector<1x16xf32> to vector<16xf32>
    %593 = vector.shape_cast %592 : vector<16xf32> to vector<1x16xf32>
    %594 = vector.broadcast %593 : vector<1x16xf32> to vector<16x16xf32>
    %595 = arith.mulf %590, %594 : vector<16x16xf32>
    %596 = vector.extract_strided_slice %518 {offsets = [0, 3], sizes = [16, 13], strides = [1, 1]} : vector<16x16xf32> to vector<16x13xf32>
    %597 = vector.extract_strided_slice %518 {offsets = [0, 0], sizes = [16, 3], strides = [1, 1]} : vector<16x16xf32> to vector<16x3xf32>
    %598 = tpu.concatenate %596, %597 in 1 : vector<16x13xf32>, vector<16x3xf32> -> vector<16x16xf32>
    %599 = vector.extract_strided_slice %2 {offsets = [5, 0], sizes = [1, 16], strides = [1, 1]} : vector<8x16xf32> to vector<1x16xf32>
    %600 = vector.shape_cast %599 : vector<1x16xf32> to vector<16xf32>
    %601 = vector.shape_cast %600 : vector<16xf32> to vector<1x16xf32>
    %602 = vector.broadcast %601 : vector<1x16xf32> to vector<16x16xf32>
    %603 = arith.mulf %598, %602 : vector<16x16xf32>
    %604 = vector.extract_strided_slice %518 {offsets = [0, 15], sizes = [16, 1], strides = [1, 1]} : vector<16x16xf32> to vector<16x1xf32>
    %605 = vector.extract_strided_slice %518 {offsets = [0, 0], sizes = [16, 15], strides = [1, 1]} : vector<16x16xf32> to vector<16x15xf32>
    %606 = tpu.concatenate %604, %605 in 1 : vector<16x1xf32>, vector<16x15xf32> -> vector<16x16xf32>
    %607 = vector.extract_strided_slice %2 {offsets = [3, 0], sizes = [1, 16], strides = [1, 1]} : vector<8x16xf32> to vector<1x16xf32>
    %608 = vector.shape_cast %607 : vector<1x16xf32> to vector<16xf32>
    %609 = vector.shape_cast %608 : vector<16xf32> to vector<1x16xf32>
    %610 = vector.broadcast %609 : vector<1x16xf32> to vector<16x16xf32>
    %611 = arith.mulf %606, %610 : vector<16x16xf32>
    %612 = tpu.concatenate %595, %603, %518, %611 in 0 : vector<16x16xf32>, vector<16x16xf32>, vector<16x16xf32>, vector<16x16xf32> -> vector<64x16xf32>
    %c2 = arith.constant 2 : index
    %c0_76 = arith.constant 0 : index
    %c0_77 = arith.constant 0 : index
    %613 = vector.load %arg16[%c2, %c0_76, %c0_77] : memref<4x16x64xbf16, #tpu.memory_space<vmem>>, vector<1x16x64xbf16>
    %614 = vector.shape_cast %613 : vector<1x16x64xbf16> to vector<16x64xbf16>
    %615 = arith.truncf %612 : vector<64x16xf32> to vector<64x16xbf16>
    %cst_78 = arith.constant dense<0.000000e+00> : vector<16x16xf32>
    %616 = tpu.matmul %614, %615, %cst_78 {dimension_numbers = #tpu.dot_dimension_numbers<[1], [0], [0], [1], [0, 0, 1, 1], [], []>} : vector<16x64xbf16>, vector<64x16xbf16>, vector<16x16xf32> -> vector<16x16xf32>
    %617 = arith.truncf %616 : vector<16x16xf32> to vector<16x16xbf16>
    %c2_79 = arith.constant 2 : index
    %c0_80 = arith.constant 0 : index
    %c0_81 = arith.constant 0 : index
    %618 = vector.load %arg41[%c2_79, %c0_80, %c0_81] : memref<4x16x64xbf16, #tpu.memory_space<vmem>>, vector<1x16x64xbf16>
    %619 = vector.shape_cast %618 : vector<1x16x64xbf16> to vector<16x64xbf16>
    %cst_82 = arith.constant dense<0.000000e+00> : vector<16x64xf32>
    %620 = tpu.matmul %617, %619, %cst_82 {dimension_numbers = #tpu.dot_dimension_numbers<[1], [0], [0], [1], [0, 0, 1, 1], [], []>} : vector<16x16xbf16>, vector<16x64xbf16>, vector<16x64xf32> -> vector<16x64xf32>
    %621 = arith.addf %587, %620 : vector<16x64xf32>
    %622 = vector.extract_strided_slice %518 {offsets = [0, 5], sizes = [16, 11], strides = [1, 1]} : vector<16x16xf32> to vector<16x11xf32>
    %623 = vector.extract_strided_slice %518 {offsets = [0, 0], sizes = [16, 5], strides = [1, 1]} : vector<16x16xf32> to vector<16x5xf32>
    %624 = tpu.concatenate %622, %623 in 1 : vector<16x11xf32>, vector<16x5xf32> -> vector<16x16xf32>
    %625 = vector.extract_strided_slice %2 {offsets = [7, 0], sizes = [1, 16], strides = [1, 1]} : vector<8x16xf32> to vector<1x16xf32>
    %626 = vector.shape_cast %625 : vector<1x16xf32> to vector<16xf32>
    %627 = vector.shape_cast %626 : vector<16xf32> to vector<1x16xf32>
    %628 = vector.broadcast %627 : vector<1x16xf32> to vector<16x16xf32>
    %629 = arith.mulf %624, %628 : vector<16x16xf32>
    %630 = vector.extract_strided_slice %518 {offsets = [0, 4], sizes = [16, 12], strides = [1, 1]} : vector<16x16xf32> to vector<16x12xf32>
    %631 = vector.extract_strided_slice %518 {offsets = [0, 0], sizes = [16, 4], strides = [1, 1]} : vector<16x16xf32> to vector<16x4xf32>
    %632 = tpu.concatenate %630, %631 in 1 : vector<16x12xf32>, vector<16x4xf32> -> vector<16x16xf32>
    %633 = vector.extract_strided_slice %2 {offsets = [6, 0], sizes = [1, 16], strides = [1, 1]} : vector<8x16xf32> to vector<1x16xf32>
    %634 = vector.shape_cast %633 : vector<1x16xf32> to vector<16xf32>
    %635 = vector.shape_cast %634 : vector<16xf32> to vector<1x16xf32>
    %636 = vector.broadcast %635 : vector<1x16xf32> to vector<16x16xf32>
    %637 = arith.mulf %632, %636 : vector<16x16xf32>
    %638 = vector.extract_strided_slice %518 {offsets = [0, 1], sizes = [16, 15], strides = [1, 1]} : vector<16x16xf32> to vector<16x15xf32>
    %639 = vector.extract_strided_slice %518 {offsets = [0, 0], sizes = [16, 1], strides = [1, 1]} : vector<16x16xf32> to vector<16x1xf32>
    %640 = tpu.concatenate %638, %639 in 1 : vector<16x15xf32>, vector<16x1xf32> -> vector<16x16xf32>
    %641 = vector.extract_strided_slice %2 {offsets = [4, 0], sizes = [1, 16], strides = [1, 1]} : vector<8x16xf32> to vector<1x16xf32>
    %642 = vector.shape_cast %641 : vector<1x16xf32> to vector<16xf32>
    %643 = vector.shape_cast %642 : vector<16xf32> to vector<1x16xf32>
    %644 = vector.broadcast %643 : vector<1x16xf32> to vector<16x16xf32>
    %645 = arith.mulf %640, %644 : vector<16x16xf32>
    %646 = tpu.concatenate %629, %637, %645, %518 in 0 : vector<16x16xf32>, vector<16x16xf32>, vector<16x16xf32>, vector<16x16xf32> -> vector<64x16xf32>
    %c3 = arith.constant 3 : index
    %c0_83 = arith.constant 0 : index
    %c0_84 = arith.constant 0 : index
    %647 = vector.load %arg16[%c3, %c0_83, %c0_84] : memref<4x16x64xbf16, #tpu.memory_space<vmem>>, vector<1x16x64xbf16>
    %648 = vector.shape_cast %647 : vector<1x16x64xbf16> to vector<16x64xbf16>
    %649 = arith.truncf %646 : vector<64x16xf32> to vector<64x16xbf16>
    %cst_85 = arith.constant dense<0.000000e+00> : vector<16x16xf32>
    %650 = tpu.matmul %648, %649, %cst_85 {dimension_numbers = #tpu.dot_dimension_numbers<[1], [0], [0], [1], [0, 0, 1, 1], [], []>} : vector<16x64xbf16>, vector<64x16xbf16>, vector<16x16xf32> -> vector<16x16xf32>
    %651 = arith.truncf %650 : vector<16x16xf32> to vector<16x16xbf16>
    %c3_86 = arith.constant 3 : index
    %c0_87 = arith.constant 0 : index
    %c0_88 = arith.constant 0 : index
    %652 = vector.load %arg41[%c3_86, %c0_87, %c0_88] : memref<4x16x64xbf16, #tpu.memory_space<vmem>>, vector<1x16x64xbf16>
    %653 = vector.shape_cast %652 : vector<1x16x64xbf16> to vector<16x64xbf16>
    %cst_89 = arith.constant dense<0.000000e+00> : vector<16x64xf32>
    %654 = tpu.matmul %651, %653, %cst_89 {dimension_numbers = #tpu.dot_dimension_numbers<[1], [0], [0], [1], [0, 0, 1, 1], [], []>} : vector<16x16xbf16>, vector<16x64xbf16>, vector<16x64xf32> -> vector<16x64xf32>
    %655 = arith.addf %621, %654 : vector<16x64xf32>
    %c0_90 = arith.constant 0 : index
    %c0_91 = arith.constant 0 : index
    %656 = vector.load %arg17[%c0_90, %c0_91] : memref<16x1xf32, #tpu.memory_space<vmem>>, vector<16x1xf32>
    %657 = vector.broadcast %656 : vector<16x1xf32> to vector<16x64xf32>
    %658 = arith.addf %655, %657 : vector<16x64xf32>
    %cst_92 = arith.constant 0.000000e+00 : f32
    %659 = vector.broadcast %cst_92 : f32 to vector<16x64xf32>
    %660 = arith.maximumf %658, %659 : vector<16x64xf32>
    %c0_93 = arith.constant 0 : index
    %c0_94 = arith.constant 0 : index
    %661 = vector.load %arg18[%c0_93, %c0_94] : memref<16x16xbf16, #tpu.memory_space<vmem>>, vector<16x16xbf16>
    %662 = arith.truncf %660 : vector<16x64xf32> to vector<16x64xbf16>
    %cst_95 = arith.constant dense<0.000000e+00> : vector<16x64xf32>
    %663 = tpu.matmul %661, %662, %cst_95 {dimension_numbers = #tpu.dot_dimension_numbers<[1], [0], [0], [1], [0, 0, 1, 1], [], []>} : vector<16x16xbf16>, vector<16x64xbf16>, vector<16x64xf32> -> vector<16x64xf32>
    %c0_96 = arith.constant 0 : index
    %c0_97 = arith.constant 0 : index
    %664 = vector.load %arg19[%c0_96, %c0_97] : memref<16x16xbf16, #tpu.memory_space<vmem>>, vector<16x16xbf16>
    %665 = arith.truncf %330 : vector<16x64xf32> to vector<16x64xbf16>
    %cst_98 = arith.constant dense<0.000000e+00> : vector<16x64xf32>
    %666 = tpu.matmul %664, %665, %cst_98 {dimension_numbers = #tpu.dot_dimension_numbers<[1], [0], [0], [1], [0, 0, 1, 1], [], []>} : vector<16x16xbf16>, vector<16x64xbf16>, vector<16x64xf32> -> vector<16x64xf32>
    %667 = arith.addf %663, %666 : vector<16x64xf32>
    %c0_99 = arith.constant 0 : index
    %c0_100 = arith.constant 0 : index
    %668 = vector.load %arg20[%c0_99, %c0_100] : memref<16x1xf32, #tpu.memory_space<vmem>>, vector<16x1xf32>
    %669 = vector.broadcast %668 : vector<16x1xf32> to vector<16x64xf32>
    %670 = arith.addf %667, %669 : vector<16x64xf32>
    %671 = vector.extract_strided_slice %670 {offsets = [0, 55], sizes = [16, 9], strides = [1, 1]} : vector<16x64xf32> to vector<16x9xf32>
    %672 = vector.extract_strided_slice %670 {offsets = [0, 0], sizes = [16, 55], strides = [1, 1]} : vector<16x64xf32> to vector<16x55xf32>
    %673 = tpu.concatenate %671, %672 in 1 : vector<16x9xf32>, vector<16x55xf32> -> vector<16x64xf32>
    %674 = vector.extract_strided_slice %1 {offsets = [0, 0], sizes = [1, 64], strides = [1, 1]} : vector<8x64xf32> to vector<1x64xf32>
    %675 = vector.shape_cast %674 : vector<1x64xf32> to vector<64xf32>
    %676 = vector.shape_cast %675 : vector<64xf32> to vector<1x64xf32>
    %677 = vector.broadcast %676 : vector<1x64xf32> to vector<16x64xf32>
    %678 = arith.mulf %673, %677 : vector<16x64xf32>
    %679 = vector.extract_strided_slice %670 {offsets = [0, 56], sizes = [16, 8], strides = [1, 1]} : vector<16x64xf32> to vector<16x8xf32>
    %680 = vector.extract_strided_slice %670 {offsets = [0, 0], sizes = [16, 56], strides = [1, 1]} : vector<16x64xf32> to vector<16x56xf32>
    %681 = tpu.concatenate %679, %680 in 1 : vector<16x8xf32>, vector<16x56xf32> -> vector<16x64xf32>
    %682 = vector.extract_strided_slice %1 {offsets = [1, 0], sizes = [1, 64], strides = [1, 1]} : vector<8x64xf32> to vector<1x64xf32>
    %683 = vector.shape_cast %682 : vector<1x64xf32> to vector<64xf32>
    %684 = vector.shape_cast %683 : vector<64xf32> to vector<1x64xf32>
    %685 = vector.broadcast %684 : vector<1x64xf32> to vector<16x64xf32>
    %686 = arith.mulf %681, %685 : vector<16x64xf32>
    %687 = vector.extract_strided_slice %670 {offsets = [0, 57], sizes = [16, 7], strides = [1, 1]} : vector<16x64xf32> to vector<16x7xf32>
    %688 = vector.extract_strided_slice %670 {offsets = [0, 0], sizes = [16, 57], strides = [1, 1]} : vector<16x64xf32> to vector<16x57xf32>
    %689 = tpu.concatenate %687, %688 in 1 : vector<16x7xf32>, vector<16x57xf32> -> vector<16x64xf32>
    %690 = vector.extract_strided_slice %1 {offsets = [2, 0], sizes = [1, 64], strides = [1, 1]} : vector<8x64xf32> to vector<1x64xf32>
    %691 = vector.shape_cast %690 : vector<1x64xf32> to vector<64xf32>
    %692 = vector.shape_cast %691 : vector<64xf32> to vector<1x64xf32>
    %693 = vector.broadcast %692 : vector<1x64xf32> to vector<16x64xf32>
    %694 = arith.mulf %689, %693 : vector<16x64xf32>
    %695 = vector.extract_strided_slice %670 {offsets = [0, 63], sizes = [16, 1], strides = [1, 1]} : vector<16x64xf32> to vector<16x1xf32>
    %696 = vector.extract_strided_slice %670 {offsets = [0, 0], sizes = [16, 63], strides = [1, 1]} : vector<16x64xf32> to vector<16x63xf32>
    %697 = tpu.concatenate %695, %696 in 1 : vector<16x1xf32>, vector<16x63xf32> -> vector<16x64xf32>
    %698 = vector.extract_strided_slice %1 {offsets = [3, 0], sizes = [1, 64], strides = [1, 1]} : vector<8x64xf32> to vector<1x64xf32>
    %699 = vector.shape_cast %698 : vector<1x64xf32> to vector<64xf32>
    %700 = vector.shape_cast %699 : vector<64xf32> to vector<1x64xf32>
    %701 = vector.broadcast %700 : vector<1x64xf32> to vector<16x64xf32>
    %702 = arith.mulf %697, %701 : vector<16x64xf32>
    %703 = vector.extract_strided_slice %670 {offsets = [0, 1], sizes = [16, 63], strides = [1, 1]} : vector<16x64xf32> to vector<16x63xf32>
    %704 = vector.extract_strided_slice %670 {offsets = [0, 0], sizes = [16, 1], strides = [1, 1]} : vector<16x64xf32> to vector<16x1xf32>
    %705 = tpu.concatenate %703, %704 in 1 : vector<16x63xf32>, vector<16x1xf32> -> vector<16x64xf32>
    %706 = vector.extract_strided_slice %1 {offsets = [4, 0], sizes = [1, 64], strides = [1, 1]} : vector<8x64xf32> to vector<1x64xf32>
    %707 = vector.shape_cast %706 : vector<1x64xf32> to vector<64xf32>
    %708 = vector.shape_cast %707 : vector<64xf32> to vector<1x64xf32>
    %709 = vector.broadcast %708 : vector<1x64xf32> to vector<16x64xf32>
    %710 = arith.mulf %705, %709 : vector<16x64xf32>
    %711 = vector.extract_strided_slice %670 {offsets = [0, 7], sizes = [16, 57], strides = [1, 1]} : vector<16x64xf32> to vector<16x57xf32>
    %712 = vector.extract_strided_slice %670 {offsets = [0, 0], sizes = [16, 7], strides = [1, 1]} : vector<16x64xf32> to vector<16x7xf32>
    %713 = tpu.concatenate %711, %712 in 1 : vector<16x57xf32>, vector<16x7xf32> -> vector<16x64xf32>
    %714 = vector.extract_strided_slice %1 {offsets = [5, 0], sizes = [1, 64], strides = [1, 1]} : vector<8x64xf32> to vector<1x64xf32>
    %715 = vector.shape_cast %714 : vector<1x64xf32> to vector<64xf32>
    %716 = vector.shape_cast %715 : vector<64xf32> to vector<1x64xf32>
    %717 = vector.broadcast %716 : vector<1x64xf32> to vector<16x64xf32>
    %718 = arith.mulf %713, %717 : vector<16x64xf32>
    %719 = vector.extract_strided_slice %670 {offsets = [0, 8], sizes = [16, 56], strides = [1, 1]} : vector<16x64xf32> to vector<16x56xf32>
    %720 = vector.extract_strided_slice %670 {offsets = [0, 0], sizes = [16, 8], strides = [1, 1]} : vector<16x64xf32> to vector<16x8xf32>
    %721 = tpu.concatenate %719, %720 in 1 : vector<16x56xf32>, vector<16x8xf32> -> vector<16x64xf32>
    %722 = vector.extract_strided_slice %1 {offsets = [6, 0], sizes = [1, 64], strides = [1, 1]} : vector<8x64xf32> to vector<1x64xf32>
    %723 = vector.shape_cast %722 : vector<1x64xf32> to vector<64xf32>
    %724 = vector.shape_cast %723 : vector<64xf32> to vector<1x64xf32>
    %725 = vector.broadcast %724 : vector<1x64xf32> to vector<16x64xf32>
    %726 = arith.mulf %721, %725 : vector<16x64xf32>
    %727 = vector.extract_strided_slice %670 {offsets = [0, 9], sizes = [16, 55], strides = [1, 1]} : vector<16x64xf32> to vector<16x55xf32>
    %728 = vector.extract_strided_slice %670 {offsets = [0, 0], sizes = [16, 9], strides = [1, 1]} : vector<16x64xf32> to vector<16x9xf32>
    %729 = tpu.concatenate %727, %728 in 1 : vector<16x55xf32>, vector<16x9xf32> -> vector<16x64xf32>
    %730 = vector.extract_strided_slice %1 {offsets = [7, 0], sizes = [1, 64], strides = [1, 1]} : vector<8x64xf32> to vector<1x64xf32>
    %731 = vector.shape_cast %730 : vector<1x64xf32> to vector<64xf32>
    %732 = vector.shape_cast %731 : vector<64xf32> to vector<1x64xf32>
    %733 = vector.broadcast %732 : vector<1x64xf32> to vector<16x64xf32>
    %734 = arith.mulf %729, %733 : vector<16x64xf32>
    %735 = tpu.concatenate %678, %686, %694, %702, %670, %710, %718, %726, %734 in 0 : vector<16x64xf32>, vector<16x64xf32>, vector<16x64xf32>, vector<16x64xf32>, vector<16x64xf32>, vector<16x64xf32>, vector<16x64xf32>, vector<16x64xf32>, vector<16x64xf32> -> vector<144x64xf32>
    %c0_101 = arith.constant 0 : index
    %c0_102 = arith.constant 0 : index
    %736 = vector.load %arg21[%c0_101, %c0_102] : memref<16x144xbf16, #tpu.memory_space<vmem>>, vector<16x144xbf16>
    %737 = arith.truncf %735 : vector<144x64xf32> to vector<144x64xbf16>
    %cst_103 = arith.constant dense<0.000000e+00> : vector<16x64xf32>
    %738 = tpu.matmul %736, %737, %cst_103 {dimension_numbers = #tpu.dot_dimension_numbers<[1], [0], [0], [1], [0, 0, 1, 1], [], []>} : vector<16x144xbf16>, vector<144x64xbf16>, vector<16x64xf32> -> vector<16x64xf32>
    %c0_104 = arith.constant 0 : index
    %c0_105 = arith.constant 0 : index
    %739 = vector.load %arg22[%c0_104, %c0_105] : memref<16x1xf32, #tpu.memory_space<vmem>>, vector<16x1xf32>
    %740 = vector.broadcast %739 : vector<16x1xf32> to vector<16x64xf32>
    %741 = arith.addf %738, %740 : vector<16x64xf32>
    %cst_106 = arith.constant 0.000000e+00 : f32
    %742 = vector.broadcast %cst_106 : f32 to vector<16x64xf32>
    %743 = arith.maximumf %741, %742 : vector<16x64xf32>
    %744 = vector.extract_strided_slice %743 {offsets = [0, 55], sizes = [16, 9], strides = [1, 1]} : vector<16x64xf32> to vector<16x9xf32>
    %745 = vector.extract_strided_slice %743 {offsets = [0, 0], sizes = [16, 55], strides = [1, 1]} : vector<16x64xf32> to vector<16x55xf32>
    %746 = tpu.concatenate %744, %745 in 1 : vector<16x9xf32>, vector<16x55xf32> -> vector<16x64xf32>
    %747 = vector.extract_strided_slice %1 {offsets = [0, 0], sizes = [1, 64], strides = [1, 1]} : vector<8x64xf32> to vector<1x64xf32>
    %748 = vector.shape_cast %747 : vector<1x64xf32> to vector<64xf32>
    %749 = vector.shape_cast %748 : vector<64xf32> to vector<1x64xf32>
    %750 = vector.broadcast %749 : vector<1x64xf32> to vector<16x64xf32>
    %751 = arith.mulf %746, %750 : vector<16x64xf32>
    %752 = vector.extract_strided_slice %743 {offsets = [0, 56], sizes = [16, 8], strides = [1, 1]} : vector<16x64xf32> to vector<16x8xf32>
    %753 = vector.extract_strided_slice %743 {offsets = [0, 0], sizes = [16, 56], strides = [1, 1]} : vector<16x64xf32> to vector<16x56xf32>
    %754 = tpu.concatenate %752, %753 in 1 : vector<16x8xf32>, vector<16x56xf32> -> vector<16x64xf32>
    %755 = vector.extract_strided_slice %1 {offsets = [1, 0], sizes = [1, 64], strides = [1, 1]} : vector<8x64xf32> to vector<1x64xf32>
    %756 = vector.shape_cast %755 : vector<1x64xf32> to vector<64xf32>
    %757 = vector.shape_cast %756 : vector<64xf32> to vector<1x64xf32>
    %758 = vector.broadcast %757 : vector<1x64xf32> to vector<16x64xf32>
    %759 = arith.mulf %754, %758 : vector<16x64xf32>
    %760 = vector.extract_strided_slice %743 {offsets = [0, 57], sizes = [16, 7], strides = [1, 1]} : vector<16x64xf32> to vector<16x7xf32>
    %761 = vector.extract_strided_slice %743 {offsets = [0, 0], sizes = [16, 57], strides = [1, 1]} : vector<16x64xf32> to vector<16x57xf32>
    %762 = tpu.concatenate %760, %761 in 1 : vector<16x7xf32>, vector<16x57xf32> -> vector<16x64xf32>
    %763 = vector.extract_strided_slice %1 {offsets = [2, 0], sizes = [1, 64], strides = [1, 1]} : vector<8x64xf32> to vector<1x64xf32>
    %764 = vector.shape_cast %763 : vector<1x64xf32> to vector<64xf32>
    %765 = vector.shape_cast %764 : vector<64xf32> to vector<1x64xf32>
    %766 = vector.broadcast %765 : vector<1x64xf32> to vector<16x64xf32>
    %767 = arith.mulf %762, %766 : vector<16x64xf32>
    %768 = vector.extract_strided_slice %743 {offsets = [0, 63], sizes = [16, 1], strides = [1, 1]} : vector<16x64xf32> to vector<16x1xf32>
    %769 = vector.extract_strided_slice %743 {offsets = [0, 0], sizes = [16, 63], strides = [1, 1]} : vector<16x64xf32> to vector<16x63xf32>
    %770 = tpu.concatenate %768, %769 in 1 : vector<16x1xf32>, vector<16x63xf32> -> vector<16x64xf32>
    %771 = vector.extract_strided_slice %1 {offsets = [3, 0], sizes = [1, 64], strides = [1, 1]} : vector<8x64xf32> to vector<1x64xf32>
    %772 = vector.shape_cast %771 : vector<1x64xf32> to vector<64xf32>
    %773 = vector.shape_cast %772 : vector<64xf32> to vector<1x64xf32>
    %774 = vector.broadcast %773 : vector<1x64xf32> to vector<16x64xf32>
    %775 = arith.mulf %770, %774 : vector<16x64xf32>
    %776 = vector.extract_strided_slice %743 {offsets = [0, 1], sizes = [16, 63], strides = [1, 1]} : vector<16x64xf32> to vector<16x63xf32>
    %777 = vector.extract_strided_slice %743 {offsets = [0, 0], sizes = [16, 1], strides = [1, 1]} : vector<16x64xf32> to vector<16x1xf32>
    %778 = tpu.concatenate %776, %777 in 1 : vector<16x63xf32>, vector<16x1xf32> -> vector<16x64xf32>
    %779 = vector.extract_strided_slice %1 {offsets = [4, 0], sizes = [1, 64], strides = [1, 1]} : vector<8x64xf32> to vector<1x64xf32>
    %780 = vector.shape_cast %779 : vector<1x64xf32> to vector<64xf32>
    %781 = vector.shape_cast %780 : vector<64xf32> to vector<1x64xf32>
    %782 = vector.broadcast %781 : vector<1x64xf32> to vector<16x64xf32>
    %783 = arith.mulf %778, %782 : vector<16x64xf32>
    %784 = vector.extract_strided_slice %743 {offsets = [0, 7], sizes = [16, 57], strides = [1, 1]} : vector<16x64xf32> to vector<16x57xf32>
    %785 = vector.extract_strided_slice %743 {offsets = [0, 0], sizes = [16, 7], strides = [1, 1]} : vector<16x64xf32> to vector<16x7xf32>
    %786 = tpu.concatenate %784, %785 in 1 : vector<16x57xf32>, vector<16x7xf32> -> vector<16x64xf32>
    %787 = vector.extract_strided_slice %1 {offsets = [5, 0], sizes = [1, 64], strides = [1, 1]} : vector<8x64xf32> to vector<1x64xf32>
    %788 = vector.shape_cast %787 : vector<1x64xf32> to vector<64xf32>
    %789 = vector.shape_cast %788 : vector<64xf32> to vector<1x64xf32>
    %790 = vector.broadcast %789 : vector<1x64xf32> to vector<16x64xf32>
    %791 = arith.mulf %786, %790 : vector<16x64xf32>
    %792 = vector.extract_strided_slice %743 {offsets = [0, 8], sizes = [16, 56], strides = [1, 1]} : vector<16x64xf32> to vector<16x56xf32>
    %793 = vector.extract_strided_slice %743 {offsets = [0, 0], sizes = [16, 8], strides = [1, 1]} : vector<16x64xf32> to vector<16x8xf32>
    %794 = tpu.concatenate %792, %793 in 1 : vector<16x56xf32>, vector<16x8xf32> -> vector<16x64xf32>
    %795 = vector.extract_strided_slice %1 {offsets = [6, 0], sizes = [1, 64], strides = [1, 1]} : vector<8x64xf32> to vector<1x64xf32>
    %796 = vector.shape_cast %795 : vector<1x64xf32> to vector<64xf32>
    %797 = vector.shape_cast %796 : vector<64xf32> to vector<1x64xf32>
    %798 = vector.broadcast %797 : vector<1x64xf32> to vector<16x64xf32>
    %799 = arith.mulf %794, %798 : vector<16x64xf32>
    %800 = vector.extract_strided_slice %743 {offsets = [0, 9], sizes = [16, 55], strides = [1, 1]} : vector<16x64xf32> to vector<16x55xf32>
    %801 = vector.extract_strided_slice %743 {offsets = [0, 0], sizes = [16, 9], strides = [1, 1]} : vector<16x64xf32> to vector<16x9xf32>
    %802 = tpu.concatenate %800, %801 in 1 : vector<16x55xf32>, vector<16x9xf32> -> vector<16x64xf32>
    %803 = vector.extract_strided_slice %1 {offsets = [7, 0], sizes = [1, 64], strides = [1, 1]} : vector<8x64xf32> to vector<1x64xf32>
    %804 = vector.shape_cast %803 : vector<1x64xf32> to vector<64xf32>
    %805 = vector.shape_cast %804 : vector<64xf32> to vector<1x64xf32>
    %806 = vector.broadcast %805 : vector<1x64xf32> to vector<16x64xf32>
    %807 = arith.mulf %802, %806 : vector<16x64xf32>
    %808 = tpu.concatenate %751, %759, %767, %775, %743, %783, %791, %799, %807 in 0 : vector<16x64xf32>, vector<16x64xf32>, vector<16x64xf32>, vector<16x64xf32>, vector<16x64xf32>, vector<16x64xf32>, vector<16x64xf32>, vector<16x64xf32>, vector<16x64xf32> -> vector<144x64xf32>
    %c0_107 = arith.constant 0 : index
    %c0_108 = arith.constant 0 : index
    %809 = vector.load %arg23[%c0_107, %c0_108] : memref<32x144xbf16, #tpu.memory_space<vmem>>, vector<32x144xbf16>
    %810 = arith.truncf %808 : vector<144x64xf32> to vector<144x64xbf16>
    %cst_109 = arith.constant dense<0.000000e+00> : vector<32x64xf32>
    %811 = tpu.matmul %809, %810, %cst_109 {dimension_numbers = #tpu.dot_dimension_numbers<[1], [0], [0], [1], [0, 0, 1, 1], [], []>} : vector<32x144xbf16>, vector<144x64xbf16>, vector<32x64xf32> -> vector<32x64xf32>
    %c0_110 = arith.constant 0 : index
    %c0_111 = arith.constant 0 : index
    %812 = vector.load %arg24[%c0_110, %c0_111] : memref<32x1xf32, #tpu.memory_space<vmem>>, vector<32x1xf32>
    %813 = vector.broadcast %812 : vector<32x1xf32> to vector<32x64xf32>
    %814 = arith.addf %811, %813 : vector<32x64xf32>
    %cst_112 = arith.constant 0.000000e+00 : f32
    %815 = vector.broadcast %cst_112 : f32 to vector<32x64xf32>
    %816 = arith.maximumf %814, %815 : vector<32x64xf32>
    %cst_113 = arith.constant 0.000000e+00 : f32
    %817 = vector.broadcast %cst_113 : f32 to vector<8x256xf32>
    %818 = vector.extract_strided_slice %816 {offsets = [0, 63], sizes = [32, 1], strides = [1, 1]} : vector<32x64xf32> to vector<32x1xf32>
    %819 = vector.extract_strided_slice %816 {offsets = [0, 0], sizes = [32, 63], strides = [1, 1]} : vector<32x64xf32> to vector<32x63xf32>
    %820 = tpu.concatenate %818, %819 in 1 : vector<32x1xf32>, vector<32x63xf32> -> vector<32x64xf32>
    %821 = vector.extract_strided_slice %1 {offsets = [3, 0], sizes = [1, 64], strides = [1, 1]} : vector<8x64xf32> to vector<1x64xf32>
    %822 = vector.shape_cast %821 : vector<1x64xf32> to vector<64xf32>
    %823 = vector.shape_cast %822 : vector<64xf32> to vector<1x64xf32>
    %824 = vector.broadcast %823 : vector<1x64xf32> to vector<32x64xf32>
    %825 = arith.mulf %820, %824 : vector<32x64xf32>
    %826 = vector.extract_strided_slice %816 {offsets = [0, 56], sizes = [32, 8], strides = [1, 1]} : vector<32x64xf32> to vector<32x8xf32>
    %827 = vector.extract_strided_slice %816 {offsets = [0, 0], sizes = [32, 56], strides = [1, 1]} : vector<32x64xf32> to vector<32x56xf32>
    %828 = tpu.concatenate %826, %827 in 1 : vector<32x8xf32>, vector<32x56xf32> -> vector<32x64xf32>
    %829 = vector.extract_strided_slice %1 {offsets = [1, 0], sizes = [1, 64], strides = [1, 1]} : vector<8x64xf32> to vector<1x64xf32>
    %830 = vector.shape_cast %829 : vector<1x64xf32> to vector<64xf32>
    %831 = vector.shape_cast %830 : vector<64xf32> to vector<1x64xf32>
    %832 = vector.broadcast %831 : vector<1x64xf32> to vector<32x64xf32>
    %833 = arith.mulf %828, %832 : vector<32x64xf32>
    %834 = vector.extract_strided_slice %816 {offsets = [0, 55], sizes = [32, 9], strides = [1, 1]} : vector<32x64xf32> to vector<32x9xf32>
    %835 = vector.extract_strided_slice %816 {offsets = [0, 0], sizes = [32, 55], strides = [1, 1]} : vector<32x64xf32> to vector<32x55xf32>
    %836 = tpu.concatenate %834, %835 in 1 : vector<32x9xf32>, vector<32x55xf32> -> vector<32x64xf32>
    %837 = vector.extract_strided_slice %1 {offsets = [0, 0], sizes = [1, 64], strides = [1, 1]} : vector<8x64xf32> to vector<1x64xf32>
    %838 = vector.shape_cast %837 : vector<1x64xf32> to vector<64xf32>
    %839 = vector.shape_cast %838 : vector<64xf32> to vector<1x64xf32>
    %840 = vector.broadcast %839 : vector<1x64xf32> to vector<32x64xf32>
    %841 = arith.mulf %836, %840 : vector<32x64xf32>
    %842 = tpu.concatenate %816, %825, %833, %841 in 0 : vector<32x64xf32>, vector<32x64xf32>, vector<32x64xf32>, vector<32x64xf32> -> vector<128x64xf32>
    %c0_114 = arith.constant 0 : index
    %c0_115 = arith.constant 0 : index
    %c0_116 = arith.constant 0 : index
    %843 = vector.load %arg25[%c0_114, %c0_115, %c0_116] : memref<4x8x128xbf16, #tpu.memory_space<vmem>>, vector<1x8x128xbf16>
    %844 = vector.shape_cast %843 : vector<1x8x128xbf16> to vector<8x128xbf16>
    %845 = arith.truncf %842 : vector<128x64xf32> to vector<128x64xbf16>
    %cst_117 = arith.constant dense<0.000000e+00> : vector<8x64xf32>
    %846 = tpu.matmul %844, %845, %cst_117 {dimension_numbers = #tpu.dot_dimension_numbers<[1], [0], [0], [1], [0, 0, 1, 1], [], []>} : vector<8x128xbf16>, vector<128x64xbf16>, vector<8x64xf32> -> vector<8x64xf32>
    %847 = arith.truncf %846 : vector<8x64xf32> to vector<8x64xbf16>
    %c0_118 = arith.constant 0 : index
    %c0_119 = arith.constant 0 : index
    %c0_120 = arith.constant 0 : index
    %848 = vector.load %arg42[%c0_118, %c0_119, %c0_120] : memref<4x64x256xbf16, #tpu.memory_space<vmem>>, vector<1x64x256xbf16>
    %849 = vector.shape_cast %848 : vector<1x64x256xbf16> to vector<64x256xbf16>
    %cst_121 = arith.constant dense<0.000000e+00> : vector<8x256xf32>
    %850 = tpu.matmul %847, %849, %cst_121 {dimension_numbers = #tpu.dot_dimension_numbers<[1], [0], [0], [1], [0, 0, 1, 1], [], []>} : vector<8x64xbf16>, vector<64x256xbf16>, vector<8x256xf32> -> vector<8x256xf32>
    %851 = arith.addf %817, %850 : vector<8x256xf32>
    %852 = vector.extract_strided_slice %816 {offsets = [0, 1], sizes = [32, 63], strides = [1, 1]} : vector<32x64xf32> to vector<32x63xf32>
    %853 = vector.extract_strided_slice %816 {offsets = [0, 0], sizes = [32, 1], strides = [1, 1]} : vector<32x64xf32> to vector<32x1xf32>
    %854 = tpu.concatenate %852, %853 in 1 : vector<32x63xf32>, vector<32x1xf32> -> vector<32x64xf32>
    %855 = vector.extract_strided_slice %1 {offsets = [4, 0], sizes = [1, 64], strides = [1, 1]} : vector<8x64xf32> to vector<1x64xf32>
    %856 = vector.shape_cast %855 : vector<1x64xf32> to vector<64xf32>
    %857 = vector.shape_cast %856 : vector<64xf32> to vector<1x64xf32>
    %858 = vector.broadcast %857 : vector<1x64xf32> to vector<32x64xf32>
    %859 = arith.mulf %854, %858 : vector<32x64xf32>
    %860 = vector.extract_strided_slice %816 {offsets = [0, 57], sizes = [32, 7], strides = [1, 1]} : vector<32x64xf32> to vector<32x7xf32>
    %861 = vector.extract_strided_slice %816 {offsets = [0, 0], sizes = [32, 57], strides = [1, 1]} : vector<32x64xf32> to vector<32x57xf32>
    %862 = tpu.concatenate %860, %861 in 1 : vector<32x7xf32>, vector<32x57xf32> -> vector<32x64xf32>
    %863 = vector.extract_strided_slice %1 {offsets = [2, 0], sizes = [1, 64], strides = [1, 1]} : vector<8x64xf32> to vector<1x64xf32>
    %864 = vector.shape_cast %863 : vector<1x64xf32> to vector<64xf32>
    %865 = vector.shape_cast %864 : vector<64xf32> to vector<1x64xf32>
    %866 = vector.broadcast %865 : vector<1x64xf32> to vector<32x64xf32>
    %867 = arith.mulf %862, %866 : vector<32x64xf32>
    %868 = vector.extract_strided_slice %816 {offsets = [0, 56], sizes = [32, 8], strides = [1, 1]} : vector<32x64xf32> to vector<32x8xf32>
    %869 = vector.extract_strided_slice %816 {offsets = [0, 0], sizes = [32, 56], strides = [1, 1]} : vector<32x64xf32> to vector<32x56xf32>
    %870 = tpu.concatenate %868, %869 in 1 : vector<32x8xf32>, vector<32x56xf32> -> vector<32x64xf32>
    %871 = vector.extract_strided_slice %1 {offsets = [1, 0], sizes = [1, 64], strides = [1, 1]} : vector<8x64xf32> to vector<1x64xf32>
    %872 = vector.shape_cast %871 : vector<1x64xf32> to vector<64xf32>
    %873 = vector.shape_cast %872 : vector<64xf32> to vector<1x64xf32>
    %874 = vector.broadcast %873 : vector<1x64xf32> to vector<32x64xf32>
    %875 = arith.mulf %870, %874 : vector<32x64xf32>
    %876 = tpu.concatenate %859, %816, %867, %875 in 0 : vector<32x64xf32>, vector<32x64xf32>, vector<32x64xf32>, vector<32x64xf32> -> vector<128x64xf32>
    %c1_122 = arith.constant 1 : index
    %c0_123 = arith.constant 0 : index
    %c0_124 = arith.constant 0 : index
    %877 = vector.load %arg25[%c1_122, %c0_123, %c0_124] : memref<4x8x128xbf16, #tpu.memory_space<vmem>>, vector<1x8x128xbf16>
    %878 = vector.shape_cast %877 : vector<1x8x128xbf16> to vector<8x128xbf16>
    %879 = arith.truncf %876 : vector<128x64xf32> to vector<128x64xbf16>
    %cst_125 = arith.constant dense<0.000000e+00> : vector<8x64xf32>
    %880 = tpu.matmul %878, %879, %cst_125 {dimension_numbers = #tpu.dot_dimension_numbers<[1], [0], [0], [1], [0, 0, 1, 1], [], []>} : vector<8x128xbf16>, vector<128x64xbf16>, vector<8x64xf32> -> vector<8x64xf32>
    %881 = arith.truncf %880 : vector<8x64xf32> to vector<8x64xbf16>
    %c1_126 = arith.constant 1 : index
    %c0_127 = arith.constant 0 : index
    %c0_128 = arith.constant 0 : index
    %882 = vector.load %arg42[%c1_126, %c0_127, %c0_128] : memref<4x64x256xbf16, #tpu.memory_space<vmem>>, vector<1x64x256xbf16>
    %883 = vector.shape_cast %882 : vector<1x64x256xbf16> to vector<64x256xbf16>
    %cst_129 = arith.constant dense<0.000000e+00> : vector<8x256xf32>
    %884 = tpu.matmul %881, %883, %cst_129 {dimension_numbers = #tpu.dot_dimension_numbers<[1], [0], [0], [1], [0, 0, 1, 1], [], []>} : vector<8x64xbf16>, vector<64x256xbf16>, vector<8x256xf32> -> vector<8x256xf32>
    %885 = arith.addf %851, %884 : vector<8x256xf32>
    %886 = vector.extract_strided_slice %816 {offsets = [0, 8], sizes = [32, 56], strides = [1, 1]} : vector<32x64xf32> to vector<32x56xf32>
    %887 = vector.extract_strided_slice %816 {offsets = [0, 0], sizes = [32, 8], strides = [1, 1]} : vector<32x64xf32> to vector<32x8xf32>
    %888 = tpu.concatenate %886, %887 in 1 : vector<32x56xf32>, vector<32x8xf32> -> vector<32x64xf32>
    %889 = vector.extract_strided_slice %1 {offsets = [6, 0], sizes = [1, 64], strides = [1, 1]} : vector<8x64xf32> to vector<1x64xf32>
    %890 = vector.shape_cast %889 : vector<1x64xf32> to vector<64xf32>
    %891 = vector.shape_cast %890 : vector<64xf32> to vector<1x64xf32>
    %892 = vector.broadcast %891 : vector<1x64xf32> to vector<32x64xf32>
    %893 = arith.mulf %888, %892 : vector<32x64xf32>
    %894 = vector.extract_strided_slice %816 {offsets = [0, 7], sizes = [32, 57], strides = [1, 1]} : vector<32x64xf32> to vector<32x57xf32>
    %895 = vector.extract_strided_slice %816 {offsets = [0, 0], sizes = [32, 7], strides = [1, 1]} : vector<32x64xf32> to vector<32x7xf32>
    %896 = tpu.concatenate %894, %895 in 1 : vector<32x57xf32>, vector<32x7xf32> -> vector<32x64xf32>
    %897 = vector.extract_strided_slice %1 {offsets = [5, 0], sizes = [1, 64], strides = [1, 1]} : vector<8x64xf32> to vector<1x64xf32>
    %898 = vector.shape_cast %897 : vector<1x64xf32> to vector<64xf32>
    %899 = vector.shape_cast %898 : vector<64xf32> to vector<1x64xf32>
    %900 = vector.broadcast %899 : vector<1x64xf32> to vector<32x64xf32>
    %901 = arith.mulf %896, %900 : vector<32x64xf32>
    %902 = vector.extract_strided_slice %816 {offsets = [0, 63], sizes = [32, 1], strides = [1, 1]} : vector<32x64xf32> to vector<32x1xf32>
    %903 = vector.extract_strided_slice %816 {offsets = [0, 0], sizes = [32, 63], strides = [1, 1]} : vector<32x64xf32> to vector<32x63xf32>
    %904 = tpu.concatenate %902, %903 in 1 : vector<32x1xf32>, vector<32x63xf32> -> vector<32x64xf32>
    %905 = vector.extract_strided_slice %1 {offsets = [3, 0], sizes = [1, 64], strides = [1, 1]} : vector<8x64xf32> to vector<1x64xf32>
    %906 = vector.shape_cast %905 : vector<1x64xf32> to vector<64xf32>
    %907 = vector.shape_cast %906 : vector<64xf32> to vector<1x64xf32>
    %908 = vector.broadcast %907 : vector<1x64xf32> to vector<32x64xf32>
    %909 = arith.mulf %904, %908 : vector<32x64xf32>
    %910 = tpu.concatenate %893, %901, %816, %909 in 0 : vector<32x64xf32>, vector<32x64xf32>, vector<32x64xf32>, vector<32x64xf32> -> vector<128x64xf32>
    %c2_130 = arith.constant 2 : index
    %c0_131 = arith.constant 0 : index
    %c0_132 = arith.constant 0 : index
    %911 = vector.load %arg25[%c2_130, %c0_131, %c0_132] : memref<4x8x128xbf16, #tpu.memory_space<vmem>>, vector<1x8x128xbf16>
    %912 = vector.shape_cast %911 : vector<1x8x128xbf16> to vector<8x128xbf16>
    %913 = arith.truncf %910 : vector<128x64xf32> to vector<128x64xbf16>
    %cst_133 = arith.constant dense<0.000000e+00> : vector<8x64xf32>
    %914 = tpu.matmul %912, %913, %cst_133 {dimension_numbers = #tpu.dot_dimension_numbers<[1], [0], [0], [1], [0, 0, 1, 1], [], []>} : vector<8x128xbf16>, vector<128x64xbf16>, vector<8x64xf32> -> vector<8x64xf32>
    %915 = arith.truncf %914 : vector<8x64xf32> to vector<8x64xbf16>
    %c2_134 = arith.constant 2 : index
    %c0_135 = arith.constant 0 : index
    %c0_136 = arith.constant 0 : index
    %916 = vector.load %arg42[%c2_134, %c0_135, %c0_136] : memref<4x64x256xbf16, #tpu.memory_space<vmem>>, vector<1x64x256xbf16>
    %917 = vector.shape_cast %916 : vector<1x64x256xbf16> to vector<64x256xbf16>
    %cst_137 = arith.constant dense<0.000000e+00> : vector<8x256xf32>
    %918 = tpu.matmul %915, %917, %cst_137 {dimension_numbers = #tpu.dot_dimension_numbers<[1], [0], [0], [1], [0, 0, 1, 1], [], []>} : vector<8x64xbf16>, vector<64x256xbf16>, vector<8x256xf32> -> vector<8x256xf32>
    %919 = arith.addf %885, %918 : vector<8x256xf32>
    %920 = vector.extract_strided_slice %816 {offsets = [0, 9], sizes = [32, 55], strides = [1, 1]} : vector<32x64xf32> to vector<32x55xf32>
    %921 = vector.extract_strided_slice %816 {offsets = [0, 0], sizes = [32, 9], strides = [1, 1]} : vector<32x64xf32> to vector<32x9xf32>
    %922 = tpu.concatenate %920, %921 in 1 : vector<32x55xf32>, vector<32x9xf32> -> vector<32x64xf32>
    %923 = vector.extract_strided_slice %1 {offsets = [7, 0], sizes = [1, 64], strides = [1, 1]} : vector<8x64xf32> to vector<1x64xf32>
    %924 = vector.shape_cast %923 : vector<1x64xf32> to vector<64xf32>
    %925 = vector.shape_cast %924 : vector<64xf32> to vector<1x64xf32>
    %926 = vector.broadcast %925 : vector<1x64xf32> to vector<32x64xf32>
    %927 = arith.mulf %922, %926 : vector<32x64xf32>
    %928 = vector.extract_strided_slice %816 {offsets = [0, 8], sizes = [32, 56], strides = [1, 1]} : vector<32x64xf32> to vector<32x56xf32>
    %929 = vector.extract_strided_slice %816 {offsets = [0, 0], sizes = [32, 8], strides = [1, 1]} : vector<32x64xf32> to vector<32x8xf32>
    %930 = tpu.concatenate %928, %929 in 1 : vector<32x56xf32>, vector<32x8xf32> -> vector<32x64xf32>
    %931 = vector.extract_strided_slice %1 {offsets = [6, 0], sizes = [1, 64], strides = [1, 1]} : vector<8x64xf32> to vector<1x64xf32>
    %932 = vector.shape_cast %931 : vector<1x64xf32> to vector<64xf32>
    %933 = vector.shape_cast %932 : vector<64xf32> to vector<1x64xf32>
    %934 = vector.broadcast %933 : vector<1x64xf32> to vector<32x64xf32>
    %935 = arith.mulf %930, %934 : vector<32x64xf32>
    %936 = vector.extract_strided_slice %816 {offsets = [0, 1], sizes = [32, 63], strides = [1, 1]} : vector<32x64xf32> to vector<32x63xf32>
    %937 = vector.extract_strided_slice %816 {offsets = [0, 0], sizes = [32, 1], strides = [1, 1]} : vector<32x64xf32> to vector<32x1xf32>
    %938 = tpu.concatenate %936, %937 in 1 : vector<32x63xf32>, vector<32x1xf32> -> vector<32x64xf32>
    %939 = vector.extract_strided_slice %1 {offsets = [4, 0], sizes = [1, 64], strides = [1, 1]} : vector<8x64xf32> to vector<1x64xf32>
    %940 = vector.shape_cast %939 : vector<1x64xf32> to vector<64xf32>
    %941 = vector.shape_cast %940 : vector<64xf32> to vector<1x64xf32>
    %942 = vector.broadcast %941 : vector<1x64xf32> to vector<32x64xf32>
    %943 = arith.mulf %938, %942 : vector<32x64xf32>
    %944 = tpu.concatenate %927, %935, %943, %816 in 0 : vector<32x64xf32>, vector<32x64xf32>, vector<32x64xf32>, vector<32x64xf32> -> vector<128x64xf32>
    %c3_138 = arith.constant 3 : index
    %c0_139 = arith.constant 0 : index
    %c0_140 = arith.constant 0 : index
    %945 = vector.load %arg25[%c3_138, %c0_139, %c0_140] : memref<4x8x128xbf16, #tpu.memory_space<vmem>>, vector<1x8x128xbf16>
    %946 = vector.shape_cast %945 : vector<1x8x128xbf16> to vector<8x128xbf16>
    %947 = arith.truncf %944 : vector<128x64xf32> to vector<128x64xbf16>
    %cst_141 = arith.constant dense<0.000000e+00> : vector<8x64xf32>
    %948 = tpu.matmul %946, %947, %cst_141 {dimension_numbers = #tpu.dot_dimension_numbers<[1], [0], [0], [1], [0, 0, 1, 1], [], []>} : vector<8x128xbf16>, vector<128x64xbf16>, vector<8x64xf32> -> vector<8x64xf32>
    %949 = arith.truncf %948 : vector<8x64xf32> to vector<8x64xbf16>
    %c3_142 = arith.constant 3 : index
    %c0_143 = arith.constant 0 : index
    %c0_144 = arith.constant 0 : index
    %950 = vector.load %arg42[%c3_142, %c0_143, %c0_144] : memref<4x64x256xbf16, #tpu.memory_space<vmem>>, vector<1x64x256xbf16>
    %951 = vector.shape_cast %950 : vector<1x64x256xbf16> to vector<64x256xbf16>
    %cst_145 = arith.constant dense<0.000000e+00> : vector<8x256xf32>
    %952 = tpu.matmul %949, %951, %cst_145 {dimension_numbers = #tpu.dot_dimension_numbers<[1], [0], [0], [1], [0, 0, 1, 1], [], []>} : vector<8x64xbf16>, vector<64x256xbf16>, vector<8x256xf32> -> vector<8x256xf32>
    %953 = arith.addf %919, %952 : vector<8x256xf32>
    %c0_146 = arith.constant 0 : index
    %c0_147 = arith.constant 0 : index
    %954 = vector.load %arg26[%c0_146, %c0_147] : memref<8x1xf32, #tpu.memory_space<vmem>>, vector<8x1xf32>
    %955 = vector.broadcast %954 : vector<8x1xf32> to vector<8x256xf32>
    %956 = arith.addf %953, %955 : vector<8x256xf32>
    %cst_148 = arith.constant 0.000000e+00 : f32
    %957 = vector.broadcast %cst_148 : f32 to vector<8x256xf32>
    %958 = arith.maximumf %956, %957 : vector<8x256xf32>
    %c0_149 = arith.constant 0 : index
    %c0_150 = arith.constant 0 : index
    %959 = vector.load %arg27[%c0_149, %c0_150] : memref<8x8xbf16, #tpu.memory_space<vmem>>, vector<8x8xbf16>
    %960 = arith.truncf %958 : vector<8x256xf32> to vector<8x256xbf16>
    %cst_151 = arith.constant dense<0.000000e+00> : vector<8x256xf32>
    %961 = tpu.matmul %959, %960, %cst_151 {dimension_numbers = #tpu.dot_dimension_numbers<[1], [0], [0], [1], [0, 0, 1, 1], [], []>} : vector<8x8xbf16>, vector<8x256xbf16>, vector<8x256xf32> -> vector<8x256xf32>
    %c0_152 = arith.constant 0 : index
    %c0_153 = arith.constant 0 : index
    %962 = vector.load %arg28[%c0_152, %c0_153] : memref<8x8xbf16, #tpu.memory_space<vmem>>, vector<8x8xbf16>
    %963 = arith.truncf %148 : vector<8x256xf32> to vector<8x256xbf16>
    %cst_154 = arith.constant dense<0.000000e+00> : vector<8x256xf32>
    %964 = tpu.matmul %962, %963, %cst_154 {dimension_numbers = #tpu.dot_dimension_numbers<[1], [0], [0], [1], [0, 0, 1, 1], [], []>} : vector<8x8xbf16>, vector<8x256xbf16>, vector<8x256xf32> -> vector<8x256xf32>
    %965 = arith.addf %961, %964 : vector<8x256xf32>
    %c0_155 = arith.constant 0 : index
    %c0_156 = arith.constant 0 : index
    %966 = vector.load %arg29[%c0_155, %c0_156] : memref<8x1xf32, #tpu.memory_space<vmem>>, vector<8x1xf32>
    %967 = vector.broadcast %966 : vector<8x1xf32> to vector<8x256xf32>
    %968 = arith.addf %965, %967 : vector<8x256xf32>
    %969 = vector.extract_strided_slice %968 {offsets = [0, 239], sizes = [8, 17], strides = [1, 1]} : vector<8x256xf32> to vector<8x17xf32>
    %970 = vector.extract_strided_slice %968 {offsets = [0, 0], sizes = [8, 239], strides = [1, 1]} : vector<8x256xf32> to vector<8x239xf32>
    %971 = tpu.concatenate %969, %970 in 1 : vector<8x17xf32>, vector<8x239xf32> -> vector<8x256xf32>
    %972 = vector.extract_strided_slice %0 {offsets = [0, 0], sizes = [1, 256], strides = [1, 1]} : vector<8x256xf32> to vector<1x256xf32>
    %973 = vector.shape_cast %972 : vector<1x256xf32> to vector<256xf32>
    %974 = vector.shape_cast %973 : vector<256xf32> to vector<1x256xf32>
    %975 = vector.broadcast %974 : vector<1x256xf32> to vector<8x256xf32>
    %976 = arith.mulf %971, %975 : vector<8x256xf32>
    %977 = vector.extract_strided_slice %968 {offsets = [0, 240], sizes = [8, 16], strides = [1, 1]} : vector<8x256xf32> to vector<8x16xf32>
    %978 = vector.extract_strided_slice %968 {offsets = [0, 0], sizes = [8, 240], strides = [1, 1]} : vector<8x256xf32> to vector<8x240xf32>
    %979 = tpu.concatenate %977, %978 in 1 : vector<8x16xf32>, vector<8x240xf32> -> vector<8x256xf32>
    %980 = vector.extract_strided_slice %0 {offsets = [1, 0], sizes = [1, 256], strides = [1, 1]} : vector<8x256xf32> to vector<1x256xf32>
    %981 = vector.shape_cast %980 : vector<1x256xf32> to vector<256xf32>
    %982 = vector.shape_cast %981 : vector<256xf32> to vector<1x256xf32>
    %983 = vector.broadcast %982 : vector<1x256xf32> to vector<8x256xf32>
    %984 = arith.mulf %979, %983 : vector<8x256xf32>
    %985 = vector.extract_strided_slice %968 {offsets = [0, 241], sizes = [8, 15], strides = [1, 1]} : vector<8x256xf32> to vector<8x15xf32>
    %986 = vector.extract_strided_slice %968 {offsets = [0, 0], sizes = [8, 241], strides = [1, 1]} : vector<8x256xf32> to vector<8x241xf32>
    %987 = tpu.concatenate %985, %986 in 1 : vector<8x15xf32>, vector<8x241xf32> -> vector<8x256xf32>
    %988 = vector.extract_strided_slice %0 {offsets = [2, 0], sizes = [1, 256], strides = [1, 1]} : vector<8x256xf32> to vector<1x256xf32>
    %989 = vector.shape_cast %988 : vector<1x256xf32> to vector<256xf32>
    %990 = vector.shape_cast %989 : vector<256xf32> to vector<1x256xf32>
    %991 = vector.broadcast %990 : vector<1x256xf32> to vector<8x256xf32>
    %992 = arith.mulf %987, %991 : vector<8x256xf32>
    %993 = vector.extract_strided_slice %968 {offsets = [0, 255], sizes = [8, 1], strides = [1, 1]} : vector<8x256xf32> to vector<8x1xf32>
    %994 = vector.extract_strided_slice %968 {offsets = [0, 0], sizes = [8, 255], strides = [1, 1]} : vector<8x256xf32> to vector<8x255xf32>
    %995 = tpu.concatenate %993, %994 in 1 : vector<8x1xf32>, vector<8x255xf32> -> vector<8x256xf32>
    %996 = vector.extract_strided_slice %0 {offsets = [3, 0], sizes = [1, 256], strides = [1, 1]} : vector<8x256xf32> to vector<1x256xf32>
    %997 = vector.shape_cast %996 : vector<1x256xf32> to vector<256xf32>
    %998 = vector.shape_cast %997 : vector<256xf32> to vector<1x256xf32>
    %999 = vector.broadcast %998 : vector<1x256xf32> to vector<8x256xf32>
    %1000 = arith.mulf %995, %999 : vector<8x256xf32>
    %1001 = vector.extract_strided_slice %968 {offsets = [0, 1], sizes = [8, 255], strides = [1, 1]} : vector<8x256xf32> to vector<8x255xf32>
    %1002 = vector.extract_strided_slice %968 {offsets = [0, 0], sizes = [8, 1], strides = [1, 1]} : vector<8x256xf32> to vector<8x1xf32>
    %1003 = tpu.concatenate %1001, %1002 in 1 : vector<8x255xf32>, vector<8x1xf32> -> vector<8x256xf32>
    %1004 = vector.extract_strided_slice %0 {offsets = [4, 0], sizes = [1, 256], strides = [1, 1]} : vector<8x256xf32> to vector<1x256xf32>
    %1005 = vector.shape_cast %1004 : vector<1x256xf32> to vector<256xf32>
    %1006 = vector.shape_cast %1005 : vector<256xf32> to vector<1x256xf32>
    %1007 = vector.broadcast %1006 : vector<1x256xf32> to vector<8x256xf32>
    %1008 = arith.mulf %1003, %1007 : vector<8x256xf32>
    %1009 = vector.extract_strided_slice %968 {offsets = [0, 15], sizes = [8, 241], strides = [1, 1]} : vector<8x256xf32> to vector<8x241xf32>
    %1010 = vector.extract_strided_slice %968 {offsets = [0, 0], sizes = [8, 15], strides = [1, 1]} : vector<8x256xf32> to vector<8x15xf32>
    %1011 = tpu.concatenate %1009, %1010 in 1 : vector<8x241xf32>, vector<8x15xf32> -> vector<8x256xf32>
    %1012 = vector.extract_strided_slice %0 {offsets = [5, 0], sizes = [1, 256], strides = [1, 1]} : vector<8x256xf32> to vector<1x256xf32>
    %1013 = vector.shape_cast %1012 : vector<1x256xf32> to vector<256xf32>
    %1014 = vector.shape_cast %1013 : vector<256xf32> to vector<1x256xf32>
    %1015 = vector.broadcast %1014 : vector<1x256xf32> to vector<8x256xf32>
    %1016 = arith.mulf %1011, %1015 : vector<8x256xf32>
    %1017 = vector.extract_strided_slice %968 {offsets = [0, 16], sizes = [8, 240], strides = [1, 1]} : vector<8x256xf32> to vector<8x240xf32>
    %1018 = vector.extract_strided_slice %968 {offsets = [0, 0], sizes = [8, 16], strides = [1, 1]} : vector<8x256xf32> to vector<8x16xf32>
    %1019 = tpu.concatenate %1017, %1018 in 1 : vector<8x240xf32>, vector<8x16xf32> -> vector<8x256xf32>
    %1020 = vector.extract_strided_slice %0 {offsets = [6, 0], sizes = [1, 256], strides = [1, 1]} : vector<8x256xf32> to vector<1x256xf32>
    %1021 = vector.shape_cast %1020 : vector<1x256xf32> to vector<256xf32>
    %1022 = vector.shape_cast %1021 : vector<256xf32> to vector<1x256xf32>
    %1023 = vector.broadcast %1022 : vector<1x256xf32> to vector<8x256xf32>
    %1024 = arith.mulf %1019, %1023 : vector<8x256xf32>
    %1025 = vector.extract_strided_slice %968 {offsets = [0, 17], sizes = [8, 239], strides = [1, 1]} : vector<8x256xf32> to vector<8x239xf32>
    %1026 = vector.extract_strided_slice %968 {offsets = [0, 0], sizes = [8, 17], strides = [1, 1]} : vector<8x256xf32> to vector<8x17xf32>
    %1027 = tpu.concatenate %1025, %1026 in 1 : vector<8x239xf32>, vector<8x17xf32> -> vector<8x256xf32>
    %1028 = vector.extract_strided_slice %0 {offsets = [7, 0], sizes = [1, 256], strides = [1, 1]} : vector<8x256xf32> to vector<1x256xf32>
    %1029 = vector.shape_cast %1028 : vector<1x256xf32> to vector<256xf32>
    %1030 = vector.shape_cast %1029 : vector<256xf32> to vector<1x256xf32>
    %1031 = vector.broadcast %1030 : vector<1x256xf32> to vector<8x256xf32>
    %1032 = arith.mulf %1027, %1031 : vector<8x256xf32>
    %1033 = tpu.concatenate %976, %984, %992, %1000, %968, %1008, %1016, %1024, %1032 in 0 : vector<8x256xf32>, vector<8x256xf32>, vector<8x256xf32>, vector<8x256xf32>, vector<8x256xf32>, vector<8x256xf32>, vector<8x256xf32>, vector<8x256xf32>, vector<8x256xf32> -> vector<72x256xf32>
    %c0_157 = arith.constant 0 : index
    %c0_158 = arith.constant 0 : index
    %1034 = vector.load %arg30[%c0_157, %c0_158] : memref<8x72xbf16, #tpu.memory_space<vmem>>, vector<8x72xbf16>
    %1035 = arith.truncf %1033 : vector<72x256xf32> to vector<72x256xbf16>
    %cst_159 = arith.constant dense<0.000000e+00> : vector<8x256xf32>
    %1036 = tpu.matmul %1034, %1035, %cst_159 {dimension_numbers = #tpu.dot_dimension_numbers<[1], [0], [0], [1], [0, 0, 1, 1], [], []>} : vector<8x72xbf16>, vector<72x256xbf16>, vector<8x256xf32> -> vector<8x256xf32>
    %c0_160 = arith.constant 0 : index
    %c0_161 = arith.constant 0 : index
    %1037 = vector.load %arg31[%c0_160, %c0_161] : memref<8x1xf32, #tpu.memory_space<vmem>>, vector<8x1xf32>
    %1038 = vector.broadcast %1037 : vector<8x1xf32> to vector<8x256xf32>
    %1039 = arith.addf %1036, %1038 : vector<8x256xf32>
    %cst_162 = arith.constant 0.000000e+00 : f32
    %1040 = vector.broadcast %cst_162 : f32 to vector<8x256xf32>
    %1041 = arith.maximumf %1039, %1040 : vector<8x256xf32>
    %1042 = vector.extract_strided_slice %1041 {offsets = [0, 239], sizes = [8, 17], strides = [1, 1]} : vector<8x256xf32> to vector<8x17xf32>
    %1043 = vector.extract_strided_slice %1041 {offsets = [0, 0], sizes = [8, 239], strides = [1, 1]} : vector<8x256xf32> to vector<8x239xf32>
    %1044 = tpu.concatenate %1042, %1043 in 1 : vector<8x17xf32>, vector<8x239xf32> -> vector<8x256xf32>
    %1045 = vector.extract_strided_slice %0 {offsets = [0, 0], sizes = [1, 256], strides = [1, 1]} : vector<8x256xf32> to vector<1x256xf32>
    %1046 = vector.shape_cast %1045 : vector<1x256xf32> to vector<256xf32>
    %1047 = vector.shape_cast %1046 : vector<256xf32> to vector<1x256xf32>
    %1048 = vector.broadcast %1047 : vector<1x256xf32> to vector<8x256xf32>
    %1049 = arith.mulf %1044, %1048 : vector<8x256xf32>
    %1050 = vector.extract_strided_slice %1041 {offsets = [0, 240], sizes = [8, 16], strides = [1, 1]} : vector<8x256xf32> to vector<8x16xf32>
    %1051 = vector.extract_strided_slice %1041 {offsets = [0, 0], sizes = [8, 240], strides = [1, 1]} : vector<8x256xf32> to vector<8x240xf32>
    %1052 = tpu.concatenate %1050, %1051 in 1 : vector<8x16xf32>, vector<8x240xf32> -> vector<8x256xf32>
    %1053 = vector.extract_strided_slice %0 {offsets = [1, 0], sizes = [1, 256], strides = [1, 1]} : vector<8x256xf32> to vector<1x256xf32>
    %1054 = vector.shape_cast %1053 : vector<1x256xf32> to vector<256xf32>
    %1055 = vector.shape_cast %1054 : vector<256xf32> to vector<1x256xf32>
    %1056 = vector.broadcast %1055 : vector<1x256xf32> to vector<8x256xf32>
    %1057 = arith.mulf %1052, %1056 : vector<8x256xf32>
    %1058 = vector.extract_strided_slice %1041 {offsets = [0, 241], sizes = [8, 15], strides = [1, 1]} : vector<8x256xf32> to vector<8x15xf32>
    %1059 = vector.extract_strided_slice %1041 {offsets = [0, 0], sizes = [8, 241], strides = [1, 1]} : vector<8x256xf32> to vector<8x241xf32>
    %1060 = tpu.concatenate %1058, %1059 in 1 : vector<8x15xf32>, vector<8x241xf32> -> vector<8x256xf32>
    %1061 = vector.extract_strided_slice %0 {offsets = [2, 0], sizes = [1, 256], strides = [1, 1]} : vector<8x256xf32> to vector<1x256xf32>
    %1062 = vector.shape_cast %1061 : vector<1x256xf32> to vector<256xf32>
    %1063 = vector.shape_cast %1062 : vector<256xf32> to vector<1x256xf32>
    %1064 = vector.broadcast %1063 : vector<1x256xf32> to vector<8x256xf32>
    %1065 = arith.mulf %1060, %1064 : vector<8x256xf32>
    %1066 = vector.extract_strided_slice %1041 {offsets = [0, 255], sizes = [8, 1], strides = [1, 1]} : vector<8x256xf32> to vector<8x1xf32>
    %1067 = vector.extract_strided_slice %1041 {offsets = [0, 0], sizes = [8, 255], strides = [1, 1]} : vector<8x256xf32> to vector<8x255xf32>
    %1068 = tpu.concatenate %1066, %1067 in 1 : vector<8x1xf32>, vector<8x255xf32> -> vector<8x256xf32>
    %1069 = vector.extract_strided_slice %0 {offsets = [3, 0], sizes = [1, 256], strides = [1, 1]} : vector<8x256xf32> to vector<1x256xf32>
    %1070 = vector.shape_cast %1069 : vector<1x256xf32> to vector<256xf32>
    %1071 = vector.shape_cast %1070 : vector<256xf32> to vector<1x256xf32>
    %1072 = vector.broadcast %1071 : vector<1x256xf32> to vector<8x256xf32>
    %1073 = arith.mulf %1068, %1072 : vector<8x256xf32>
    %1074 = vector.extract_strided_slice %1041 {offsets = [0, 1], sizes = [8, 255], strides = [1, 1]} : vector<8x256xf32> to vector<8x255xf32>
    %1075 = vector.extract_strided_slice %1041 {offsets = [0, 0], sizes = [8, 1], strides = [1, 1]} : vector<8x256xf32> to vector<8x1xf32>
    %1076 = tpu.concatenate %1074, %1075 in 1 : vector<8x255xf32>, vector<8x1xf32> -> vector<8x256xf32>
    %1077 = vector.extract_strided_slice %0 {offsets = [4, 0], sizes = [1, 256], strides = [1, 1]} : vector<8x256xf32> to vector<1x256xf32>
    %1078 = vector.shape_cast %1077 : vector<1x256xf32> to vector<256xf32>
    %1079 = vector.shape_cast %1078 : vector<256xf32> to vector<1x256xf32>
    %1080 = vector.broadcast %1079 : vector<1x256xf32> to vector<8x256xf32>
    %1081 = arith.mulf %1076, %1080 : vector<8x256xf32>
    %1082 = vector.extract_strided_slice %1041 {offsets = [0, 15], sizes = [8, 241], strides = [1, 1]} : vector<8x256xf32> to vector<8x241xf32>
    %1083 = vector.extract_strided_slice %1041 {offsets = [0, 0], sizes = [8, 15], strides = [1, 1]} : vector<8x256xf32> to vector<8x15xf32>
    %1084 = tpu.concatenate %1082, %1083 in 1 : vector<8x241xf32>, vector<8x15xf32> -> vector<8x256xf32>
    %1085 = vector.extract_strided_slice %0 {offsets = [5, 0], sizes = [1, 256], strides = [1, 1]} : vector<8x256xf32> to vector<1x256xf32>
    %1086 = vector.shape_cast %1085 : vector<1x256xf32> to vector<256xf32>
    %1087 = vector.shape_cast %1086 : vector<256xf32> to vector<1x256xf32>
    %1088 = vector.broadcast %1087 : vector<1x256xf32> to vector<8x256xf32>
    %1089 = arith.mulf %1084, %1088 : vector<8x256xf32>
    %1090 = vector.extract_strided_slice %1041 {offsets = [0, 16], sizes = [8, 240], strides = [1, 1]} : vector<8x256xf32> to vector<8x240xf32>
    %1091 = vector.extract_strided_slice %1041 {offsets = [0, 0], sizes = [8, 16], strides = [1, 1]} : vector<8x256xf32> to vector<8x16xf32>
    %1092 = tpu.concatenate %1090, %1091 in 1 : vector<8x240xf32>, vector<8x16xf32> -> vector<8x256xf32>
    %1093 = vector.extract_strided_slice %0 {offsets = [6, 0], sizes = [1, 256], strides = [1, 1]} : vector<8x256xf32> to vector<1x256xf32>
    %1094 = vector.shape_cast %1093 : vector<1x256xf32> to vector<256xf32>
    %1095 = vector.shape_cast %1094 : vector<256xf32> to vector<1x256xf32>
    %1096 = vector.broadcast %1095 : vector<1x256xf32> to vector<8x256xf32>
    %1097 = arith.mulf %1092, %1096 : vector<8x256xf32>
    %1098 = vector.extract_strided_slice %1041 {offsets = [0, 17], sizes = [8, 239], strides = [1, 1]} : vector<8x256xf32> to vector<8x239xf32>
    %1099 = vector.extract_strided_slice %1041 {offsets = [0, 0], sizes = [8, 17], strides = [1, 1]} : vector<8x256xf32> to vector<8x17xf32>
    %1100 = tpu.concatenate %1098, %1099 in 1 : vector<8x239xf32>, vector<8x17xf32> -> vector<8x256xf32>
    %1101 = vector.extract_strided_slice %0 {offsets = [7, 0], sizes = [1, 256], strides = [1, 1]} : vector<8x256xf32> to vector<1x256xf32>
    %1102 = vector.shape_cast %1101 : vector<1x256xf32> to vector<256xf32>
    %1103 = vector.shape_cast %1102 : vector<256xf32> to vector<1x256xf32>
    %1104 = vector.broadcast %1103 : vector<1x256xf32> to vector<8x256xf32>
    %1105 = arith.mulf %1100, %1104 : vector<8x256xf32>
    %1106 = tpu.concatenate %1049, %1057, %1065, %1073, %1041, %1081, %1089, %1097, %1105 in 0 : vector<8x256xf32>, vector<8x256xf32>, vector<8x256xf32>, vector<8x256xf32>, vector<8x256xf32>, vector<8x256xf32>, vector<8x256xf32>, vector<8x256xf32>, vector<8x256xf32> -> vector<72x256xf32>
    %c0_163 = arith.constant 0 : index
    %c0_164 = arith.constant 0 : index
    %1107 = vector.load %arg32[%c0_163, %c0_164] : memref<16x72xbf16, #tpu.memory_space<vmem>>, vector<16x72xbf16>
    %1108 = arith.truncf %1106 : vector<72x256xf32> to vector<72x256xbf16>
    %cst_165 = arith.constant dense<0.000000e+00> : vector<16x256xf32>
    %1109 = tpu.matmul %1107, %1108, %cst_165 {dimension_numbers = #tpu.dot_dimension_numbers<[1], [0], [0], [1], [0, 0, 1, 1], [], []>} : vector<16x72xbf16>, vector<72x256xbf16>, vector<16x256xf32> -> vector<16x256xf32>
    %c0_166 = arith.constant 0 : index
    %c0_167 = arith.constant 0 : index
    %1110 = vector.load %arg33[%c0_166, %c0_167] : memref<16x1xf32, #tpu.memory_space<vmem>>, vector<16x1xf32>
    %1111 = vector.broadcast %1110 : vector<16x1xf32> to vector<16x256xf32>
    %1112 = arith.addf %1109, %1111 : vector<16x256xf32>
    %cst_168 = arith.constant 0.000000e+00 : f32
    %1113 = vector.broadcast %cst_168 : f32 to vector<16x256xf32>
    %1114 = arith.maximumf %1112, %1113 : vector<16x256xf32>
    %c0_169 = arith.constant 0 : index
    %c0_170 = arith.constant 0 : index
    %1115 = vector.load %arg34[%c0_169, %c0_170] : memref<1x16xbf16, #tpu.memory_space<vmem>>, vector<1x16xbf16>
    %1116 = arith.truncf %1114 : vector<16x256xf32> to vector<16x256xbf16>
    %cst_171 = arith.constant dense<0.000000e+00> : vector<1x256xf32>
    %1117 = tpu.matmul %1115, %1116, %cst_171 {dimension_numbers = #tpu.dot_dimension_numbers<[1], [0], [0], [1], [0, 0, 1, 1], [], []>} : vector<1x16xbf16>, vector<16x256xbf16>, vector<1x256xf32> -> vector<1x256xf32>
    %c0_172 = arith.constant 0 : index
    %c0_173 = arith.constant 0 : index
    %1118 = vector.load %arg35[%c0_172, %c0_173] : memref<1x1xf32, #tpu.memory_space<vmem>>, vector<1x1xf32>
    %1119 = vector.broadcast %1118 : vector<1x1xf32> to vector<1x256xf32>
    %1120 = arith.addf %1117, %1119 : vector<1x256xf32>
    %cst_174 = arith.constant 0.000000e+00 : f32
    %1121 = vector.broadcast %cst_174 : f32 to vector<1x256xf32>
    %1122 = arith.subf %1121, %1120 : vector<1x256xf32>
    %1123 = math.exp %1122 : vector<1x256xf32>
    %cst_175 = arith.constant 1.000000e+00 : f32
    %1124 = vector.broadcast %cst_175 : f32 to vector<1x256xf32>
    %1125 = arith.addf %1124, %1123 : vector<1x256xf32>
    %1126 = tpu.reciprocal %1125 {approx = true} : vector<1x256xf32> -> vector<1x256xf32>
    %c0_176 = arith.constant 0 : index
    %c0_177 = arith.constant 0 : index
    %c0_178 = arith.constant 0 : index
    %1127 = vector.load %arg43[%c0_176, %c0_177, %c0_178] : memref<1x1x256xf32, #tpu.memory_space<vmem>>, vector<1x1x256xf32>
    %1128 = vector.shape_cast %1127 : vector<1x1x256xf32> to vector<1x256xf32>
    %1129 = vector.shape_cast %1126 : vector<1x256xf32> to vector<1x1x256xf32>
    tpu.vector_store %arg43[%c0_176, %c0_177, %c0_178], %1129 {strides = array<i32>} : memref<1x1x256xf32, #tpu.memory_space<vmem>>, vector<1x1x256xf32>,
    return
  }
  func.func @transform_0(%arg0: i32) -> (i32, i32, i32) {
    %c0_i32 = arith.constant 0 : i32
    %c0_i32_0 = arith.constant 0 : i32
    %c0_i32_1 = arith.constant 0 : i32
    return %arg0, %c0_i32, %c0_i32_0 : i32, i32, i32
  }
  func.func @transform_1(%arg0: i32) -> (i32, i32) {
    %c0_i32 = arith.constant 0 : i32
    %c0_i32_0 = arith.constant 0 : i32
    %c0_i32_1 = arith.constant 0 : i32
    return %c0_i32, %c0_i32_0 : i32, i32
  }
  func.func @transform_2(%arg0: i32) -> (i32, i32) {
    %c0_i32 = arith.constant 0 : i32
    %c0_i32_0 = arith.constant 0 : i32
    %c0_i32_1 = arith.constant 0 : i32
    return %c0_i32, %c0_i32_0 : i32, i32
  }
  func.func @transform_3(%arg0: i32) -> (i32, i32) {
    %c0_i32 = arith.constant 0 : i32
    %c0_i32_0 = arith.constant 0 : i32
    %c0_i32_1 = arith.constant 0 : i32
    return %c0_i32, %c0_i32_0 : i32, i32
  }
  func.func @transform_4(%arg0: i32) -> (i32, i32) {
    %c0_i32 = arith.constant 0 : i32
    %c0_i32_0 = arith.constant 0 : i32
    %c0_i32_1 = arith.constant 0 : i32
    return %c0_i32, %c0_i32_0 : i32, i32
  }
  func.func @transform_5(%arg0: i32) -> (i32, i32) {
    %c0_i32 = arith.constant 0 : i32
    %c0_i32_0 = arith.constant 0 : i32
    %c0_i32_1 = arith.constant 0 : i32
    return %c0_i32, %c0_i32_0 : i32, i32
  }
  func.func @transform_6(%arg0: i32) -> (i32, i32) {
    %c0_i32 = arith.constant 0 : i32
    %c0_i32_0 = arith.constant 0 : i32
    %c0_i32_1 = arith.constant 0 : i32
    return %c0_i32, %c0_i32_0 : i32, i32
  }
  func.func @transform_7(%arg0: i32) -> (i32, i32) {
    %c0_i32 = arith.constant 0 : i32
    %c0_i32_0 = arith.constant 0 : i32
    %c0_i32_1 = arith.constant 0 : i32
    return %c0_i32, %c0_i32_0 : i32, i32
  }
  func.func @transform_8(%arg0: i32) -> (i32, i32) {
    %c0_i32 = arith.constant 0 : i32
    %c0_i32_0 = arith.constant 0 : i32
    %c0_i32_1 = arith.constant 0 : i32
    return %c0_i32, %c0_i32_0 : i32, i32
  }
  func.func @transform_9(%arg0: i32) -> (i32, i32) {
    %c0_i32 = arith.constant 0 : i32
    %c0_i32_0 = arith.constant 0 : i32
    %c0_i32_1 = arith.constant 0 : i32
    return %c0_i32, %c0_i32_0 : i32, i32
  }
  func.func @transform_10(%arg0: i32) -> (i32, i32) {
    %c0_i32 = arith.constant 0 : i32
    %c0_i32_0 = arith.constant 0 : i32
    %c0_i32_1 = arith.constant 0 : i32
    return %c0_i32, %c0_i32_0 : i32, i32
  }
  func.func @transform_11(%arg0: i32) -> (i32, i32) {
    %c0_i32 = arith.constant 0 : i32
    %c0_i32_0 = arith.constant 0 : i32
    %c0_i32_1 = arith.constant 0 : i32
    return %c0_i32, %c0_i32_0 : i32, i32
  }
  func.func @transform_12(%arg0: i32) -> (i32, i32) {
    %c0_i32 = arith.constant 0 : i32
    %c0_i32_0 = arith.constant 0 : i32
    %c0_i32_1 = arith.constant 0 : i32
    return %c0_i32, %c0_i32_0 : i32, i32
  }
  func.func @transform_13(%arg0: i32) -> (i32, i32) {
    %c0_i32 = arith.constant 0 : i32
    %c0_i32_0 = arith.constant 0 : i32
    %c0_i32_1 = arith.constant 0 : i32
    return %c0_i32, %c0_i32_0 : i32, i32
  }
  func.func @transform_14(%arg0: i32) -> (i32, i32) {
    %c0_i32 = arith.constant 0 : i32
    %c0_i32_0 = arith.constant 0 : i32
    %c0_i32_1 = arith.constant 0 : i32
    return %c0_i32, %c0_i32_0 : i32, i32
  }
  func.func @transform_15(%arg0: i32) -> (i32, i32, i32) {
    %c0_i32 = arith.constant 0 : i32
    %c0_i32_0 = arith.constant 0 : i32
    %c0_i32_1 = arith.constant 0 : i32
    %c0_i32_2 = arith.constant 0 : i32
    return %c0_i32, %c0_i32_0, %c0_i32_1 : i32, i32, i32
  }
  func.func @transform_16(%arg0: i32) -> (i32, i32) {
    %c0_i32 = arith.constant 0 : i32
    %c0_i32_0 = arith.constant 0 : i32
    %c0_i32_1 = arith.constant 0 : i32
    return %c0_i32, %c0_i32_0 : i32, i32
  }
  func.func @transform_17(%arg0: i32) -> (i32, i32) {
    %c0_i32 = arith.constant 0 : i32
    %c0_i32_0 = arith.constant 0 : i32
    %c0_i32_1 = arith.constant 0 : i32
    return %c0_i32, %c0_i32_0 : i32, i32
  }
  func.func @transform_18(%arg0: i32) -> (i32, i32) {
    %c0_i32 = arith.constant 0 : i32
    %c0_i32_0 = arith.constant 0 : i32
    %c0_i32_1 = arith.constant 0 : i32
    return %c0_i32, %c0_i32_0 : i32, i32
  }
  func.func @transform_19(%arg0: i32) -> (i32, i32) {
    %c0_i32 = arith.constant 0 : i32
    %c0_i32_0 = arith.constant 0 : i32
    %c0_i32_1 = arith.constant 0 : i32
    return %c0_i32, %c0_i32_0 : i32, i32
  }
  func.func @transform_20(%arg0: i32) -> (i32, i32) {
    %c0_i32 = arith.constant 0 : i32
    %c0_i32_0 = arith.constant 0 : i32
    %c0_i32_1 = arith.constant 0 : i32
    return %c0_i32, %c0_i32_0 : i32, i32
  }
  func.func @transform_21(%arg0: i32) -> (i32, i32) {
    %c0_i32 = arith.constant 0 : i32
    %c0_i32_0 = arith.constant 0 : i32
    %c0_i32_1 = arith.constant 0 : i32
    return %c0_i32, %c0_i32_0 : i32, i32
  }
  func.func @transform_22(%arg0: i32) -> (i32, i32) {
    %c0_i32 = arith.constant 0 : i32
    %c0_i32_0 = arith.constant 0 : i32
    %c0_i32_1 = arith.constant 0 : i32
    return %c0_i32, %c0_i32_0 : i32, i32
  }
  func.func @transform_23(%arg0: i32) -> (i32, i32) {
    %c0_i32 = arith.constant 0 : i32
    %c0_i32_0 = arith.constant 0 : i32
    %c0_i32_1 = arith.constant 0 : i32
    return %c0_i32, %c0_i32_0 : i32, i32
  }
  func.func @transform_24(%arg0: i32) -> (i32, i32, i32) {
    %c0_i32 = arith.constant 0 : i32
    %c0_i32_0 = arith.constant 0 : i32
    %c0_i32_1 = arith.constant 0 : i32
    %c0_i32_2 = arith.constant 0 : i32
    return %c0_i32, %c0_i32_0, %c0_i32_1 : i32, i32, i32
  }
  func.func @transform_25(%arg0: i32) -> (i32, i32) {
    %c0_i32 = arith.constant 0 : i32
    %c0_i32_0 = arith.constant 0 : i32
    %c0_i32_1 = arith.constant 0 : i32
    return %c0_i32, %c0_i32_0 : i32, i32
  }
  func.func @transform_26(%arg0: i32) -> (i32, i32) {
    %c0_i32 = arith.constant 0 : i32
    %c0_i32_0 = arith.constant 0 : i32
    %c0_i32_1 = arith.constant 0 : i32
    return %c0_i32, %c0_i32_0 : i32, i32
  }
  func.func @transform_27(%arg0: i32) -> (i32, i32) {
    %c0_i32 = arith.constant 0 : i32
    %c0_i32_0 = arith.constant 0 : i32
    %c0_i32_1 = arith.constant 0 : i32
    return %c0_i32, %c0_i32_0 : i32, i32
  }
  func.func @transform_28(%arg0: i32) -> (i32, i32) {
    %c0_i32 = arith.constant 0 : i32
    %c0_i32_0 = arith.constant 0 : i32
    %c0_i32_1 = arith.constant 0 : i32
    return %c0_i32, %c0_i32_0 : i32, i32
  }
  func.func @transform_29(%arg0: i32) -> (i32, i32) {
    %c0_i32 = arith.constant 0 : i32
    %c0_i32_0 = arith.constant 0 : i32
    %c0_i32_1 = arith.constant 0 : i32
    return %c0_i32, %c0_i32_0 : i32, i32
  }
  func.func @transform_30(%arg0: i32) -> (i32, i32) {
    %c0_i32 = arith.constant 0 : i32
    %c0_i32_0 = arith.constant 0 : i32
    %c0_i32_1 = arith.constant 0 : i32
    return %c0_i32, %c0_i32_0 : i32, i32
  }
  func.func @transform_31(%arg0: i32) -> (i32, i32) {
    %c0_i32 = arith.constant 0 : i32
    %c0_i32_0 = arith.constant 0 : i32
    %c0_i32_1 = arith.constant 0 : i32
    return %c0_i32, %c0_i32_0 : i32, i32
  }
  func.func @transform_32(%arg0: i32) -> (i32, i32) {
    %c0_i32 = arith.constant 0 : i32
    %c0_i32_0 = arith.constant 0 : i32
    %c0_i32_1 = arith.constant 0 : i32
    return %c0_i32, %c0_i32_0 : i32, i32
  }
  func.func @transform_33(%arg0: i32) -> (i32, i32) {
    %c0_i32 = arith.constant 0 : i32
    %c0_i32_0 = arith.constant 0 : i32
    %c0_i32_1 = arith.constant 0 : i32
    return %c0_i32, %c0_i32_0 : i32, i32
  }
  func.func @transform_34(%arg0: i32) -> (i32, i32) {
    %c0_i32 = arith.constant 0 : i32
    %c0_i32_0 = arith.constant 0 : i32
    %c0_i32_1 = arith.constant 0 : i32
    return %c0_i32, %c0_i32_0 : i32, i32
  }
  func.func @transform_35(%arg0: i32) -> (i32, i32) {
    %c0_i32 = arith.constant 0 : i32
    %c0_i32_0 = arith.constant 0 : i32
    %c0_i32_1 = arith.constant 0 : i32
    return %c0_i32, %c0_i32_0 : i32, i32
  }
  func.func @transform_36(%arg0: i32) -> (i32, i32) {
    %c0_i32 = arith.constant 0 : i32
    %c0_i32_0 = arith.constant 0 : i32
    %c0_i32_1 = arith.constant 0 : i32
    return %c0_i32, %c0_i32_0 : i32, i32
  }
  func.func @transform_37(%arg0: i32) -> (i32, i32) {
    %c0_i32 = arith.constant 0 : i32
    %c0_i32_0 = arith.constant 0 : i32
    %c0_i32_1 = arith.constant 0 : i32
    return %c0_i32, %c0_i32_0 : i32, i32
  }
  func.func @transform_38(%arg0: i32) -> (i32, i32) {
    %c0_i32 = arith.constant 0 : i32
    %c0_i32_0 = arith.constant 0 : i32
    %c0_i32_1 = arith.constant 0 : i32
    return %c0_i32, %c0_i32_0 : i32, i32
  }
  func.func @transform_39(%arg0: i32) -> (i32, i32) {
    %c0_i32 = arith.constant 0 : i32
    %c0_i32_0 = arith.constant 0 : i32
    %c0_i32_1 = arith.constant 0 : i32
    return %c0_i32, %c0_i32_0 : i32, i32
  }
  func.func @transform_40(%arg0: i32) -> (i32, i32, i32) {
    %c0_i32 = arith.constant 0 : i32
    %c0_i32_0 = arith.constant 0 : i32
    %c0_i32_1 = arith.constant 0 : i32
    %c0_i32_2 = arith.constant 0 : i32
    return %c0_i32, %c0_i32_0, %c0_i32_1 : i32, i32, i32
  }
  func.func @transform_41(%arg0: i32) -> (i32, i32, i32) {
    %c0_i32 = arith.constant 0 : i32
    %c0_i32_0 = arith.constant 0 : i32
    %c0_i32_1 = arith.constant 0 : i32
    %c0_i32_2 = arith.constant 0 : i32
    return %c0_i32, %c0_i32_0, %c0_i32_1 : i32, i32, i32
  }
  func.func @transform_42(%arg0: i32) -> (i32, i32, i32) {
    %c0_i32 = arith.constant 0 : i32
    %c0_i32_0 = arith.constant 0 : i32
    %c0_i32_1 = arith.constant 0 : i32
    return %arg0, %c0_i32, %c0_i32_0 : i32, i32, i32
  }
}

</mosaic_0001>

<llo_original>
// kernel: _lambda_.1
$region0: #{_lambda_.1}
  #allocation0 [shape = 'u32[]', space=smem, size = 0x4, offset = 0x4, fixed_abs, tag = 'smem constant byte address 0x4 - core index']
  #allocation1 [shape = 'u32[144,128]{1,0:T(1,128)}', space=vmem, size = 0x12000, scoped, tag = 'internal scratch']
  #allocation2 [shape = 'f32[1,1]{1,0:T(1,128)S(1)}', space=vmem, size = 0x200, scoped, tag = 'scoped memory for _lambda_.1']
  %s0 = inlined_call_operand.smem [shape: u32[43], index: -1, kind: input, shape index: {}]
  %s1 = sld [smem:[%s0]]
  %s2 = scalar_lea.smem %s0, 1
  %s3 = sld [smem:[%s2]]
  %s4 = scalar_lea.smem %s0, 2
  %s5 = sld [smem:[%s4]]
  %s6 = scalar_lea.smem %s0, 3
  %s7 = sld [smem:[%s6]]
  %s8 = scalar_lea.smem %s0, 4
  %s9 = sld [smem:[%s8]]
  %s10 = scalar_lea.smem %s0, 5
  %s11 = sld [smem:[%s10]]
  %s12 = scalar_lea.smem %s0, 6
  %s13 = sld [smem:[%s12]]
  %s14 = scalar_lea.smem %s0, 7
  %s15 = sld [smem:[%s14]]
  %s16 = scalar_lea.smem %s0, 8
  %s17 = sld [smem:[%s16]]
  %s18 = scalar_lea.smem %s0, 9
  %s19 = sld [smem:[%s18]]
  %s20 = scalar_lea.smem %s0, 10
  %s21 = sld [smem:[%s20]]
  %s22 = scalar_lea.smem %s0, 11
  %s23 = sld [smem:[%s22]]
  %s24 = scalar_lea.smem %s0, 12
  %s25 = sld [smem:[%s24]]
  %s26 = scalar_lea.smem %s0, 13
  %s27 = sld [smem:[%s26]]
  %s28 = scalar_lea.smem %s0, 14
  %s29 = sld [smem:[%s28]]
  %s30 = scalar_lea.smem %s0, 15
  %s31 = sld [smem:[%s30]]
  %s32 = scalar_lea.smem %s0, 16
  %s33 = sld [smem:[%s32]]
  %s34 = scalar_lea.smem %s0, 17
  %s35 = sld [smem:[%s34]]
  %s36 = scalar_lea.smem %s0, 18
  %s37 = sld [smem:[%s36]]
  %s38 = scalar_lea.smem %s0, 19
  %s39 = sld [smem:[%s38]]
  %s40 = scalar_lea.smem %s0, 20
  %s41 = sld [smem:[%s40]]
  %s42 = scalar_lea.smem %s0, 21
  %s43 = sld [smem:[%s42]]
  %s44 = scalar_lea.smem %s0, 22
  %s45 = sld [smem:[%s44]]
  %s46 = scalar_lea.smem %s0, 23
  %s47 = sld [smem:[%s46]]
  %s48 = scalar_lea.smem %s0, 24
  %s49 = sld [smem:[%s48]]
  %s50 = scalar_lea.smem %s0, 25
  %s51 = sld [smem:[%s50]]
  %s52 = scalar_lea.smem %s0, 26
  %s53 = sld [smem:[%s52]]
  %s54 = scalar_lea.smem %s0, 27
  %s55 = sld [smem:[%s54]]
  %s56 = scalar_lea.smem %s0, 28
  %s57 = sld [smem:[%s56]]
  %s58 = scalar_lea.smem %s0, 29
  %s59 = sld [smem:[%s58]]
  %s60 = scalar_lea.smem %s0, 30
  %s61 = sld [smem:[%s60]]
  %s62 = scalar_lea.smem %s0, 31
  %s63 = sld [smem:[%s62]]
  %s64 = scalar_lea.smem %s0, 32
  %s65 = sld [smem:[%s64]]
  %s66 = scalar_lea.smem %s0, 33
  %s67 = sld [smem:[%s66]]
  %s68 = scalar_lea.smem %s0, 34
  %s69 = sld [smem:[%s68]]
  %s70 = scalar_lea.smem %s0, 35
  %s71 = sld [smem:[%s70]]
  %s72 = scalar_lea.smem %s0, 36
  %s73 = sld [smem:[%s72]]
  %s74 = scalar_lea.smem %s0, 37
  %s75 = sld [smem:[%s74]]
  %s76 = scalar_lea.smem %s0, 38
  %s77 = sld [smem:[%s76]]
  %s78 = scalar_lea.smem %s0, 39
  %s79 = sld [smem:[%s78]]
  %s80 = scalar_lea.smem %s0, 40
  %s81 = sld [smem:[%s80]]
  %s82 = scalar_lea.smem %s0, 41
  %s83 = sld [smem:[%s82]]
  %s84 = scalar_lea.smem %s0, 42
  %s85 = sld [smem:[%s84]]
  %s86 = sld [smem:[#allocation0]]
  $region201: #{_lambda_.1} parent=0
    _
  %s88 = ssub.s32 1, %s86
  %s89 = scalar_select 0, %s88, %s86
  %v90 = vstv %s69
  %91 = vst [vmem:[#allocation2] sm:$0x1] %v90
  loop: start=0, step=1, limit=4
  $region2: #{_lambda_.1} parent=0 // loop_pre_header
    _
  $region3: #{_lambda_.1} parent=0 // loop_header
    %s93 = sphi 0, %s97
    %p94 = scmp.ge.s32.totalorder %s93, 4
    %s103 = sphi 0, %s105
    %s106 = sphi 0, %s103
    %s107 = sphi 0, %s106
    %s123 = sphi 0, %s107
    %s127 = sphi 0, %s127
    %s129 = sphi 0, %s127
    %s130 = sphi 0, %s129
    %s144 = sphi 0, %s130
    %s148 = sphi 0, %s148
    %s150 = sphi 0, %s148
    %s151 = sphi 0, %s150
    %s165 = sphi 0, %s151
    %s169 = sphi 0, %s169
    %s171 = sphi 0, %s169
    %s172 = sphi 0, %s171
    %s186 = sphi 0, %s172
    %s190 = sphi 0, %s190
    %s192 = sphi 0, %s190
    %s193 = sphi 0, %s192
    %s207 = sphi 0, %s193
    %s211 = sphi 0, %s211
    %s213 = sphi 0, %s211
    %s214 = sphi 0, %s213
    %s228 = sphi 0, %s214
    %s232 = sphi 0, %s232
    %s234 = sphi 0, %s232
    %s235 = sphi 0, %s234
    %s249 = sphi 0, %s235
    %s253 = sphi 0, %s253
    %s255 = sphi 0, %s253
    %s256 = sphi 0, %s255
    %s270 = sphi 0, %s256
    %s274 = sphi 0, %s274
    %s276 = sphi 0, %s274
    %s277 = sphi 0, %s276
    %s291 = sphi 0, %s277
    %s295 = sphi 0, %s295
    %s297 = sphi 0, %s295
    %s298 = sphi 0, %s297
    %s312 = sphi 0, %s298
    %s316 = sphi 0, %s316
    %s318 = sphi 0, %s316
    %s319 = sphi 0, %s318
    %s333 = sphi 0, %s319
    %s337 = sphi 0, %s337
    %s339 = sphi 0, %s337
    %s340 = sphi 0, %s339
    %s354 = sphi 0, %s340
    %s358 = sphi 0, %s358
    %s360 = sphi 0, %s358
    %s361 = sphi 0, %s360
    %s375 = sphi 0, %s361
    %s379 = sphi 0, %s379
    %s381 = sphi 0, %s379
    %s382 = sphi 0, %s381
    %s396 = sphi 0, %s382
    %s400 = sphi 0, %s400
    %s402 = sphi 0, %s400
    %s403 = sphi 0, %s402
    %s417 = sphi 0, %s403
    %s421 = sphi 0, %s421
    %s423 = sphi 0, %s421
    %s424 = sphi 0, %s423
    %s438 = sphi 0, %s424
    %s442 = sphi 0, %s442
    %s444 = sphi 0, %s442
    %s445 = sphi 0, %s444
    %s459 = sphi 0, %s445
    %s463 = sphi 0, %s463
    %s465 = sphi 0, %s463
    %s466 = sphi 0, %s465
    %s480 = sphi 0, %s466
    %s484 = sphi 0, %s484
    %s486 = sphi 0, %s484
    %s487 = sphi 0, %s486
    %s501 = sphi 0, %s487
    %s505 = sphi 0, %s505
    %s507 = sphi 0, %s505
    %s508 = sphi 0, %s507
    %s522 = sphi 0, %s508
    %s526 = sphi 0, %s526
    %s528 = sphi 0, %s526
    %s529 = sphi 0, %s528
    %s543 = sphi 0, %s529
    %s547 = sphi 0, %s547
    %s549 = sphi 0, %s547
    %s550 = sphi 0, %s549
    %s564 = sphi 0, %s550
    %s568 = sphi 0, %s568
    %s570 = sphi 0, %s568
    %s571 = sphi 0, %s570
    %s585 = sphi 0, %s571
    %s589 = sphi 0, %s589
    %s591 = sphi 0, %s589
    %s592 = sphi 0, %s591
    %s606 = sphi 0, %s592
    %s610 = sphi 0, %s610
    %s612 = sphi 0, %s610
    %s613 = sphi 0, %s612
    %s627 = sphi 0, %s613
    %s631 = sphi 0, %s631
    %s633 = sphi 0, %s631
    %s634 = sphi 0, %s633
    %s648 = sphi 0, %s634
    %s652 = sphi 0, %s652
    %s654 = sphi 0, %s652
    %s655 = sphi 0, %s654
    %s669 = sphi 0, %s655
    %s673 = sphi 0, %s673
    %s675 = sphi 0, %s673
    %s676 = sphi 0, %s675
    %s690 = sphi 0, %s676
    %s694 = sphi 0, %s694
    %s696 = sphi 0, %s694
    %s697 = sphi 0, %s696
    %s711 = sphi 0, %s697
    %s715 = sphi 0, %s715
    %s717 = sphi 0, %s715
    %s718 = sphi 0, %s717
    %s732 = sphi 0, %s718
    %s736 = sphi 0, %s736
    %s738 = sphi 0, %s736
    %s739 = sphi 0, %s738
    %s753 = sphi 0, %s739
    %s757 = sphi 0, %s757
    %s759 = sphi 0, %s757
    %s760 = sphi 0, %s759
    %s774 = sphi 0, %s760
    %s778 = sphi 0, %s778
    %s780 = sphi 0, %s778
    %s781 = sphi 0, %s780
    %s795 = sphi 0, %s781
    %s799 = sphi 0, %s799
    %s801 = sphi 0, %s799
    %s802 = sphi 0, %s801
    %s816 = sphi 0, %s802
    %s820 = sphi 0, %s820
    %s822 = sphi 0, %s820
    %s823 = sphi 0, %s822
    %s837 = sphi 0, %s823
    %s841 = sphi 0, %s841
    %s843 = sphi 0, %s841
    %s844 = sphi 0, %s843
    %s858 = sphi 0, %s844
    %s862 = sphi 0, %s862
    %s864 = sphi 0, %s862
    %s865 = sphi 0, %s864
    %s879 = sphi 0, %s865
    %s883 = sphi 0, %s883
    %s885 = sphi 0, %s883
    %s886 = sphi 0, %s885
    %s900 = sphi 0, %s886
    %s904 = sphi 0, %s904
    %s906 = sphi 0, %s904
    %s907 = sphi 0, %s906
    %s921 = sphi 0, %s907
    %s925 = sphi 0, %s925
    %s927 = sphi 0, %s925
    %s928 = sphi 0, %s927
    %s942 = sphi 0, %s928
    %s946 = sphi 0, %s946
    %s948 = sphi 0, %s946
    %s949 = sphi 0, %s948
    %s963 = sphi 0, %s949
    %s967 = sphi 0, %s967
    %s969 = sphi 0, %s967
    %s970 = sphi 0, %s969
    %s984 = sphi 0, %s970
    %s990 = sphi 0, %s992
    %s993 = sphi 0, %s990
    %s994 = sphi 0, %s993
    %s1010 = sphi 0, %s994
  $region4: #{_lambda_.1} parent=0 // loop_header_branch
    %96 = sbr.rel (%p94) target = $region8
  $region5: #{_lambda_.1} parent=0 // loop_body
    %s98 = ssub.s32 %s93, 1
    %s99 = ssub.s32 %s93, 2
    %s100 = sadd.s32 %s93, 1
    %s101 = ssub.s32 %s93, %s100
    %p102 = scmp.eq.s32.totalorder %s101, 0
    %s104 = sadd.s32 %s103, 1
    %s105 = scalar_select %p102, %s103, %s104
    %p108 = pneg %p102
    %p109 = scmp.eq.s32.totalorder %s93, 1
    %p110 = por %p108, %p109
    %p111 = scmp.ne.s32.totalorder %s103, %s106
    %p112 = scmp.eq.s32.totalorder %s93, 0
    %p113 = por %p111, %p112
    %p114 = scmp.ne.s32.totalorder %s103, %s106
    %p115 = scmp.eq.s32.totalorder %s98, 1
    %p116 = por %p114, %p115
    %p117 = scmp.ne.s32.totalorder %s106, %s107
    %p118 = scmp.eq.s32.totalorder %s98, 0
    %p119 = por %p117, %p118
    %p120 = scmp.ne.s32.totalorder %s106, %s107
    %p121 = scmp.eq.s32.totalorder %s99, 1
    %p122 = por %p120, %p121
    %p124 = scmp.ne.s32.totalorder %s107, %s123
    %p125 = scmp.eq.s32.totalorder %s99, 0
    %p126 = por %p124, %p125
    %s128 = sadd.s32 %s127, 1
    %p131 = scmp.eq.s32.totalorder %s93, 1
    %p132 = scmp.ne.s32.totalorder %s127, %s129
    %p133 = scmp.eq.s32.totalorder %s93, 0
    %p134 = por %p132, %p133
    %p135 = scmp.ne.s32.totalorder %s127, %s129
    %p136 = scmp.eq.s32.totalorder %s98, 1
    %p137 = por %p135, %p136
    %p138 = scmp.ne.s32.totalorder %s129, %s130
    %p139 = scmp.eq.s32.totalorder %s98, 0
    %p140 = por %p138, %p139
    %p141 = scmp.ne.s32.totalorder %s129, %s130
    %p142 = scmp.eq.s32.totalorder %s99, 1
    %p143 = por %p141, %p142
    %p145 = scmp.ne.s32.totalorder %s130, %s144
    %p146 = scmp.eq.s32.totalorder %s99, 0
    %p147 = por %p145, %p146
    %s149 = sadd.s32 %s148, 1
    %p152 = scmp.eq.s32.totalorder %s93, 1
    %p153 = scmp.ne.s32.totalorder %s148, %s150
    %p154 = scmp.eq.s32.totalorder %s93, 0
    %p155 = por %p153, %p154
    %p156 = scmp.ne.s32.totalorder %s148, %s150
    %p157 = scmp.eq.s32.totalorder %s98, 1
    %p158 = por %p156, %p157
    %p159 = scmp.ne.s32.totalorder %s150, %s151
    %p160 = scmp.eq.s32.totalorder %s98, 0
    %p161 = por %p159, %p160
    %p162 = scmp.ne.s32.totalorder %s150, %s151
    %p163 = scmp.eq.s32.totalorder %s99, 1
    %p164 = por %p162, %p163
    %p166 = scmp.ne.s32.totalorder %s151, %s165
    %p167 = scmp.eq.s32.totalorder %s99, 0
    %p168 = por %p166, %p167
    %s170 = sadd.s32 %s169, 1
    %p173 = scmp.eq.s32.totalorder %s93, 1
    %p174 = scmp.ne.s32.totalorder %s169, %s171
    %p175 = scmp.eq.s32.totalorder %s93, 0
    %p176 = por %p174, %p175
    %p177 = scmp.ne.s32.totalorder %s169, %s171
    %p178 = scmp.eq.s32.totalorder %s98, 1
    %p179 = por %p177, %p178
    %p180 = scmp.ne.s32.totalorder %s171, %s172
    %p181 = scmp.eq.s32.totalorder %s98, 0
    %p182 = por %p180, %p181
    %p183 = scmp.ne.s32.totalorder %s171, %s172
    %p184 = scmp.eq.s32.totalorder %s99, 1
    %p185 = por %p183, %p184
    %p187 = scmp.ne.s32.totalorder %s172, %s186
    %p188 = scmp.eq.s32.totalorder %s99, 0
    %p189 = por %p187, %p188
    %s191 = sadd.s32 %s190, 1
    %p194 = scmp.eq.s32.totalorder %s93, 1
    %p195 = scmp.ne.s32.totalorder %s190, %s192
    %p196 = scmp.eq.s32.totalorder %s93, 0
    %p197 = por %p195, %p196
    %p198 = scmp.ne.s32.totalorder %s190, %s192
    %p199 = scmp.eq.s32.totalorder %s98, 1
    %p200 = por %p198, %p199
    %p201 = scmp.ne.s32.totalorder %s192, %s193
    %p202 = scmp.eq.s32.totalorder %s98, 0
    %p203 = por %p201, %p202
    %p204 = scmp.ne.s32.totalorder %s192, %s193
    %p205 = scmp.eq.s32.totalorder %s99, 1
    %p206 = por %p204, %p205
    %p208 = scmp.ne.s32.totalorder %s193, %s207
    %p209 = scmp.eq.s32.totalorder %s99, 0
    %p210 = por %p208, %p209
    %s212 = sadd.s32 %s211, 1
    %p215 = scmp.eq.s32.totalorder %s93, 1
    %p216 = scmp.ne.s32.totalorder %s211, %s213
    %p217 = scmp.eq.s32.totalorder %s93, 0
    %p218 = por %p216, %p217
    %p219 = scmp.ne.s32.totalorder %s211, %s213
    %p220 = scmp.eq.s32.totalorder %s98, 1
    %p221 = por %p219, %p220
    %p222 = scmp.ne.s32.totalorder %s213, %s214
    %p223 = scmp.eq.s32.totalorder %s98, 0
    %p224 = por %p222, %p223
    %p225 = scmp.ne.s32.totalorder %s213, %s214
    %p226 = scmp.eq.s32.totalorder %s99, 1
    %p227 = por %p225, %p226
    %p229 = scmp.ne.s32.totalorder %s214, %s228
    %p230 = scmp.eq.s32.totalorder %s99, 0
    %p231 = por %p229, %p230
    %s233 = sadd.s32 %s232, 1
    %p236 = scmp.eq.s32.totalorder %s93, 1
    %p237 = scmp.ne.s32.totalorder %s232, %s234
    %p238 = scmp.eq.s32.totalorder %s93, 0
    %p239 = por %p237, %p238
    %p240 = scmp.ne.s32.totalorder %s232, %s234
    %p241 = scmp.eq.s32.totalorder %s98, 1
    %p242 = por %p240, %p241
    %p243 = scmp.ne.s32.totalorder %s234, %s235
    %p244 = scmp.eq.s32.totalorder %s98, 0
    %p245 = por %p243, %p244
    %p246 = scmp.ne.s32.totalorder %s234, %s235
    %p247 = scmp.eq.s32.totalorder %s99, 1
    %p248 = por %p246, %p247
    %p250 = scmp.ne.s32.totalorder %s235, %s249
    %p251 = scmp.eq.s32.totalorder %s99, 0
    %p252 = por %p250, %p251
    %s254 = sadd.s32 %s253, 1
    %p257 = scmp.eq.s32.totalorder %s93, 1
    %p258 = scmp.ne.s32.totalorder %s253, %s255
    %p259 = scmp.eq.s32.totalorder %s93, 0
    %p260 = por %p258, %p259
    %p261 = scmp.ne.s32.totalorder %s253, %s255
    %p262 = scmp.eq.s32.totalorder %s98, 1
    %p263 = por %p261, %p262
    %p264 = scmp.ne.s32.totalorder %s255, %s256
    %p265 = scmp.eq.s32.totalorder %s98, 0
    %p266 = por %p264, %p265
    %p267 = scmp.ne.s32.totalorder %s255, %s256
    %p268 = scmp.eq.s32.totalorder %s99, 1
    %p269 = por %p267, %p268
    %p271 = scmp.ne.s32.totalorder %s256, %s270
    %p272 = scmp.eq.s32.totalorder %s99, 0
    %p273 = por %p271, %p272
    %s275 = sadd.s32 %s274, 1
    %p278 = scmp.eq.s32.totalorder %s93, 1
    %p279 = scmp.ne.s32.totalorder %s274, %s276
    %p280 = scmp.eq.s32.totalorder %s93, 0
    %p281 = por %p279, %p280
    %p282 = scmp.ne.s32.totalorder %s274, %s276
    %p283 = scmp.eq.s32.totalorder %s98, 1
    %p284 = por %p282, %p283
    %p285 = scmp.ne.s32.totalorder %s276, %s277
    %p286 = scmp.eq.s32.totalorder %s98, 0
    %p287 = por %p285, %p286
    %p288 = scmp.ne.s32.totalorder %s276, %s277
    %p289 = scmp.eq.s32.totalorder %s99, 1
    %p290 = por %p288, %p289
    %p292 = scmp.ne.s32.totalorder %s277, %s291
    %p293 = scmp.eq.s32.totalorder %s99, 0
    %p294 = por %p292, %p293
    %s296 = sadd.s32 %s295, 1
    %p299 = scmp.eq.s32.totalorder %s93, 1
    %p300 = scmp.ne.s32.totalorder %s295, %s297
    %p301 = scmp.eq.s32.totalorder %s93, 0
    %p302 = por %p300, %p301
    %p303 = scmp.ne.s32.totalorder %s295, %s297
    %p304 = scmp.eq.s32.totalorder %s98, 1
    %p305 = por %p303, %p304
    %p306 = scmp.ne.s32.totalorder %s297, %s298
    %p307 = scmp.eq.s32.totalorder %s98, 0
    %p308 = por %p306, %p307
    %p309 = scmp.ne.s32.totalorder %s297, %s298
    %p310 = scmp.eq.s32.totalorder %s99, 1
    %p311 = por %p309, %p310
    %p313 = scmp.ne.s32.totalorder %s298, %s312
    %p314 = scmp.eq.s32.totalorder %s99, 0
    %p315 = por %p313, %p314
    %s317 = sadd.s32 %s316, 1
    %p320 = scmp.eq.s32.totalorder %s93, 1
    %p321 = scmp.ne.s32.totalorder %s316, %s318
    %p322 = scmp.eq.s32.totalorder %s93, 0
    %p323 = por %p321, %p322
    %p324 = scmp.ne.s32.totalorder %s316, %s318
    %p325 = scmp.eq.s32.totalorder %s98, 1
    %p326 = por %p324, %p325
    %p327 = scmp.ne.s32.totalorder %s318, %s319
    %p328 = scmp.eq.s32.totalorder %s98, 0
    %p329 = por %p327, %p328
    %p330 = scmp.ne.s32.totalorder %s318, %s319
    %p331 = scmp.eq.s32.totalorder %s99, 1
    %p332 = por %p330, %p331
    %p334 = scmp.ne.s32.totalorder %s319, %s333
    %p335 = scmp.eq.s32.totalorder %s99, 0
    %p336 = por %p334, %p335
    %s338 = sadd.s32 %s337, 1
    %p341 = scmp.eq.s32.totalorder %s93, 1
    %p342 = scmp.ne.s32.totalorder %s337, %s339
    %p343 = scmp.eq.s32.totalorder %s93, 0
    %p344 = por %p342, %p343
    %p345 = scmp.ne.s32.totalorder %s337, %s339
    %p346 = scmp.eq.s32.totalorder %s98, 1
    %p347 = por %p345, %p346
    %p348 = scmp.ne.s32.totalorder %s339, %s340
    %p349 = scmp.eq.s32.totalorder %s98, 0
    %p350 = por %p348, %p349
    %p351 = scmp.ne.s32.totalorder %s339, %s340
    %p352 = scmp.eq.s32.totalorder %s99, 1
    %p353 = por %p351, %p352
    %p355 = scmp.ne.s32.totalorder %s340, %s354
    %p356 = scmp.eq.s32.totalorder %s99, 0
    %p357 = por %p355, %p356
    %s359 = sadd.s32 %s358, 1
    %p362 = scmp.eq.s32.totalorder %s93, 1
    %p363 = scmp.ne.s32.totalorder %s358, %s360
    %p364 = scmp.eq.s32.totalorder %s93, 0
    %p365 = por %p363, %p364
    %p366 = scmp.ne.s32.totalorder %s358, %s360
    %p367 = scmp.eq.s32.totalorder %s98, 1
    %p368 = por %p366, %p367
    %p369 = scmp.ne.s32.totalorder %s360, %s361
    %p370 = scmp.eq.s32.totalorder %s98, 0
    %p371 = por %p369, %p370
    %p372 = scmp.ne.s32.totalorder %s360, %s361
    %p373 = scmp.eq.s32.totalorder %s99, 1
    %p374 = por %p372, %p373
    %p376 = scmp.ne.s32.totalorder %s361, %s375
    %p377 = scmp.eq.s32.totalorder %s99, 0
    %p378 = por %p376, %p377
    %s380 = sadd.s32 %s379, 1
    %p383 = scmp.eq.s32.totalorder %s93, 1
    %p384 = scmp.ne.s32.totalorder %s379, %s381
    %p385 = scmp.eq.s32.totalorder %s93, 0
    %p386 = por %p384, %p385
    %p387 = scmp.ne.s32.totalorder %s379, %s381
    %p388 = scmp.eq.s32.totalorder %s98, 1
    %p389 = por %p387, %p388
    %p390 = scmp.ne.s32.totalorder %s381, %s382
    %p391 = scmp.eq.s32.totalorder %s98, 0
    %p392 = por %p390, %p391
    %p393 = scmp.ne.s32.totalorder %s381, %s382
    %p394 = scmp.eq.s32.totalorder %s99, 1
    %p395 = por %p393, %p394
    %p397 = scmp.ne.s32.totalorder %s382, %s396
    %p398 = scmp.eq.s32.totalorder %s99, 0
    %p399 = por %p397, %p398
    %s401 = sadd.s32 %s400, 1
    %p404 = scmp.eq.s32.totalorder %s93, 1
    %p405 = scmp.ne.s32.totalorder %s400, %s402
    %p406 = scmp.eq.s32.totalorder %s93, 0
    %p407 = por %p405, %p406
    %p408 = scmp.ne.s32.totalorder %s400, %s402
    %p409 = scmp.eq.s32.totalorder %s98, 1
    %p410 = por %p408, %p409
    %p411 = scmp.ne.s32.totalorder %s402, %s403
    %p412 = scmp.eq.s32.totalorder %s98, 0
    %p413 = por %p411, %p412
    %p414 = scmp.ne.s32.totalorder %s402, %s403
    %p415 = scmp.eq.s32.totalorder %s99, 1
    %p416 = por %p414, %p415
    %p418 = scmp.ne.s32.totalorder %s403, %s417
    %p419 = scmp.eq.s32.totalorder %s99, 0
    %p420 = por %p418, %p419
    %s422 = sadd.s32 %s421, 1
    %p425 = scmp.eq.s32.totalorder %s93, 1
    %p426 = scmp.ne.s32.totalorder %s421, %s423
    %p427 = scmp.eq.s32.totalorder %s93, 0
    %p428 = por %p426, %p427
    %p429 = scmp.ne.s32.totalorder %s421, %s423
    %p430 = scmp.eq.s32.totalorder %s98, 1
    %p431 = por %p429, %p430
    %p432 = scmp.ne.s32.totalorder %s423, %s424
    %p433 = scmp.eq.s32.totalorder %s98, 0
    %p434 = por %p432, %p433
    %p435 = scmp.ne.s32.totalorder %s423, %s424
    %p436 = scmp.eq.s32.totalorder %s99, 1
    %p437 = por %p435, %p436
    %p439 = scmp.ne.s32.totalorder %s424, %s438
    %p440 = scmp.eq.s32.totalorder %s99, 0
    %p441 = por %p439, %p440
    %s443 = sadd.s32 %s442, 1
    %p446 = scmp.eq.s32.totalorder %s93, 1
    %p447 = scmp.ne.s32.totalorder %s442, %s444
    %p448 = scmp.eq.s32.totalorder %s93, 0
    %p449 = por %p447, %p448
    %p450 = scmp.ne.s32.totalorder %s442, %s444
    %p451 = scmp.eq.s32.totalorder %s98, 1
    %p452 = por %p450, %p451
    %p453 = scmp.ne.s32.totalorder %s444, %s445
    %p454 = scmp.eq.s32.totalorder %s98, 0
    %p455 = por %p453, %p454
    %p456 = scmp.ne.s32.totalorder %s444, %s445
    %p457 = scmp.eq.s32.totalorder %s99, 1
    %p458 = por %p456, %p457
    %p460 = scmp.ne.s32.totalorder %s445, %s459
    %p461 = scmp.eq.s32.totalorder %s99, 0
    %p462 = por %p460, %p461
    %s464 = sadd.s32 %s463, 1
    %p467 = scmp.eq.s32.totalorder %s93, 1
    %p468 = scmp.ne.s32.totalorder %s463, %s465
    %p469 = scmp.eq.s32.totalorder %s93, 0
    %p470 = por %p468, %p469
    %p471 = scmp.ne.s32.totalorder %s463, %s465
    %p472 = scmp.eq.s32.totalorder %s98, 1
    %p473 = por %p471, %p472
    %p474 = scmp.ne.s32.totalorder %s465, %s466
    %p475 = scmp.eq.s32.totalorder %s98, 0
    %p476 = por %p474, %p475
    %p477 = scmp.ne.s32.totalorder %s465, %s466
    %p478 = scmp.eq.s32.totalorder %s99, 1
    %p479 = por %p477, %p478
    %p481 = scmp.ne.s32.totalorder %s466, %s480
    %p482 = scmp.eq.s32.totalorder %s99, 0
    %p483 = por %p481, %p482
    %s485 = sadd.s32 %s484, 1
    %p488 = scmp.eq.s32.totalorder %s93, 1
    %p489 = scmp.ne.s32.totalorder %s484, %s486
    %p490 = scmp.eq.s32.totalorder %s93, 0
    %p491 = por %p489, %p490
    %p492 = scmp.ne.s32.totalorder %s484, %s486
    %p493 = scmp.eq.s32.totalorder %s98, 1
    %p494 = por %p492, %p493
    %p495 = scmp.ne.s32.totalorder %s486, %s487
    %p496 = scmp.eq.s32.totalorder %s98, 0
    %p497 = por %p495, %p496
    %p498 = scmp.ne.s32.totalorder %s486, %s487
    %p499 = scmp.eq.s32.totalorder %s99, 1
    %p500 = por %p498, %p499
    %p502 = scmp.ne.s32.totalorder %s487, %s501
    %p503 = scmp.eq.s32.totalorder %s99, 0
    %p504 = por %p502, %p503
    %s506 = sadd.s32 %s505, 1
    %p509 = scmp.eq.s32.totalorder %s93, 1
    %p510 = scmp.ne.s32.totalorder %s505, %s507
    %p511 = scmp.eq.s32.totalorder %s93, 0
    %p512 = por %p510, %p511
    %p513 = scmp.ne.s32.totalorder %s505, %s507
    %p514 = scmp.eq.s32.totalorder %s98, 1
    %p515 = por %p513, %p514
    %p516 = scmp.ne.s32.totalorder %s507, %s508
    %p517 = scmp.eq.s32.totalorder %s98, 0
    %p518 = por %p516, %p517
    %p519 = scmp.ne.s32.totalorder %s507, %s508
    %p520 = scmp.eq.s32.totalorder %s99, 1
    %p521 = por %p519, %p520
    %p523 = scmp.ne.s32.totalorder %s508, %s522
    %p524 = scmp.eq.s32.totalorder %s99, 0
    %p525 = por %p523, %p524
    %s527 = sadd.s32 %s526, 1
    %p530 = scmp.eq.s32.totalorder %s93, 1
    %p531 = scmp.ne.s32.totalorder %s526, %s528
    %p532 = scmp.eq.s32.totalorder %s93, 0
    %p533 = por %p531, %p532
    %p534 = scmp.ne.s32.totalorder %s526, %s528
    %p535 = scmp.eq.s32.totalorder %s98, 1
    %p536 = por %p534, %p535
    %p537 = scmp.ne.s32.totalorder %s528, %s529
    %p538 = scmp.eq.s32.totalorder %s98, 0
    %p539 = por %p537, %p538
    %p540 = scmp.ne.s32.totalorder %s528, %s529
    %p541 = scmp.eq.s32.totalorder %s99, 1
    %p542 = por %p540, %p541
    %p544 = scmp.ne.s32.totalorder %s529, %s543
    %p545 = scmp.eq.s32.totalorder %s99, 0
    %p546 = por %p544, %p545
    %s548 = sadd.s32 %s547, 1
    %p551 = scmp.eq.s32.totalorder %s93, 1
    %p552 = scmp.ne.s32.totalorder %s547, %s549
    %p553 = scmp.eq.s32.totalorder %s93, 0
    %p554 = por %p552, %p553
    %p555 = scmp.ne.s32.totalorder %s547, %s549
    %p556 = scmp.eq.s32.totalorder %s98, 1
    %p557 = por %p555, %p556
    %p558 = scmp.ne.s32.totalorder %s549, %s550
    %p559 = scmp.eq.s32.totalorder %s98, 0
    %p560 = por %p558, %p559
    %p561 = scmp.ne.s32.totalorder %s549, %s550
    %p562 = scmp.eq.s32.totalorder %s99, 1
    %p563 = por %p561, %p562
    %p565 = scmp.ne.s32.totalorder %s550, %s564
    %p566 = scmp.eq.s32.totalorder %s99, 0
    %p567 = por %p565, %p566
    %s569 = sadd.s32 %s568, 1
    %p572 = scmp.eq.s32.totalorder %s93, 1
    %p573 = scmp.ne.s32.totalorder %s568, %s570
    %p574 = scmp.eq.s32.totalorder %s93, 0
    %p575 = por %p573, %p574
    %p576 = scmp.ne.s32.totalorder %s568, %s570
    %p577 = scmp.eq.s32.totalorder %s98, 1
    %p578 = por %p576, %p577
    %p579 = scmp.ne.s32.totalorder %s570, %s571
    %p580 = scmp.eq.s32.totalorder %s98, 0
    %p581 = por %p579, %p580
    %p582 = scmp.ne.s32.totalorder %s570, %s571
    %p583 = scmp.eq.s32.totalorder %s99, 1
    %p584 = por %p582, %p583
    %p586 = scmp.ne.s32.totalorder %s571, %s585
    %p587 = scmp.eq.s32.totalorder %s99, 0
    %p588 = por %p586, %p587
    %s590 = sadd.s32 %s589, 1
    %p593 = scmp.eq.s32.totalorder %s93, 1
    %p594 = scmp.ne.s32.totalorder %s589, %s591
    %p595 = scmp.eq.s32.totalorder %s93, 0
    %p596 = por %p594, %p595
    %p597 = scmp.ne.s32.totalorder %s589, %s591
    %p598 = scmp.eq.s32.totalorder %s98, 1
    %p599 = por %p597, %p598
    %p600 = scmp.ne.s32.totalorder %s591, %s592
    %p601 = scmp.eq.s32.totalorder %s98, 0
    %p602 = por %p600, %p601
    %p603 = scmp.ne.s32.totalorder %s591, %s592
    %p604 = scmp.eq.s32.totalorder %s99, 1
    %p605 = por %p603, %p604
    %p607 = scmp.ne.s32.totalorder %s592, %s606
    %p608 = scmp.eq.s32.totalorder %s99, 0
    %p609 = por %p607, %p608
    %s611 = sadd.s32 %s610, 1
    %p614 = scmp.eq.s32.totalorder %s93, 1
    %p615 = scmp.ne.s32.totalorder %s610, %s612
    %p616 = scmp.eq.s32.totalorder %s93, 0
    %p617 = por %p615, %p616
    %p618 = scmp.ne.s32.totalorder %s610, %s612
    %p619 = scmp.eq.s32.totalorder %s98, 1
    %p620 = por %p618, %p619
    %p621 = scmp.ne.s32.totalorder %s612, %s613
    %p622 = scmp.eq.s32.totalorder %s98, 0
    %p623 = por %p621, %p622
    %p624 = scmp.ne.s32.totalorder %s612, %s613
    %p625 = scmp.eq.s32.totalorder %s99, 1
    %p626 = por %p624, %p625
    %p628 = scmp.ne.s32.totalorder %s613, %s627
    %p629 = scmp.eq.s32.totalorder %s99, 0
    %p630 = por %p628, %p629
    %s632 = sadd.s32 %s631, 1
    %p635 = scmp.eq.s32.totalorder %s93, 1
    %p636 = scmp.ne.s32.totalorder %s631, %s633
    %p637 = scmp.eq.s32.totalorder %s93, 0
    %p638 = por %p636, %p637
    %p639 = scmp.ne.s32.totalorder %s631, %s633
    %p640 = scmp.eq.s32.totalorder %s98, 1
    %p641 = por %p639, %p640
    %p642 = scmp.ne.s32.totalorder %s633, %s634
    %p643 = scmp.eq.s32.totalorder %s98, 0
    %p644 = por %p642, %p643
    %p645 = scmp.ne.s32.totalorder %s633, %s634
    %p646 = scmp.eq.s32.totalorder %s99, 1
    %p647 = por %p645, %p646
    %p649 = scmp.ne.s32.totalorder %s634, %s648
    %p650 = scmp.eq.s32.totalorder %s99, 0
    %p651 = por %p649, %p650
    %s653 = sadd.s32 %s652, 1
    %p656 = scmp.eq.s32.totalorder %s93, 1
    %p657 = scmp.ne.s32.totalorder %s652, %s654
    %p658 = scmp.eq.s32.totalorder %s93, 0
    %p659 = por %p657, %p658
    %p660 = scmp.ne.s32.totalorder %s652, %s654
    %p661 = scmp.eq.s32.totalorder %s98, 1
    %p662 = por %p660, %p661
    %p663 = scmp.ne.s32.totalorder %s654, %s655
    %p664 = scmp.eq.s32.totalorder %s98, 0
    %p665 = por %p663, %p664
    %p666 = scmp.ne.s32.totalorder %s654, %s655
    %p667 = scmp.eq.s32.totalorder %s99, 1
    %p668 = por %p666, %p667
    %p670 = scmp.ne.s32.totalorder %s655, %s669
    %p671 = scmp.eq.s32.totalorder %s99, 0
    %p672 = por %p670, %p671
    %s674 = sadd.s32 %s673, 1
    %p677 = scmp.eq.s32.totalorder %s93, 1
    %p678 = scmp.ne.s32.totalorder %s673, %s675
    %p679 = scmp.eq.s32.totalorder %s93, 0
    %p680 = por %p678, %p679
    %p681 = scmp.ne.s32.totalorder %s673, %s675
    %p682 = scmp.eq.s32.totalorder %s98, 1
    %p683 = por %p681, %p682
    %p684 = scmp.ne.s32.totalorder %s675, %s676
    %p685 = scmp.eq.s32.totalorder %s98, 0
    %p686 = por %p684, %p685
    %p687 = scmp.ne.s32.totalorder %s675, %s676
    %p688 = scmp.eq.s32.totalorder %s99, 1
    %p689 = por %p687, %p688
    %p691 = scmp.ne.s32.totalorder %s676, %s690
    %p692 = scmp.eq.s32.totalorder %s99, 0
    %p693 = por %p691, %p692
    %s695 = sadd.s32 %s694, 1
    %p698 = scmp.eq.s32.totalorder %s93, 1
    %p699 = scmp.ne.s32.totalorder %s694, %s696
    %p700 = scmp.eq.s32.totalorder %s93, 0
    %p701 = por %p699, %p700
    %p702 = scmp.ne.s32.totalorder %s694, %s696
    %p703 = scmp.eq.s32.totalorder %s98, 1
    %p704 = por %p702, %p703
    %p705 = scmp.ne.s32.totalorder %s696, %s697
    %p706 = scmp.eq.s32.totalorder %s98, 0
    %p707 = por %p705, %p706
    %p708 = scmp.ne.s32.totalorder %s696, %s697
    %p709 = scmp.eq.s32.totalorder %s99, 1
    %p710 = por %p708, %p709
    %p712 = scmp.ne.s32.totalorder %s697, %s711
    %p713 = scmp.eq.s32.totalorder %s99, 0
    %p714 = por %p712, %p713
    %s716 = sadd.s32 %s715, 1
    %p719 = scmp.eq.s32.totalorder %s93, 1
    %p720 = scmp.ne.s32.totalorder %s715, %s717
    %p721 = scmp.eq.s32.totalorder %s93, 0
    %p722 = por %p720, %p721
    %p723 = scmp.ne.s32.totalorder %s715, %s717
    %p724 = scmp.eq.s32.totalorder %s98, 1
    %p725 = por %p723, %p724
    %p726 = scmp.ne.s32.totalorder %s717, %s718
    %p727 = scmp.eq.s32.totalorder %s98, 0
    %p728 = por %p726, %p727
    %p729 = scmp.ne.s32.totalorder %s717, %s718
    %p730 = scmp.eq.s32.totalorder %s99, 1
    %p731 = por %p729, %p730
    %p733 = scmp.ne.s32.totalorder %s718, %s732
    %p734 = scmp.eq.s32.totalorder %s99, 0
    %p735 = por %p733, %p734
    %s737 = sadd.s32 %s736, 1
    %p740 = scmp.eq.s32.totalorder %s93, 1
    %p741 = scmp.ne.s32.totalorder %s736, %s738
    %p742 = scmp.eq.s32.totalorder %s93, 0
    %p743 = por %p741, %p742
    %p744 = scmp.ne.s32.totalorder %s736, %s738
    %p745 = scmp.eq.s32.totalorder %s98, 1
    %p746 = por %p744, %p745
    %p747 = scmp.ne.s32.totalorder %s738, %s739
    %p748 = scmp.eq.s32.totalorder %s98, 0
    %p749 = por %p747, %p748
    %p750 = scmp.ne.s32.totalorder %s738, %s739
    %p751 = scmp.eq.s32.totalorder %s99, 1
    %p752 = por %p750, %p751
    %p754 = scmp.ne.s32.totalorder %s739, %s753
    %p755 = scmp.eq.s32.totalorder %s99, 0
    %p756 = por %p754, %p755
    %s758 = sadd.s32 %s757, 1
    %p761 = scmp.eq.s32.totalorder %s93, 1
    %p762 = scmp.ne.s32.totalorder %s757, %s759
    %p763 = scmp.eq.s32.totalorder %s93, 0
    %p764 = por %p762, %p763
    %p765 = scmp.ne.s32.totalorder %s757, %s759
    %p766 = scmp.eq.s32.totalorder %s98, 1
    %p767 = por %p765, %p766
    %p768 = scmp.ne.s32.totalorder %s759, %s760
    %p769 = scmp.eq.s32.totalorder %s98, 0
    %p770 = por %p768, %p769
    %p771 = scmp.ne.s32.totalorder %s759, %s760
    %p772 = scmp.eq.s32.totalorder %s99, 1
    %p773 = por %p771, %p772
    %p775 = scmp.ne.s32.totalorder %s760, %s774
    %p776 = scmp.eq.s32.totalorder %s99, 0
    %p777 = por %p775, %p776
    %s779 = sadd.s32 %s778, 1
    %p782 = scmp.eq.s32.totalorder %s93, 1
    %p783 = scmp.ne.s32.totalorder %s778, %s780
    %p784 = scmp.eq.s32.totalorder %s93, 0
    %p785 = por %p783, %p784
    %p786 = scmp.ne.s32.totalorder %s778, %s780
    %p787 = scmp.eq.s32.totalorder %s98, 1
    %p788 = por %p786, %p787
    %p789 = scmp.ne.s32.totalorder %s780, %s781
    %p790 = scmp.eq.s32.totalorder %s98, 0
    %p791 = por %p789, %p790
    %p792 = scmp.ne.s32.totalorder %s780, %s781
    %p793 = scmp.eq.s32.totalorder %s99, 1
    %p794 = por %p792, %p793
    %p796 = scmp.ne.s32.totalorder %s781, %s795
    %p797 = scmp.eq.s32.totalorder %s99, 0
    %p798 = por %p796, %p797
    %s800 = sadd.s32 %s799, 1
    %p803 = scmp.eq.s32.totalorder %s93, 1
    %p804 = scmp.ne.s32.totalorder %s799, %s801
    %p805 = scmp.eq.s32.totalorder %s93, 0
    %p806 = por %p804, %p805
    %p807 = scmp.ne.s32.totalorder %s799, %s801
    %p808 = scmp.eq.s32.totalorder %s98, 1
    %p809 = por %p807, %p808
    %p810 = scmp.ne.s32.totalorder %s801, %s802
    %p811 = scmp.eq.s32.totalorder %s98, 0
    %p812 = por %p810, %p811
    %p813 = scmp.ne.s32.totalorder %s801, %s802
    %p814 = scmp.eq.s32.totalorder %s99, 1
    %p815 = por %p813, %p814
    %p817 = scmp.ne.s32.totalorder %s802, %s816
    %p818 = scmp.eq.s32.totalorder %s99, 0
    %p819 = por %p817, %p818
    %s821 = sadd.s32 %s820, 1
    %p824 = scmp.eq.s32.totalorder %s93, 1
    %p825 = scmp.ne.s32.totalorder %s820, %s822
    %p826 = scmp.eq.s32.totalorder %s93, 0
    %p827 = por %p825, %p826
    %p828 = scmp.ne.s32.totalorder %s820, %s822
    %p829 = scmp.eq.s32.totalorder %s98, 1
    %p830 = por %p828, %p829
    %p831 = scmp.ne.s32.totalorder %s822, %s823
    %p832 = scmp.eq.s32.totalorder %s98, 0
    %p833 = por %p831, %p832
    %p834 = scmp.ne.s32.totalorder %s822, %s823
    %p835 = scmp.eq.s32.totalorder %s99, 1
    %p836 = por %p834, %p835
    %p838 = scmp.ne.s32.totalorder %s823, %s837
    %p839 = scmp.eq.s32.totalorder %s99, 0
    %p840 = por %p838, %p839
    %s842 = sadd.s32 %s841, 1
    %p845 = scmp.eq.s32.totalorder %s93, 1
    %p846 = scmp.ne.s32.totalorder %s841, %s843
    %p847 = scmp.eq.s32.totalorder %s93, 0
    %p848 = por %p846, %p847
    %p849 = scmp.ne.s32.totalorder %s841, %s843
    %p850 = scmp.eq.s32.totalorder %s98, 1
    %p851 = por %p849, %p850
    %p852 = scmp.ne.s32.totalorder %s843, %s844
    %p853 = scmp.eq.s32.totalorder %s98, 0
    %p854 = por %p852, %p853
    %p855 = scmp.ne.s32.totalorder %s843, %s844
    %p856 = scmp.eq.s32.totalorder %s99, 1
    %p857 = por %p855, %p856
    %p859 = scmp.ne.s32.totalorder %s844, %s858
    %p860 = scmp.eq.s32.totalorder %s99, 0
    %p861 = por %p859, %p860
    %s863 = sadd.s32 %s862, 1
    %p866 = scmp.eq.s32.totalorder %s93, 1
    %p867 = scmp.ne.s32.totalorder %s862, %s864
    %p868 = scmp.eq.s32.totalorder %s93, 0
    %p869 = por %p867, %p868
    %p870 = scmp.ne.s32.totalorder %s862, %s864
    %p871 = scmp.eq.s32.totalorder %s98, 1
    %p872 = por %p870, %p871
    %p873 = scmp.ne.s32.totalorder %s864, %s865
    %p874 = scmp.eq.s32.totalorder %s98, 0
    %p875 = por %p873, %p874
    %p876 = scmp.ne.s32.totalorder %s864, %s865
    %p877 = scmp.eq.s32.totalorder %s99, 1
    %p878 = por %p876, %p877
    %p880 = scmp.ne.s32.totalorder %s865, %s879
    %p881 = scmp.eq.s32.totalorder %s99, 0
    %p882 = por %p880, %p881
    %s884 = sadd.s32 %s883, 1
    %p887 = scmp.eq.s32.totalorder %s93, 1
    %p888 = scmp.ne.s32.totalorder %s883, %s885
    %p889 = scmp.eq.s32.totalorder %s93, 0
    %p890 = por %p888, %p889
    %p891 = scmp.ne.s32.totalorder %s883, %s885
    %p892 = scmp.eq.s32.totalorder %s98, 1
    %p893 = por %p891, %p892
    %p894 = scmp.ne.s32.totalorder %s885, %s886
    %p895 = scmp.eq.s32.totalorder %s98, 0
    %p896 = por %p894, %p895
    %p897 = scmp.ne.s32.totalorder %s885, %s886
    %p898 = scmp.eq.s32.totalorder %s99, 1
    %p899 = por %p897, %p898
    %p901 = scmp.ne.s32.totalorder %s886, %s900
    %p902 = scmp.eq.s32.totalorder %s99, 0
    %p903 = por %p901, %p902
    %s905 = sadd.s32 %s904, 1
    %p908 = scmp.eq.s32.totalorder %s93, 1
    %p909 = scmp.ne.s32.totalorder %s904, %s906
    %p910 = scmp.eq.s32.totalorder %s93, 0
    %p911 = por %p909, %p910
    %p912 = scmp.ne.s32.totalorder %s904, %s906
    %p913 = scmp.eq.s32.totalorder %s98, 1
    %p914 = por %p912, %p913
    %p915 = scmp.ne.s32.totalorder %s906, %s907
    %p916 = scmp.eq.s32.totalorder %s98, 0
    %p917 = por %p915, %p916
    %p918 = scmp.ne.s32.totalorder %s906, %s907
    %p919 = scmp.eq.s32.totalorder %s99, 1
    %p920 = por %p918, %p919
    %p922 = scmp.ne.s32.totalorder %s907, %s921
    %p923 = scmp.eq.s32.totalorder %s99, 0
    %p924 = por %p922, %p923
    %s926 = sadd.s32 %s925, 1
    %p929 = scmp.eq.s32.totalorder %s93, 1
    %p930 = scmp.ne.s32.totalorder %s925, %s927
    %p931 = scmp.eq.s32.totalorder %s93, 0
    %p932 = por %p930, %p931
    %p933 = scmp.ne.s32.totalorder %s925, %s927
    %p934 = scmp.eq.s32.totalorder %s98, 1
    %p935 = por %p933, %p934
    %p936 = scmp.ne.s32.totalorder %s927, %s928
    %p937 = scmp.eq.s32.totalorder %s98, 0
    %p938 = por %p936, %p937
    %p939 = scmp.ne.s32.totalorder %s927, %s928
    %p940 = scmp.eq.s32.totalorder %s99, 1
    %p941 = por %p939, %p940
    %p943 = scmp.ne.s32.totalorder %s928, %s942
    %p944 = scmp.eq.s32.totalorder %s99, 0
    %p945 = por %p943, %p944
    %s947 = sadd.s32 %s946, 1
    %p950 = scmp.eq.s32.totalorder %s93, 1
    %p951 = scmp.ne.s32.totalorder %s946, %s948
    %p952 = scmp.eq.s32.totalorder %s93, 0
    %p953 = por %p951, %p952
    %p954 = scmp.ne.s32.totalorder %s946, %s948
    %p955 = scmp.eq.s32.totalorder %s98, 1
    %p956 = por %p954, %p955
    %p957 = scmp.ne.s32.totalorder %s948, %s949
    %p958 = scmp.eq.s32.totalorder %s98, 0
    %p959 = por %p957, %p958
    %p960 = scmp.ne.s32.totalorder %s948, %s949
    %p961 = scmp.eq.s32.totalorder %s99, 1
    %p962 = por %p960, %p961
    %p964 = scmp.ne.s32.totalorder %s949, %s963
    %p965 = scmp.eq.s32.totalorder %s99, 0
    %p966 = por %p964, %p965
    %s968 = sadd.s32 %s967, 1
    %p971 = scmp.eq.s32.totalorder %s93, 1
    %p972 = scmp.ne.s32.totalorder %s967, %s969
    %p973 = scmp.eq.s32.totalorder %s93, 0
    %p974 = por %p972, %p973
    %p975 = scmp.ne.s32.totalorder %s967, %s969
    %p976 = scmp.eq.s32.totalorder %s98, 1
    %p977 = por %p975, %p976
    %p978 = scmp.ne.s32.totalorder %s969, %s970
    %p979 = scmp.eq.s32.totalorder %s98, 0
    %p980 = por %p978, %p979
    %p981 = scmp.ne.s32.totalorder %s969, %s970
    %p982 = scmp.eq.s32.totalorder %s99, 1
    %p983 = por %p981, %p982
    %p985 = scmp.ne.s32.totalorder %s970, %s984
    %p986 = scmp.eq.s32.totalorder %s99, 0
    %p987 = por %p985, %p986
    %s988 = ssub.s32 %s93, %s100
    %p989 = scmp.eq.s32.totalorder %s988, 0
    %s991 = sadd.s32 %s990, 1
    %s992 = scalar_select %p989, %s990, %s991
    %p995 = pneg %p989
    %p996 = scmp.eq.s32.totalorder %s93, 1
    %p997 = por %p995, %p996
    %p998 = scmp.ne.s32.totalorder %s990, %s993
    %p999 = scmp.eq.s32.totalorder %s93, 0
    %p1000 = por %p998, %p999
    %p1001 = scmp.ne.s32.totalorder %s990, %s993
    %p1002 = scmp.eq.s32.totalorder %s98, 1
    %p1003 = por %p1001, %p1002
    %p1004 = scmp.ne.s32.totalorder %s993, %s994
    %p1005 = scmp.eq.s32.totalorder %s98, 0
    %p1006 = por %p1004, %p1005
    %p1007 = scmp.ne.s32.totalorder %s993, %s994
    %p1008 = scmp.eq.s32.totalorder %s99, 1
    %p1009 = por %p1007, %p1008
    %p1011 = scmp.ne.s32.totalorder %s994, %s1010
    %p1012 = scmp.eq.s32.totalorder %s99, 0
    %p1013 = por %p1011, %p1012
    %p1014 = scmp.le.s32.totalorder 1, %s93
    %p1015 = scmp.lt.s32.totalorder %s93, 3
    %p1016 = pnand %p1014, %p1015
    %p1017 = pneg %p1016
    // Predicated region
    $region9: #{_lambda_.1} parent=5 // pred_check
      _
    $region10: #{_lambda_.1} parent=5 // pred_check_branch
      %1019 = sbr.rel (%p1016) target = $region12
    $region11: #{_lambda_.1} parent=5 // pred_region
      %s1020 = ssub.s32 %s93, 1
      // Predicated region
      $region13: #{_lambda_.1} parent=11 // pred_check
        %p1021 = pneg %p140
      $region14: #{_lambda_.1} parent=11 // pred_check_branch
        %1023 = sbr.rel (%p1021) target = $region16
      $region15: #{_lambda_.1} parent=11 // pred_region
        _
      $region16: #{_lambda_.1} parent=11 // pred_fallthru
        _
      // Predicated region
      $region17: #{_lambda_.1} parent=11 // pred_check
        %p1024 = pneg %p161
      $region18: #{_lambda_.1} parent=11 // pred_check_branch
        %1026 = sbr.rel (%p1024) target = $region20
      $region19: #{_lambda_.1} parent=11 // pred_region
        _
      $region20: #{_lambda_.1} parent=11 // pred_fallthru
        _
      // Predicated region
      $region21: #{_lambda_.1} parent=11 // pred_check
        %p1027 = pneg %p182
      $region22: #{_lambda_.1} parent=11 // pred_check_branch
        %1029 = sbr.rel (%p1027) target = $region24
      $region23: #{_lambda_.1} parent=11 // pred_region
        _
      $region24: #{_lambda_.1} parent=11 // pred_fallthru
        _
      // Predicated region
      $region25: #{_lambda_.1} parent=11 // pred_check
        %p1030 = pneg %p203
      $region26: #{_lambda_.1} parent=11 // pred_check_branch
        %1032 = sbr.rel (%p1030) target = $region28
      $region27: #{_lambda_.1} parent=11 // pred_region
        _
      $region28: #{_lambda_.1} parent=11 // pred_fallthru
        _
      // Predicated region
      $region29: #{_lambda_.1} parent=11 // pred_check
        %p1033 = pneg %p224
      $region30: #{_lambda_.1} parent=11 // pred_check_branch
        %1035 = sbr.rel (%p1033) target = $region32
      $region31: #{_lambda_.1} parent=11 // pred_region
        _
      $region32: #{_lambda_.1} parent=11 // pred_fallthru
        _
      // Predicated region
      $region33: #{_lambda_.1} parent=11 // pred_check
        %p1036 = pneg %p245
      $region34: #{_lambda_.1} parent=11 // pred_check_branch
        %1038 = sbr.rel (%p1036) target = $region36
      $region35: #{_lambda_.1} parent=11 // pred_region
        _
      $region36: #{_lambda_.1} parent=11 // pred_fallthru
        _
      // Predicated region
      $region37: #{_lambda_.1} parent=11 // pred_check
        %p1039 = pneg %p266
      $region38: #{_lambda_.1} parent=11 // pred_check_branch
        %1041 = sbr.rel (%p1039) target = $region40
      $region39: #{_lambda_.1} parent=11 // pred_region
        _
      $region40: #{_lambda_.1} parent=11 // pred_fallthru
        _
      // Predicated region
      $region41: #{_lambda_.1} parent=11 // pred_check
        %p1042 = pneg %p287
      $region42: #{_lambda_.1} parent=11 // pred_check_branch
        %1044 = sbr.rel (%p1042) target = $region44
      $region43: #{_lambda_.1} parent=11 // pred_region
        _
      $region44: #{_lambda_.1} parent=11 // pred_fallthru
        _
      // Predicated region
      $region45: #{_lambda_.1} parent=11 // pred_check
        %p1045 = pneg %p308
      $region46: #{_lambda_.1} parent=11 // pred_check_branch
        %1047 = sbr.rel (%p1045) target = $region48
      $region47: #{_lambda_.1} parent=11 // pred_region
        _
      $region48: #{_lambda_.1} parent=11 // pred_fallthru
        _
      // Predicated region
      $region49: #{_lambda_.1} parent=11 // pred_check
        %p1048 = pneg %p329
      $region50: #{_lambda_.1} parent=11 // pred_check_branch
        %1050 = sbr.rel (%p1048) target = $region52
      $region51: #{_lambda_.1} parent=11 // pred_region
        _
      $region52: #{_lambda_.1} parent=11 // pred_fallthru
        _
      // Predicated region
      $region53: #{_lambda_.1} parent=11 // pred_check
        %p1051 = pneg %p350
      $region54: #{_lambda_.1} parent=11 // pred_check_branch
        %1053 = sbr.rel (%p1051) target = $region56
      $region55: #{_lambda_.1} parent=11 // pred_region
        _
      $region56: #{_lambda_.1} parent=11 // pred_fallthru
        _
      // Predicated region
      $region57: #{_lambda_.1} parent=11 // pred_check
        %p1054 = pneg %p371
      $region58: #{_lambda_.1} parent=11 // pred_check_branch
        %1056 = sbr.rel (%p1054) target = $region60
      $region59: #{_lambda_.1} parent=11 // pred_region
        _
      $region60: #{_lambda_.1} parent=11 // pred_fallthru
        _
      // Predicated region
      $region61: #{_lambda_.1} parent=11 // pred_check
        %p1057 = pneg %p392
      $region62: #{_lambda_.1} parent=11 // pred_check_branch
        %1059 = sbr.rel (%p1057) target = $region64
      $region63: #{_lambda_.1} parent=11 // pred_region
        _
      $region64: #{_lambda_.1} parent=11 // pred_fallthru
        _
      // Predicated region
      $region65: #{_lambda_.1} parent=11 // pred_check
        %p1060 = pneg %p413
      $region66: #{_lambda_.1} parent=11 // pred_check_branch
        %1062 = sbr.rel (%p1060) target = $region68
      $region67: #{_lambda_.1} parent=11 // pred_region
        _
      $region68: #{_lambda_.1} parent=11 // pred_fallthru
        _
      // Predicated region
      $region69: #{_lambda_.1} parent=11 // pred_check
        %p1063 = pneg %p434
      $region70: #{_lambda_.1} parent=11 // pred_check_branch
        %1065 = sbr.rel (%p1063) target = $region72
      $region71: #{_lambda_.1} parent=11 // pred_region
        _
      $region72: #{_lambda_.1} parent=11 // pred_fallthru
        _
      // Predicated region
      $region73: #{_lambda_.1} parent=11 // pred_check
        %p1066 = pneg %p455
      $region74: #{_lambda_.1} parent=11 // pred_check_branch
        %1068 = sbr.rel (%p1066) target = $region76
      $region75: #{_lambda_.1} parent=11 // pred_region
        _
      $region76: #{_lambda_.1} parent=11 // pred_fallthru
        _
      // Predicated region
      $region77: #{_lambda_.1} parent=11 // pred_check
        %p1069 = pneg %p476
      $region78: #{_lambda_.1} parent=11 // pred_check_branch
        %1071 = sbr.rel (%p1069) target = $region80
      $region79: #{_lambda_.1} parent=11 // pred_region
        _
      $region80: #{_lambda_.1} parent=11 // pred_fallthru
        _
      // Predicated region
      $region81: #{_lambda_.1} parent=11 // pred_check
        %p1072 = pneg %p497
      $region82: #{_lambda_.1} parent=11 // pred_check_branch
        %1074 = sbr.rel (%p1072) target = $region84
      $region83: #{_lambda_.1} parent=11 // pred_region
        _
      $region84: #{_lambda_.1} parent=11 // pred_fallthru
        _
      // Predicated region
      $region85: #{_lambda_.1} parent=11 // pred_check
        %p1075 = pneg %p518
      $region86: #{_lambda_.1} parent=11 // pred_check_branch
        %1077 = sbr.rel (%p1075) target = $region88
      $region87: #{_lambda_.1} parent=11 // pred_region
        _
      $region88: #{_lambda_.1} parent=11 // pred_fallthru
        _
      // Predicated region
      $region89: #{_lambda_.1} parent=11 // pred_check
        %p1078 = pneg %p539
      $region90: #{_lambda_.1} parent=11 // pred_check_branch
        %1080 = sbr.rel (%p1078) target = $region92
      $region91: #{_lambda_.1} parent=11 // pred_region
        _
      $region92: #{_lambda_.1} parent=11 // pred_fallthru
        _
      // Predicated region
      $region93: #{_lambda_.1} parent=11 // pred_check
        %p1081 = pneg %p560
      $region94: #{_lambda_.1} parent=11 // pred_check_branch
        %1083 = sbr.rel (%p1081) target = $region96
      $region95: #{_lambda_.1} parent=11 // pred_region
        _
      $region96: #{_lambda_.1} parent=11 // pred_fallthru
        _
      // Predicated region
      $region97: #{_lambda_.1} parent=11 // pred_check
        %p1084 = pneg %p581
      $region98: #{_lambda_.1} parent=11 // pred_check_branch
        %1086 = sbr.rel (%p1084) target = $region100
      $region99: #{_lambda_.1} parent=11 // pred_region
        _
      $region100: #{_lambda_.1} parent=11 // pred_fallthru
        _
      // Predicated region
      $region101: #{_lambda_.1} parent=11 // pred_check
        %p1087 = pneg %p602
      $region102: #{_lambda_.1} parent=11 // pred_check_branch
        %1089 = sbr.rel (%p1087) target = $region104
      $region103: #{_lambda_.1} parent=11 // pred_region
        _
      $region104: #{_lambda_.1} parent=11 // pred_fallthru
        _
      // Predicated region
      $region105: #{_lambda_.1} parent=11 // pred_check
        %p1090 = pneg %p623
      $region106: #{_lambda_.1} parent=11 // pred_check_branch
        %1092 = sbr.rel (%p1090) target = $region108
      $region107: #{_lambda_.1} parent=11 // pred_region
        _
      $region108: #{_lambda_.1} parent=11 // pred_fallthru
        _
      // Predicated region
      $region109: #{_lambda_.1} parent=11 // pred_check
        %p1093 = pneg %p644
      $region110: #{_lambda_.1} parent=11 // pred_check_branch
        %1095 = sbr.rel (%p1093) target = $region112
      $region111: #{_lambda_.1} parent=11 // pred_region
        _
      $region112: #{_lambda_.1} parent=11 // pred_fallthru
        _
      // Predicated region
      $region113: #{_lambda_.1} parent=11 // pred_check
        %p1096 = pneg %p665
      $region114: #{_lambda_.1} parent=11 // pred_check_branch
        %1098 = sbr.rel (%p1096) target = $region116
      $region115: #{_lambda_.1} parent=11 // pred_region
        _
      $region116: #{_lambda_.1} parent=11 // pred_fallthru
        _
      // Predicated region
      $region117: #{_lambda_.1} parent=11 // pred_check
        %p1099 = pneg %p686
      $region118: #{_lambda_.1} parent=11 // pred_check_branch
        %1101 = sbr.rel (%p1099) target = $region120
      $region119: #{_lambda_.1} parent=11 // pred_region
        _
      $region120: #{_lambda_.1} parent=11 // pred_fallthru
        _
      // Predicated region
      $region121: #{_lambda_.1} parent=11 // pred_check
        %p1102 = pneg %p707
      $region122: #{_lambda_.1} parent=11 // pred_check_branch
        %1104 = sbr.rel (%p1102) target = $region124
      $region123: #{_lambda_.1} parent=11 // pred_region
        _
      $region124: #{_lambda_.1} parent=11 // pred_fallthru
        _
      // Predicated region
      $region125: #{_lambda_.1} parent=11 // pred_check
        %p1105 = pneg %p728
      $region126: #{_lambda_.1} parent=11 // pred_check_branch
        %1107 = sbr.rel (%p1105) target = $region128
      $region127: #{_lambda_.1} parent=11 // pred_region
        _
      $region128: #{_lambda_.1} parent=11 // pred_fallthru
        _
      // Predicated region
      $region129: #{_lambda_.1} parent=11 // pred_check
        %p1108 = pneg %p749
      $region130: #{_lambda_.1} parent=11 // pred_check_branch
        %1110 = sbr.rel (%p1108) target = $region132
      $region131: #{_lambda_.1} parent=11 // pred_region
        _
      $region132: #{_lambda_.1} parent=11 // pred_fallthru
        _
      // Predicated region
      $region133: #{_lambda_.1} parent=11 // pred_check
        %p1111 = pneg %p770
      $region134: #{_lambda_.1} parent=11 // pred_check_branch
        %1113 = sbr.rel (%p1111) target = $region136
      $region135: #{_lambda_.1} parent=11 // pred_region
        _
      $region136: #{_lambda_.1} parent=11 // pred_fallthru
        _
      // Predicated region
      $region137: #{_lambda_.1} parent=11 // pred_check
        %p1114 = pneg %p791
      $region138: #{_lambda_.1} parent=11 // pred_check_branch
        %1116 = sbr.rel (%p1114) target = $region140
      $region139: #{_lambda_.1} parent=11 // pred_region
        _
      $region140: #{_lambda_.1} parent=11 // pred_fallthru
        _
      // Predicated region
      $region141: #{_lambda_.1} parent=11 // pred_check
        %p1117 = pneg %p812
      $region142: #{_lambda_.1} parent=11 // pred_check_branch
        %1119 = sbr.rel (%p1117) target = $region144
      $region143: #{_lambda_.1} parent=11 // pred_region
        _
      $region144: #{_lambda_.1} parent=11 // pred_fallthru
        _
      // Predicated region
      $region145: #{_lambda_.1} parent=11 // pred_check
        %p1120 = pneg %p833
      $region146: #{_lambda_.1} parent=11 // pred_check_branch
        %1122 = sbr.rel (%p1120) target = $region148
      $region147: #{_lambda_.1} parent=11 // pred_region
        _
      $region148: #{_lambda_.1} parent=11 // pred_fallthru
        _
      // Predicated region
      $region149: #{_lambda_.1} parent=11 // pred_check
        %p1123 = pneg %p854
      $region150: #{_lambda_.1} parent=11 // pred_check_branch
        %1125 = sbr.rel (%p1123) target = $region152
      $region151: #{_lambda_.1} parent=11 // pred_region
        _
      $region152: #{_lambda_.1} parent=11 // pred_fallthru
        _
      // Predicated region
      $region153: #{_lambda_.1} parent=11 // pred_check
        %p1126 = pneg %p875
      $region154: #{_lambda_.1} parent=11 // pred_check_branch
        %1128 = sbr.rel (%p1126) target = $region156
      $region155: #{_lambda_.1} parent=11 // pred_region
        _
      $region156: #{_lambda_.1} parent=11 // pred_fallthru
        _
      // Predicated region
      $region157: #{_lambda_.1} parent=11 // pred_check
        %p1129 = pneg %p896
      $region158: #{_lambda_.1} parent=11 // pred_check_branch
        %1131 = sbr.rel (%p1129) target = $region160
      $region159: #{_lambda_.1} parent=11 // pred_region
        _
      $region160: #{_lambda_.1} parent=11 // pred_fallthru
        _
      // Predicated region
      $region161: #{_lambda_.1} parent=11 // pred_check
        %p1132 = pneg %p917
      $region162: #{_lambda_.1} parent=11 // pred_check_branch
        %1134 = sbr.rel (%p1132) target = $region164
      $region163: #{_lambda_.1} parent=11 // pred_region
        _
      $region164: #{_lambda_.1} parent=11 // pred_fallthru
        _
      // Predicated region
      $region165: #{_lambda_.1} parent=11 // pred_check
        %p1135 = pneg %p938
      $region166: #{_lambda_.1} parent=11 // pred_check_branch
        %1137 = sbr.rel (%p1135) target = $region168
      $region167: #{_lambda_.1} parent=11 // pred_region
        _
      $region168: #{_lambda_.1} parent=11 // pred_fallthru
        _
      // Predicated region
      $region169: #{_lambda_.1} parent=11 // pred_check
        %p1138 = pneg %p959
      $region170: #{_lambda_.1} parent=11 // pred_check_branch
        %1140 = sbr.rel (%p1138) target = $region172
      $region171: #{_lambda_.1} parent=11 // pred_region
        _
      $region172: #{_lambda_.1} parent=11 // pred_fallthru
        _
      // Predicated region
      $region173: #{_lambda_.1} parent=11 // pred_check
        %p1141 = pneg %p980
      $region174: #{_lambda_.1} parent=11 // pred_check_branch
        %1143 = sbr.rel (%p1141) target = $region176
      $region175: #{_lambda_.1} parent=11 // pred_region
        _
      $region176: #{_lambda_.1} parent=11 // pred_fallthru
        _
    $region12: #{_lambda_.1} parent=5 // pred_fallthru
      _
    %p1144 = scmp.lt.s32.totalorder %s93, 2
    // Predicated region
    $region177: #{_lambda_.1} parent=5 // pred_check
      %p1145 = pneg %p1144
    $region178: #{_lambda_.1} parent=5 // pred_check_branch
      %1147 = sbr.rel (%p1145) target = $region180
    $region179: #{_lambda_.1} parent=5 // pred_region
      // Predicated region
      $region181: #{_lambda_.1} parent=179 // pred_check
        %p1148 = pneg %p113
      $region182: #{_lambda_.1} parent=179 // pred_check_branch
        %1150 = sbr.rel (%p1148) target = $region184
      $region183: #{_lambda_.1} parent=179 // pred_region
        %p1151 = scmp.lt.s32.totalorder %s93, 1
        %s1152 = scalar_select %p1151, %s93, 1
        %s1153 = smul.addr %s1152, 2
        %s1154 = scalar_lea.vmem %s1, %s1153
      $region184: #{_lambda_.1} parent=179 // pred_fallthru
        _
    $region180: #{_lambda_.1} parent=5 // pred_fallthru
      _
    %p1155 = scmp.le.s32.totalorder 1, %s93
    %p1156 = scmp.lt.s32.totalorder %s93, 3
    %p1157 = pnand %p1155, %p1156
    %p1158 = pneg %p1157
    // Predicated region
    $region185: #{_lambda_.1} parent=5 // pred_check
      _
    $region186: #{_lambda_.1} parent=5 // pred_check_branch
      %1160 = sbr.rel (%p1157) target = $region188
    $region187: #{_lambda_.1} parent=5 // pred_region
      %s1161 = ssub.s32 %s93, 1
      %p1162 = scmp.lt.s32.totalorder %s98, 1
      %s1163 = scalar_select %p1162, %s98, 1
      %s1164 = smul.addr %s1163, 2
      %s1165 = scalar_lea.vmem %s1, %s1164
      %p1166 = pneg %p119
      %p1167 = pneg %p116
      %p1168 = pneg %p140
      %p1169 = pneg %p137
      %p1170 = pneg %p161
      %p1171 = pneg %p158
      %p1172 = pneg %p182
      %p1173 = pneg %p179
      %p1174 = pneg %p203
      %p1175 = pneg %p200
      %p1176 = pneg %p224
      %p1177 = pneg %p221
      %p1178 = pneg %p245
      %p1179 = pneg %p242
      %p1180 = pneg %p266
      %p1181 = pneg %p263
      %p1182 = pneg %p287
      %p1183 = pneg %p284
      %p1184 = pneg %p308
      %p1185 = pneg %p305
      %p1186 = pneg %p329
      %p1187 = pneg %p326
      %p1188 = pneg %p350
      %p1189 = pneg %p347
      %p1190 = pneg %p371
      %p1191 = pneg %p368
      %p1192 = pneg %p392
      %p1193 = pneg %p389
      %p1194 = pneg %p413
      %p1195 = pneg %p410
      %p1196 = pneg %p434
      %p1197 = pneg %p431
      %p1198 = pneg %p455
      %p1199 = pneg %p452
      %p1200 = pneg %p476
      %p1201 = pneg %p473
      %p1202 = pneg %p497
      %p1203 = pneg %p494
      %p1204 = pneg %p518
      %p1205 = pneg %p515
      %p1206 = pneg %p539
      %p1207 = pneg %p536
      %p1208 = pneg %p560
      %p1209 = pneg %p557
      %p1210 = pneg %p581
      %p1211 = pneg %p578
      %p1212 = pneg %p602
      %p1213 = pneg %p599
      %p1214 = pneg %p623
      %p1215 = pneg %p620
      %p1216 = pneg %p644
      %p1217 = pneg %p641
      %p1218 = pneg %p665
      %p1219 = pneg %p662
      %p1220 = pneg %p686
      %p1221 = pneg %p683
      %p1222 = pneg %p707
      %p1223 = pneg %p704
      %p1224 = pneg %p728
      %p1225 = pneg %p725
      %p1226 = pneg %p749
      %p1227 = pneg %p746
      %p1228 = pneg %p770
      %p1229 = pneg %p767
      %p1230 = pneg %p791
      %p1231 = pneg %p788
      %p1232 = pneg %p812
      %p1233 = pneg %p809
      %p1234 = pneg %p833
      %p1235 = pneg %p830
      %p1236 = pneg %p854
      %p1237 = pneg %p851
      %p1238 = pneg %p875
      %p1239 = pneg %p872
      %p1240 = pneg %p896
      %p1241 = pneg %p893
      %p1242 = pneg %p917
      %p1243 = pneg %p914
      %p1244 = pneg %p938
      %p1245 = pneg %p935
      %p1246 = pneg %p959
      %p1247 = pneg %p956
      %p1248 = pneg %p980
      %p1249 = pneg %p977
      %p1250 = pneg %p1006
      %p1251 = pneg %p1003
      %p1252 = scmp.lt.s32.totalorder %s98, 1
      %s1253 = scalar_select %p1252, %s98, 1
      %s1254 = smul.addr %s1253, 2
      %s1255 = scalar_lea.vmem %s85, %s1254
      %p1256 = scmp.lt.s32.totalorder %s98, 1
      %s1257 = scalar_select %p1256, %s98, 1
      %s1258 = smul.addr %s1257, 2
      %s1259 = scalar_lea.vmem %s1, %s1258
      %p1260 = scmp.lt.s32.totalorder %s98, 1
      %s1261 = scalar_select %p1260, %s98, 1
      %s1262 = smul.addr %s1261, 2
      %s1263 = scalar_lea.vmem %s85, %s1262
      %v1265 = vld [vmem:[%s71] sm:$0xff]
      %v1266 = vld [vmem:[%s71 + $0x8] sm:$0xff]
      %v1267 = vld [vmem:[%s73] sm:$0xff]
      %v1268 = vld [vmem:[%s75] sm:$0xff]
      %v1269 = vld [vmem:[%s1259] sm:$0x3]
      %v1271 = vlaneseq
      %v1272 = vshrl.u32 %v1271, 7
      %v1273 = vsub.s32 1, %v1272
      %v1274 = vrot.slane %v1269, %v1273
      %1275 = vrot.lane.b32.xlu0 %v1274, 17
      %v1276 = vpop.permute.xlu0 %1275
      %v1278 = vlaneseq
      %v1279 = vshrl.u32 %v1278, 7
      %v1280 = vsub.s32 0, %v1279
      %v1281 = vrot.slane %v1269, %v1280
      %1282 = vrot.lane.b32.xlu0 %v1281, 17
      %v1283 = vpop.permute.xlu0 %1282
      %vm1284 = vcmask 138240
      %v1285 = vsel %vm1284, %v1283, %v1276
      %v1288 = vsel %vm1284, %v1276, %v1283
      %v1289 = vmul.f32 %v1288, %v1265
      %v1290 = vmul.f32 %v1285, %v1266
      %1291 = vrot.lane.b32.xlu0 %v1274, 16
      %v1292 = vpop.permute.xlu0 %1291
      %1294 = vrot.lane.b32.xlu0 %v1281, 16
      %v1295 = vpop.permute.xlu0 %1294
      %vm1296 = vcmask 130048
      %v1297 = vsel %vm1296, %v1295, %v1292
      %v1300 = vsel %vm1296, %v1292, %v1295
      %v1303 = vrot.slane %v1265, 1
      %v1304 = vrot.slane %v1266, 1
      %v1307 = vmul.f32 %v1300, %v1303
      %v1308 = vmul.f32 %v1297, %v1304
      %1309 = vrot.lane.b32.xlu0 %v1274, 15
      %v1310 = vpop.permute.xlu0 %1309
      %1312 = vrot.lane.b32.xlu0 %v1281, 15
      %v1313 = vpop.permute.xlu0 %1312
      %vm1314 = vcmask 121856
      %v1315 = vsel %vm1314, %v1313, %v1310
      %v1318 = vsel %vm1314, %v1310, %v1313
      %v1319 = vrot.slane %v1265, 2
      %v1320 = vrot.slane %v1266, 2
      %v1323 = vmul.f32 %v1318, %v1319
      %v1324 = vmul.f32 %v1315, %v1320
      %1325 = vrot.lane.b32.xlu0 %v1274, 1
      %v1326 = vpop.permute.xlu0 %1325
      %1328 = vrot.lane.b32.xlu0 %v1281, 1
      %v1329 = vpop.permute.xlu0 %1328
      %vm1330 = vcmask 7168
      %v1331 = vsel %vm1330, %v1329, %v1326
      %v1334 = vsel %vm1330, %v1326, %v1329
      %v1335 = vrot.slane %v1265, 3
      %v1336 = vrot.slane %v1266, 3
      %v1339 = vmul.f32 %v1334, %v1335
      %v1340 = vmul.f32 %v1331, %v1336
      %1341 = vrot.lane.b32.xlu0 %v1281, 127
      %v1342 = vpop.permute.xlu0 %1341
      %1343 = vrot.lane.b32.xlu0 %v1274, 127
      %v1344 = vpop.permute.xlu0 %1343
      %vm1345 = vcmask 1039360
      %v1346 = vsel %vm1345, %v1342, %v1344
      %v1350 = vsel %vm1345, %v1344, %v1342
      %v1351 = vrot.slane %v1265, 4
      %v1352 = vrot.slane %v1266, 4
      %v1355 = vmul.f32 %v1346, %v1351
      %v1356 = vmul.f32 %v1350, %v1352
      %1357 = vrot.lane.b32.xlu0 %v1281, 113
      %v1358 = vpop.permute.xlu0 %1357
      %1359 = vrot.lane.b32.xlu0 %v1274, 113
      %v1360 = vpop.permute.xlu0 %1359
      %vm1361 = vcmask 924672
      %v1362 = vsel %vm1361, %v1358, %v1360
      %v1366 = vsel %vm1361, %v1360, %v1358
      %v1367 = vrot.slane %v1265, 5
      %v1368 = vrot.slane %v1266, 5
      %v1371 = vmul.f32 %v1362, %v1367
      %v1372 = vmul.f32 %v1366, %v1368
      %1373 = vrot.lane.b32.xlu0 %v1281, 112
      %v1374 = vpop.permute.xlu0 %1373
      %1375 = vrot.lane.b32.xlu0 %v1274, 112
      %v1376 = vpop.permute.xlu0 %1375
      %vm1377 = vcmask 916480
      %v1378 = vsel %vm1377, %v1374, %v1376
      %v1382 = vsel %vm1377, %v1376, %v1374
      %v1383 = vrot.slane %v1265, 6
      %v1384 = vrot.slane %v1266, 6
      %v1387 = vmul.f32 %v1378, %v1383
      %v1388 = vmul.f32 %v1382, %v1384
      %1389 = vrot.lane.b32.xlu0 %v1281, 111
      %v1390 = vpop.permute.xlu0 %1389
      %1391 = vrot.lane.b32.xlu0 %v1274, 111
      %v1392 = vpop.permute.xlu0 %1391
      %vm1393 = vcmask 908288
      %v1394 = vsel %vm1393, %v1390, %v1392
      %v1398 = vsel %vm1393, %v1392, %v1390
      %v1399 = vrot.slane %v1265, 7
      %v1400 = vrot.slane %v1266, 7
      %v1403 = vmul.f32 %v1394, %v1399
      %v1404 = vmul.f32 %v1398, %v1400
      %v1407 = vrot.slane %v1307, 7
      %v1408 = vrot.slane %v1308, 7
      %v1413 = vrot.slane %v1323, 6
      %v1414 = vrot.slane %v1324, 6
      %v1419 = vrot.slane %v1339, 5
      %v1420 = vrot.slane %v1340, 5
      %v1427 = vrot.slane %v1355, 3
      %v1428 = vrot.slane %v1356, 3
      %v1433 = vrot.slane %v1371, 2
      %v1434 = vrot.slane %v1372, 2
      %v1439 = vrot.slane %v1387, 1
      %v1440 = vrot.slane %v1388, 1
      %vm1443 = vcmask 1040384
      %v1444 = vsel %vm1443, %v1289, %v1407
      %v1445 = vsel %vm1443, %v1290, %v1408
      %vm1446 = vcmask 1041408
      %v1447 = vsel %vm1446, %v1444, %v1413
      %v1448 = vsel %vm1446, %v1445, %v1414
      %vm1449 = vcmask 1042432
      %v1450 = vsel %vm1449, %v1447, %v1419
      %v1451 = vsel %vm1449, %v1448, %v1420
      %vm1452 = vcmask 1043456
      %v1453 = vsel %vm1452, %v1450, %v1281
      %v1454 = vsel %vm1452, %v1451, %v1274
      %vm1455 = vcmask 1044480
      %v1456 = vsel %vm1455, %v1453, %v1427
      %v1457 = vsel %vm1455, %v1454, %v1428
      %vm1458 = vcmask 1045504
      %v1459 = vsel %vm1458, %v1456, %v1433
      %v1460 = vsel %vm1458, %v1457, %v1434
      %vm1461 = vcmask 1046528
      %v1462 = vsel %vm1461, %v1459, %v1439
      %v1463 = vsel %vm1461, %v1460, %v1440
      %v1464 = vld [vmem:[%s3] sm:$0x3]
      %v1465 = vpack.c.bf16 %v1403, %v1462
      %v1466 = vpack.c.bf16 %v1404, %v1463
      %v1467 = vld [vmem:[%s5] sm:$0xf]
      %1469 = vset.pattern.permute.xlu0 0
      %1470 = vperm.xlu0 %1469, %v1467
      %v1471 = vpop.permute.xlu0 %1470
      %vm1473 = vcmask 72704
      %v1475 = vsel %vm1473, %v1464, 0
      %v1477 = vsel %vm1452, 4294967295, 65535
      %v1478 = vsel %vm1455, %v1477, 0
      %v1480 = vand.u32 %v1465, %v1478
      %v1483 = vand.u32 %v1466, %v1478
      %1485 = vmatprep.subr.bf16.mxu0 0
      %1486 = vmatpush1.bf16.msra.mxu0 0
      %1487 = vmatprep.subr.bf16.mxu0 0
      %1488 = vmatpush1.bf16.msra.mxu0 0
      %1489 = vmatprep.subr.bf16.mxu0 0
      %1490 = vmatpush1.bf16.msra.mxu0 0
      %1491 = vmatprep.subr.bf16.mxu0 0
      %1492 = vmatpush1.bf16.msra.mxu0 0
      %1493 = vmatprep.subr.bf16.mxu0 0
      %1494 = vmatpush1.bf16.msra.mxu0 0
      %1495 = vmatprep.subr.bf16.mxu0 0
      %1496 = vmatpush1.bf16.msra.mxu0 0
      %1497 = vmatprep.subr.bf16.mxu0 0
      %1498 = vmatpush1.bf16.msra.mxu0 0
      %1499 = vmatprep.subr.bf16.mxu0 %v1483
      %1500 = vmatpush1.bf16.msra.mxu0 %v1480
      %1501 = vmatprep.subr.bf16.mxu0 0
      %1502 = vmatpush2.bf16.msra.mxu0 0
      %1503 = vmatprep.subr.bf16.mxu0 0
      %1504 = vmatpush2.bf16.msra.mxu0 0
      %1505 = vmatprep.subr.bf16.mxu0 0
      %1506 = vmatpush2.bf16.msra.mxu0 0
      %1507 = vmatprep.subr.bf16.mxu0 0
      %1508 = vmatpush2.bf16.msra.mxu0 0
      %1509 = vmatprep.subr.bf16.mxu0 0
      %1510 = vmatpush2.bf16.msra.mxu0 0
      %1511 = vmatprep.subr.bf16.mxu0 0
      %1512 = vmatpush2.bf16.msra.mxu0 0
      %1513 = vmatprep.subr.bf16.mxu0 0
      %1514 = vmatpush2.bf16.msra.mxu0 0
      %1515 = vmatprep.subr.bf16.mxu0 0
      %1516 = vmatpush2.bf16.msra.mxu0 0
      %1517 = vmatprep.mubr.bf16.mxu0 0
      %1518 = vmatmul.mubr.bf16.gmra.mxu0 %v1475
      %v1519 = vpop.f32.mrf.mxu0
      %v1520 = vadd.f32 %v1471, %v1519
      %v1521 = vpop.f32.mrf.mxu0
      %v1522 = vadd.f32 %v1471, %v1521
      %v1523 = vpop.f32.mrf.mxu0
      %v1524 = vpop.f32.mrf.mxu0
      %1525 = vdwg.mxu0
      %vm1526 = vcmp.ge.f32.partialorder %v1520, 0.0
      %vm1527 = vcmp.ge.f32.partialorder %v1522, 0.0
      %v1528 = vmul.f32 %v1520, 0.2
      %v1529 = vmul.f32 %v1522, 0.2
      %v1530 = vsel %vm1526, %v1520, %v1528
      %v1531 = vsel %vm1527, %v1522, %v1529
      %1533 = vrot.lane.b32.xlu0 %v1531, 17
      %v1534 = vpop.permute.xlu0 %1533
      %1537 = vrot.lane.b32.xlu0 %v1530, 17
      %v1538 = vpop.permute.xlu0 %1537
      %v1539 = vsel %vm1284, %v1538, %v1534
      %v1542 = vsel %vm1284, %v1534, %v1538
      %v1543 = vlaneseq
      %v1544 = vshrl.u32 %v1543, 7
      %v1545 = vsub.s32 0, %v1544
      %v1546 = vrot.slane %v1265, %v1545
      %v1547 = vlaneseq
      %v1548 = vshrl.u32 %v1547, 7
      %v1549 = vsub.s32 0, %v1548
      %v1550 = vrot.slane %v1266, %v1549
      %v1551 = vmul.f32 %v1542, %v1546
      %v1552 = vmul.f32 %v1539, %v1550
      %1553 = vrot.lane.b32.xlu0 %v1531, 16
      %v1554 = vpop.permute.xlu0 %1553
      %1556 = vrot.lane.b32.xlu0 %v1530, 16
      %v1557 = vpop.permute.xlu0 %1556
      %v1558 = vsel %vm1296, %v1557, %v1554
      %v1561 = vsel %vm1296, %v1554, %v1557
      %v1562 = vlaneseq
      %v1563 = vshrl.u32 %v1562, 7
      %v1564 = vsub.s32 1, %v1563
      %v1565 = vrot.slane %v1265, %v1564
      %v1566 = vlaneseq
      %v1567 = vshrl.u32 %v1566, 7
      %v1568 = vsub.s32 1, %v1567
      %v1569 = vrot.slane %v1266, %v1568
      %v1570 = vmul.f32 %v1561, %v1565
      %v1571 = vmul.f32 %v1558, %v1569
      %1572 = vrot.lane.b32.xlu0 %v1531, 15
      %v1573 = vpop.permute.xlu0 %1572
      %1575 = vrot.lane.b32.xlu0 %v1530, 15
      %v1576 = vpop.permute.xlu0 %1575
      %v1577 = vsel %vm1314, %v1576, %v1573
      %v1580 = vsel %vm1314, %v1573, %v1576
      %v1581 = vlaneseq
      %v1582 = vshrl.u32 %v1581, 7
      %v1583 = vsub.s32 2, %v1582
      %v1584 = vrot.slane %v1265, %v1583
      %v1585 = vlaneseq
      %v1586 = vshrl.u32 %v1585, 7
      %v1587 = vsub.s32 2, %v1586
      %v1588 = vrot.slane %v1266, %v1587
      %v1589 = vmul.f32 %v1580, %v1584
      %v1590 = vmul.f32 %v1577, %v1588
      %1591 = vrot.lane.b32.xlu0 %v1531, 1
      %v1592 = vpop.permute.xlu0 %1591
      %1594 = vrot.lane.b32.xlu0 %v1530, 1
      %v1595 = vpop.permute.xlu0 %1594
      %v1596 = vsel %vm1330, %v1595, %v1592
      %v1599 = vsel %vm1330, %v1592, %v1595
      %v1600 = vlaneseq
      %v1601 = vshrl.u32 %v1600, 7
      %v1602 = vsub.s32 3, %v1601
      %v1603 = vrot.slane %v1265, %v1602
      %v1604 = vlaneseq
      %v1605 = vshrl.u32 %v1604, 7
      %v1606 = vsub.s32 3, %v1605
      %v1607 = vrot.slane %v1266, %v1606
      %v1608 = vmul.f32 %v1599, %v1603
      %v1609 = vmul.f32 %v1596, %v1607
      %1610 = vrot.lane.b32.xlu0 %v1530, 127
      %v1611 = vpop.permute.xlu0 %1610
      %1612 = vrot.lane.b32.xlu0 %v1531, 127
      %v1613 = vpop.permute.xlu0 %1612
      %v1614 = vsel %vm1345, %v1611, %v1613
      %v1618 = vsel %vm1345, %v1613, %v1611
      %v1619 = vlaneseq
      %v1620 = vshrl.u32 %v1619, 7
      %v1621 = vsub.s32 4, %v1620
      %v1622 = vrot.slane %v1265, %v1621
      %v1623 = vlaneseq
      %v1624 = vshrl.u32 %v1623, 7
      %v1625 = vsub.s32 4, %v1624
      %v1626 = vrot.slane %v1266, %v1625
      %v1627 = vmul.f32 %v1614, %v1622
      %v1628 = vmul.f32 %v1618, %v1626
      %1629 = vrot.lane.b32.xlu0 %v1530, 113
      %v1630 = vpop.permute.xlu0 %1629
      %1631 = vrot.lane.b32.xlu0 %v1531, 113
      %v1632 = vpop.permute.xlu0 %1631
      %v1633 = vsel %vm1361, %v1630, %v1632
      %v1637 = vsel %vm1361, %v1632, %v1630
      %v1638 = vlaneseq
      %v1639 = vshrl.u32 %v1638, 7
      %v1640 = vsub.s32 5, %v1639
      %v1641 = vrot.slane %v1265, %v1640
      %v1642 = vlaneseq
      %v1643 = vshrl.u32 %v1642, 7
      %v1644 = vsub.s32 5, %v1643
      %v1645 = vrot.slane %v1266, %v1644
      %v1646 = vmul.f32 %v1633, %v1641
      %v1647 = vmul.f32 %v1637, %v1645
      %1648 = vrot.lane.b32.xlu0 %v1530, 112
      %v1649 = vpop.permute.xlu0 %1648
      %1650 = vrot.lane.b32.xlu0 %v1531, 112
      %v1651 = vpop.permute.xlu0 %1650
      %v1652 = vsel %vm1377, %v1649, %v1651
      %v1656 = vsel %vm1377, %v1651, %v1649
      %v1657 = vlaneseq
      %v1658 = vshrl.u32 %v1657, 7
      %v1659 = vsub.s32 6, %v1658
      %v1660 = vrot.slane %v1265, %v1659
      %v1661 = vlaneseq
      %v1662 = vshrl.u32 %v1661, 7
      %v1663 = vsub.s32 6, %v1662
      %v1664 = vrot.slane %v1266, %v1663
      %v1665 = vmul.f32 %v1652, %v1660
      %v1666 = vmul.f32 %v1656, %v1664
      %1667 = vrot.lane.b32.xlu0 %v1530, 111
      %v1668 = vpop.permute.xlu0 %1667
      %1669 = vrot.lane.b32.xlu0 %v1531, 111
      %v1670 = vpop.permute.xlu0 %1669
      %v1671 = vsel %vm1393, %v1668, %v1670
      %v1675 = vsel %vm1393, %v1670, %v1668
      %v1676 = vlaneseq
      %v1677 = vshrl.u32 %v1676, 7
      %v1678 = vsub.s32 7, %v1677
      %v1679 = vrot.slane %v1265, %v1678
      %v1680 = vlaneseq
      %v1681 = vshrl.u32 %v1680, 7
      %v1682 = vsub.s32 7, %v1681
      %v1683 = vrot.slane %v1266, %v1682
      %v1684 = vmul.f32 %v1671, %v1679
      %v1685 = vmul.f32 %v1675, %v1683
      %v1688 = vrot.slane %v1570, 4
      %v1689 = vrot.slane %v1571, 4
      %v1694 = vrot.slane %v1608, 4
      %v1695 = vrot.slane %v1609, 4
      %v1700 = vrot.slane %v1627, 4
      %v1701 = vrot.slane %v1628, 4
      %v1706 = vrot.slane %v1665, 4
      %v1707 = vrot.slane %v1666, 4
      %v1710 = vsel %vm1452, %v1551, %v1688
      %v1711 = vsel %vm1452, %v1552, %v1689
      %v1712 = vsel %vm1452, %v1589, %v1694
      %v1713 = vsel %vm1452, %v1590, %v1695
      %v1714 = vsel %vm1452, %v1530, %v1700
      %v1715 = vsel %vm1452, %v1531, %v1701
      %v1716 = vsel %vm1452, %v1646, %v1706
      %v1717 = vsel %vm1452, %v1647, %v1707
      %v1718 = vld [vmem:[%s7] sm:$0xf]
      %v1719 = vpack.c.bf16 %v1712, %v1710
      %v1720 = vpack.c.bf16 %v1713, %v1711
      %v1721 = vpack.c.bf16 %v1716, %v1714
      %v1722 = vpack.c.bf16 %v1717, %v1715
      %v1723 = vpack.c.bf16 %v1684, %v1684
      %v1724 = vpack.c.bf16 %v1685, %v1685
      %v1725 = vld [vmem:[%s9] sm:$0xff]
      %1727 = vset.pattern.permute.xlu0 0
      %1728 = vperm.xlu0 %1727, %v1725
      %v1729 = vpop.permute.xlu0 %1728
      %vm1731 = vcmask 293888
      %v1733 = vsel %vm1731, %v1718, 0
      %v1736 = vsel %vm1446, %v1723, 0
      %v1739 = vsel %vm1446, %v1724, 0
      %1741 = vmatprep.subr.bf16.mxu0 0
      %1742 = vmatpush1.bf16.msra.mxu0 0
      %1743 = vmatprep.subr.bf16.mxu0 0
      %1744 = vmatpush1.bf16.msra.mxu0 0
      %1745 = vmatprep.subr.bf16.mxu0 0
      %1746 = vmatpush1.bf16.msra.mxu0 0
      %1747 = vmatprep.subr.bf16.mxu0 0
      %1748 = vmatpush1.bf16.msra.mxu0 0
      %1749 = vmatprep.subr.bf16.mxu0 0
      %1750 = vmatpush1.bf16.msra.mxu0 0
      %1751 = vmatprep.subr.bf16.mxu0 %v1739
      %1752 = vmatpush1.bf16.msra.mxu0 %v1736
      %1753 = vmatprep.subr.bf16.mxu0 %v1722
      %1754 = vmatpush1.bf16.msra.mxu0 %v1721
      %1755 = vmatprep.subr.bf16.mxu0 %v1720
      %1756 = vmatpush1.bf16.msra.mxu0 %v1719
      %1757 = vmatprep.subr.bf16.mxu0 0
      %1758 = vmatpush2.bf16.msra.mxu0 0
      %1759 = vmatprep.subr.bf16.mxu0 0
      %1760 = vmatpush2.bf16.msra.mxu0 0
      %1761 = vmatprep.subr.bf16.mxu0 0
      %1762 = vmatpush2.bf16.msra.mxu0 0
      %1763 = vmatprep.subr.bf16.mxu0 0
      %1764 = vmatpush2.bf16.msra.mxu0 0
      %1765 = vmatprep.subr.bf16.mxu0 0
      %1766 = vmatpush2.bf16.msra.mxu0 0
      %1767 = vmatprep.subr.bf16.mxu0 0
      %1768 = vmatpush2.bf16.msra.mxu0 0
      %1769 = vmatprep.subr.bf16.mxu0 0
      %1770 = vmatpush2.bf16.msra.mxu0 0
      %1771 = vmatprep.subr.bf16.mxu0 0
      %1772 = vmatpush2.bf16.msra.mxu0 0
      %1773 = vmatprep.mubr.bf16.mxu0 0
      %1774 = vmatmul.mubr.bf16.gmra.mxu0 %v1733
      %v1775 = vpop.f32.mrf.mxu0
      %v1776 = vadd.f32 %v1729, %v1775
      %v1777 = vpop.f32.mrf.mxu0
      %v1778 = vadd.f32 %v1729, %v1777
      %v1779 = vpop.f32.mrf.mxu0
      %v1780 = vpop.f32.mrf.mxu0
      %1781 = vdwg.mxu0
      %vm1782 = vcmp.ge.f32.partialorder %v1776, 0.0
      %vm1783 = vcmp.ge.f32.partialorder %v1778, 0.0
      %v1784 = vmul.f32 %v1776, 0.2
      %v1785 = vmul.f32 %v1778, 0.2
      %v1786 = vsel %vm1782, %v1776, %v1784
      %v1787 = vsel %vm1783, %v1778, %v1785
      %1790 = vrot.lane.b32.xlu0 %v1786, 127
      %v1791 = vpop.permute.xlu0 %1790
      %1792 = vrot.lane.b32.xlu0 %v1787, 127
      %v1793 = vpop.permute.xlu0 %1792
      %v1794 = vsel %vm1345, %v1791, %v1793
      %v1798 = vsel %vm1345, %v1793, %v1791
      %v1799 = vmul.f32 %v1794, %v1622
      %v1800 = vmul.f32 %v1798, %v1626
      %v1801 = vmax.f32 %v1786, %v1799
      %v1802 = vmax.f32 %v1787, %v1800
      %1803 = vrot.lane.b32.xlu0 %v1786, 112
      %v1804 = vpop.permute.xlu0 %1803
      %1805 = vrot.lane.b32.xlu0 %v1787, 112
      %v1806 = vpop.permute.xlu0 %1805
      %v1807 = vsel %vm1377, %v1804, %v1806
      %v1811 = vsel %vm1377, %v1806, %v1804
      %v1812 = vmul.f32 %v1807, %v1660
      %v1813 = vmul.f32 %v1811, %v1664
      %v1814 = vmax.f32 %v1801, %v1812
      %v1815 = vmax.f32 %v1802, %v1813
      %1816 = vrot.lane.b32.xlu0 %v1786, 111
      %v1817 = vpop.permute.xlu0 %1816
      %1818 = vrot.lane.b32.xlu0 %v1787, 111
      %v1819 = vpop.permute.xlu0 %1818
      %v1820 = vsel %vm1393, %v1817, %v1819
      %v1824 = vsel %vm1393, %v1819, %v1817
      %v1825 = vmul.f32 %v1820, %v1679
      %v1826 = vmul.f32 %v1824, %v1683
      %v1827 = vmax.f32 %v1814, %v1825
      %v1828 = vmax.f32 %v1815, %v1826
      %v1829 = vpack.c.bf16 %v1827, %v1827
      %v1830 = vpack.c.bf16 %v1828, %v1828
      %v1831 = vld [vmem:[%s77] sm:$0xf]
      %v1832 = vld [vmem:[%s77 + $0x4] sm:$0xf]
      %v1833 = vld [vmem:[%s77 + $0x8] sm:$0xf]
      %v1834 = vld [vmem:[%s77 + $0xc] sm:$0xf]
      %v1835 = vld [vmem:[%s77 + $0x10] sm:$0xf]
      %v1836 = vld [vmem:[%s77 + $0x14] sm:$0xf]
      %v1837 = vld [vmem:[%s77 + $0x18] sm:$0xf]
      %v1838 = vld [vmem:[%s77 + $0x1c] sm:$0xf]
      %v1839 = vld [vmem:[%s77 + $0x20] sm:$0xf]
      %v1840 = vld [vmem:[%s77 + $0x24] sm:$0xf]
      %v1841 = vld [vmem:[%s77 + $0x28] sm:$0xf]
      %v1842 = vld [vmem:[%s77 + $0x2c] sm:$0xf]
      %v1843 = vld [vmem:[%s77 + $0x30] sm:$0xf]
      %v1844 = vld [vmem:[%s77 + $0x34] sm:$0xf]
      %v1845 = vld [vmem:[%s77 + $0x38] sm:$0xf]
      %v1846 = vld [vmem:[%s77 + $0x3c] sm:$0xf]
      %v1847 = vld [vmem:[%s77 + $0x40] sm:$0xf]
      %v1848 = vld [vmem:[%s77 + $0x44] sm:$0xf]
      %v1849 = vld [vmem:[%s77 + $0x48] sm:$0xf]
      %v1850 = vld [vmem:[%s77 + $0x4c] sm:$0xf]
      %v1851 = vld [vmem:[%s77 + $0x50] sm:$0xf]
      %v1852 = vld [vmem:[%s77 + $0x54] sm:$0xf]
      %v1853 = vld [vmem:[%s77 + $0x58] sm:$0xf]
      %v1854 = vld [vmem:[%s77 + $0x5c] sm:$0xf]
      %v1855 = vld [vmem:[%s77 + $0x60] sm:$0xf]
      %v1856 = vld [vmem:[%s77 + $0x64] sm:$0xf]
      %v1857 = vld [vmem:[%s77 + $0x68] sm:$0xf]
      %v1858 = vld [vmem:[%s77 + $0x6c] sm:$0xf]
      %v1859 = vld [vmem:[%s77 + $0x70] sm:$0xf]
      %v1860 = vld [vmem:[%s77 + $0x74] sm:$0xf]
      %v1861 = vld [vmem:[%s77 + $0x78] sm:$0xf]
      %v1862 = vld [vmem:[%s77 + $0x7c] sm:$0xf]
      %v1895 = vunpack.c.l.b16 %v1831
      %v1896 = vunpack.c.l.b16 %v1832
      %v1897 = vunpack.c.l.b16 %v1833
      %v1898 = vunpack.c.l.b16 %v1834
      %v1899 = vunpack.c.l.b16 %v1835
      %v1900 = vunpack.c.l.b16 %v1836
      %v1901 = vunpack.c.l.b16 %v1837
      %v1902 = vunpack.c.l.b16 %v1838
      %v1903 = vunpack.c.l.b16 %v1839
      %v1904 = vunpack.c.l.b16 %v1840
      %v1905 = vunpack.c.l.b16 %v1841
      %v1906 = vunpack.c.l.b16 %v1842
      %v1907 = vunpack.c.l.b16 %v1843
      %v1908 = vunpack.c.l.b16 %v1844
      %v1909 = vunpack.c.l.b16 %v1845
      %v1910 = vunpack.c.l.b16 %v1846
      %v1911 = vunpack.c.l.b16 %v1847
      %v1912 = vunpack.c.l.b16 %v1848
      %v1913 = vunpack.c.l.b16 %v1849
      %v1914 = vunpack.c.l.b16 %v1850
      %v1915 = vunpack.c.l.b16 %v1851
      %v1916 = vunpack.c.l.b16 %v1852
      %v1917 = vunpack.c.l.b16 %v1853
      %v1918 = vunpack.c.l.b16 %v1854
      %v1919 = vunpack.c.l.b16 %v1855
      %v1920 = vunpack.c.l.b16 %v1856
      %v1921 = vunpack.c.l.b16 %v1857
      %v1922 = vunpack.c.l.b16 %v1858
      %v1923 = vunpack.c.l.b16 %v1859
      %v1924 = vunpack.c.l.b16 %v1860
      %v1925 = vunpack.c.l.b16 %v1861
      %v1926 = vunpack.c.l.b16 %v1862
      %v1927 = vpack.c.b16 %v1896, %v1895
      %v1928 = vpack.c.b16 %v1898, %v1897
      %v1929 = vpack.c.b16 %v1900, %v1899
      %v1930 = vpack.c.b16 %v1902, %v1901
      %v1931 = vpack.c.b16 %v1904, %v1903
      %v1932 = vpack.c.b16 %v1906, %v1905
      %v1933 = vpack.c.b16 %v1908, %v1907
      %v1934 = vpack.c.b16 %v1910, %v1909
      %v1935 = vpack.c.b16 %v1912, %v1911
      %v1936 = vpack.c.b16 %v1914, %v1913
      %v1937 = vpack.c.b16 %v1916, %v1915
      %v1938 = vpack.c.b16 %v1918, %v1917
      %v1939 = vpack.c.b16 %v1920, %v1919
      %v1940 = vpack.c.b16 %v1922, %v1921
      %v1941 = vpack.c.b16 %v1924, %v1923
      %v1942 = vpack.c.b16 %v1926, %v1925
      %1959 = vmatprep.subr.bf16.mxu0 0
      %1960 = vmatpush1.bf16.msra.mxu0 %v1934
      %1961 = vmatprep.subr.bf16.mxu0 0
      %1962 = vmatpush1.bf16.msra.mxu0 %v1933
      %1963 = vmatprep.subr.bf16.mxu0 0
      %1964 = vmatpush1.bf16.msra.mxu0 %v1932
      %1965 = vmatprep.subr.bf16.mxu0 0
      %1966 = vmatpush1.bf16.msra.mxu0 %v1931
      %1967 = vmatprep.subr.bf16.mxu0 0
      %1968 = vmatpush1.bf16.msra.mxu0 %v1930
      %1969 = vmatprep.subr.bf16.mxu0 0
      %1970 = vmatpush1.bf16.msra.mxu0 %v1929
      %1971 = vmatprep.subr.bf16.mxu0 0
      %1972 = vmatpush1.bf16.msra.mxu0 %v1928
      %1973 = vmatprep.subr.bf16.mxu0 0
      %1974 = vmatpush1.bf16.msra.mxu0 %v1927
      %1975 = vmatprep.subr.bf16.mxu0 0
      %1976 = vmatpush2.bf16.msra.mxu0 %v1942
      %1977 = vmatprep.subr.bf16.mxu0 0
      %1978 = vmatpush2.bf16.msra.mxu0 %v1941
      %1979 = vmatprep.subr.bf16.mxu0 0
      %1980 = vmatpush2.bf16.msra.mxu0 %v1940
      %1981 = vmatprep.subr.bf16.mxu0 0
      %1982 = vmatpush2.bf16.msra.mxu0 %v1939
      %1983 = vmatprep.subr.bf16.mxu0 0
      %1984 = vmatpush2.bf16.msra.mxu0 %v1938
      %1985 = vmatprep.subr.bf16.mxu0 0
      %1986 = vmatpush2.bf16.msra.mxu0 %v1937
      %1987 = vmatprep.subr.bf16.mxu0 0
      %1988 = vmatpush2.bf16.msra.mxu0 %v1936
      %1989 = vmatprep.subr.bf16.mxu0 0
      %1990 = vmatpush2.bf16.msra.mxu0 %v1935
      %1991 = vmatprep.mubr.bf16.mxu0 %v1830
      %1992 = vmatmul.mubr.bf16.gmra.mxu0 %v1829
      %v1993 = vpop.f32.mrf.mxu0
      %v1994 = vadd.f32 0.0, %v1993
      %v1995 = vpop.f32.mrf.mxu0
      %v1996 = vpop.f32.mrf.mxu0
      %v1997 = vpop.f32.mrf.mxu0
      %1998 = vdwg.mxu0
      %2000 = vrot.lane.b32.xlu0 %v1994, 73
      %v2001 = vpop.permute.xlu0 %2000
      %2003 = vrot.lane.b32.xlu0 %v1994, 9
      %v2004 = vpop.permute.xlu0 %2003
      %v2006 = vsel %vm1473, %v2001, %v2004
      %v2007 = vlaneseq
      %v2008 = vshrl.u32 %v2007, 7
      %v2009 = vsub.s32 0, %v2008
      %v2010 = vrot.slane %v1267, %v2009
      %v2011 = vmul.f32 %v2006, %v2010
      %2012 = vrot.lane.b32.xlu0 %v1994, 72
      %v2013 = vpop.permute.xlu0 %2012
      %2015 = vrot.lane.b32.xlu0 %v1994, 8
      %v2016 = vpop.permute.xlu0 %2015
      %vm2018 = vcmask 64512
      %v2019 = vsel %vm2018, %v2013, %v2016
      %v2020 = vlaneseq
      %v2021 = vshrl.u32 %v2020, 7
      %v2022 = vsub.s32 1, %v2021
      %v2023 = vrot.slane %v1267, %v2022
      %v2024 = vmul.f32 %v2019, %v2023
      %2025 = vrot.lane.b32.xlu0 %v1994, 71
      %v2026 = vpop.permute.xlu0 %2025
      %2028 = vrot.lane.b32.xlu0 %v1994, 7
      %v2029 = vpop.permute.xlu0 %2028
      %vm2031 = vcmask 56320
      %v2032 = vsel %vm2031, %v2026, %v2029
      %v2033 = vlaneseq
      %v2034 = vshrl.u32 %v2033, 7
      %v2035 = vsub.s32 2, %v2034
      %v2036 = vrot.slane %v1267, %v2035
      %v2037 = vmul.f32 %v2032, %v2036
      %2038 = vrot.lane.b32.xlu0 %v1994, 65
      %v2039 = vpop.permute.xlu0 %2038
      %2041 = vrot.lane.b32.xlu0 %v1994, 1
      %v2042 = vpop.permute.xlu0 %2041
      %v2044 = vsel %vm1330, %v2039, %v2042
      %v2045 = vlaneseq
      %v2046 = vshrl.u32 %v2045, 7
      %v2047 = vsub.s32 3, %v2046
      %v2048 = vrot.slane %v1267, %v2047
      %v2049 = vmul.f32 %v2044, %v2048
      %2050 = vrot.lane.b32.xlu0 %v1994, 127
      %v2051 = vpop.permute.xlu0 %2050
      %2053 = vrot.lane.b32.xlu0 %v1994, 63
      %v2054 = vpop.permute.xlu0 %2053
      %vm2056 = vcmask 515072
      %v2057 = vsel %vm2056, %v2051, %v2054
      %v2058 = vlaneseq
      %v2059 = vshrl.u32 %v2058, 7
      %v2060 = vsub.s32 4, %v2059
      %v2061 = vrot.slane %v1267, %v2060
      %v2062 = vmul.f32 %v2057, %v2061
      %2063 = vrot.lane.b32.xlu0 %v1994, 121
      %v2064 = vpop.permute.xlu0 %2063
      %2066 = vrot.lane.b32.xlu0 %v1994, 57
      %v2067 = vpop.permute.xlu0 %2066
      %vm2069 = vcmask 465920
      %v2070 = vsel %vm2069, %v2064, %v2067
      %v2071 = vlaneseq
      %v2072 = vshrl.u32 %v2071, 7
      %v2073 = vsub.s32 5, %v2072
      %v2074 = vrot.slane %v1267, %v2073
      %v2075 = vmul.f32 %v2070, %v2074
      %2076 = vrot.lane.b32.xlu0 %v1994, 120
      %v2077 = vpop.permute.xlu0 %2076
      %2079 = vrot.lane.b32.xlu0 %v1994, 56
      %v2080 = vpop.permute.xlu0 %2079
      %vm2082 = vcmask 457728
      %v2083 = vsel %vm2082, %v2077, %v2080
      %v2084 = vlaneseq
      %v2085 = vshrl.u32 %v2084, 7
      %v2086 = vsub.s32 6, %v2085
      %v2087 = vrot.slane %v1267, %v2086
      %v2088 = vmul.f32 %v2083, %v2087
      %2089 = vrot.lane.b32.xlu0 %v1994, 119
      %v2090 = vpop.permute.xlu0 %2089
      %2092 = vrot.lane.b32.xlu0 %v1994, 55
      %v2093 = vpop.permute.xlu0 %2092
      %vm2095 = vcmask 449536
      %v2096 = vsel %vm2095, %v2090, %v2093
      %v2097 = vlaneseq
      %v2098 = vshrl.u32 %v2097, 7
      %v2099 = vsub.s32 7, %v2098
      %v2100 = vrot.slane %v1267, %v2099
      %v2101 = vmul.f32 %v2096, %v2100
      %v2102 = vld [vmem:[%s11] sm:$0xf]
      %v2103 = vpack.c.bf16 %v2024, %v2011
      %v2104 = vpack.c.bf16 %v2049, %v2037
      %v2105 = vpack.c.bf16 %v2062, %v1994
      %v2106 = vpack.c.bf16 %v2088, %v2075
      %v2107 = vpack.c.bf16 %v2101, %v2101
      %v2108 = vld [vmem:[%s13] sm:$0xff]
      %2110 = vset.pattern.permute.xlu0 0
      %2111 = vperm.xlu0 %2110, %v2108
      %v2112 = vpop.permute.xlu0 %2111
      %vm2114 = vcmask 588800
      %v2116 = vsel %vm2114, %v2102, 0
      %v2119 = vsel %vm1452, %v2107, 0
      %2121 = vmatprep.subr.bf16.mxu0 0
      %2122 = vmatpush1.bf16.msra.mxu0 0
      %2123 = vmatprep.subr.bf16.mxu0 0
      %2124 = vmatpush1.bf16.msra.mxu0 0
      %2125 = vmatprep.subr.bf16.mxu0 0
      %2126 = vmatpush1.bf16.msra.mxu0 0
      %2127 = vmatprep.subr.bf16.mxu0 0
      %2128 = vmatpush1.bf16.msra.mxu0 %v2119
      %2129 = vmatprep.subr.bf16.mxu0 0
      %2130 = vmatpush1.bf16.msra.mxu0 %v2106
      %2131 = vmatprep.subr.bf16.mxu0 0
      %2132 = vmatpush1.bf16.msra.mxu0 %v2105
      %2133 = vmatprep.subr.bf16.mxu0 0
      %2134 = vmatpush1.bf16.msra.mxu0 %v2104
      %2135 = vmatprep.subr.bf16.mxu0 0
      %2136 = vmatpush1.bf16.msra.mxu0 %v2103
      %2137 = vmatprep.subr.bf16.mxu0 0
      %2138 = vmatpush2.bf16.msra.mxu0 0
      %2139 = vmatprep.subr.bf16.mxu0 0
      %2140 = vmatpush2.bf16.msra.mxu0 0
      %2141 = vmatprep.subr.bf16.mxu0 0
      %2142 = vmatpush2.bf16.msra.mxu0 0
      %2143 = vmatprep.subr.bf16.mxu0 0
      %2144 = vmatpush2.bf16.msra.mxu0 0
      %2145 = vmatprep.subr.bf16.mxu0 0
      %2146 = vmatpush2.bf16.msra.mxu0 0
      %2147 = vmatprep.subr.bf16.mxu0 0
      %2148 = vmatpush2.bf16.msra.mxu0 0
      %2149 = vmatprep.subr.bf16.mxu0 0
      %2150 = vmatpush2.bf16.msra.mxu0 0
      %2151 = vmatprep.subr.bf16.mxu0 0
      %2152 = vmatpush2.bf16.msra.mxu0 0
      %2153 = vmatprep.mubr.bf16.mxu0 0
      %2154 = vmatmul.mubr.bf16.gmra.mxu0 %v2116
      %v2155 = vpop.f32.mrf.mxu0
      %v2156 = vadd.f32 %v2112, %v2155
      %v2157 = vpop.f32.mrf.mxu0
      %v2158 = vpop.f32.mrf.mxu0
      %v2159 = vpop.f32.mrf.mxu0
      %2160 = vdwg.mxu0
      %vm2161 = vcmp.ge.f32.partialorder %v2156, 0.0
      %v2162 = vmul.f32 %v2156, 0.2
      %v2163 = vsel %vm2161, %v2156, %v2162
      %2165 = vrot.lane.b32.xlu0 %v2163, 73
      %v2166 = vpop.permute.xlu0 %2165
      %2168 = vrot.lane.b32.xlu0 %v2163, 9
      %v2169 = vpop.permute.xlu0 %2168
      %v2171 = vsel %vm1473, %v2166, %v2169
      %v2172 = vmul.f32 %v2171, %v2010
      %2173 = vrot.lane.b32.xlu0 %v2163, 72
      %v2174 = vpop.permute.xlu0 %2173
      %2176 = vrot.lane.b32.xlu0 %v2163, 8
      %v2177 = vpop.permute.xlu0 %2176
      %v2179 = vsel %vm2018, %v2174, %v2177
      %v2180 = vmul.f32 %v2179, %v2023
      %2181 = vrot.lane.b32.xlu0 %v2163, 71
      %v2182 = vpop.permute.xlu0 %2181
      %2184 = vrot.lane.b32.xlu0 %v2163, 7
      %v2185 = vpop.permute.xlu0 %2184
      %v2187 = vsel %vm2031, %v2182, %v2185
      %v2188 = vmul.f32 %v2187, %v2036
      %2189 = vrot.lane.b32.xlu0 %v2163, 65
      %v2190 = vpop.permute.xlu0 %2189
      %2192 = vrot.lane.b32.xlu0 %v2163, 1
      %v2193 = vpop.permute.xlu0 %2192
      %v2195 = vsel %vm1330, %v2190, %v2193
      %v2196 = vmul.f32 %v2195, %v2048
      %2197 = vrot.lane.b32.xlu0 %v2163, 127
      %v2198 = vpop.permute.xlu0 %2197
      %2200 = vrot.lane.b32.xlu0 %v2163, 63
      %v2201 = vpop.permute.xlu0 %2200
      %v2203 = vsel %vm2056, %v2198, %v2201
      %v2204 = vmul.f32 %v2203, %v2061
      %2205 = vrot.lane.b32.xlu0 %v2163, 121
      %v2206 = vpop.permute.xlu0 %2205
      %2208 = vrot.lane.b32.xlu0 %v2163, 57
      %v2209 = vpop.permute.xlu0 %2208
      %v2211 = vsel %vm2069, %v2206, %v2209
      %v2212 = vmul.f32 %v2211, %v2074
      %2213 = vrot.lane.b32.xlu0 %v2163, 120
      %v2214 = vpop.permute.xlu0 %2213
      %2216 = vrot.lane.b32.xlu0 %v2163, 56
      %v2217 = vpop.permute.xlu0 %2216
      %v2219 = vsel %vm2082, %v2214, %v2217
      %v2220 = vmul.f32 %v2219, %v2087
      %2221 = vrot.lane.b32.xlu0 %v2163, 119
      %v2222 = vpop.permute.xlu0 %2221
      %2224 = vrot.lane.b32.xlu0 %v2163, 55
      %v2225 = vpop.permute.xlu0 %2224
      %v2227 = vsel %vm2095, %v2222, %v2225
      %v2228 = vmul.f32 %v2227, %v2100
      %v2229 = vld [vmem:[%s15] sm:$0xf]
      %v2230 = vld [vmem:[%s15 + $0x4] sm:$0xf]
      %v2231 = vpack.c.bf16 %v2180, %v2172
      %v2232 = vpack.c.bf16 %v2196, %v2188
      %v2233 = vpack.c.bf16 %v2204, %v2163
      %v2234 = vpack.c.bf16 %v2220, %v2212
      %v2235 = vpack.c.bf16 %v2228, %v2228
      %v2236 = vld [vmem:[%s17] sm:$0xff]
      %v2237 = vld [vmem:[%s17 + $0x8] sm:$0xff]
      %2239 = vset.pattern.permute.xlu0 0
      %2240 = vperm.xlu0 %2239, %v2236
      %v2241 = vpop.permute.xlu0 %2240
      %2244 = vset.pattern.permute.xlu0 0
      %2245 = vperm.xlu0 %2244, %v2237
      %v2246 = vpop.permute.xlu0 %2245
      %v2250 = vunpack.c.l.b16 %v2229
      %v2251 = vunpack.c.l.b16 %v2230
      %v2252 = vpack.c.b16 %v2251, %v2250
      %v2254 = vsel %vm2114, %v2252, 0
      %v2257 = vsel %vm1452, %v2235, 0
      %2259 = vmatprep.subr.bf16.mxu0 0
      %2260 = vmatpush1.bf16.msra.mxu0 0
      %2261 = vmatprep.subr.bf16.mxu0 0
      %2262 = vmatpush1.bf16.msra.mxu0 0
      %2263 = vmatprep.subr.bf16.mxu0 0
      %2264 = vmatpush1.bf16.msra.mxu0 0
      %2265 = vmatprep.subr.bf16.mxu0 0
      %2266 = vmatpush1.bf16.msra.mxu0 %v2257
      %2267 = vmatprep.subr.bf16.mxu0 0
      %2268 = vmatpush1.bf16.msra.mxu0 %v2234
      %2269 = vmatprep.subr.bf16.mxu0 0
      %2270 = vmatpush1.bf16.msra.mxu0 %v2233
      %2271 = vmatprep.subr.bf16.mxu0 0
      %2272 = vmatpush1.bf16.msra.mxu0 %v2232
      %2273 = vmatprep.subr.bf16.mxu0 0
      %2274 = vmatpush1.bf16.msra.mxu0 %v2231
      %2275 = vmatprep.subr.bf16.mxu0 0
      %2276 = vmatpush2.bf16.msra.mxu0 0
      %2277 = vmatprep.subr.bf16.mxu0 0
      %2278 = vmatpush2.bf16.msra.mxu0 0
      %2279 = vmatprep.subr.bf16.mxu0 0
      %2280 = vmatpush2.bf16.msra.mxu0 0
      %2281 = vmatprep.subr.bf16.mxu0 0
      %2282 = vmatpush2.bf16.msra.mxu0 0
      %2283 = vmatprep.subr.bf16.mxu0 0
      %2284 = vmatpush2.bf16.msra.mxu0 0
      %2285 = vmatprep.subr.bf16.mxu0 0
      %2286 = vmatpush2.bf16.msra.mxu0 0
      %2287 = vmatprep.subr.bf16.mxu0 0
      %2288 = vmatpush2.bf16.msra.mxu0 0
      %2289 = vmatprep.subr.bf16.mxu0 0
      %2290 = vmatpush2.bf16.msra.mxu0 0
      %2291 = vmatprep.mubr.bf16.mxu0 0
      %2292 = vmatmul.mubr.bf16.gmra.mxu0 %v2254
      %v2293 = vpop.f32.mrf.mxu0
      %v2294 = vadd.f32 %v2241, %v2293
      %v2295 = vpop.f32.mrf.mxu0
      %v2296 = vpop.f32.mrf.mxu0
      %v2297 = vadd.f32 %v2246, %v2296
      %v2298 = vpop.f32.mrf.mxu0
      %2299 = vdwg.mxu0
      %vm2300 = vcmp.ge.f32.partialorder %v2294, 0.0
      %vm2301 = vcmp.ge.f32.partialorder %v2297, 0.0
      %v2302 = vmul.f32 %v2294, 0.2
      %v2303 = vmul.f32 %v2297, 0.2
      %v2304 = vsel %vm2300, %v2294, %v2302
      %v2305 = vsel %vm2301, %v2297, %v2303
      %2308 = vrot.lane.b32.xlu0 %v2304, 127
      %v2309 = vpop.permute.xlu0 %2308
      %2310 = vrot.lane.b32.xlu0 %v2305, 127
      %v2311 = vpop.permute.xlu0 %2310
      %2314 = vrot.lane.b32.xlu0 %v2304, 63
      %v2315 = vpop.permute.xlu0 %2314
      %2316 = vrot.lane.b32.xlu0 %v2305, 63
      %v2317 = vpop.permute.xlu0 %2316
      %v2320 = vsel %vm2056, %v2309, %v2315
      %v2321 = vsel %vm2056, %v2311, %v2317
      %v2322 = vmul.f32 %v2320, %v2061
      %v2323 = vmul.f32 %v2321, %v2061
      %v2324 = vmax.f32 %v2304, %v2322
      %v2325 = vmax.f32 %v2305, %v2323
      %2326 = vrot.lane.b32.xlu0 %v2304, 120
      %v2327 = vpop.permute.xlu0 %2326
      %2328 = vrot.lane.b32.xlu0 %v2305, 120
      %v2329 = vpop.permute.xlu0 %2328
      %2332 = vrot.lane.b32.xlu0 %v2304, 56
      %v2333 = vpop.permute.xlu0 %2332
      %2334 = vrot.lane.b32.xlu0 %v2305, 56
      %v2335 = vpop.permute.xlu0 %2334
      %v2338 = vsel %vm2082, %v2327, %v2333
      %v2339 = vsel %vm2082, %v2329, %v2335
      %v2340 = vmul.f32 %v2338, %v2087
      %v2341 = vmul.f32 %v2339, %v2087
      %v2342 = vmax.f32 %v2324, %v2340
      %v2343 = vmax.f32 %v2325, %v2341
      %2344 = vrot.lane.b32.xlu0 %v2304, 119
      %v2345 = vpop.permute.xlu0 %2344
      %2346 = vrot.lane.b32.xlu0 %v2305, 119
      %v2347 = vpop.permute.xlu0 %2346
      %2350 = vrot.lane.b32.xlu0 %v2304, 55
      %v2351 = vpop.permute.xlu0 %2350
      %2352 = vrot.lane.b32.xlu0 %v2305, 55
      %v2353 = vpop.permute.xlu0 %2352
      %v2356 = vsel %vm2095, %v2345, %v2351
      %v2357 = vsel %vm2095, %v2347, %v2353
      %v2358 = vmul.f32 %v2356, %v2100
      %v2359 = vmul.f32 %v2357, %v2100
      %v2360 = vmax.f32 %v2342, %v2358
      %v2361 = vmax.f32 %v2343, %v2359
      %v2362 = vpack.c.bf16 %v2361, %v2360
      %v2363 = vld [vmem:[%s79] sm:$0xf]
      %v2364 = vld [vmem:[%s79 + $0x4] sm:$0xf]
      %v2365 = vld [vmem:[%s79 + $0x8] sm:$0xf]
      %v2366 = vld [vmem:[%s79 + $0xc] sm:$0xf]
      %v2367 = vld [vmem:[%s79 + $0x10] sm:$0xf]
      %v2368 = vld [vmem:[%s79 + $0x14] sm:$0xf]
      %v2369 = vld [vmem:[%s79 + $0x18] sm:$0xf]
      %v2370 = vld [vmem:[%s79 + $0x1c] sm:$0xf]
      %v2379 = vunpack.c.l.b16 %v2363
      %v2380 = vunpack.c.l.b16 %v2364
      %v2381 = vunpack.c.l.b16 %v2365
      %v2382 = vunpack.c.l.b16 %v2366
      %v2383 = vunpack.c.l.b16 %v2367
      %v2384 = vunpack.c.l.b16 %v2368
      %v2385 = vunpack.c.l.b16 %v2369
      %v2386 = vunpack.c.l.b16 %v2370
      %v2387 = vpack.c.b16 %v2380, %v2379
      %v2388 = vpack.c.b16 %v2382, %v2381
      %v2389 = vpack.c.b16 %v2384, %v2383
      %v2390 = vpack.c.b16 %v2386, %v2385
      %vm2395 = vcmask 523264
      %v2397 = vsel %vm2395, %v2362, 0
      %2399 = vmatprep.subr.bf16.mxu0 0
      %2400 = vmatpush1.bf16.msra.mxu0 0
      %2401 = vmatprep.subr.bf16.mxu0 0
      %2402 = vmatpush1.bf16.msra.mxu0 0
      %2403 = vmatprep.subr.bf16.mxu0 0
      %2404 = vmatpush1.bf16.msra.mxu0 0
      %2405 = vmatprep.subr.bf16.mxu0 0
      %2406 = vmatpush1.bf16.msra.mxu0 0
      %2407 = vmatprep.subr.bf16.mxu0 0
      %2408 = vmatpush1.bf16.msra.mxu0 %v2390
      %2409 = vmatprep.subr.bf16.mxu0 0
      %2410 = vmatpush1.bf16.msra.mxu0 %v2389
      %2411 = vmatprep.subr.bf16.mxu0 0
      %2412 = vmatpush1.bf16.msra.mxu0 %v2388
      %2413 = vmatprep.subr.bf16.mxu0 0
      %2414 = vmatpush1.bf16.msra.mxu0 %v2387
      %2415 = vmatprep.subr.bf16.mxu0 0
      %2416 = vmatpush2.bf16.msra.mxu0 0
      %2417 = vmatprep.subr.bf16.mxu0 0
      %2418 = vmatpush2.bf16.msra.mxu0 0
      %2419 = vmatprep.subr.bf16.mxu0 0
      %2420 = vmatpush2.bf16.msra.mxu0 0
      %2421 = vmatprep.subr.bf16.mxu0 0
      %2422 = vmatpush2.bf16.msra.mxu0 0
      %2423 = vmatprep.subr.bf16.mxu0 0
      %2424 = vmatpush2.bf16.msra.mxu0 0
      %2425 = vmatprep.subr.bf16.mxu0 0
      %2426 = vmatpush2.bf16.msra.mxu0 0
      %2427 = vmatprep.subr.bf16.mxu0 0
      %2428 = vmatpush2.bf16.msra.mxu0 0
      %2429 = vmatprep.subr.bf16.mxu0 0
      %2430 = vmatpush2.bf16.msra.mxu0 0
      %2431 = vmatprep.mubr.bf16.mxu0 0
      %2432 = vmatmul.mubr.bf16.gmra.mxu0 %v2397
      %v2433 = vpop.f32.mrf.mxu0
      %v2434 = vadd.f32 0.0, %v2433
      %v2435 = vpop.f32.mrf.mxu0
      %v2436 = vpop.f32.mrf.mxu0
      %v2437 = vadd.f32 0.0, %v2436
      %v2438 = vpop.f32.mrf.mxu0
      %2439 = vdwg.mxu0
      %2442 = vrot.lane.b32.xlu0 %v2434, 117
      %v2443 = vpop.permute.xlu0 %2442
      %2444 = vrot.lane.b32.xlu0 %v2437, 117
      %v2445 = vpop.permute.xlu0 %2444
      %2448 = vrot.lane.b32.xlu0 %v2434, 5
      %v2449 = vpop.permute.xlu0 %2448
      %2450 = vrot.lane.b32.xlu0 %v2437, 5
      %v2451 = vpop.permute.xlu0 %2450
      %vm2454 = vcmask 39936
      %v2455 = vsel %vm2454, %v2443, %v2449
      %v2456 = vsel %vm2454, %v2445, %v2451
      %v2457 = vlaneseq
      %v2458 = vshrl.u32 %v2457, 7
      %v2459 = vsub.s32 0, %v2458
      %v2460 = vrot.slane %v1268, %v2459
      %v2461 = vmul.f32 %v2455, %v2460
      %v2462 = vmul.f32 %v2456, %v2460
      %2463 = vrot.lane.b32.xlu0 %v2434, 116
      %v2464 = vpop.permute.xlu0 %2463
      %2465 = vrot.lane.b32.xlu0 %v2437, 116
      %v2466 = vpop.permute.xlu0 %2465
      %2469 = vrot.lane.b32.xlu0 %v2434, 4
      %v2470 = vpop.permute.xlu0 %2469
      %2471 = vrot.lane.b32.xlu0 %v2437, 4
      %v2472 = vpop.permute.xlu0 %2471
      %vm2475 = vcmask 31744
      %v2476 = vsel %vm2475, %v2464, %v2470
      %v2477 = vsel %vm2475, %v2466, %v2472
      %v2478 = vlaneseq
      %v2479 = vshrl.u32 %v2478, 7
      %v2480 = vsub.s32 1, %v2479
      %v2481 = vrot.slane %v1268, %v2480
      %v2482 = vmul.f32 %v2476, %v2481
      %v2483 = vmul.f32 %v2477, %v2481
      %2484 = vrot.lane.b32.xlu0 %v2434, 115
      %v2485 = vpop.permute.xlu0 %2484
      %2486 = vrot.lane.b32.xlu0 %v2437, 115
      %v2487 = vpop.permute.xlu0 %2486
      %2490 = vrot.lane.b32.xlu0 %v2434, 3
      %v2491 = vpop.permute.xlu0 %2490
      %2492 = vrot.lane.b32.xlu0 %v2437, 3
      %v2493 = vpop.permute.xlu0 %2492
      %vm2496 = vcmask 23552
      %v2497 = vsel %vm2496, %v2485, %v2491
      %v2498 = vsel %vm2496, %v2487, %v2493
      %v2499 = vlaneseq
      %v2500 = vshrl.u32 %v2499, 7
      %v2501 = vsub.s32 2, %v2500
      %v2502 = vrot.slane %v1268, %v2501
      %v2503 = vmul.f32 %v2497, %v2502
      %v2504 = vmul.f32 %v2498, %v2502
      %2505 = vrot.lane.b32.xlu0 %v2434, 113
      %v2506 = vpop.permute.xlu0 %2505
      %2507 = vrot.lane.b32.xlu0 %v2437, 113
      %v2508 = vpop.permute.xlu0 %2507
      %2511 = vrot.lane.b32.xlu0 %v2434, 1
      %v2512 = vpop.permute.xlu0 %2511
      %2513 = vrot.lane.b32.xlu0 %v2437, 1
      %v2514 = vpop.permute.xlu0 %2513
      %v2517 = vsel %vm1330, %v2506, %v2512
      %v2518 = vsel %vm1330, %v2508, %v2514
      %v2519 = vlaneseq
      %v2520 = vshrl.u32 %v2519, 7
      %v2521 = vsub.s32 3, %v2520
      %v2522 = vrot.slane %v1268, %v2521
      %v2523 = vmul.f32 %v2517, %v2522
      %v2524 = vmul.f32 %v2518, %v2522
      %2525 = vrot.lane.b32.xlu0 %v2434, 127
      %v2526 = vpop.permute.xlu0 %2525
      %2527 = vrot.lane.b32.xlu0 %v2437, 127
      %v2528 = vpop.permute.xlu0 %2527
      %2531 = vrot.lane.b32.xlu0 %v2434, 15
      %v2532 = vpop.permute.xlu0 %2531
      %2533 = vrot.lane.b32.xlu0 %v2437, 15
      %v2534 = vpop.permute.xlu0 %2533
      %v2537 = vsel %vm1314, %v2526, %v2532
      %v2538 = vsel %vm1314, %v2528, %v2534
      %v2539 = vlaneseq
      %v2540 = vshrl.u32 %v2539, 7
      %v2541 = vsub.s32 4, %v2540
      %v2542 = vrot.slane %v1268, %v2541
      %v2543 = vmul.f32 %v2537, %v2542
      %v2544 = vmul.f32 %v2538, %v2542
      %2545 = vrot.lane.b32.xlu0 %v2434, 125
      %v2546 = vpop.permute.xlu0 %2545
      %2547 = vrot.lane.b32.xlu0 %v2437, 125
      %v2548 = vpop.permute.xlu0 %2547
      %2551 = vrot.lane.b32.xlu0 %v2434, 13
      %v2552 = vpop.permute.xlu0 %2551
      %2553 = vrot.lane.b32.xlu0 %v2437, 13
      %v2554 = vpop.permute.xlu0 %2553
      %vm2557 = vcmask 105472
      %v2558 = vsel %vm2557, %v2546, %v2552
      %v2559 = vsel %vm2557, %v2548, %v2554
      %v2560 = vlaneseq
      %v2561 = vshrl.u32 %v2560, 7
      %v2562 = vsub.s32 5, %v2561
      %v2563 = vrot.slane %v1268, %v2562
      %v2564 = vmul.f32 %v2558, %v2563
      %v2565 = vmul.f32 %v2559, %v2563
      %2566 = vrot.lane.b32.xlu0 %v2434, 124
      %v2567 = vpop.permute.xlu0 %2566
      %2568 = vrot.lane.b32.xlu0 %v2437, 124
      %v2569 = vpop.permute.xlu0 %2568
      %2572 = vrot.lane.b32.xlu0 %v2434, 12
      %v2573 = vpop.permute.xlu0 %2572
      %2574 = vrot.lane.b32.xlu0 %v2437, 12
      %v2575 = vpop.permute.xlu0 %2574
      %vm2578 = vcmask 97280
      %v2579 = vsel %vm2578, %v2567, %v2573
      %v2580 = vsel %vm2578, %v2569, %v2575
      %v2581 = vlaneseq
      %v2582 = vshrl.u32 %v2581, 7
      %v2583 = vsub.s32 6, %v2582
      %v2584 = vrot.slane %v1268, %v2583
      %v2585 = vmul.f32 %v2579, %v2584
      %v2586 = vmul.f32 %v2580, %v2584
      %2587 = vrot.lane.b32.xlu0 %v2434, 123
      %v2588 = vpop.permute.xlu0 %2587
      %2589 = vrot.lane.b32.xlu0 %v2437, 123
      %v2590 = vpop.permute.xlu0 %2589
      %2593 = vrot.lane.b32.xlu0 %v2434, 11
      %v2594 = vpop.permute.xlu0 %2593
      %2595 = vrot.lane.b32.xlu0 %v2437, 11
      %v2596 = vpop.permute.xlu0 %2595
      %vm2599 = vcmask 89088
      %v2600 = vsel %vm2599, %v2588, %v2594
      %v2601 = vsel %vm2599, %v2590, %v2596
      %v2602 = vlaneseq
      %v2603 = vshrl.u32 %v2602, 7
      %v2604 = vsub.s32 7, %v2603
      %v2605 = vrot.slane %v1268, %v2604
      %v2606 = vmul.f32 %v2600, %v2605
      %v2607 = vmul.f32 %v2601, %v2605
      %v2608 = vld [vmem:[%s19] sm:$0xff]
      %v2609 = vld [vmem:[%s19 + $0x8] sm:$0xff]
      %v2610 = vpack.c.bf16 %v2462, %v2461
      %v2611 = vpack.c.bf16 %v2483, %v2482
      %v2612 = vpack.c.bf16 %v2504, %v2503
      %v2613 = vpack.c.bf16 %v2524, %v2523
      %v2614 = vpack.c.bf16 %v2437, %v2434
      %v2615 = vpack.c.bf16 %v2544, %v2543
      %v2616 = vpack.c.bf16 %v2565, %v2564
      %v2617 = vpack.c.bf16 %v2586, %v2585
      %v2618 = vpack.c.bf16 %v2607, %v2606
      %v2619 = vld [vmem:[%s21] sm:$0xff]
      %v2620 = vld [vmem:[%s21 + $0x8] sm:$0xff]
      %2622 = vset.pattern.permute.xlu0 0
      %2623 = vperm.xlu0 %2622, %v2619
      %v2624 = vpop.permute.xlu0 %2623
      %2627 = vset.pattern.permute.xlu0 0
      %2628 = vperm.xlu0 %2627, %v2620
      %v2629 = vpop.permute.xlu0 %2628
      %v2633 = vunpack.c.l.b16 %v2608
      %v2634 = vunpack.c.h.b16 %v2608
      %v2635 = vunpack.c.l.b16 %v2609
      %v2636 = vunpack.c.h.b16 %v2609
      %v2637 = vpack.c.b16 %v2635, %v2633
      %v2638 = vpack.c.b16 %v2636, %v2634
      %v2641 = vsel %vm1296, %v2638, 0
      %2643 = vmatprep.subr.bf16.mxu0 0
      %2644 = vmatpush1.bf16.msra.mxu0 %v2617
      %2645 = vmatprep.subr.bf16.mxu0 0
      %2646 = vmatpush1.bf16.msra.mxu0 %v2616
      %2647 = vmatprep.subr.bf16.mxu0 0
      %2648 = vmatpush1.bf16.msra.mxu0 %v2615
      %2649 = vmatprep.subr.bf16.mxu0 0
      %2650 = vmatpush1.bf16.msra.mxu0 %v2614
      %2651 = vmatprep.subr.bf16.mxu0 0
      %2652 = vmatpush1.bf16.msra.mxu0 %v2613
      %2653 = vmatprep.subr.bf16.mxu0 0
      %2654 = vmatpush1.bf16.msra.mxu0 %v2612
      %2655 = vmatprep.subr.bf16.mxu0 0
      %2656 = vmatpush1.bf16.msra.mxu0 %v2611
      %2657 = vmatprep.subr.bf16.mxu0 0
      %2658 = vmatpush1.bf16.msra.mxu0 %v2610
      %2659 = vmatprep.subr.bf16.mxu0 0
      %2660 = vmatpush2.bf16.msra.mxu0 0
      %2661 = vmatprep.subr.bf16.mxu0 0
      %2662 = vmatpush2.bf16.msra.mxu0 0
      %2663 = vmatprep.subr.bf16.mxu0 0
      %2664 = vmatpush2.bf16.msra.mxu0 0
      %2665 = vmatprep.subr.bf16.mxu0 0
      %2666 = vmatpush2.bf16.msra.mxu0 0
      %2667 = vmatprep.subr.bf16.mxu0 0
      %2668 = vmatpush2.bf16.msra.mxu0 0
      %2669 = vmatprep.subr.bf16.mxu0 0
      %2670 = vmatpush2.bf16.msra.mxu0 0
      %2671 = vmatprep.subr.bf16.mxu0 0
      %2672 = vmatpush2.bf16.msra.mxu0 0
      %2673 = vmatprep.subr.bf16.mxu0 0
      %2674 = vmatpush2.bf16.msra.mxu0 %v2618
      %2675 = vmatprep.mubr.bf16.mxu0 %v2641
      %2676 = vmatmul.mubr.bf16.gmra.mxu0 %v2637
      %v2677 = vpop.f32.mrf.mxu0
      %v2678 = vadd.f32 %v2624, %v2677
      %v2679 = vpop.f32.mrf.mxu0
      %v2680 = vpop.f32.mrf.mxu0
      %v2681 = vadd.f32 %v2629, %v2680
      %v2682 = vpop.f32.mrf.mxu0
      %2683 = vdwg.mxu0
      %vm2684 = vcmp.ge.f32.partialorder %v2678, 0.0
      %vm2685 = vcmp.ge.f32.partialorder %v2681, 0.0
      %v2686 = vmul.f32 %v2678, 0.2
      %v2687 = vmul.f32 %v2681, 0.2
      %v2688 = vsel %vm2684, %v2678, %v2686
      %v2689 = vsel %vm2685, %v2681, %v2687
      %2692 = vrot.lane.b32.xlu0 %v2688, 117
      %v2693 = vpop.permute.xlu0 %2692
      %2694 = vrot.lane.b32.xlu0 %v2689, 117
      %v2695 = vpop.permute.xlu0 %2694
      %2698 = vrot.lane.b32.xlu0 %v2688, 5
      %v2699 = vpop.permute.xlu0 %2698
      %2700 = vrot.lane.b32.xlu0 %v2689, 5
      %v2701 = vpop.permute.xlu0 %2700
      %v2704 = vsel %vm2454, %v2693, %v2699
      %v2705 = vsel %vm2454, %v2695, %v2701
      %v2706 = vmul.f32 %v2704, %v2460
      %v2707 = vmul.f32 %v2705, %v2460
      %2708 = vrot.lane.b32.xlu0 %v2688, 116
      %v2709 = vpop.permute.xlu0 %2708
      %2710 = vrot.lane.b32.xlu0 %v2689, 116
      %v2711 = vpop.permute.xlu0 %2710
      %2714 = vrot.lane.b32.xlu0 %v2688, 4
      %v2715 = vpop.permute.xlu0 %2714
      %2716 = vrot.lane.b32.xlu0 %v2689, 4
      %v2717 = vpop.permute.xlu0 %2716
      %v2720 = vsel %vm2475, %v2709, %v2715
      %v2721 = vsel %vm2475, %v2711, %v2717
      %v2722 = vmul.f32 %v2720, %v2481
      %v2723 = vmul.f32 %v2721, %v2481
      %2724 = vrot.lane.b32.xlu0 %v2688, 115
      %v2725 = vpop.permute.xlu0 %2724
      %2726 = vrot.lane.b32.xlu0 %v2689, 115
      %v2727 = vpop.permute.xlu0 %2726
      %2730 = vrot.lane.b32.xlu0 %v2688, 3
      %v2731 = vpop.permute.xlu0 %2730
      %2732 = vrot.lane.b32.xlu0 %v2689, 3
      %v2733 = vpop.permute.xlu0 %2732
      %v2736 = vsel %vm2496, %v2725, %v2731
      %v2737 = vsel %vm2496, %v2727, %v2733
      %v2738 = vmul.f32 %v2736, %v2502
      %v2739 = vmul.f32 %v2737, %v2502
      %2740 = vrot.lane.b32.xlu0 %v2688, 113
      %v2741 = vpop.permute.xlu0 %2740
      %2742 = vrot.lane.b32.xlu0 %v2689, 113
      %v2743 = vpop.permute.xlu0 %2742
      %2746 = vrot.lane.b32.xlu0 %v2688, 1
      %v2747 = vpop.permute.xlu0 %2746
      %2748 = vrot.lane.b32.xlu0 %v2689, 1
      %v2749 = vpop.permute.xlu0 %2748
      %v2752 = vsel %vm1330, %v2741, %v2747
      %v2753 = vsel %vm1330, %v2743, %v2749
      %v2754 = vmul.f32 %v2752, %v2522
      %v2755 = vmul.f32 %v2753, %v2522
      %2756 = vrot.lane.b32.xlu0 %v2688, 127
      %v2757 = vpop.permute.xlu0 %2756
      %2758 = vrot.lane.b32.xlu0 %v2689, 127
      %v2759 = vpop.permute.xlu0 %2758
      %2762 = vrot.lane.b32.xlu0 %v2688, 15
      %v2763 = vpop.permute.xlu0 %2762
      %2764 = vrot.lane.b32.xlu0 %v2689, 15
      %v2765 = vpop.permute.xlu0 %2764
      %v2768 = vsel %vm1314, %v2757, %v2763
      %v2769 = vsel %vm1314, %v2759, %v2765
      %v2770 = vmul.f32 %v2768, %v2542
      %v2771 = vmul.f32 %v2769, %v2542
      %2772 = vrot.lane.b32.xlu0 %v2688, 125
      %v2773 = vpop.permute.xlu0 %2772
      %2774 = vrot.lane.b32.xlu0 %v2689, 125
      %v2775 = vpop.permute.xlu0 %2774
      %2778 = vrot.lane.b32.xlu0 %v2688, 13
      %v2779 = vpop.permute.xlu0 %2778
      %2780 = vrot.lane.b32.xlu0 %v2689, 13
      %v2781 = vpop.permute.xlu0 %2780
      %v2784 = vsel %vm2557, %v2773, %v2779
      %v2785 = vsel %vm2557, %v2775, %v2781
      %v2786 = vmul.f32 %v2784, %v2563
      %v2787 = vmul.f32 %v2785, %v2563
      %2788 = vrot.lane.b32.xlu0 %v2688, 124
      %v2789 = vpop.permute.xlu0 %2788
      %2790 = vrot.lane.b32.xlu0 %v2689, 124
      %v2791 = vpop.permute.xlu0 %2790
      %2794 = vrot.lane.b32.xlu0 %v2688, 12
      %v2795 = vpop.permute.xlu0 %2794
      %2796 = vrot.lane.b32.xlu0 %v2689, 12
      %v2797 = vpop.permute.xlu0 %2796
      %v2800 = vsel %vm2578, %v2789, %v2795
      %v2801 = vsel %vm2578, %v2791, %v2797
      %v2802 = vmul.f32 %v2800, %v2584
      %v2803 = vmul.f32 %v2801, %v2584
      %2804 = vrot.lane.b32.xlu0 %v2688, 123
      %v2805 = vpop.permute.xlu0 %2804
      %2806 = vrot.lane.b32.xlu0 %v2689, 123
      %v2807 = vpop.permute.xlu0 %2806
      %2810 = vrot.lane.b32.xlu0 %v2688, 11
      %v2811 = vpop.permute.xlu0 %2810
      %2812 = vrot.lane.b32.xlu0 %v2689, 11
      %v2813 = vpop.permute.xlu0 %2812
      %v2816 = vsel %vm2599, %v2805, %v2811
      %v2817 = vsel %vm2599, %v2807, %v2813
      %v2818 = vmul.f32 %v2816, %v2605
      %v2819 = vmul.f32 %v2817, %v2605
      %v2820 = vld [vmem:[%s23] sm:$0xff]
      %v2821 = vld [vmem:[%s23 + $0x8] sm:$0xff]
      %v2822 = vld [vmem:[%s23 + $0x10] sm:$0xff]
      %v2823 = vld [vmem:[%s23 + $0x18] sm:$0xff]
      %v2824 = vpack.c.bf16 %v2707, %v2706
      %v2825 = vpack.c.bf16 %v2723, %v2722
      %v2826 = vpack.c.bf16 %v2739, %v2738
      %v2827 = vpack.c.bf16 %v2755, %v2754
      %v2828 = vpack.c.bf16 %v2689, %v2688
      %v2829 = vpack.c.bf16 %v2771, %v2770
      %v2830 = vpack.c.bf16 %v2787, %v2786
      %v2831 = vpack.c.bf16 %v2803, %v2802
      %v2832 = vpack.c.bf16 %v2819, %v2818
      %v2833 = vld [vmem:[%s25] sm:$0xff]
      %v2834 = vld [vmem:[%s25 + $0x8] sm:$0xff]
      %v2835 = vld [vmem:[%s25 + $0x10] sm:$0xff]
      %v2836 = vld [vmem:[%s25 + $0x18] sm:$0xff]
      %2838 = vset.pattern.permute.xlu0 0
      %2839 = vperm.xlu0 %2838, %v2833
      %v2840 = vpop.permute.xlu0 %2839
      %2843 = vset.pattern.permute.xlu0 0
      %2844 = vperm.xlu0 %2843, %v2834
      %v2845 = vpop.permute.xlu0 %2844
      %2848 = vset.pattern.permute.xlu0 0
      %2849 = vperm.xlu0 %2848, %v2835
      %v2850 = vpop.permute.xlu0 %2849
      %2853 = vset.pattern.permute.xlu0 0
      %2854 = vperm.xlu0 %2853, %v2836
      %v2855 = vpop.permute.xlu0 %2854
      %v2861 = vunpack.c.l.b16 %v2820
      %v2862 = vunpack.c.h.b16 %v2820
      %v2863 = vunpack.c.l.b16 %v2821
      %v2864 = vunpack.c.h.b16 %v2821
      %v2865 = vunpack.c.l.b16 %v2822
      %v2866 = vunpack.c.h.b16 %v2822
      %v2867 = vunpack.c.l.b16 %v2823
      %v2868 = vunpack.c.h.b16 %v2823
      %v2869 = vpack.c.b16 %v2863, %v2861
      %v2870 = vpack.c.b16 %v2864, %v2862
      %v2871 = vpack.c.b16 %v2867, %v2865
      %v2872 = vpack.c.b16 %v2868, %v2866
      %v2876 = vsel %vm1296, %v2870, 0
      %v2879 = vsel %vm1296, %v2872, 0
      %2881 = vmatprep.subr.bf16.mxu0 0
      %2882 = vmatpush1.bf16.msra.mxu0 %v2831
      %2883 = vmatprep.subr.bf16.mxu0 0
      %2884 = vmatpush1.bf16.msra.mxu0 %v2830
      %2885 = vmatprep.subr.bf16.mxu0 0
      %2886 = vmatpush1.bf16.msra.mxu0 %v2829
      %2887 = vmatprep.subr.bf16.mxu0 0
      %2888 = vmatpush1.bf16.msra.mxu0 %v2828
      %2889 = vmatprep.subr.bf16.mxu0 0
      %2890 = vmatpush1.bf16.msra.mxu0 %v2827
      %2891 = vmatprep.subr.bf16.mxu0 0
      %2892 = vmatpush1.bf16.msra.mxu0 %v2826
      %2893 = vmatprep.subr.bf16.mxu0 0
      %2894 = vmatpush1.bf16.msra.mxu0 %v2825
      %2895 = vmatprep.subr.bf16.mxu0 0
      %2896 = vmatpush1.bf16.msra.mxu0 %v2824
      %2897 = vmatprep.subr.bf16.mxu0 0
      %2898 = vmatpush2.bf16.msra.mxu0 0
      %2899 = vmatprep.subr.bf16.mxu0 0
      %2900 = vmatpush2.bf16.msra.mxu0 0
      %2901 = vmatprep.subr.bf16.mxu0 0
      %2902 = vmatpush2.bf16.msra.mxu0 0
      %2903 = vmatprep.subr.bf16.mxu0 0
      %2904 = vmatpush2.bf16.msra.mxu0 0
      %2905 = vmatprep.subr.bf16.mxu0 0
      %2906 = vmatpush2.bf16.msra.mxu0 0
      %2907 = vmatprep.subr.bf16.mxu0 0
      %2908 = vmatpush2.bf16.msra.mxu0 0
      %2909 = vmatprep.subr.bf16.mxu0 0
      %2910 = vmatpush2.bf16.msra.mxu0 0
      %2911 = vmatprep.subr.bf16.mxu0 0
      %2912 = vmatpush2.bf16.msra.mxu0 %v2832
      %2913 = vmatprep.mubr.bf16.mxu0 %v2876
      %2914 = vmatmul.mubr.bf16.gmra.mxu0 %v2869
      %v2915 = vpop.f32.mrf.mxu0
      %v2916 = vadd.f32 %v2840, %v2915
      %v2917 = vpop.f32.mrf.mxu0
      %v2918 = vpop.f32.mrf.mxu0
      %v2919 = vadd.f32 %v2845, %v2918
      %v2920 = vpop.f32.mrf.mxu0
      %2921 = vmatprep.mubr.bf16.mxu0 %v2879
      %2922 = vmatmul.mubr.bf16.gmra.mxu0 %v2871
      %v2923 = vpop.f32.mrf.mxu0
      %v2924 = vadd.f32 %v2850, %v2923
      %v2925 = vpop.f32.mrf.mxu0
      %v2926 = vpop.f32.mrf.mxu0
      %v2927 = vadd.f32 %v2855, %v2926
      %v2928 = vpop.f32.mrf.mxu0
      %2929 = vdwg.mxu0
      %vm2930 = vcmp.ge.f32.partialorder %v2916, 0.0
      %vm2931 = vcmp.ge.f32.partialorder %v2919, 0.0
      %vm2932 = vcmp.ge.f32.partialorder %v2924, 0.0
      %vm2933 = vcmp.ge.f32.partialorder %v2927, 0.0
      %v2934 = vmul.f32 %v2916, 0.2
      %v2935 = vmul.f32 %v2919, 0.2
      %v2936 = vmul.f32 %v2924, 0.2
      %v2937 = vmul.f32 %v2927, 0.2
      %v2938 = vsel %vm2930, %v2916, %v2934
      %v2939 = vsel %vm2931, %v2919, %v2935
      %v2940 = vsel %vm2932, %v2924, %v2936
      %v2941 = vsel %vm2933, %v2927, %v2937
      %v2942 = vld [vmem:[%s27] sm:$0xf]
      %v2943 = vld [vmem:[%s27 + $0x4] sm:$0xf]
      %v2944 = vpack.c.bf16 %v2939, %v2938
      %v2945 = vpack.c.bf16 %v2941, %v2940
      %v2946 = vld [vmem:[%s29] sm:$0xff]
      %v2947 = vld [vmem:[%s29 + $0x8] sm:$0xff]
      %2949 = vset.pattern.permute.xlu0 0
      %2950 = vperm.xlu0 %2949, %v2946
      %v2951 = vpop.permute.xlu0 %2950
      %2954 = vset.pattern.permute.xlu0 0
      %2955 = vperm.xlu0 %2954, %v2947
      %v2956 = vpop.permute.xlu0 %2955
      %v2960 = vunpack.c.l.b16 %v2942
      %v2961 = vunpack.c.l.b16 %v2943
      %v2962 = vpack.c.b16 %v2961, %v2960
      %vm2963 = vcmask 261120
      %v2965 = vsel %vm2963, %v2962, 0
      %2967 = vmatprep.subr.bf16.mxu0 0
      %2968 = vmatpush1.bf16.msra.mxu0 0
      %2969 = vmatprep.subr.bf16.mxu0 0
      %2970 = vmatpush1.bf16.msra.mxu0 0
      %2971 = vmatprep.subr.bf16.mxu0 0
      %2972 = vmatpush1.bf16.msra.mxu0 0
      %2973 = vmatprep.subr.bf16.mxu0 0
      %2974 = vmatpush1.bf16.msra.mxu0 0
      %2975 = vmatprep.subr.bf16.mxu0 0
      %2976 = vmatpush1.bf16.msra.mxu0 0
      %2977 = vmatprep.subr.bf16.mxu0 0
      %2978 = vmatpush1.bf16.msra.mxu0 0
      %2979 = vmatprep.subr.bf16.mxu0 0
      %2980 = vmatpush1.bf16.msra.mxu0 %v2945
      %2981 = vmatprep.subr.bf16.mxu0 0
      %2982 = vmatpush1.bf16.msra.mxu0 %v2944
      %2983 = vmatprep.subr.bf16.mxu0 0
      %2984 = vmatpush2.bf16.msra.mxu0 0
      %2985 = vmatprep.subr.bf16.mxu0 0
      %2986 = vmatpush2.bf16.msra.mxu0 0
      %2987 = vmatprep.subr.bf16.mxu0 0
      %2988 = vmatpush2.bf16.msra.mxu0 0
      %2989 = vmatprep.subr.bf16.mxu0 0
      %2990 = vmatpush2.bf16.msra.mxu0 0
      %2991 = vmatprep.subr.bf16.mxu0 0
      %2992 = vmatpush2.bf16.msra.mxu0 0
      %2993 = vmatprep.subr.bf16.mxu0 0
      %2994 = vmatpush2.bf16.msra.mxu0 0
      %2995 = vmatprep.subr.bf16.mxu0 0
      %2996 = vmatpush2.bf16.msra.mxu0 0
      %2997 = vmatprep.subr.bf16.mxu0 0
      %2998 = vmatpush2.bf16.msra.mxu0 0
      %2999 = vmatprep.mubr.bf16.mxu0 0
      %3000 = vmatmul.mubr.bf16.gmra.mxu0 %v2965
      %v3001 = vpop.f32.mrf.mxu0
      %v3002 = vadd.f32 %v2951, %v3001
      %v3003 = vpop.f32.mrf.mxu0
      %v3004 = vpop.f32.mrf.mxu0
      %v3005 = vadd.f32 %v2956, %v3004
      %v3006 = vpop.f32.mrf.mxu0
      %3007 = vdwg.mxu0
      %3010 = vrot.lane.b32.xlu0 %v3002, 113
      %v3011 = vpop.permute.xlu0 %3010
      %3012 = vrot.lane.b32.xlu0 %v3005, 113
      %v3013 = vpop.permute.xlu0 %3012
      %3016 = vrot.lane.b32.xlu0 %v3002, 1
      %v3017 = vpop.permute.xlu0 %3016
      %3018 = vrot.lane.b32.xlu0 %v3005, 1
      %v3019 = vpop.permute.xlu0 %3018
      %v3022 = vsel %vm1330, %v3011, %v3017
      %v3023 = vsel %vm1330, %v3013, %v3019
      %v3024 = vmul.f32 %v3022, %v2522
      %v3025 = vmul.f32 %v3023, %v2522
      %3026 = vrot.lane.b32.xlu0 %v3002, 116
      %v3027 = vpop.permute.xlu0 %3026
      %3028 = vrot.lane.b32.xlu0 %v3005, 116
      %v3029 = vpop.permute.xlu0 %3028
      %3032 = vrot.lane.b32.xlu0 %v3002, 4
      %v3033 = vpop.permute.xlu0 %3032
      %3034 = vrot.lane.b32.xlu0 %v3005, 4
      %v3035 = vpop.permute.xlu0 %3034
      %v3038 = vsel %vm2475, %v3027, %v3033
      %v3039 = vsel %vm2475, %v3029, %v3035
      %v3040 = vmul.f32 %v3038, %v2481
      %v3041 = vmul.f32 %v3039, %v2481
      %3042 = vrot.lane.b32.xlu0 %v3002, 117
      %v3043 = vpop.permute.xlu0 %3042
      %3044 = vrot.lane.b32.xlu0 %v3005, 117
      %v3045 = vpop.permute.xlu0 %3044
      %3048 = vrot.lane.b32.xlu0 %v3002, 5
      %v3049 = vpop.permute.xlu0 %3048
      %3050 = vrot.lane.b32.xlu0 %v3005, 5
      %v3051 = vpop.permute.xlu0 %3050
      %v3054 = vsel %vm2454, %v3043, %v3049
      %v3055 = vsel %vm2454, %v3045, %v3051
      %v3056 = vmul.f32 %v3054, %v2460
      %v3057 = vmul.f32 %v3055, %v2460
      %v3058 = vld [vmem:[%s31] sm:$0xf]
      %v3059 = vld [vmem:[%s31 + $0x4] sm:$0xf]
      %v3060 = vpack.c.bf16 %v3005, %v3002
      %v3061 = vpack.c.bf16 %v3025, %v3024
      %v3062 = vpack.c.bf16 %v3041, %v3040
      %v3063 = vpack.c.bf16 %v3057, %v3056
      %v3066 = vunpack.c.l.b16 %v3058
      %v3067 = vunpack.c.l.b16 %v3059
      %v3068 = vpack.c.b16 %v3067, %v3066
      %v3070 = vsel %vm2395, %v3068, 0
      %3072 = vmatprep.subr.bf16.mxu0 0
      %3073 = vmatpush1.bf16.msra.mxu0 0
      %3074 = vmatprep.subr.bf16.mxu0 0
      %3075 = vmatpush1.bf16.msra.mxu0 0
      %3076 = vmatprep.subr.bf16.mxu0 0
      %3077 = vmatpush1.bf16.msra.mxu0 0
      %3078 = vmatprep.subr.bf16.mxu0 0
      %3079 = vmatpush1.bf16.msra.mxu0 0
      %3080 = vmatprep.subr.bf16.mxu0 0
      %3081 = vmatpush1.bf16.msra.mxu0 %v3063
      %3082 = vmatprep.subr.bf16.mxu0 0
      %3083 = vmatpush1.bf16.msra.mxu0 %v3062
      %3084 = vmatprep.subr.bf16.mxu0 0
      %3085 = vmatpush1.bf16.msra.mxu0 %v3061
      %3086 = vmatprep.subr.bf16.mxu0 0
      %3087 = vmatpush1.bf16.msra.mxu0 %v3060
      %3088 = vmatprep.subr.bf16.mxu0 0
      %3089 = vmatpush2.bf16.msra.mxu0 0
      %3090 = vmatprep.subr.bf16.mxu0 0
      %3091 = vmatpush2.bf16.msra.mxu0 0
      %3092 = vmatprep.subr.bf16.mxu0 0
      %3093 = vmatpush2.bf16.msra.mxu0 0
      %3094 = vmatprep.subr.bf16.mxu0 0
      %3095 = vmatpush2.bf16.msra.mxu0 0
      %3096 = vmatprep.subr.bf16.mxu0 0
      %3097 = vmatpush2.bf16.msra.mxu0 0
      %3098 = vmatprep.subr.bf16.mxu0 0
      %3099 = vmatpush2.bf16.msra.mxu0 0
      %3100 = vmatprep.subr.bf16.mxu0 0
      %3101 = vmatpush2.bf16.msra.mxu0 0
      %3102 = vmatprep.subr.bf16.mxu0 0
      %3103 = vmatpush2.bf16.msra.mxu0 0
      %3104 = vmatprep.mubr.bf16.mxu0 0
      %3105 = vmatmul.mubr.bf16.gmra.mxu0 %v3070
      %v3106 = vpop.f32.mrf.mxu0
      %v3107 = vadd.f32 0.0, %v3106
      %v3108 = vpop.f32.mrf.mxu0
      %v3109 = vpop.f32.mrf.mxu0
      %v3110 = vadd.f32 0.0, %v3109
      %v3111 = vpop.f32.mrf.mxu0
      %3112 = vdwg.mxu0
      %v3113 = vpack.c.bf16 %v3110, %v3107
      %v3114 = vld [vmem:[%s81] sm:$0xf]
      %v3115 = vld [vmem:[%s81 + $0x4] sm:$0xf]
      %3116 = vrot.lane.b32.xlu0 %v3002, 127
      %v3117 = vpop.permute.xlu0 %3116
      %3118 = vrot.lane.b32.xlu0 %v3005, 127
      %v3119 = vpop.permute.xlu0 %3118
      %3122 = vrot.lane.b32.xlu0 %v3002, 15
      %v3123 = vpop.permute.xlu0 %3122
      %3124 = vrot.lane.b32.xlu0 %v3005, 15
      %v3125 = vpop.permute.xlu0 %3124
      %v3128 = vsel %vm1314, %v3117, %v3123
      %v3129 = vsel %vm1314, %v3119, %v3125
      %v3130 = vmul.f32 %v3128, %v2542
      %v3131 = vmul.f32 %v3129, %v2542
      %3132 = vrot.lane.b32.xlu0 %v3002, 115
      %v3133 = vpop.permute.xlu0 %3132
      %3134 = vrot.lane.b32.xlu0 %v3005, 115
      %v3135 = vpop.permute.xlu0 %3134
      %3138 = vrot.lane.b32.xlu0 %v3002, 3
      %v3139 = vpop.permute.xlu0 %3138
      %3140 = vrot.lane.b32.xlu0 %v3005, 3
      %v3141 = vpop.permute.xlu0 %3140
      %v3144 = vsel %vm2496, %v3133, %v3139
      %v3145 = vsel %vm2496, %v3135, %v3141
      %v3146 = vmul.f32 %v3144, %v2502
      %v3147 = vmul.f32 %v3145, %v2502
      %s3148 = scalar_lea.vmem %s31, 8
      %v3149 = vld [vmem:[%s3148] sm:$0xf]
      %v3150 = vld [vmem:[%s3148 + $0x4] sm:$0xf]
      %v3151 = vpack.c.bf16 %v3131, %v3130
      %v3152 = vpack.c.bf16 %v3147, %v3146
      %v3155 = vunpack.c.l.b16 %v3149
      %v3156 = vunpack.c.l.b16 %v3150
      %v3157 = vpack.c.b16 %v3156, %v3155
      %v3159 = vsel %vm2395, %v3157, 0
      %3161 = vmatprep.subr.bf16.mxu0 0
      %3162 = vmatpush1.bf16.msra.mxu0 0
      %3163 = vmatprep.subr.bf16.mxu0 0
      %3164 = vmatpush1.bf16.msra.mxu0 0
      %3165 = vmatprep.subr.bf16.mxu0 0
      %3166 = vmatpush1.bf16.msra.mxu0 0
      %3167 = vmatprep.subr.bf16.mxu0 0
      %3168 = vmatpush1.bf16.msra.mxu0 0
      %3169 = vmatprep.subr.bf16.mxu0 0
      %3170 = vmatpush1.bf16.msra.mxu0 %v3062
      %3171 = vmatprep.subr.bf16.mxu0 0
      %3172 = vmatpush1.bf16.msra.mxu0 %v3152
      %3173 = vmatprep.subr.bf16.mxu0 0
      %3174 = vmatpush1.bf16.msra.mxu0 %v3060
      %3175 = vmatprep.subr.bf16.mxu0 0
      %3176 = vmatpush1.bf16.msra.mxu0 %v3151
      %3177 = vmatprep.subr.bf16.mxu0 0
      %3178 = vmatpush2.bf16.msra.mxu0 0
      %3179 = vmatprep.subr.bf16.mxu0 0
      %3180 = vmatpush2.bf16.msra.mxu0 0
      %3181 = vmatprep.subr.bf16.mxu0 0
      %3182 = vmatpush2.bf16.msra.mxu0 0
      %3183 = vmatprep.subr.bf16.mxu0 0
      %3184 = vmatpush2.bf16.msra.mxu0 0
      %3185 = vmatprep.subr.bf16.mxu0 0
      %3186 = vmatpush2.bf16.msra.mxu0 0
      %3187 = vmatprep.subr.bf16.mxu0 0
      %3188 = vmatpush2.bf16.msra.mxu0 0
      %3189 = vmatprep.subr.bf16.mxu0 0
      %3190 = vmatpush2.bf16.msra.mxu0 0
      %3191 = vmatprep.subr.bf16.mxu0 0
      %3192 = vmatpush2.bf16.msra.mxu0 0
      %3193 = vmatprep.mubr.bf16.mxu0 0
      %3194 = vmatmul.mubr.bf16.gmra.mxu0 %v3159
      %v3195 = vpop.f32.mrf.mxu0
      %v3196 = vadd.f32 0.0, %v3195
      %v3197 = vpop.f32.mrf.mxu0
      %v3198 = vpop.f32.mrf.mxu0
      %v3199 = vadd.f32 0.0, %v3198
      %v3200 = vpop.f32.mrf.mxu0
      %3201 = vdwg.mxu0
      %v3202 = vpack.c.bf16 %v3199, %v3196
      %s3203 = scalar_lea.vmem %s81, 8
      %v3204 = vld [vmem:[%s3203] sm:$0xf]
      %v3205 = vld [vmem:[%s3203 + $0x4] sm:$0xf]
      %v3208 = vunpack.c.l.b16 %v3204
      %v3209 = vunpack.c.l.b16 %v3205
      %v3210 = vpack.c.b16 %v3209, %v3208
      %v3213 = vsel %vm1296, %v3202, 0
      %3215 = vmatprep.subr.bf16.mxu0 0
      %3216 = vmatpush1.bf16.msra.mxu0 0
      %3217 = vmatprep.subr.bf16.mxu0 0
      %3218 = vmatpush1.bf16.msra.mxu0 0
      %3219 = vmatprep.subr.bf16.mxu0 0
      %3220 = vmatpush1.bf16.msra.mxu0 0
      %3221 = vmatprep.subr.bf16.mxu0 0
      %3222 = vmatpush1.bf16.msra.mxu0 0
      %3223 = vmatprep.subr.bf16.mxu0 0
      %3224 = vmatpush1.bf16.msra.mxu0 0
      %3225 = vmatprep.subr.bf16.mxu0 0
      %3226 = vmatpush1.bf16.msra.mxu0 0
      %3227 = vmatprep.subr.bf16.mxu0 0
      %3228 = vmatpush1.bf16.msra.mxu0 0
      %3229 = vmatprep.subr.bf16.mxu0 0
      %3230 = vmatpush1.bf16.msra.mxu0 %v3210
      %3231 = vmatprep.subr.bf16.mxu0 0
      %3232 = vmatpush2.bf16.msra.mxu0 0
      %3233 = vmatprep.subr.bf16.mxu0 0
      %3234 = vmatpush2.bf16.msra.mxu0 0
      %3235 = vmatprep.subr.bf16.mxu0 0
      %3236 = vmatpush2.bf16.msra.mxu0 0
      %3237 = vmatprep.subr.bf16.mxu0 0
      %3238 = vmatpush2.bf16.msra.mxu0 0
      %3239 = vmatprep.subr.bf16.mxu0 0
      %3240 = vmatpush2.bf16.msra.mxu0 0
      %3241 = vmatprep.subr.bf16.mxu0 0
      %3242 = vmatpush2.bf16.msra.mxu0 0
      %3243 = vmatprep.subr.bf16.mxu0 0
      %3244 = vmatpush2.bf16.msra.mxu0 0
      %3245 = vmatprep.subr.bf16.mxu0 0
      %3246 = vmatpush2.bf16.msra.mxu0 0
      %3247 = vmatprep.mubr.bf16.mxu0 0
      %3248 = vmatmul.mubr.bf16.gmra.mxu0 %v3213
      %v3249 = vpop.f32.mrf.mxu0
      %v3250 = vadd.f32 0.0, %v3249
      %v3251 = vpop.f32.mrf.mxu0
      %v3252 = vpop.f32.mrf.mxu0
      %v3253 = vadd.f32 0.0, %v3252
      %v3254 = vpop.f32.mrf.mxu0
      %3255 = vdwg.mxu0
      %v3258 = vunpack.c.l.b16 %v3114
      %v3259 = vunpack.c.l.b16 %v3115
      %v3260 = vpack.c.b16 %v3259, %v3258
      %v3263 = vsel %vm1296, %v3113, 0
      %3265 = vmatprep.subr.bf16.mxu0 0
      %3266 = vmatpush1.bf16.msra.mxu0 0
      %3267 = vmatprep.subr.bf16.mxu0 0
      %3268 = vmatpush1.bf16.msra.mxu0 0
      %3269 = vmatprep.subr.bf16.mxu0 0
      %3270 = vmatpush1.bf16.msra.mxu0 0
      %3271 = vmatprep.subr.bf16.mxu0 0
      %3272 = vmatpush1.bf16.msra.mxu0 0
      %3273 = vmatprep.subr.bf16.mxu0 0
      %3274 = vmatpush1.bf16.msra.mxu0 0
      %3275 = vmatprep.subr.bf16.mxu0 0
      %3276 = vmatpush1.bf16.msra.mxu0 0
      %3277 = vmatprep.subr.bf16.mxu0 0
      %3278 = vmatpush1.bf16.msra.mxu0 0
      %3279 = vmatprep.subr.bf16.mxu0 0
      %3280 = vmatpush1.bf16.msra.mxu0 %v3260
      %3281 = vmatprep.subr.bf16.mxu0 0
      %3282 = vmatpush2.bf16.msra.mxu0 0
      %3283 = vmatprep.subr.bf16.mxu0 0
      %3284 = vmatpush2.bf16.msra.mxu0 0
      %3285 = vmatprep.subr.bf16.mxu0 0
      %3286 = vmatpush2.bf16.msra.mxu0 0
      %3287 = vmatprep.subr.bf16.mxu0 0
      %3288 = vmatpush2.bf16.msra.mxu0 0
      %3289 = vmatprep.subr.bf16.mxu0 0
      %3290 = vmatpush2.bf16.msra.mxu0 0
      %3291 = vmatprep.subr.bf16.mxu0 0
      %3292 = vmatpush2.bf16.msra.mxu0 0
      %3293 = vmatprep.subr.bf16.mxu0 0
      %3294 = vmatpush2.bf16.msra.mxu0 0
      %3295 = vmatprep.subr.bf16.mxu0 0
      %3296 = vmatpush2.bf16.msra.mxu0 0
      %3297 = vmatprep.mubr.bf16.mxu0 0
      %3298 = vmatmul.mubr.bf16.gmra.mxu0 %v3263
      %v3299 = vpop.f32.mrf.mxu0
      %v3300 = vadd.f32 %v3250, %v3299
      %v3301 = vpop.f32.mrf.mxu0
      %v3302 = vpop.f32.mrf.mxu0
      %v3303 = vadd.f32 %v3253, %v3302
      %v3304 = vpop.f32.mrf.mxu0
      %3305 = vdwg.mxu0
      %3306 = vrot.lane.b32.xlu0 %v3002, 124
      %v3307 = vpop.permute.xlu0 %3306
      %3308 = vrot.lane.b32.xlu0 %v3005, 124
      %v3309 = vpop.permute.xlu0 %3308
      %3312 = vrot.lane.b32.xlu0 %v3002, 12
      %v3313 = vpop.permute.xlu0 %3312
      %3314 = vrot.lane.b32.xlu0 %v3005, 12
      %v3315 = vpop.permute.xlu0 %3314
      %v3318 = vsel %vm2578, %v3307, %v3313
      %v3319 = vsel %vm2578, %v3309, %v3315
      %v3320 = vmul.f32 %v3318, %v2584
      %v3321 = vmul.f32 %v3319, %v2584
      %3322 = vrot.lane.b32.xlu0 %v3002, 125
      %v3323 = vpop.permute.xlu0 %3322
      %3324 = vrot.lane.b32.xlu0 %v3005, 125
      %v3325 = vpop.permute.xlu0 %3324
      %3328 = vrot.lane.b32.xlu0 %v3002, 13
      %v3329 = vpop.permute.xlu0 %3328
      %3330 = vrot.lane.b32.xlu0 %v3005, 13
      %v3331 = vpop.permute.xlu0 %3330
      %v3334 = vsel %vm2557, %v3323, %v3329
      %v3335 = vsel %vm2557, %v3325, %v3331
      %v3336 = vmul.f32 %v3334, %v2563
      %v3337 = vmul.f32 %v3335, %v2563
      %s3338 = scalar_lea.vmem %s31, 16
      %v3339 = vld [vmem:[%s3338] sm:$0xf]
      %v3340 = vld [vmem:[%s3338 + $0x4] sm:$0xf]
      %v3341 = vpack.c.bf16 %v3321, %v3320
      %v3342 = vpack.c.bf16 %v3337, %v3336
      %v3345 = vunpack.c.l.b16 %v3339
      %v3346 = vunpack.c.l.b16 %v3340
      %v3347 = vpack.c.b16 %v3346, %v3345
      %v3349 = vsel %vm2395, %v3347, 0
      %3351 = vmatprep.subr.bf16.mxu0 0
      %3352 = vmatpush1.bf16.msra.mxu0 0
      %3353 = vmatprep.subr.bf16.mxu0 0
      %3354 = vmatpush1.bf16.msra.mxu0 0
      %3355 = vmatprep.subr.bf16.mxu0 0
      %3356 = vmatpush1.bf16.msra.mxu0 0
      %3357 = vmatprep.subr.bf16.mxu0 0
      %3358 = vmatpush1.bf16.msra.mxu0 0
      %3359 = vmatprep.subr.bf16.mxu0 0
      %3360 = vmatpush1.bf16.msra.mxu0 %v3061
      %3361 = vmatprep.subr.bf16.mxu0 0
      %3362 = vmatpush1.bf16.msra.mxu0 %v3060
      %3363 = vmatprep.subr.bf16.mxu0 0
      %3364 = vmatpush1.bf16.msra.mxu0 %v3342
      %3365 = vmatprep.subr.bf16.mxu0 0
      %3366 = vmatpush1.bf16.msra.mxu0 %v3341
      %3367 = vmatprep.subr.bf16.mxu0 0
      %3368 = vmatpush2.bf16.msra.mxu0 0
      %3369 = vmatprep.subr.bf16.mxu0 0
      %3370 = vmatpush2.bf16.msra.mxu0 0
      %3371 = vmatprep.subr.bf16.mxu0 0
      %3372 = vmatpush2.bf16.msra.mxu0 0
      %3373 = vmatprep.subr.bf16.mxu0 0
      %3374 = vmatpush2.bf16.msra.mxu0 0
      %3375 = vmatprep.subr.bf16.mxu0 0
      %3376 = vmatpush2.bf16.msra.mxu0 0
      %3377 = vmatprep.subr.bf16.mxu0 0
      %3378 = vmatpush2.bf16.msra.mxu0 0
      %3379 = vmatprep.subr.bf16.mxu0 0
      %3380 = vmatpush2.bf16.msra.mxu0 0
      %3381 = vmatprep.subr.bf16.mxu0 0
      %3382 = vmatpush2.bf16.msra.mxu0 0
      %3383 = vmatprep.mubr.bf16.mxu0 0
      %3384 = vmatmul.mubr.bf16.gmra.mxu0 %v3349
      %v3385 = vpop.f32.mrf.mxu0
      %v3386 = vadd.f32 0.0, %v3385
      %v3387 = vpop.f32.mrf.mxu0
      %v3388 = vpop.f32.mrf.mxu0
      %v3389 = vadd.f32 0.0, %v3388
      %v3390 = vpop.f32.mrf.mxu0
      %3391 = vdwg.mxu0
      %v3392 = vpack.c.bf16 %v3389, %v3386
      %s3393 = scalar_lea.vmem %s81, 16
      %v3394 = vld [vmem:[%s3393] sm:$0xf]
      %v3395 = vld [vmem:[%s3393 + $0x4] sm:$0xf]
      %v3398 = vunpack.c.l.b16 %v3394
      %v3399 = vunpack.c.l.b16 %v3395
      %v3400 = vpack.c.b16 %v3399, %v3398
      %v3403 = vsel %vm1296, %v3392, 0
      %3405 = vmatprep.subr.bf16.mxu0 0
      %3406 = vmatpush1.bf16.msra.mxu0 0
      %3407 = vmatprep.subr.bf16.mxu0 0
      %3408 = vmatpush1.bf16.msra.mxu0 0
      %3409 = vmatprep.subr.bf16.mxu0 0
      %3410 = vmatpush1.bf16.msra.mxu0 0
      %3411 = vmatprep.subr.bf16.mxu0 0
      %3412 = vmatpush1.bf16.msra.mxu0 0
      %3413 = vmatprep.subr.bf16.mxu0 0
      %3414 = vmatpush1.bf16.msra.mxu0 0
      %3415 = vmatprep.subr.bf16.mxu0 0
      %3416 = vmatpush1.bf16.msra.mxu0 0
      %3417 = vmatprep.subr.bf16.mxu0 0
      %3418 = vmatpush1.bf16.msra.mxu0 0
      %3419 = vmatprep.subr.bf16.mxu0 0
      %3420 = vmatpush1.bf16.msra.mxu0 %v3400
      %3421 = vmatprep.subr.bf16.mxu0 0
      %3422 = vmatpush2.bf16.msra.mxu0 0
      %3423 = vmatprep.subr.bf16.mxu0 0
      %3424 = vmatpush2.bf16.msra.mxu0 0
      %3425 = vmatprep.subr.bf16.mxu0 0
      %3426 = vmatpush2.bf16.msra.mxu0 0
      %3427 = vmatprep.subr.bf16.mxu0 0
      %3428 = vmatpush2.bf16.msra.mxu0 0
      %3429 = vmatprep.subr.bf16.mxu0 0
      %3430 = vmatpush2.bf16.msra.mxu0 0
      %3431 = vmatprep.subr.bf16.mxu0 0
      %3432 = vmatpush2.bf16.msra.mxu0 0
      %3433 = vmatprep.subr.bf16.mxu0 0
      %3434 = vmatpush2.bf16.msra.mxu0 0
      %3435 = vmatprep.subr.bf16.mxu0 0
      %3436 = vmatpush2.bf16.msra.mxu0 0
      %3437 = vmatprep.mubr.bf16.mxu0 0
      %3438 = vmatmul.mubr.bf16.gmra.mxu0 %v3403
      %v3439 = vpop.f32.mrf.mxu0
      %v3440 = vadd.f32 0.0, %v3439
      %v3441 = vpop.f32.mrf.mxu0
      %v3442 = vpop.f32.mrf.mxu0
      %v3443 = vadd.f32 0.0, %v3442
      %v3444 = vpop.f32.mrf.mxu0
      %3445 = vdwg.mxu0
      %v3446 = vadd.f32 %v3300, %v3440
      %v3447 = vadd.f32 %v3303, %v3443
      %3448 = vrot.lane.b32.xlu0 %v3002, 123
      %v3449 = vpop.permute.xlu0 %3448
      %3450 = vrot.lane.b32.xlu0 %v3005, 123
      %v3451 = vpop.permute.xlu0 %3450
      %3454 = vrot.lane.b32.xlu0 %v3002, 11
      %v3455 = vpop.permute.xlu0 %3454
      %3456 = vrot.lane.b32.xlu0 %v3005, 11
      %v3457 = vpop.permute.xlu0 %3456
      %v3460 = vsel %vm2599, %v3449, %v3455
      %v3461 = vsel %vm2599, %v3451, %v3457
      %v3462 = vmul.f32 %v3460, %v2605
      %v3463 = vmul.f32 %v3461, %v2605
      %s3464 = scalar_lea.vmem %s31, 24
      %v3465 = vld [vmem:[%s3464] sm:$0xf]
      %v3466 = vld [vmem:[%s3464 + $0x4] sm:$0xf]
      %v3467 = vpack.c.bf16 %v3463, %v3462
      %v3470 = vunpack.c.l.b16 %v3465
      %v3471 = vunpack.c.l.b16 %v3466
      %v3472 = vpack.c.b16 %v3471, %v3470
      %v3474 = vsel %vm2395, %v3472, 0
      %3476 = vmatprep.subr.bf16.mxu0 0
      %3477 = vmatpush1.bf16.msra.mxu0 0
      %3478 = vmatprep.subr.bf16.mxu0 0
      %3479 = vmatpush1.bf16.msra.mxu0 0
      %3480 = vmatprep.subr.bf16.mxu0 0
      %3481 = vmatpush1.bf16.msra.mxu0 0
      %3482 = vmatprep.subr.bf16.mxu0 0
      %3483 = vmatpush1.bf16.msra.mxu0 0
      %3484 = vmatprep.subr.bf16.mxu0 0
      %3485 = vmatpush1.bf16.msra.mxu0 %v3060
      %3486 = vmatprep.subr.bf16.mxu0 0
      %3487 = vmatpush1.bf16.msra.mxu0 %v3151
      %3488 = vmatprep.subr.bf16.mxu0 0
      %3489 = vmatpush1.bf16.msra.mxu0 %v3341
      %3490 = vmatprep.subr.bf16.mxu0 0
      %3491 = vmatpush1.bf16.msra.mxu0 %v3467
      %3492 = vmatprep.subr.bf16.mxu0 0
      %3493 = vmatpush2.bf16.msra.mxu0 0
      %3494 = vmatprep.subr.bf16.mxu0 0
      %3495 = vmatpush2.bf16.msra.mxu0 0
      %3496 = vmatprep.subr.bf16.mxu0 0
      %3497 = vmatpush2.bf16.msra.mxu0 0
      %3498 = vmatprep.subr.bf16.mxu0 0
      %3499 = vmatpush2.bf16.msra.mxu0 0
      %3500 = vmatprep.subr.bf16.mxu0 0
      %3501 = vmatpush2.bf16.msra.mxu0 0
      %3502 = vmatprep.subr.bf16.mxu0 0
      %3503 = vmatpush2.bf16.msra.mxu0 0
      %3504 = vmatprep.subr.bf16.mxu0 0
      %3505 = vmatpush2.bf16.msra.mxu0 0
      %3506 = vmatprep.subr.bf16.mxu0 0
      %3507 = vmatpush2.bf16.msra.mxu0 0
      %3508 = vmatprep.mubr.bf16.mxu0 0
      %3509 = vmatmul.mubr.bf16.gmra.mxu0 %v3474
      %v3510 = vpop.f32.mrf.mxu0
      %v3511 = vadd.f32 0.0, %v3510
      %v3512 = vpop.f32.mrf.mxu0
      %v3513 = vpop.f32.mrf.mxu0
      %v3514 = vadd.f32 0.0, %v3513
      %v3515 = vpop.f32.mrf.mxu0
      %3516 = vdwg.mxu0
      %v3517 = vpack.c.bf16 %v3514, %v3511
      %s3518 = scalar_lea.vmem %s81, 24
      %v3519 = vld [vmem:[%s3518] sm:$0xf]
      %v3520 = vld [vmem:[%s3518 + $0x4] sm:$0xf]
      %v3523 = vunpack.c.l.b16 %v3519
      %v3524 = vunpack.c.l.b16 %v3520
      %v3525 = vpack.c.b16 %v3524, %v3523
      %v3528 = vsel %vm1296, %v3517, 0
      %3530 = vmatprep.subr.bf16.mxu0 0
      %3531 = vmatpush1.bf16.msra.mxu0 0
      %3532 = vmatprep.subr.bf16.mxu0 0
      %3533 = vmatpush1.bf16.msra.mxu0 0
      %3534 = vmatprep.subr.bf16.mxu0 0
      %3535 = vmatpush1.bf16.msra.mxu0 0
      %3536 = vmatprep.subr.bf16.mxu0 0
      %3537 = vmatpush1.bf16.msra.mxu0 0
      %3538 = vmatprep.subr.bf16.mxu0 0
      %3539 = vmatpush1.bf16.msra.mxu0 0
      %3540 = vmatprep.subr.bf16.mxu0 0
      %3541 = vmatpush1.bf16.msra.mxu0 0
      %3542 = vmatprep.subr.bf16.mxu0 0
      %3543 = vmatpush1.bf16.msra.mxu0 0
      %3544 = vmatprep.subr.bf16.mxu0 0
      %3545 = vmatpush1.bf16.msra.mxu0 %v3525
      %3546 = vmatprep.subr.bf16.mxu0 0
      %3547 = vmatpush2.bf16.msra.mxu0 0
      %3548 = vmatprep.subr.bf16.mxu0 0
      %3549 = vmatpush2.bf16.msra.mxu0 0
      %3550 = vmatprep.subr.bf16.mxu0 0
      %3551 = vmatpush2.bf16.msra.mxu0 0
      %3552 = vmatprep.subr.bf16.mxu0 0
      %3553 = vmatpush2.bf16.msra.mxu0 0
      %3554 = vmatprep.subr.bf16.mxu0 0
      %3555 = vmatpush2.bf16.msra.mxu0 0
      %3556 = vmatprep.subr.bf16.mxu0 0
      %3557 = vmatpush2.bf16.msra.mxu0 0
      %3558 = vmatprep.subr.bf16.mxu0 0
      %3559 = vmatpush2.bf16.msra.mxu0 0
      %3560 = vmatprep.subr.bf16.mxu0 0
      %3561 = vmatpush2.bf16.msra.mxu0 0
      %3562 = vmatprep.mubr.bf16.mxu0 0
      %3563 = vmatmul.mubr.bf16.gmra.mxu0 %v3528
      %v3564 = vpop.f32.mrf.mxu0
      %v3565 = vadd.f32 0.0, %v3564
      %v3566 = vpop.f32.mrf.mxu0
      %v3567 = vpop.f32.mrf.mxu0
      %v3568 = vadd.f32 0.0, %v3567
      %v3569 = vpop.f32.mrf.mxu0
      %3570 = vdwg.mxu0
      %v3571 = vadd.f32 %v3446, %v3565
      %v3572 = vadd.f32 %v3447, %v3568
      %v3573 = vld [vmem:[%s33] sm:$0xff]
      %v3574 = vld [vmem:[%s33 + $0x8] sm:$0xff]
      %3576 = vset.pattern.permute.xlu0 0
      %3577 = vperm.xlu0 %3576, %v3573
      %v3578 = vpop.permute.xlu0 %3577
      %3581 = vset.pattern.permute.xlu0 0
      %3582 = vperm.xlu0 %3581, %v3574
      %v3583 = vpop.permute.xlu0 %3582
      %v3585 = vadd.f32 %v3571, %v3578
      %v3586 = vadd.f32 %v3572, %v3583
      %v3587 = vmax.f32 %v3585, 0.0
      %v3588 = vmax.f32 %v3586, 0.0
      %v3589 = vld [vmem:[%s35] sm:$0xf]
      %v3590 = vld [vmem:[%s35 + $0x4] sm:$0xf]
      %v3591 = vpack.c.bf16 %v3588, %v3587
      %v3592 = vld [vmem:[%s37] sm:$0xf]
      %v3593 = vld [vmem:[%s37 + $0x4] sm:$0xf]
      %v3594 = vpack.c.bf16 %v2305, %v2304
      %v3597 = vunpack.c.l.b16 %v3592
      %v3598 = vunpack.c.l.b16 %v3593
      %v3599 = vpack.c.b16 %v3598, %v3597
      %v3601 = vsel %vm1296, %v3599, 0
      %3603 = vmatprep.subr.bf16.mxu0 0
      %3604 = vmatpush1.bf16.msra.mxu0 0
      %3605 = vmatprep.subr.bf16.mxu0 0
      %3606 = vmatpush1.bf16.msra.mxu0 0
      %3607 = vmatprep.subr.bf16.mxu0 0
      %3608 = vmatpush1.bf16.msra.mxu0 0
      %3609 = vmatprep.subr.bf16.mxu0 0
      %3610 = vmatpush1.bf16.msra.mxu0 0
      %3611 = vmatprep.subr.bf16.mxu0 0
      %3612 = vmatpush1.bf16.msra.mxu0 0
      %3613 = vmatprep.subr.bf16.mxu0 0
      %3614 = vmatpush1.bf16.msra.mxu0 0
      %3615 = vmatprep.subr.bf16.mxu0 0
      %3616 = vmatpush1.bf16.msra.mxu0 0
      %3617 = vmatprep.subr.bf16.mxu0 0
      %3618 = vmatpush1.bf16.msra.mxu0 %v3594
      %3619 = vmatprep.subr.bf16.mxu0 0
      %3620 = vmatpush2.bf16.msra.mxu0 0
      %3621 = vmatprep.subr.bf16.mxu0 0
      %3622 = vmatpush2.bf16.msra.mxu0 0
      %3623 = vmatprep.subr.bf16.mxu0 0
      %3624 = vmatpush2.bf16.msra.mxu0 0
      %3625 = vmatprep.subr.bf16.mxu0 0
      %3626 = vmatpush2.bf16.msra.mxu0 0
      %3627 = vmatprep.subr.bf16.mxu0 0
      %3628 = vmatpush2.bf16.msra.mxu0 0
      %3629 = vmatprep.subr.bf16.mxu0 0
      %3630 = vmatpush2.bf16.msra.mxu0 0
      %3631 = vmatprep.subr.bf16.mxu0 0
      %3632 = vmatpush2.bf16.msra.mxu0 0
      %3633 = vmatprep.subr.bf16.mxu0 0
      %3634 = vmatpush2.bf16.msra.mxu0 0
      %3635 = vmatprep.mubr.bf16.mxu0 0
      %3636 = vmatmul.mubr.bf16.gmra.mxu0 %v3601
      %v3637 = vpop.f32.mrf.mxu0
      %v3638 = vadd.f32 0.0, %v3637
      %v3639 = vpop.f32.mrf.mxu0
      %v3640 = vpop.f32.mrf.mxu0
      %v3641 = vadd.f32 0.0, %v3640
      %v3642 = vpop.f32.mrf.mxu0
      %3643 = vdwg.mxu0
      %v3646 = vunpack.c.l.b16 %v3589
      %v3647 = vunpack.c.l.b16 %v3590
      %v3648 = vpack.c.b16 %v3647, %v3646
      %v3650 = vsel %vm1296, %v3648, 0
      %3652 = vmatprep.subr.bf16.mxu0 0
      %3653 = vmatpush1.bf16.msra.mxu0 0
      %3654 = vmatprep.subr.bf16.mxu0 0
      %3655 = vmatpush1.bf16.msra.mxu0 0
      %3656 = vmatprep.subr.bf16.mxu0 0
      %3657 = vmatpush1.bf16.msra.mxu0 0
      %3658 = vmatprep.subr.bf16.mxu0 0
      %3659 = vmatpush1.bf16.msra.mxu0 0
      %3660 = vmatprep.subr.bf16.mxu0 0
      %3661 = vmatpush1.bf16.msra.mxu0 0
      %3662 = vmatprep.subr.bf16.mxu0 0
      %3663 = vmatpush1.bf16.msra.mxu0 0
      %3664 = vmatprep.subr.bf16.mxu0 0
      %3665 = vmatpush1.bf16.msra.mxu0 0
      %3666 = vmatprep.subr.bf16.mxu0 0
      %3667 = vmatpush1.bf16.msra.mxu0 %v3591
      %3668 = vmatprep.subr.bf16.mxu0 0
      %3669 = vmatpush2.bf16.msra.mxu0 0
      %3670 = vmatprep.subr.bf16.mxu0 0
      %3671 = vmatpush2.bf16.msra.mxu0 0
      %3672 = vmatprep.subr.bf16.mxu0 0
      %3673 = vmatpush2.bf16.msra.mxu0 0
      %3674 = vmatprep.subr.bf16.mxu0 0
      %3675 = vmatpush2.bf16.msra.mxu0 0
      %3676 = vmatprep.subr.bf16.mxu0 0
      %3677 = vmatpush2.bf16.msra.mxu0 0
      %3678 = vmatprep.subr.bf16.mxu0 0
      %3679 = vmatpush2.bf16.msra.mxu0 0
      %3680 = vmatprep.subr.bf16.mxu0 0
      %3681 = vmatpush2.bf16.msra.mxu0 0
      %3682 = vmatprep.subr.bf16.mxu0 0
      %3683 = vmatpush2.bf16.msra.mxu0 0
      %3684 = vmatprep.mubr.bf16.mxu0 0
      %3685 = vmatmul.mubr.bf16.gmra.mxu0 %v3650
      %v3686 = vpop.f32.mrf.mxu0
      %v3687 = vadd.f32 %v3638, %v3686
      %v3688 = vpop.f32.mrf.mxu0
      %v3689 = vpop.f32.mrf.mxu0
      %v3690 = vadd.f32 %v3641, %v3689
      %v3691 = vpop.f32.mrf.mxu0
      %3692 = vdwg.mxu0
      %v3693 = vld [vmem:[%s39] sm:$0xff]
      %v3694 = vld [vmem:[%s39 + $0x8] sm:$0xff]
      %3696 = vset.pattern.permute.xlu0 0
      %3697 = vperm.xlu0 %3696, %v3693
      %v3698 = vpop.permute.xlu0 %3697
      %3701 = vset.pattern.permute.xlu0 0
      %3702 = vperm.xlu0 %3701, %v3694
      %v3703 = vpop.permute.xlu0 %3702
      %v3705 = vadd.f32 %v3687, %v3698
      %v3706 = vadd.f32 %v3690, %v3703
      %3709 = vrot.lane.b32.xlu0 %v3705, 73
      %v3710 = vpop.permute.xlu0 %3709
      %3711 = vrot.lane.b32.xlu0 %v3706, 73
      %v3712 = vpop.permute.xlu0 %3711
      %3715 = vrot.lane.b32.xlu0 %v3705, 9
      %v3716 = vpop.permute.xlu0 %3715
      %3717 = vrot.lane.b32.xlu0 %v3706, 9
      %v3718 = vpop.permute.xlu0 %3717
      %v3721 = vsel %vm1473, %v3710, %v3716
      %v3722 = vsel %vm1473, %v3712, %v3718
      %v3723 = vmul.f32 %v3721, %v2010
      %v3724 = vmul.f32 %v3722, %v2010
      %3725 = vrot.lane.b32.xlu0 %v3705, 72
      %v3726 = vpop.permute.xlu0 %3725
      %3727 = vrot.lane.b32.xlu0 %v3706, 72
      %v3728 = vpop.permute.xlu0 %3727
      %3731 = vrot.lane.b32.xlu0 %v3705, 8
      %v3732 = vpop.permute.xlu0 %3731
      %3733 = vrot.lane.b32.xlu0 %v3706, 8
      %v3734 = vpop.permute.xlu0 %3733
      %v3737 = vsel %vm2018, %v3726, %v3732
      %v3738 = vsel %vm2018, %v3728, %v3734
      %v3739 = vmul.f32 %v3737, %v2023
      %v3740 = vmul.f32 %v3738, %v2023
      %3741 = vrot.lane.b32.xlu0 %v3705, 71
      %v3742 = vpop.permute.xlu0 %3741
      %3743 = vrot.lane.b32.xlu0 %v3706, 71
      %v3744 = vpop.permute.xlu0 %3743
      %3747 = vrot.lane.b32.xlu0 %v3705, 7
      %v3748 = vpop.permute.xlu0 %3747
      %3749 = vrot.lane.b32.xlu0 %v3706, 7
      %v3750 = vpop.permute.xlu0 %3749
      %v3753 = vsel %vm2031, %v3742, %v3748
      %v3754 = vsel %vm2031, %v3744, %v3750
      %v3755 = vmul.f32 %v3753, %v2036
      %v3756 = vmul.f32 %v3754, %v2036
      %3757 = vrot.lane.b32.xlu0 %v3705, 65
      %v3758 = vpop.permute.xlu0 %3757
      %3759 = vrot.lane.b32.xlu0 %v3706, 65
      %v3760 = vpop.permute.xlu0 %3759
      %3763 = vrot.lane.b32.xlu0 %v3705, 1
      %v3764 = vpop.permute.xlu0 %3763
      %3765 = vrot.lane.b32.xlu0 %v3706, 1
      %v3766 = vpop.permute.xlu0 %3765
      %v3769 = vsel %vm1330, %v3758, %v3764
      %v3770 = vsel %vm1330, %v3760, %v3766
      %v3771 = vmul.f32 %v3769, %v2048
      %v3772 = vmul.f32 %v3770, %v2048
      %3773 = vrot.lane.b32.xlu0 %v3705, 127
      %v3774 = vpop.permute.xlu0 %3773
      %3775 = vrot.lane.b32.xlu0 %v3706, 127
      %v3776 = vpop.permute.xlu0 %3775
      %3779 = vrot.lane.b32.xlu0 %v3705, 63
      %v3780 = vpop.permute.xlu0 %3779
      %3781 = vrot.lane.b32.xlu0 %v3706, 63
      %v3782 = vpop.permute.xlu0 %3781
      %v3785 = vsel %vm2056, %v3774, %v3780
      %v3786 = vsel %vm2056, %v3776, %v3782
      %v3787 = vmul.f32 %v3785, %v2061
      %v3788 = vmul.f32 %v3786, %v2061
      %3789 = vrot.lane.b32.xlu0 %v3705, 121
      %v3790 = vpop.permute.xlu0 %3789
      %3791 = vrot.lane.b32.xlu0 %v3706, 121
      %v3792 = vpop.permute.xlu0 %3791
      %3795 = vrot.lane.b32.xlu0 %v3705, 57
      %v3796 = vpop.permute.xlu0 %3795
      %3797 = vrot.lane.b32.xlu0 %v3706, 57
      %v3798 = vpop.permute.xlu0 %3797
      %v3801 = vsel %vm2069, %v3790, %v3796
      %v3802 = vsel %vm2069, %v3792, %v3798
      %v3803 = vmul.f32 %v3801, %v2074
      %v3804 = vmul.f32 %v3802, %v2074
      %3805 = vrot.lane.b32.xlu0 %v3705, 120
      %v3806 = vpop.permute.xlu0 %3805
      %3807 = vrot.lane.b32.xlu0 %v3706, 120
      %v3808 = vpop.permute.xlu0 %3807
      %3811 = vrot.lane.b32.xlu0 %v3705, 56
      %v3812 = vpop.permute.xlu0 %3811
      %3813 = vrot.lane.b32.xlu0 %v3706, 56
      %v3814 = vpop.permute.xlu0 %3813
      %v3817 = vsel %vm2082, %v3806, %v3812
      %v3818 = vsel %vm2082, %v3808, %v3814
      %v3819 = vmul.f32 %v3817, %v2087
      %v3820 = vmul.f32 %v3818, %v2087
      %3821 = vrot.lane.b32.xlu0 %v3705, 119
      %v3822 = vpop.permute.xlu0 %3821
      %3823 = vrot.lane.b32.xlu0 %v3706, 119
      %v3824 = vpop.permute.xlu0 %3823
      %3827 = vrot.lane.b32.xlu0 %v3705, 55
      %v3828 = vpop.permute.xlu0 %3827
      %3829 = vrot.lane.b32.xlu0 %v3706, 55
      %v3830 = vpop.permute.xlu0 %3829
      %v3833 = vsel %vm2095, %v3822, %v3828
      %v3834 = vsel %vm2095, %v3824, %v3830
      %v3835 = vmul.f32 %v3833, %v2100
      %v3836 = vmul.f32 %v3834, %v2100
      %v3837 = vld [vmem:[%s41] sm:$0xff]
      %v3838 = vld [vmem:[%s41 + $0x8] sm:$0xff]
      %v3839 = vpack.c.bf16 %v3724, %v3723
      %v3840 = vpack.c.bf16 %v3740, %v3739
      %v3841 = vpack.c.bf16 %v3756, %v3755
      %v3842 = vpack.c.bf16 %v3772, %v3771
      %v3843 = vpack.c.bf16 %v3706, %v3705
      %v3844 = vpack.c.bf16 %v3788, %v3787
      %v3845 = vpack.c.bf16 %v3804, %v3803
      %v3846 = vpack.c.bf16 %v3820, %v3819
      %v3847 = vpack.c.bf16 %v3836, %v3835
      %v3848 = vld [vmem:[%s43] sm:$0xff]
      %v3849 = vld [vmem:[%s43 + $0x8] sm:$0xff]
      %3851 = vset.pattern.permute.xlu0 0
      %3852 = vperm.xlu0 %3851, %v3848
      %v3853 = vpop.permute.xlu0 %3852
      %3856 = vset.pattern.permute.xlu0 0
      %3857 = vperm.xlu0 %3856, %v3849
      %v3858 = vpop.permute.xlu0 %3857
      %v3862 = vunpack.c.l.b16 %v3837
      %v3863 = vunpack.c.h.b16 %v3837
      %v3864 = vunpack.c.l.b16 %v3838
      %v3865 = vunpack.c.h.b16 %v3838
      %v3866 = vpack.c.b16 %v3864, %v3862
      %v3867 = vpack.c.b16 %v3865, %v3863
      %v3870 = vsel %vm1296, %v3867, 0
      %3872 = vmatprep.subr.bf16.mxu0 0
      %3873 = vmatpush1.bf16.msra.mxu0 %v3846
      %3874 = vmatprep.subr.bf16.mxu0 0
      %3875 = vmatpush1.bf16.msra.mxu0 %v3845
      %3876 = vmatprep.subr.bf16.mxu0 0
      %3877 = vmatpush1.bf16.msra.mxu0 %v3844
      %3878 = vmatprep.subr.bf16.mxu0 0
      %3879 = vmatpush1.bf16.msra.mxu0 %v3843
      %3880 = vmatprep.subr.bf16.mxu0 0
      %3881 = vmatpush1.bf16.msra.mxu0 %v3842
      %3882 = vmatprep.subr.bf16.mxu0 0
      %3883 = vmatpush1.bf16.msra.mxu0 %v3841
      %3884 = vmatprep.subr.bf16.mxu0 0
      %3885 = vmatpush1.bf16.msra.mxu0 %v3840
      %3886 = vmatprep.subr.bf16.mxu0 0
      %3887 = vmatpush1.bf16.msra.mxu0 %v3839
      %3888 = vmatprep.subr.bf16.mxu0 0
      %3889 = vmatpush2.bf16.msra.mxu0 0
      %3890 = vmatprep.subr.bf16.mxu0 0
      %3891 = vmatpush2.bf16.msra.mxu0 0
      %3892 = vmatprep.subr.bf16.mxu0 0
      %3893 = vmatpush2.bf16.msra.mxu0 0
      %3894 = vmatprep.subr.bf16.mxu0 0
      %3895 = vmatpush2.bf16.msra.mxu0 0
      %3896 = vmatprep.subr.bf16.mxu0 0
      %3897 = vmatpush2.bf16.msra.mxu0 0
      %3898 = vmatprep.subr.bf16.mxu0 0
      %3899 = vmatpush2.bf16.msra.mxu0 0
      %3900 = vmatprep.subr.bf16.mxu0 0
      %3901 = vmatpush2.bf16.msra.mxu0 0
      %3902 = vmatprep.subr.bf16.mxu0 0
      %3903 = vmatpush2.bf16.msra.mxu0 %v3847
      %3904 = vmatprep.mubr.bf16.mxu0 %v3870
      %3905 = vmatmul.mubr.bf16.gmra.mxu0 %v3866
      %v3906 = vpop.f32.mrf.mxu0
      %v3907 = vadd.f32 %v3853, %v3906
      %v3908 = vpop.f32.mrf.mxu0
      %v3909 = vpop.f32.mrf.mxu0
      %v3910 = vadd.f32 %v3858, %v3909
      %v3911 = vpop.f32.mrf.mxu0
      %3912 = vdwg.mxu0
      %v3913 = vmax.f32 %v3907, 0.0
      %v3914 = vmax.f32 %v3910, 0.0
      %3917 = vrot.lane.b32.xlu0 %v3913, 73
      %v3918 = vpop.permute.xlu0 %3917
      %3919 = vrot.lane.b32.xlu0 %v3914, 73
      %v3920 = vpop.permute.xlu0 %3919
      %3923 = vrot.lane.b32.xlu0 %v3913, 9
      %v3924 = vpop.permute.xlu0 %3923
      %3925 = vrot.lane.b32.xlu0 %v3914, 9
      %v3926 = vpop.permute.xlu0 %3925
      %v3929 = vsel %vm1473, %v3918, %v3924
      %v3930 = vsel %vm1473, %v3920, %v3926
      %v3931 = vmul.f32 %v3929, %v2010
      %v3932 = vmul.f32 %v3930, %v2010
      %3933 = vrot.lane.b32.xlu0 %v3913, 72
      %v3934 = vpop.permute.xlu0 %3933
      %3935 = vrot.lane.b32.xlu0 %v3914, 72
      %v3936 = vpop.permute.xlu0 %3935
      %3939 = vrot.lane.b32.xlu0 %v3913, 8
      %v3940 = vpop.permute.xlu0 %3939
      %3941 = vrot.lane.b32.xlu0 %v3914, 8
      %v3942 = vpop.permute.xlu0 %3941
      %v3945 = vsel %vm2018, %v3934, %v3940
      %v3946 = vsel %vm2018, %v3936, %v3942
      %v3947 = vmul.f32 %v3945, %v2023
      %v3948 = vmul.f32 %v3946, %v2023
      %3949 = vrot.lane.b32.xlu0 %v3913, 71
      %v3950 = vpop.permute.xlu0 %3949
      %3951 = vrot.lane.b32.xlu0 %v3914, 71
      %v3952 = vpop.permute.xlu0 %3951
      %3955 = vrot.lane.b32.xlu0 %v3913, 7
      %v3956 = vpop.permute.xlu0 %3955
      %3957 = vrot.lane.b32.xlu0 %v3914, 7
      %v3958 = vpop.permute.xlu0 %3957
      %v3961 = vsel %vm2031, %v3950, %v3956
      %v3962 = vsel %vm2031, %v3952, %v3958
      %v3963 = vmul.f32 %v3961, %v2036
      %v3964 = vmul.f32 %v3962, %v2036
      %3965 = vrot.lane.b32.xlu0 %v3913, 65
      %v3966 = vpop.permute.xlu0 %3965
      %3967 = vrot.lane.b32.xlu0 %v3914, 65
      %v3968 = vpop.permute.xlu0 %3967
      %3971 = vrot.lane.b32.xlu0 %v3913, 1
      %v3972 = vpop.permute.xlu0 %3971
      %3973 = vrot.lane.b32.xlu0 %v3914, 1
      %v3974 = vpop.permute.xlu0 %3973
      %v3977 = vsel %vm1330, %v3966, %v3972
      %v3978 = vsel %vm1330, %v3968, %v3974
      %v3979 = vmul.f32 %v3977, %v2048
      %v3980 = vmul.f32 %v3978, %v2048
      %3981 = vrot.lane.b32.xlu0 %v3913, 127
      %v3982 = vpop.permute.xlu0 %3981
      %3983 = vrot.lane.b32.xlu0 %v3914, 127
      %v3984 = vpop.permute.xlu0 %3983
      %3987 = vrot.lane.b32.xlu0 %v3913, 63
      %v3988 = vpop.permute.xlu0 %3987
      %3989 = vrot.lane.b32.xlu0 %v3914, 63
      %v3990 = vpop.permute.xlu0 %3989
      %v3993 = vsel %vm2056, %v3982, %v3988
      %v3994 = vsel %vm2056, %v3984, %v3990
      %v3995 = vmul.f32 %v3993, %v2061
      %v3996 = vmul.f32 %v3994, %v2061
      %3997 = vrot.lane.b32.xlu0 %v3913, 121
      %v3998 = vpop.permute.xlu0 %3997
      %3999 = vrot.lane.b32.xlu0 %v3914, 121
      %v4000 = vpop.permute.xlu0 %3999
      %4003 = vrot.lane.b32.xlu0 %v3913, 57
      %v4004 = vpop.permute.xlu0 %4003
      %4005 = vrot.lane.b32.xlu0 %v3914, 57
      %v4006 = vpop.permute.xlu0 %4005
      %v4009 = vsel %vm2069, %v3998, %v4004
      %v4010 = vsel %vm2069, %v4000, %v4006
      %v4011 = vmul.f32 %v4009, %v2074
      %v4012 = vmul.f32 %v4010, %v2074
      %4013 = vrot.lane.b32.xlu0 %v3913, 120
      %v4014 = vpop.permute.xlu0 %4013
      %4015 = vrot.lane.b32.xlu0 %v3914, 120
      %v4016 = vpop.permute.xlu0 %4015
      %4019 = vrot.lane.b32.xlu0 %v3913, 56
      %v4020 = vpop.permute.xlu0 %4019
      %4021 = vrot.lane.b32.xlu0 %v3914, 56
      %v4022 = vpop.permute.xlu0 %4021
      %v4025 = vsel %vm2082, %v4014, %v4020
      %v4026 = vsel %vm2082, %v4016, %v4022
      %v4027 = vmul.f32 %v4025, %v2087
      %v4028 = vmul.f32 %v4026, %v2087
      %4029 = vrot.lane.b32.xlu0 %v3913, 119
      %v4030 = vpop.permute.xlu0 %4029
      %4031 = vrot.lane.b32.xlu0 %v3914, 119
      %v4032 = vpop.permute.xlu0 %4031
      %4035 = vrot.lane.b32.xlu0 %v3913, 55
      %v4036 = vpop.permute.xlu0 %4035
      %4037 = vrot.lane.b32.xlu0 %v3914, 55
      %v4038 = vpop.permute.xlu0 %4037
      %v4041 = vsel %vm2095, %v4030, %v4036
      %v4042 = vsel %vm2095, %v4032, %v4038
      %v4043 = vmul.f32 %v4041, %v2100
      %v4044 = vmul.f32 %v4042, %v2100
      %v4045 = vld [vmem:[%s45] sm:$0xff]
      %v4046 = vld [vmem:[%s45 + $0x8] sm:$0xff]
      %v4047 = vld [vmem:[%s45 + $0x10] sm:$0xff]
      %v4048 = vld [vmem:[%s45 + $0x18] sm:$0xff]
      %v4049 = vpack.c.bf16 %v3932, %v3931
      %v4050 = vpack.c.bf16 %v3948, %v3947
      %v4051 = vpack.c.bf16 %v3964, %v3963
      %v4052 = vpack.c.bf16 %v3980, %v3979
      %v4053 = vpack.c.bf16 %v3914, %v3913
      %v4054 = vpack.c.bf16 %v3996, %v3995
      %v4055 = vpack.c.bf16 %v4012, %v4011
      %v4056 = vpack.c.bf16 %v4028, %v4027
      %v4057 = vpack.c.bf16 %v4044, %v4043
      %v4058 = vld [vmem:[%s47] sm:$0xff]
      %v4059 = vld [vmem:[%s47 + $0x8] sm:$0xff]
      %v4060 = vld [vmem:[%s47 + $0x10] sm:$0xff]
      %v4061 = vld [vmem:[%s47 + $0x18] sm:$0xff]
      %4063 = vset.pattern.permute.xlu0 0
      %4064 = vperm.xlu0 %4063, %v4058
      %v4065 = vpop.permute.xlu0 %4064
      %4068 = vset.pattern.permute.xlu0 0
      %4069 = vperm.xlu0 %4068, %v4059
      %v4070 = vpop.permute.xlu0 %4069
      %4073 = vset.pattern.permute.xlu0 0
      %4074 = vperm.xlu0 %4073, %v4060
      %v4075 = vpop.permute.xlu0 %4074
      %4078 = vset.pattern.permute.xlu0 0
      %4079 = vperm.xlu0 %4078, %v4061
      %v4080 = vpop.permute.xlu0 %4079
      %v4086 = vunpack.c.l.b16 %v4045
      %v4087 = vunpack.c.h.b16 %v4045
      %v4088 = vunpack.c.l.b16 %v4046
      %v4089 = vunpack.c.h.b16 %v4046
      %v4090 = vunpack.c.l.b16 %v4047
      %v4091 = vunpack.c.h.b16 %v4047
      %v4092 = vunpack.c.l.b16 %v4048
      %v4093 = vunpack.c.h.b16 %v4048
      %v4094 = vpack.c.b16 %v4088, %v4086
      %v4095 = vpack.c.b16 %v4089, %v4087
      %v4096 = vpack.c.b16 %v4092, %v4090
      %v4097 = vpack.c.b16 %v4093, %v4091
      %v4101 = vsel %vm1296, %v4095, 0
      %v4104 = vsel %vm1296, %v4097, 0
      %4106 = vmatprep.subr.bf16.mxu0 0
      %4107 = vmatpush1.bf16.msra.mxu0 %v4056
      %4108 = vmatprep.subr.bf16.mxu0 0
      %4109 = vmatpush1.bf16.msra.mxu0 %v4055
      %4110 = vmatprep.subr.bf16.mxu0 0
      %4111 = vmatpush1.bf16.msra.mxu0 %v4054
      %4112 = vmatprep.subr.bf16.mxu0 0
      %4113 = vmatpush1.bf16.msra.mxu0 %v4053
      %4114 = vmatprep.subr.bf16.mxu0 0
      %4115 = vmatpush1.bf16.msra.mxu0 %v4052
      %4116 = vmatprep.subr.bf16.mxu0 0
      %4117 = vmatpush1.bf16.msra.mxu0 %v4051
      %4118 = vmatprep.subr.bf16.mxu0 0
      %4119 = vmatpush1.bf16.msra.mxu0 %v4050
      %4120 = vmatprep.subr.bf16.mxu0 0
      %4121 = vmatpush1.bf16.msra.mxu0 %v4049
      %4122 = vmatprep.subr.bf16.mxu0 0
      %4123 = vmatpush2.bf16.msra.mxu0 0
      %4124 = vmatprep.subr.bf16.mxu0 0
      %4125 = vmatpush2.bf16.msra.mxu0 0
      %4126 = vmatprep.subr.bf16.mxu0 0
      %4127 = vmatpush2.bf16.msra.mxu0 0
      %4128 = vmatprep.subr.bf16.mxu0 0
      %4129 = vmatpush2.bf16.msra.mxu0 0
      %4130 = vmatprep.subr.bf16.mxu0 0
      %4131 = vmatpush2.bf16.msra.mxu0 0
      %4132 = vmatprep.subr.bf16.mxu0 0
      %4133 = vmatpush2.bf16.msra.mxu0 0
      %4134 = vmatprep.subr.bf16.mxu0 0
      %4135 = vmatpush2.bf16.msra.mxu0 0
      %4136 = vmatprep.subr.bf16.mxu0 0
      %4137 = vmatpush2.bf16.msra.mxu0 %v4057
      %4138 = vmatprep.mubr.bf16.mxu0 %v4101
      %4139 = vmatmul.mubr.bf16.gmra.mxu0 %v4094
      %v4140 = vpop.f32.mrf.mxu0
      %v4141 = vadd.f32 %v4065, %v4140
      %v4142 = vpop.f32.mrf.mxu0
      %v4143 = vpop.f32.mrf.mxu0
      %v4144 = vadd.f32 %v4070, %v4143
      %v4145 = vpop.f32.mrf.mxu0
      %4146 = vmatprep.mubr.bf16.mxu0 %v4104
      %4147 = vmatmul.mubr.bf16.gmra.mxu0 %v4096
      %v4148 = vpop.f32.mrf.mxu0
      %v4149 = vadd.f32 %v4075, %v4148
      %v4150 = vpop.f32.mrf.mxu0
      %v4151 = vpop.f32.mrf.mxu0
      %v4152 = vadd.f32 %v4080, %v4151
      %v4153 = vpop.f32.mrf.mxu0
      %4154 = vdwg.mxu0
      %v4155 = vmax.f32 %v4141, 0.0
      %v4156 = vmax.f32 %v4144, 0.0
      %v4157 = vmax.f32 %v4149, 0.0
      %v4158 = vmax.f32 %v4152, 0.0
      %4163 = vrot.lane.b32.xlu0 %v4155, 65
      %v4164 = vpop.permute.xlu0 %4163
      %4165 = vrot.lane.b32.xlu0 %v4156, 65
      %v4166 = vpop.permute.xlu0 %4165
      %4167 = vrot.lane.b32.xlu0 %v4157, 65
      %v4168 = vpop.permute.xlu0 %4167
      %4169 = vrot.lane.b32.xlu0 %v4158, 65
      %v4170 = vpop.permute.xlu0 %4169
      %4175 = vrot.lane.b32.xlu0 %v4155, 1
      %v4176 = vpop.permute.xlu0 %4175
      %4177 = vrot.lane.b32.xlu0 %v4156, 1
      %v4178 = vpop.permute.xlu0 %4177
      %4179 = vrot.lane.b32.xlu0 %v4157, 1
      %v4180 = vpop.permute.xlu0 %4179
      %4181 = vrot.lane.b32.xlu0 %v4158, 1
      %v4182 = vpop.permute.xlu0 %4181
      %v4187 = vsel %vm1330, %v4164, %v4176
      %v4188 = vsel %vm1330, %v4166, %v4178
      %v4189 = vsel %vm1330, %v4168, %v4180
      %v4190 = vsel %vm1330, %v4170, %v4182
      %v4191 = vmul.f32 %v4187, %v2048
      %v4192 = vmul.f32 %v4188, %v2048
      %v4193 = vmul.f32 %v4189, %v2048
      %v4194 = vmul.f32 %v4190, %v2048
      %4195 = vrot.lane.b32.xlu0 %v4155, 72
      %v4196 = vpop.permute.xlu0 %4195
      %4197 = vrot.lane.b32.xlu0 %v4156, 72
      %v4198 = vpop.permute.xlu0 %4197
      %4199 = vrot.lane.b32.xlu0 %v4157, 72
      %v4200 = vpop.permute.xlu0 %4199
      %4201 = vrot.lane.b32.xlu0 %v4158, 72
      %v4202 = vpop.permute.xlu0 %4201
      %4207 = vrot.lane.b32.xlu0 %v4155, 8
      %v4208 = vpop.permute.xlu0 %4207
      %4209 = vrot.lane.b32.xlu0 %v4156, 8
      %v4210 = vpop.permute.xlu0 %4209
      %4211 = vrot.lane.b32.xlu0 %v4157, 8
      %v4212 = vpop.permute.xlu0 %4211
      %4213 = vrot.lane.b32.xlu0 %v4158, 8
      %v4214 = vpop.permute.xlu0 %4213
      %v4219 = vsel %vm2018, %v4196, %v4208
      %v4220 = vsel %vm2018, %v4198, %v4210
      %v4221 = vsel %vm2018, %v4200, %v4212
      %v4222 = vsel %vm2018, %v4202, %v4214
      %v4223 = vmul.f32 %v4219, %v2023
      %v4224 = vmul.f32 %v4220, %v2023
      %v4225 = vmul.f32 %v4221, %v2023
      %v4226 = vmul.f32 %v4222, %v2023
      %4227 = vrot.lane.b32.xlu0 %v4155, 73
      %v4228 = vpop.permute.xlu0 %4227
      %4229 = vrot.lane.b32.xlu0 %v4156, 73
      %v4230 = vpop.permute.xlu0 %4229
      %4231 = vrot.lane.b32.xlu0 %v4157, 73
      %v4232 = vpop.permute.xlu0 %4231
      %4233 = vrot.lane.b32.xlu0 %v4158, 73
      %v4234 = vpop.permute.xlu0 %4233
      %4239 = vrot.lane.b32.xlu0 %v4155, 9
      %v4240 = vpop.permute.xlu0 %4239
      %4241 = vrot.lane.b32.xlu0 %v4156, 9
      %v4242 = vpop.permute.xlu0 %4241
      %4243 = vrot.lane.b32.xlu0 %v4157, 9
      %v4244 = vpop.permute.xlu0 %4243
      %4245 = vrot.lane.b32.xlu0 %v4158, 9
      %v4246 = vpop.permute.xlu0 %4245
      %v4251 = vsel %vm1473, %v4228, %v4240
      %v4252 = vsel %vm1473, %v4230, %v4242
      %v4253 = vsel %vm1473, %v4232, %v4244
      %v4254 = vsel %vm1473, %v4234, %v4246
      %v4255 = vmul.f32 %v4251, %v2010
      %v4256 = vmul.f32 %v4252, %v2010
      %v4257 = vmul.f32 %v4253, %v2010
      %v4258 = vmul.f32 %v4254, %v2010
      %v4259 = vld [vmem:[%s49] sm:$0xf]
      %v4260 = vpack.c.bf16 %v4156, %v4155
      %v4261 = vpack.c.bf16 %v4158, %v4157
      %v4262 = vpack.c.bf16 %v4192, %v4191
      %v4263 = vpack.c.bf16 %v4194, %v4193
      %v4264 = vpack.c.bf16 %v4224, %v4223
      %v4265 = vpack.c.bf16 %v4226, %v4225
      %v4266 = vpack.c.bf16 %v4256, %v4255
      %v4267 = vpack.c.bf16 %v4258, %v4257
      %4268 = vmatprep.subr.bf16.mxu0 0
      %4269 = vmatpush1.bf16.msra.mxu0 %v4267
      %4270 = vmatprep.subr.bf16.mxu0 0
      %4271 = vmatpush1.bf16.msra.mxu0 %v4266
      %4272 = vmatprep.subr.bf16.mxu0 0
      %4273 = vmatpush1.bf16.msra.mxu0 %v4265
      %4274 = vmatprep.subr.bf16.mxu0 0
      %4275 = vmatpush1.bf16.msra.mxu0 %v4264
      %4276 = vmatprep.subr.bf16.mxu0 0
      %4277 = vmatpush1.bf16.msra.mxu0 %v4263
      %4278 = vmatprep.subr.bf16.mxu0 0
      %4279 = vmatpush1.bf16.msra.mxu0 %v4262
      %4280 = vmatprep.subr.bf16.mxu0 0
      %4281 = vmatpush1.bf16.msra.mxu0 %v4261
      %4282 = vmatprep.subr.bf16.mxu0 0
      %4283 = vmatpush1.bf16.msra.mxu0 %v4260
      %4284 = vmatprep.subr.bf16.mxu0 0
      %4285 = vmatpush2.bf16.msra.mxu0 0
      %4286 = vmatprep.subr.bf16.mxu0 0
      %4287 = vmatpush2.bf16.msra.mxu0 0
      %4288 = vmatprep.subr.bf16.mxu0 0
      %4289 = vmatpush2.bf16.msra.mxu0 0
      %4290 = vmatprep.subr.bf16.mxu0 0
      %4291 = vmatpush2.bf16.msra.mxu0 0
      %4292 = vmatprep.subr.bf16.mxu0 0
      %4293 = vmatpush2.bf16.msra.mxu0 0
      %4294 = vmatprep.subr.bf16.mxu0 0
      %4295 = vmatpush2.bf16.msra.mxu0 0
      %4296 = vmatprep.subr.bf16.mxu0 0
      %4297 = vmatpush2.bf16.msra.mxu0 0
      %4298 = vmatprep.subr.bf16.mxu0 0
      %4299 = vmatpush2.bf16.msra.mxu0 0
      %4300 = vmatprep.mubr.bf16.mxu0 0
      %4301 = vmatmul.mubr.bf16.gmra.mxu0 %v4259
      %v4302 = vpop.f32.mrf.mxu0
      %v4303 = vadd.f32 0.0, %v4302
      %v4304 = vpop.f32.mrf.mxu0
      %v4305 = vpop.f32.mrf.mxu0
      %v4306 = vpop.f32.mrf.mxu0
      %4307 = vdwg.mxu0
      %v4308 = vpack.c.bf16 %v4303, %v4303
      %v4309 = vld [vmem:[%s83] sm:$0xff]
      %v4310 = vld [vmem:[%s83 + $0x8] sm:$0xff]
      %v4311 = vld [vmem:[%s83 + $0x10] sm:$0xff]
      %v4312 = vld [vmem:[%s83 + $0x18] sm:$0xff]
      %v4313 = vld [vmem:[%s83 + $0x20] sm:$0xff]
      %v4314 = vld [vmem:[%s83 + $0x28] sm:$0xff]
      %v4315 = vld [vmem:[%s83 + $0x30] sm:$0xff]
      %v4316 = vld [vmem:[%s83 + $0x38] sm:$0xff]
      %4317 = vrot.lane.b32.xlu0 %v4155, 127
      %v4318 = vpop.permute.xlu0 %4317
      %4319 = vrot.lane.b32.xlu0 %v4156, 127
      %v4320 = vpop.permute.xlu0 %4319
      %4321 = vrot.lane.b32.xlu0 %v4157, 127
      %v4322 = vpop.permute.xlu0 %4321
      %4323 = vrot.lane.b32.xlu0 %v4158, 127
      %v4324 = vpop.permute.xlu0 %4323
      %4329 = vrot.lane.b32.xlu0 %v4155, 63
      %v4330 = vpop.permute.xlu0 %4329
      %4331 = vrot.lane.b32.xlu0 %v4156, 63
      %v4332 = vpop.permute.xlu0 %4331
      %4333 = vrot.lane.b32.xlu0 %v4157, 63
      %v4334 = vpop.permute.xlu0 %4333
      %4335 = vrot.lane.b32.xlu0 %v4158, 63
      %v4336 = vpop.permute.xlu0 %4335
      %v4341 = vsel %vm2056, %v4318, %v4330
      %v4342 = vsel %vm2056, %v4320, %v4332
      %v4343 = vsel %vm2056, %v4322, %v4334
      %v4344 = vsel %vm2056, %v4324, %v4336
      %v4345 = vmul.f32 %v4341, %v2061
      %v4346 = vmul.f32 %v4342, %v2061
      %v4347 = vmul.f32 %v4343, %v2061
      %v4348 = vmul.f32 %v4344, %v2061
      %4349 = vrot.lane.b32.xlu0 %v4155, 71
      %v4350 = vpop.permute.xlu0 %4349
      %4351 = vrot.lane.b32.xlu0 %v4156, 71
      %v4352 = vpop.permute.xlu0 %4351
      %4353 = vrot.lane.b32.xlu0 %v4157, 71
      %v4354 = vpop.permute.xlu0 %4353
      %4355 = vrot.lane.b32.xlu0 %v4158, 71
      %v4356 = vpop.permute.xlu0 %4355
      %4361 = vrot.lane.b32.xlu0 %v4155, 7
      %v4362 = vpop.permute.xlu0 %4361
      %4363 = vrot.lane.b32.xlu0 %v4156, 7
      %v4364 = vpop.permute.xlu0 %4363
      %4365 = vrot.lane.b32.xlu0 %v4157, 7
      %v4366 = vpop.permute.xlu0 %4365
      %4367 = vrot.lane.b32.xlu0 %v4158, 7
      %v4368 = vpop.permute.xlu0 %4367
      %v4373 = vsel %vm2031, %v4350, %v4362
      %v4374 = vsel %vm2031, %v4352, %v4364
      %v4375 = vsel %vm2031, %v4354, %v4366
      %v4376 = vsel %vm2031, %v4356, %v4368
      %v4377 = vmul.f32 %v4373, %v2036
      %v4378 = vmul.f32 %v4374, %v2036
      %v4379 = vmul.f32 %v4375, %v2036
      %v4380 = vmul.f32 %v4376, %v2036
      %s4381 = scalar_lea.vmem %s49, 4
      %v4382 = vld [vmem:[%s4381] sm:$0xf]
      %v4383 = vpack.c.bf16 %v4346, %v4345
      %v4384 = vpack.c.bf16 %v4348, %v4347
      %v4385 = vpack.c.bf16 %v4378, %v4377
      %v4386 = vpack.c.bf16 %v4380, %v4379
      %4387 = vmatprep.subr.bf16.mxu0 0
      %4388 = vmatpush1.bf16.msra.mxu0 %v4265
      %4389 = vmatprep.subr.bf16.mxu0 0
      %4390 = vmatpush1.bf16.msra.mxu0 %v4264
      %4391 = vmatprep.subr.bf16.mxu0 0
      %4392 = vmatpush1.bf16.msra.mxu0 %v4386
      %4393 = vmatprep.subr.bf16.mxu0 0
      %4394 = vmatpush1.bf16.msra.mxu0 %v4385
      %4395 = vmatprep.subr.bf16.mxu0 0
      %4396 = vmatpush1.bf16.msra.mxu0 %v4261
      %4397 = vmatprep.subr.bf16.mxu0 0
      %4398 = vmatpush1.bf16.msra.mxu0 %v4260
      %4399 = vmatprep.subr.bf16.mxu0 0
      %4400 = vmatpush1.bf16.msra.mxu0 %v4384
      %4401 = vmatprep.subr.bf16.mxu0 0
      %4402 = vmatpush1.bf16.msra.mxu0 %v4383
      %4403 = vmatprep.subr.bf16.mxu0 0
      %4404 = vmatpush2.bf16.msra.mxu0 0
      %4405 = vmatprep.subr.bf16.mxu0 0
      %4406 = vmatpush2.bf16.msra.mxu0 0
      %4407 = vmatprep.subr.bf16.mxu0 0
      %4408 = vmatpush2.bf16.msra.mxu0 0
      %4409 = vmatprep.subr.bf16.mxu0 0
      %4410 = vmatpush2.bf16.msra.mxu0 0
      %4411 = vmatprep.subr.bf16.mxu0 0
      %4412 = vmatpush2.bf16.msra.mxu0 0
      %4413 = vmatprep.subr.bf16.mxu0 0
      %4414 = vmatpush2.bf16.msra.mxu0 0
      %4415 = vmatprep.subr.bf16.mxu0 0
      %4416 = vmatpush2.bf16.msra.mxu0 0
      %4417 = vmatprep.subr.bf16.mxu0 0
      %4418 = vmatpush2.bf16.msra.mxu0 0
      %4419 = vmatprep.mubr.bf16.mxu0 0
      %4420 = vmatmul.mubr.bf16.gmra.mxu0 %v4382
      %v4421 = vpop.f32.mrf.mxu0
      %v4422 = vadd.f32 0.0, %v4421
      %v4423 = vpop.f32.mrf.mxu0
      %v4424 = vpop.f32.mrf.mxu0
      %v4425 = vpop.f32.mrf.mxu0
      %4426 = vdwg.mxu0
      %v4427 = vpack.c.bf16 %v4422, %v4422
      %s4428 = scalar_lea.vmem %s83, 64
      %v4429 = vld [vmem:[%s4428] sm:$0xff]
      %v4430 = vld [vmem:[%s4428 + $0x8] sm:$0xff]
      %v4431 = vld [vmem:[%s4428 + $0x10] sm:$0xff]
      %v4432 = vld [vmem:[%s4428 + $0x18] sm:$0xff]
      %v4433 = vld [vmem:[%s4428 + $0x20] sm:$0xff]
      %v4434 = vld [vmem:[%s4428 + $0x28] sm:$0xff]
      %v4435 = vld [vmem:[%s4428 + $0x30] sm:$0xff]
      %v4436 = vld [vmem:[%s4428 + $0x38] sm:$0xff]
      %v4445 = vunpack.c.l.b16 %v4429
      %v4446 = vunpack.c.h.b16 %v4429
      %v4447 = vunpack.c.l.b16 %v4430
      %v4448 = vunpack.c.h.b16 %v4430
      %v4449 = vunpack.c.l.b16 %v4431
      %v4450 = vunpack.c.h.b16 %v4431
      %v4451 = vunpack.c.l.b16 %v4432
      %v4452 = vunpack.c.h.b16 %v4432
      %v4453 = vunpack.c.l.b16 %v4433
      %v4454 = vunpack.c.h.b16 %v4433
      %v4455 = vunpack.c.l.b16 %v4434
      %v4456 = vunpack.c.h.b16 %v4434
      %v4457 = vunpack.c.l.b16 %v4435
      %v4458 = vunpack.c.h.b16 %v4435
      %v4459 = vunpack.c.l.b16 %v4436
      %v4460 = vunpack.c.h.b16 %v4436
      %v4461 = vpack.c.b16 %v4447, %v4445
      %v4462 = vpack.c.b16 %v4448, %v4446
      %v4463 = vpack.c.b16 %v4451, %v4449
      %v4464 = vpack.c.b16 %v4452, %v4450
      %v4465 = vpack.c.b16 %v4455, %v4453
      %v4466 = vpack.c.b16 %v4456, %v4454
      %v4467 = vpack.c.b16 %v4459, %v4457
      %v4468 = vpack.c.b16 %v4460, %v4458
      %v4478 = vsel %vm2395, %v4427, 0
      %4480 = vmatprep.subr.bf16.mxu0 0
      %4481 = vmatpush1.bf16.msra.mxu0 0
      %4482 = vmatprep.subr.bf16.mxu0 0
      %4483 = vmatpush1.bf16.msra.mxu0 0
      %4484 = vmatprep.subr.bf16.mxu0 0
      %4485 = vmatpush1.bf16.msra.mxu0 0
      %4486 = vmatprep.subr.bf16.mxu0 0
      %4487 = vmatpush1.bf16.msra.mxu0 0
      %4488 = vmatprep.subr.bf16.mxu0 %v4468
      %4489 = vmatpush1.bf16.msra.mxu0 %v4467
      %4490 = vmatprep.subr.bf16.mxu0 %v4466
      %4491 = vmatpush1.bf16.msra.mxu0 %v4465
      %4492 = vmatprep.subr.bf16.mxu0 %v4464
      %4493 = vmatpush1.bf16.msra.mxu0 %v4463
      %4494 = vmatprep.subr.bf16.mxu0 %v4462
      %4495 = vmatpush1.bf16.msra.mxu0 %v4461
      %4496 = vmatprep.subr.bf16.mxu0 0
      %4497 = vmatpush2.bf16.msra.mxu0 0
      %4498 = vmatprep.subr.bf16.mxu0 0
      %4499 = vmatpush2.bf16.msra.mxu0 0
      %4500 = vmatprep.subr.bf16.mxu0 0
      %4501 = vmatpush2.bf16.msra.mxu0 0
      %4502 = vmatprep.subr.bf16.mxu0 0
      %4503 = vmatpush2.bf16.msra.mxu0 0
      %4504 = vmatprep.subr.bf16.mxu0 0
      %4505 = vmatpush2.bf16.msra.mxu0 0
      %4506 = vmatprep.subr.bf16.mxu0 0
      %4507 = vmatpush2.bf16.msra.mxu0 0
      %4508 = vmatprep.subr.bf16.mxu0 0
      %4509 = vmatpush2.bf16.msra.mxu0 0
      %4510 = vmatprep.subr.bf16.mxu0 0
      %4511 = vmatpush2.bf16.msra.mxu0 0
      %4512 = vmatprep.mubr.bf16.mxu0 0
      %4513 = vmatmul.mubr.bf16.gmra.mxu0 %v4478
      %v4514 = vpop.f32.mrf.mxu0
      %v4515 = vadd.f32 0.0, %v4514
      %v4516 = vpop.f32.mrf.mxu0
      %v4517 = vadd.f32 0.0, %v4516
      %v4518 = vpop.f32.mrf.mxu0
      %v4519 = vpop.f32.mrf.mxu0
      %4520 = vdwg.mxu0
      %v4529 = vunpack.c.l.b16 %v4309
      %v4530 = vunpack.c.h.b16 %v4309
      %v4531 = vunpack.c.l.b16 %v4310
      %v4532 = vunpack.c.h.b16 %v4310
      %v4533 = vunpack.c.l.b16 %v4311
      %v4534 = vunpack.c.h.b16 %v4311
      %v4535 = vunpack.c.l.b16 %v4312
      %v4536 = vunpack.c.h.b16 %v4312
      %v4537 = vunpack.c.l.b16 %v4313
      %v4538 = vunpack.c.h.b16 %v4313
      %v4539 = vunpack.c.l.b16 %v4314
      %v4540 = vunpack.c.h.b16 %v4314
      %v4541 = vunpack.c.l.b16 %v4315
      %v4542 = vunpack.c.h.b16 %v4315
      %v4543 = vunpack.c.l.b16 %v4316
      %v4544 = vunpack.c.h.b16 %v4316
      %v4545 = vpack.c.b16 %v4531, %v4529
      %v4546 = vpack.c.b16 %v4532, %v4530
      %v4547 = vpack.c.b16 %v4535, %v4533
      %v4548 = vpack.c.b16 %v4536, %v4534
      %v4549 = vpack.c.b16 %v4539, %v4537
      %v4550 = vpack.c.b16 %v4540, %v4538
      %v4551 = vpack.c.b16 %v4543, %v4541
      %v4552 = vpack.c.b16 %v4544, %v4542
      %v4562 = vsel %vm2395, %v4308, 0
      %4564 = vmatprep.subr.bf16.mxu0 0
      %4565 = vmatpush1.bf16.msra.mxu0 0
      %4566 = vmatprep.subr.bf16.mxu0 0
      %4567 = vmatpush1.bf16.msra.mxu0 0
      %4568 = vmatprep.subr.bf16.mxu0 0
      %4569 = vmatpush1.bf16.msra.mxu0 0
      %4570 = vmatprep.subr.bf16.mxu0 0
      %4571 = vmatpush1.bf16.msra.mxu0 0
      %4572 = vmatprep.subr.bf16.mxu0 %v4552
      %4573 = vmatpush1.bf16.msra.mxu0 %v4551
      %4574 = vmatprep.subr.bf16.mxu0 %v4550
      %4575 = vmatpush1.bf16.msra.mxu0 %v4549
      %4576 = vmatprep.subr.bf16.mxu0 %v4548
      %4577 = vmatpush1.bf16.msra.mxu0 %v4547
      %4578 = vmatprep.subr.bf16.mxu0 %v4546
      %4579 = vmatpush1.bf16.msra.mxu0 %v4545
      %4580 = vmatprep.subr.bf16.mxu0 0
      %4581 = vmatpush2.bf16.msra.mxu0 0
      %4582 = vmatprep.subr.bf16.mxu0 0
      %4583 = vmatpush2.bf16.msra.mxu0 0
      %4584 = vmatprep.subr.bf16.mxu0 0
      %4585 = vmatpush2.bf16.msra.mxu0 0
      %4586 = vmatprep.subr.bf16.mxu0 0
      %4587 = vmatpush2.bf16.msra.mxu0 0
      %4588 = vmatprep.subr.bf16.mxu0 0
      %4589 = vmatpush2.bf16.msra.mxu0 0
      %4590 = vmatprep.subr.bf16.mxu0 0
      %4591 = vmatpush2.bf16.msra.mxu0 0
      %4592 = vmatprep.subr.bf16.mxu0 0
      %4593 = vmatpush2.bf16.msra.mxu0 0
      %4594 = vmatprep.subr.bf16.mxu0 0
      %4595 = vmatpush2.bf16.msra.mxu0 0
      %4596 = vmatprep.mubr.bf16.mxu0 0
      %4597 = vmatmul.mubr.bf16.gmra.mxu0 %v4562
      %v4598 = vpop.f32.mrf.mxu0
      %v4599 = vadd.f32 %v4515, %v4598
      %v4600 = vpop.f32.mrf.mxu0
      %v4601 = vadd.f32 %v4517, %v4600
      %v4602 = vpop.f32.mrf.mxu0
      %v4603 = vpop.f32.mrf.mxu0
      %4604 = vdwg.mxu0
      %4605 = vrot.lane.b32.xlu0 %v4155, 120
      %v4606 = vpop.permute.xlu0 %4605
      %4607 = vrot.lane.b32.xlu0 %v4156, 120
      %v4608 = vpop.permute.xlu0 %4607
      %4609 = vrot.lane.b32.xlu0 %v4157, 120
      %v4610 = vpop.permute.xlu0 %4609
      %4611 = vrot.lane.b32.xlu0 %v4158, 120
      %v4612 = vpop.permute.xlu0 %4611
      %4617 = vrot.lane.b32.xlu0 %v4155, 56
      %v4618 = vpop.permute.xlu0 %4617
      %4619 = vrot.lane.b32.xlu0 %v4156, 56
      %v4620 = vpop.permute.xlu0 %4619
      %4621 = vrot.lane.b32.xlu0 %v4157, 56
      %v4622 = vpop.permute.xlu0 %4621
      %4623 = vrot.lane.b32.xlu0 %v4158, 56
      %v4624 = vpop.permute.xlu0 %4623
      %v4629 = vsel %vm2082, %v4606, %v4618
      %v4630 = vsel %vm2082, %v4608, %v4620
      %v4631 = vsel %vm2082, %v4610, %v4622
      %v4632 = vsel %vm2082, %v4612, %v4624
      %v4633 = vmul.f32 %v4629, %v2087
      %v4634 = vmul.f32 %v4630, %v2087
      %v4635 = vmul.f32 %v4631, %v2087
      %v4636 = vmul.f32 %v4632, %v2087
      %4637 = vrot.lane.b32.xlu0 %v4155, 121
      %v4638 = vpop.permute.xlu0 %4637
      %4639 = vrot.lane.b32.xlu0 %v4156, 121
      %v4640 = vpop.permute.xlu0 %4639
      %4641 = vrot.lane.b32.xlu0 %v4157, 121
      %v4642 = vpop.permute.xlu0 %4641
      %4643 = vrot.lane.b32.xlu0 %v4158, 121
      %v4644 = vpop.permute.xlu0 %4643
      %4649 = vrot.lane.b32.xlu0 %v4155, 57
      %v4650 = vpop.permute.xlu0 %4649
      %4651 = vrot.lane.b32.xlu0 %v4156, 57
      %v4652 = vpop.permute.xlu0 %4651
      %4653 = vrot.lane.b32.xlu0 %v4157, 57
      %v4654 = vpop.permute.xlu0 %4653
      %4655 = vrot.lane.b32.xlu0 %v4158, 57
      %v4656 = vpop.permute.xlu0 %4655
      %v4661 = vsel %vm2069, %v4638, %v4650
      %v4662 = vsel %vm2069, %v4640, %v4652
      %v4663 = vsel %vm2069, %v4642, %v4654
      %v4664 = vsel %vm2069, %v4644, %v4656
      %v4665 = vmul.f32 %v4661, %v2074
      %v4666 = vmul.f32 %v4662, %v2074
      %v4667 = vmul.f32 %v4663, %v2074
      %v4668 = vmul.f32 %v4664, %v2074
      %s4669 = scalar_lea.vmem %s49, 8
      %v4670 = vld [vmem:[%s4669] sm:$0xf]
      %v4671 = vpack.c.bf16 %v4634, %v4633
      %v4672 = vpack.c.bf16 %v4636, %v4635
      %v4673 = vpack.c.bf16 %v4666, %v4665
      %v4674 = vpack.c.bf16 %v4668, %v4667
      %4675 = vmatprep.subr.bf16.mxu0 0
      %4676 = vmatpush1.bf16.msra.mxu0 %v4263
      %4677 = vmatprep.subr.bf16.mxu0 0
      %4678 = vmatpush1.bf16.msra.mxu0 %v4262
      %4679 = vmatprep.subr.bf16.mxu0 0
      %4680 = vmatpush1.bf16.msra.mxu0 %v4261
      %4681 = vmatprep.subr.bf16.mxu0 0
      %4682 = vmatpush1.bf16.msra.mxu0 %v4260
      %4683 = vmatprep.subr.bf16.mxu0 0
      %4684 = vmatpush1.bf16.msra.mxu0 %v4674
      %4685 = vmatprep.subr.bf16.mxu0 0
      %4686 = vmatpush1.bf16.msra.mxu0 %v4673
      %4687 = vmatprep.subr.bf16.mxu0 0
      %4688 = vmatpush1.bf16.msra.mxu0 %v4672
      %4689 = vmatprep.subr.bf16.mxu0 0
      %4690 = vmatpush1.bf16.msra.mxu0 %v4671
      %4691 = vmatprep.subr.bf16.mxu0 0
      %4692 = vmatpush2.bf16.msra.mxu0 0
      %4693 = vmatprep.subr.bf16.mxu0 0
      %4694 = vmatpush2.bf16.msra.mxu0 0
      %4695 = vmatprep.subr.bf16.mxu0 0
      %4696 = vmatpush2.bf16.msra.mxu0 0
      %4697 = vmatprep.subr.bf16.mxu0 0
      %4698 = vmatpush2.bf16.msra.mxu0 0
      %4699 = vmatprep.subr.bf16.mxu0 0
      %4700 = vmatpush2.bf16.msra.mxu0 0
      %4701 = vmatprep.subr.bf16.mxu0 0
      %4702 = vmatpush2.bf16.msra.mxu0 0
      %4703 = vmatprep.subr.bf16.mxu0 0
      %4704 = vmatpush2.bf16.msra.mxu0 0
      %4705 = vmatprep.subr.bf16.mxu0 0
      %4706 = vmatpush2.bf16.msra.mxu0 0
      %4707 = vmatprep.mubr.bf16.mxu0 0
      %4708 = vmatmul.mubr.bf16.gmra.mxu0 %v4670
      %v4709 = vpop.f32.mrf.mxu0
      %v4710 = vadd.f32 0.0, %v4709
      %v4711 = vpop.f32.mrf.mxu0
      %v4712 = vpop.f32.mrf.mxu0
      %v4713 = vpop.f32.mrf.mxu0
      %4714 = vdwg.mxu0
      %v4715 = vpack.c.bf16 %v4710, %v4710
      %s4716 = scalar_lea.vmem %s83, 128
      %v4717 = vld [vmem:[%s4716] sm:$0xff]
      %v4718 = vld [vmem:[%s4716 + $0x8] sm:$0xff]
      %v4719 = vld [vmem:[%s4716 + $0x10] sm:$0xff]
      %v4720 = vld [vmem:[%s4716 + $0x18] sm:$0xff]
      %v4721 = vld [vmem:[%s4716 + $0x20] sm:$0xff]
      %v4722 = vld [vmem:[%s4716 + $0x28] sm:$0xff]
      %v4723 = vld [vmem:[%s4716 + $0x30] sm:$0xff]
      %v4724 = vld [vmem:[%s4716 + $0x38] sm:$0xff]
      %v4733 = vunpack.c.l.b16 %v4717
      %v4734 = vunpack.c.h.b16 %v4717
      %v4735 = vunpack.c.l.b16 %v4718
      %v4736 = vunpack.c.h.b16 %v4718
      %v4737 = vunpack.c.l.b16 %v4719
      %v4738 = vunpack.c.h.b16 %v4719
      %v4739 = vunpack.c.l.b16 %v4720
      %v4740 = vunpack.c.h.b16 %v4720
      %v4741 = vunpack.c.l.b16 %v4721
      %v4742 = vunpack.c.h.b16 %v4721
      %v4743 = vunpack.c.l.b16 %v4722
      %v4744 = vunpack.c.h.b16 %v4722
      %v4745 = vunpack.c.l.b16 %v4723
      %v4746 = vunpack.c.h.b16 %v4723
      %v4747 = vunpack.c.l.b16 %v4724
      %v4748 = vunpack.c.h.b16 %v4724
      %v4749 = vpack.c.b16 %v4735, %v4733
      %v4750 = vpack.c.b16 %v4736, %v4734
      %v4751 = vpack.c.b16 %v4739, %v4737
      %v4752 = vpack.c.b16 %v4740, %v4738
      %v4753 = vpack.c.b16 %v4743, %v4741
      %v4754 = vpack.c.b16 %v4744, %v4742
      %v4755 = vpack.c.b16 %v4747, %v4745
      %v4756 = vpack.c.b16 %v4748, %v4746
      %v4766 = vsel %vm2395, %v4715, 0
      %4768 = vmatprep.subr.bf16.mxu0 0
      %4769 = vmatpush1.bf16.msra.mxu0 0
      %4770 = vmatprep.subr.bf16.mxu0 0
      %4771 = vmatpush1.bf16.msra.mxu0 0
      %4772 = vmatprep.subr.bf16.mxu0 0
      %4773 = vmatpush1.bf16.msra.mxu0 0
      %4774 = vmatprep.subr.bf16.mxu0 0
      %4775 = vmatpush1.bf16.msra.mxu0 0
      %4776 = vmatprep.subr.bf16.mxu0 %v4756
      %4777 = vmatpush1.bf16.msra.mxu0 %v4755
      %4778 = vmatprep.subr.bf16.mxu0 %v4754
      %4779 = vmatpush1.bf16.msra.mxu0 %v4753
      %4780 = vmatprep.subr.bf16.mxu0 %v4752
      %4781 = vmatpush1.bf16.msra.mxu0 %v4751
      %4782 = vmatprep.subr.bf16.mxu0 %v4750
      %4783 = vmatpush1.bf16.msra.mxu0 %v4749
      %4784 = vmatprep.subr.bf16.mxu0 0
      %4785 = vmatpush2.bf16.msra.mxu0 0
      %4786 = vmatprep.subr.bf16.mxu0 0
      %4787 = vmatpush2.bf16.msra.mxu0 0
      %4788 = vmatprep.subr.bf16.mxu0 0
      %4789 = vmatpush2.bf16.msra.mxu0 0
      %4790 = vmatprep.subr.bf16.mxu0 0
      %4791 = vmatpush2.bf16.msra.mxu0 0
      %4792 = vmatprep.subr.bf16.mxu0 0
      %4793 = vmatpush2.bf16.msra.mxu0 0
      %4794 = vmatprep.subr.bf16.mxu0 0
      %4795 = vmatpush2.bf16.msra.mxu0 0
      %4796 = vmatprep.subr.bf16.mxu0 0
      %4797 = vmatpush2.bf16.msra.mxu0 0
      %4798 = vmatprep.subr.bf16.mxu0 0
      %4799 = vmatpush2.bf16.msra.mxu0 0
      %4800 = vmatprep.mubr.bf16.mxu0 0
      %4801 = vmatmul.mubr.bf16.gmra.mxu0 %v4766
      %v4802 = vpop.f32.mrf.mxu0
      %v4803 = vadd.f32 0.0, %v4802
      %v4804 = vpop.f32.mrf.mxu0
      %v4805 = vadd.f32 0.0, %v4804
      %v4806 = vpop.f32.mrf.mxu0
      %v4807 = vpop.f32.mrf.mxu0
      %4808 = vdwg.mxu0
      %v4809 = vadd.f32 %v4599, %v4803
      %v4810 = vadd.f32 %v4601, %v4805
      %4811 = vrot.lane.b32.xlu0 %v4155, 119
      %v4812 = vpop.permute.xlu0 %4811
      %4813 = vrot.lane.b32.xlu0 %v4156, 119
      %v4814 = vpop.permute.xlu0 %4813
      %4815 = vrot.lane.b32.xlu0 %v4157, 119
      %v4816 = vpop.permute.xlu0 %4815
      %4817 = vrot.lane.b32.xlu0 %v4158, 119
      %v4818 = vpop.permute.xlu0 %4817
      %4823 = vrot.lane.b32.xlu0 %v4155, 55
      %v4824 = vpop.permute.xlu0 %4823
      %4825 = vrot.lane.b32.xlu0 %v4156, 55
      %v4826 = vpop.permute.xlu0 %4825
      %4827 = vrot.lane.b32.xlu0 %v4157, 55
      %v4828 = vpop.permute.xlu0 %4827
      %4829 = vrot.lane.b32.xlu0 %v4158, 55
      %v4830 = vpop.permute.xlu0 %4829
      %v4835 = vsel %vm2095, %v4812, %v4824
      %v4836 = vsel %vm2095, %v4814, %v4826
      %v4837 = vsel %vm2095, %v4816, %v4828
      %v4838 = vsel %vm2095, %v4818, %v4830
      %v4839 = vmul.f32 %v4835, %v2100
      %v4840 = vmul.f32 %v4836, %v2100
      %v4841 = vmul.f32 %v4837, %v2100
      %v4842 = vmul.f32 %v4838, %v2100
      %s4843 = scalar_lea.vmem %s49, 12
      %v4844 = vld [vmem:[%s4843] sm:$0xf]
      %v4845 = vpack.c.bf16 %v4840, %v4839
      %v4846 = vpack.c.bf16 %v4842, %v4841
      %4847 = vmatprep.subr.bf16.mxu0 0
      %4848 = vmatpush1.bf16.msra.mxu0 %v4261
      %4849 = vmatprep.subr.bf16.mxu0 0
      %4850 = vmatpush1.bf16.msra.mxu0 %v4260
      %4851 = vmatprep.subr.bf16.mxu0 0
      %4852 = vmatpush1.bf16.msra.mxu0 %v4384
      %4853 = vmatprep.subr.bf16.mxu0 0
      %4854 = vmatpush1.bf16.msra.mxu0 %v4383
      %4855 = vmatprep.subr.bf16.mxu0 0
      %4856 = vmatpush1.bf16.msra.mxu0 %v4672
      %4857 = vmatprep.subr.bf16.mxu0 0
      %4858 = vmatpush1.bf16.msra.mxu0 %v4671
      %4859 = vmatprep.subr.bf16.mxu0 0
      %4860 = vmatpush1.bf16.msra.mxu0 %v4846
      %4861 = vmatprep.subr.bf16.mxu0 0
      %4862 = vmatpush1.bf16.msra.mxu0 %v4845
      %4863 = vmatprep.subr.bf16.mxu0 0
      %4864 = vmatpush2.bf16.msra.mxu0 0
      %4865 = vmatprep.subr.bf16.mxu0 0
      %4866 = vmatpush2.bf16.msra.mxu0 0
      %4867 = vmatprep.subr.bf16.mxu0 0
      %4868 = vmatpush2.bf16.msra.mxu0 0
      %4869 = vmatprep.subr.bf16.mxu0 0
      %4870 = vmatpush2.bf16.msra.mxu0 0
      %4871 = vmatprep.subr.bf16.mxu0 0
      %4872 = vmatpush2.bf16.msra.mxu0 0
      %4873 = vmatprep.subr.bf16.mxu0 0
      %4874 = vmatpush2.bf16.msra.mxu0 0
      %4875 = vmatprep.subr.bf16.mxu0 0
      %4876 = vmatpush2.bf16.msra.mxu0 0
      %4877 = vmatprep.subr.bf16.mxu0 0
      %4878 = vmatpush2.bf16.msra.mxu0 0
      %4879 = vmatprep.mubr.bf16.mxu0 0
      %4880 = vmatmul.mubr.bf16.gmra.mxu0 %v4844
      %v4881 = vpop.f32.mrf.mxu0
      %v4882 = vadd.f32 0.0, %v4881
      %v4883 = vpop.f32.mrf.mxu0
      %v4884 = vpop.f32.mrf.mxu0
      %v4885 = vpop.f32.mrf.mxu0
      %4886 = vdwg.mxu0
      %v4887 = vpack.c.bf16 %v4882, %v4882
      %s4888 = scalar_lea.vmem %s83, 192
      %v4889 = vld [vmem:[%s4888] sm:$0xff]
      %v4890 = vld [vmem:[%s4888 + $0x8] sm:$0xff]
      %v4891 = vld [vmem:[%s4888 + $0x10] sm:$0xff]
      %v4892 = vld [vmem:[%s4888 + $0x18] sm:$0xff]
      %v4893 = vld [vmem:[%s4888 + $0x20] sm:$0xff]
      %v4894 = vld [vmem:[%s4888 + $0x28] sm:$0xff]
      %v4895 = vld [vmem:[%s4888 + $0x30] sm:$0xff]
      %v4896 = vld [vmem:[%s4888 + $0x38] sm:$0xff]
      %v4905 = vunpack.c.l.b16 %v4889
      %v4906 = vunpack.c.h.b16 %v4889
      %v4907 = vunpack.c.l.b16 %v4890
      %v4908 = vunpack.c.h.b16 %v4890
      %v4909 = vunpack.c.l.b16 %v4891
      %v4910 = vunpack.c.h.b16 %v4891
      %v4911 = vunpack.c.l.b16 %v4892
      %v4912 = vunpack.c.h.b16 %v4892
      %v4913 = vunpack.c.l.b16 %v4893
      %v4914 = vunpack.c.h.b16 %v4893
      %v4915 = vunpack.c.l.b16 %v4894
      %v4916 = vunpack.c.h.b16 %v4894
      %v4917 = vunpack.c.l.b16 %v4895
      %v4918 = vunpack.c.h.b16 %v4895
      %v4919 = vunpack.c.l.b16 %v4896
      %v4920 = vunpack.c.h.b16 %v4896
      %v4921 = vpack.c.b16 %v4907, %v4905
      %v4922 = vpack.c.b16 %v4908, %v4906
      %v4923 = vpack.c.b16 %v4911, %v4909
      %v4924 = vpack.c.b16 %v4912, %v4910
      %v4925 = vpack.c.b16 %v4915, %v4913
      %v4926 = vpack.c.b16 %v4916, %v4914
      %v4927 = vpack.c.b16 %v4919, %v4917
      %v4928 = vpack.c.b16 %v4920, %v4918
      %v4938 = vsel %vm2395, %v4887, 0
      %4940 = vmatprep.subr.bf16.mxu0 0
      %4941 = vmatpush1.bf16.msra.mxu0 0
      %4942 = vmatprep.subr.bf16.mxu0 0
      %4943 = vmatpush1.bf16.msra.mxu0 0
      %4944 = vmatprep.subr.bf16.mxu0 0
      %4945 = vmatpush1.bf16.msra.mxu0 0
      %4946 = vmatprep.subr.bf16.mxu0 0
      %4947 = vmatpush1.bf16.msra.mxu0 0
      %4948 = vmatprep.subr.bf16.mxu0 %v4928
      %4949 = vmatpush1.bf16.msra.mxu0 %v4927
      %4950 = vmatprep.subr.bf16.mxu0 %v4926
      %4951 = vmatpush1.bf16.msra.mxu0 %v4925
      %4952 = vmatprep.subr.bf16.mxu0 %v4924
      %4953 = vmatpush1.bf16.msra.mxu0 %v4923
      %4954 = vmatprep.subr.bf16.mxu0 %v4922
      %4955 = vmatpush1.bf16.msra.mxu0 %v4921
      %4956 = vmatprep.subr.bf16.mxu0 0
      %4957 = vmatpush2.bf16.msra.mxu0 0
      %4958 = vmatprep.subr.bf16.mxu0 0
      %4959 = vmatpush2.bf16.msra.mxu0 0
      %4960 = vmatprep.subr.bf16.mxu0 0
      %4961 = vmatpush2.bf16.msra.mxu0 0
      %4962 = vmatprep.subr.bf16.mxu0 0
      %4963 = vmatpush2.bf16.msra.mxu0 0
      %4964 = vmatprep.subr.bf16.mxu0 0
      %4965 = vmatpush2.bf16.msra.mxu0 0
      %4966 = vmatprep.subr.bf16.mxu0 0
      %4967 = vmatpush2.bf16.msra.mxu0 0
      %4968 = vmatprep.subr.bf16.mxu0 0
      %4969 = vmatpush2.bf16.msra.mxu0 0
      %4970 = vmatprep.subr.bf16.mxu0 0
      %4971 = vmatpush2.bf16.msra.mxu0 0
      %4972 = vmatprep.mubr.bf16.mxu0 0
      %4973 = vmatmul.mubr.bf16.gmra.mxu0 %v4938
      %v4974 = vpop.f32.mrf.mxu0
      %v4975 = vadd.f32 0.0, %v4974
      %v4976 = vpop.f32.mrf.mxu0
      %v4977 = vadd.f32 0.0, %v4976
      %v4978 = vpop.f32.mrf.mxu0
      %v4979 = vpop.f32.mrf.mxu0
      %4980 = vdwg.mxu0
      %v4981 = vadd.f32 %v4809, %v4975
      %v4982 = vadd.f32 %v4810, %v4977
      %v4983 = vld [vmem:[%s51] sm:$0xff]
      %4985 = vset.pattern.permute.xlu0 0
      %4986 = vperm.xlu0 %4985, %v4983
      %v4987 = vpop.permute.xlu0 %4986
      %v4989 = vadd.f32 %v4981, %v4987
      %v4990 = vadd.f32 %v4982, %v4987
      %v4991 = vmax.f32 %v4989, 0.0
      %v4992 = vmax.f32 %v4990, 0.0
      %v4993 = vld [vmem:[%s53] sm:$0xf]
      %v4994 = vpack.c.bf16 %v4991, %v4991
      %v4995 = vpack.c.bf16 %v4992, %v4992
      %v4996 = vld [vmem:[%s55] sm:$0xf]
      %v4997 = vpack.c.bf16 %v1786, %v1786
      %v4998 = vpack.c.bf16 %v1787, %v1787
      %v5000 = vsel %vm2018, %v4996, 0
      %v5003 = vsel %vm1452, %v4997, 0
      %v5006 = vsel %vm1452, %v4998, 0
      %5008 = vmatprep.subr.bf16.mxu0 0
      %5009 = vmatpush1.bf16.msra.mxu0 0
      %5010 = vmatprep.subr.bf16.mxu0 0
      %5011 = vmatpush1.bf16.msra.mxu0 0
      %5012 = vmatprep.subr.bf16.mxu0 0
      %5013 = vmatpush1.bf16.msra.mxu0 0
      %5014 = vmatprep.subr.bf16.mxu0 0
      %5015 = vmatpush1.bf16.msra.mxu0 0
      %5016 = vmatprep.subr.bf16.mxu0 0
      %5017 = vmatpush1.bf16.msra.mxu0 0
      %5018 = vmatprep.subr.bf16.mxu0 0
      %5019 = vmatpush1.bf16.msra.mxu0 0
      %5020 = vmatprep.subr.bf16.mxu0 0
      %5021 = vmatpush1.bf16.msra.mxu0 0
      %5022 = vmatprep.subr.bf16.mxu0 %v5006
      %5023 = vmatpush1.bf16.msra.mxu0 %v5003
      %5024 = vmatprep.subr.bf16.mxu0 0
      %5025 = vmatpush2.bf16.msra.mxu0 0
      %5026 = vmatprep.subr.bf16.mxu0 0
      %5027 = vmatpush2.bf16.msra.mxu0 0
      %5028 = vmatprep.subr.bf16.mxu0 0
      %5029 = vmatpush2.bf16.msra.mxu0 0
      %5030 = vmatprep.subr.bf16.mxu0 0
      %5031 = vmatpush2.bf16.msra.mxu0 0
      %5032 = vmatprep.subr.bf16.mxu0 0
      %5033 = vmatpush2.bf16.msra.mxu0 0
      %5034 = vmatprep.subr.bf16.mxu0 0
      %5035 = vmatpush2.bf16.msra.mxu0 0
      %5036 = vmatprep.subr.bf16.mxu0 0
      %5037 = vmatpush2.bf16.msra.mxu0 0
      %5038 = vmatprep.subr.bf16.mxu0 0
      %5039 = vmatpush2.bf16.msra.mxu0 0
      %5040 = vmatprep.mubr.bf16.mxu0 0
      %5041 = vmatmul.mubr.bf16.gmra.mxu0 %v5000
      %v5042 = vpop.f32.mrf.mxu0
      %v5043 = vadd.f32 0.0, %v5042
      %v5044 = vpop.f32.mrf.mxu0
      %v5045 = vadd.f32 0.0, %v5044
      %v5046 = vpop.f32.mrf.mxu0
      %v5047 = vpop.f32.mrf.mxu0
      %5048 = vdwg.mxu0
      %v5050 = vsel %vm2018, %v4993, 0
      %v5053 = vsel %vm1452, %v4994, 0
      %v5056 = vsel %vm1452, %v4995, 0
      %5058 = vmatprep.subr.bf16.mxu0 0
      %5059 = vmatpush1.bf16.msra.mxu0 0
      %5060 = vmatprep.subr.bf16.mxu0 0
      %5061 = vmatpush1.bf16.msra.mxu0 0
      %5062 = vmatprep.subr.bf16.mxu0 0
      %5063 = vmatpush1.bf16.msra.mxu0 0
      %5064 = vmatprep.subr.bf16.mxu0 0
      %5065 = vmatpush1.bf16.msra.mxu0 0
      %5066 = vmatprep.subr.bf16.mxu0 0
      %5067 = vmatpush1.bf16.msra.mxu0 0
      %5068 = vmatprep.subr.bf16.mxu0 0
      %5069 = vmatpush1.bf16.msra.mxu0 0
      %5070 = vmatprep.subr.bf16.mxu0 0
      %5071 = vmatpush1.bf16.msra.mxu0 0
      %5072 = vmatprep.subr.bf16.mxu0 %v5056
      %5073 = vmatpush1.bf16.msra.mxu0 %v5053
      %5074 = vmatprep.subr.bf16.mxu0 0
      %5075 = vmatpush2.bf16.msra.mxu0 0
      %5076 = vmatprep.subr.bf16.mxu0 0
      %5077 = vmatpush2.bf16.msra.mxu0 0
      %5078 = vmatprep.subr.bf16.mxu0 0
      %5079 = vmatpush2.bf16.msra.mxu0 0
      %5080 = vmatprep.subr.bf16.mxu0 0
      %5081 = vmatpush2.bf16.msra.mxu0 0
      %5082 = vmatprep.subr.bf16.mxu0 0
      %5083 = vmatpush2.bf16.msra.mxu0 0
      %5084 = vmatprep.subr.bf16.mxu0 0
      %5085 = vmatpush2.bf16.msra.mxu0 0
      %5086 = vmatprep.subr.bf16.mxu0 0
      %5087 = vmatpush2.bf16.msra.mxu0 0
      %5088 = vmatprep.subr.bf16.mxu0 0
      %5089 = vmatpush2.bf16.msra.mxu0 0
      %5090 = vmatprep.mubr.bf16.mxu0 0
      %5091 = vmatmul.mubr.bf16.gmra.mxu0 %v5050
      %v5092 = vpop.f32.mrf.mxu0
      %v5093 = vadd.f32 %v5043, %v5092
      %v5094 = vpop.f32.mrf.mxu0
      %v5095 = vadd.f32 %v5045, %v5094
      %v5096 = vpop.f32.mrf.mxu0
      %v5097 = vpop.f32.mrf.mxu0
      %5098 = vdwg.mxu0
      %v5099 = vld [vmem:[%s57] sm:$0xff]
      %5101 = vset.pattern.permute.xlu0 0
      %5102 = vperm.xlu0 %5101, %v5099
      %v5103 = vpop.permute.xlu0 %5102
      %v5105 = vadd.f32 %v5093, %v5103
      %v5106 = vadd.f32 %v5095, %v5103
      %5108 = vrot.lane.b32.xlu0 %v5106, 17
      %v5109 = vpop.permute.xlu0 %5108
      %5112 = vrot.lane.b32.xlu0 %v5105, 17
      %v5113 = vpop.permute.xlu0 %5112
      %v5114 = vsel %vm1284, %v5113, %v5109
      %v5117 = vsel %vm1284, %v5109, %v5113
      %v5118 = vmul.f32 %v5117, %v1546
      %v5119 = vmul.f32 %v5114, %v1550
      %5120 = vrot.lane.b32.xlu0 %v5106, 16
      %v5121 = vpop.permute.xlu0 %5120
      %5123 = vrot.lane.b32.xlu0 %v5105, 16
      %v5124 = vpop.permute.xlu0 %5123
      %v5125 = vsel %vm1296, %v5124, %v5121
      %v5128 = vsel %vm1296, %v5121, %v5124
      %v5129 = vmul.f32 %v5128, %v1565
      %v5130 = vmul.f32 %v5125, %v1569
      %5131 = vrot.lane.b32.xlu0 %v5106, 15
      %v5132 = vpop.permute.xlu0 %5131
      %5134 = vrot.lane.b32.xlu0 %v5105, 15
      %v5135 = vpop.permute.xlu0 %5134
      %v5136 = vsel %vm1314, %v5135, %v5132
      %v5139 = vsel %vm1314, %v5132, %v5135
      %v5140 = vmul.f32 %v5139, %v1584
      %v5141 = vmul.f32 %v5136, %v1588
      %5142 = vrot.lane.b32.xlu0 %v5106, 1
      %v5143 = vpop.permute.xlu0 %5142
      %5145 = vrot.lane.b32.xlu0 %v5105, 1
      %v5146 = vpop.permute.xlu0 %5145
      %v5147 = vsel %vm1330, %v5146, %v5143
      %v5150 = vsel %vm1330, %v5143, %v5146
      %v5151 = vmul.f32 %v5150, %v1603
      %v5152 = vmul.f32 %v5147, %v1607
      %5153 = vrot.lane.b32.xlu0 %v5105, 127
      %v5154 = vpop.permute.xlu0 %5153
      %5155 = vrot.lane.b32.xlu0 %v5106, 127
      %v5156 = vpop.permute.xlu0 %5155
      %v5157 = vsel %vm1345, %v5154, %v5156
      %v5161 = vsel %vm1345, %v5156, %v5154
      %v5162 = vmul.f32 %v5157, %v1622
      %v5163 = vmul.f32 %v5161, %v1626
      %5164 = vrot.lane.b32.xlu0 %v5105, 113
      %v5165 = vpop.permute.xlu0 %5164
      %5166 = vrot.lane.b32.xlu0 %v5106, 113
      %v5167 = vpop.permute.xlu0 %5166
      %v5168 = vsel %vm1361, %v5165, %v5167
      %v5172 = vsel %vm1361, %v5167, %v5165
      %v5173 = vmul.f32 %v5168, %v1641
      %v5174 = vmul.f32 %v5172, %v1645
      %5175 = vrot.lane.b32.xlu0 %v5105, 112
      %v5176 = vpop.permute.xlu0 %5175
      %5177 = vrot.lane.b32.xlu0 %v5106, 112
      %v5178 = vpop.permute.xlu0 %5177
      %v5179 = vsel %vm1377, %v5176, %v5178
      %v5183 = vsel %vm1377, %v5178, %v5176
      %v5184 = vmul.f32 %v5179, %v1660
      %v5185 = vmul.f32 %v5183, %v1664
      %5186 = vrot.lane.b32.xlu0 %v5105, 111
      %v5187 = vpop.permute.xlu0 %5186
      %5188 = vrot.lane.b32.xlu0 %v5106, 111
      %v5189 = vpop.permute.xlu0 %5188
      %v5190 = vsel %vm1393, %v5187, %v5189
      %v5194 = vsel %vm1393, %v5189, %v5187
      %v5195 = vmul.f32 %v5190, %v1679
      %v5196 = vmul.f32 %v5194, %v1683
      %v5197 = vld [vmem:[%s59] sm:$0xf]
      %v5198 = vpack.c.bf16 %v5129, %v5118
      %v5199 = vpack.c.bf16 %v5130, %v5119
      %v5200 = vpack.c.bf16 %v5151, %v5140
      %v5201 = vpack.c.bf16 %v5152, %v5141
      %v5202 = vpack.c.bf16 %v5162, %v5105
      %v5203 = vpack.c.bf16 %v5163, %v5106
      %v5204 = vpack.c.bf16 %v5184, %v5173
      %v5205 = vpack.c.bf16 %v5185, %v5174
      %v5206 = vpack.c.bf16 %v5195, %v5195
      %v5207 = vpack.c.bf16 %v5196, %v5196
      %v5208 = vld [vmem:[%s61] sm:$0xff]
      %5210 = vset.pattern.permute.xlu0 0
      %5211 = vperm.xlu0 %5210, %v5208
      %v5212 = vpop.permute.xlu0 %5211
      %v5215 = vsel %vm2114, %v5197, 0
      %v5218 = vsel %vm1452, %v5206, 0
      %v5221 = vsel %vm1452, %v5207, 0
      %5223 = vmatprep.subr.bf16.mxu0 0
      %5224 = vmatpush1.bf16.msra.mxu0 0
      %5225 = vmatprep.subr.bf16.mxu0 0
      %5226 = vmatpush1.bf16.msra.mxu0 0
      %5227 = vmatprep.subr.bf16.mxu0 0
      %5228 = vmatpush1.bf16.msra.mxu0 0
      %5229 = vmatprep.subr.bf16.mxu0 %v5221
      %5230 = vmatpush1.bf16.msra.mxu0 %v5218
      %5231 = vmatprep.subr.bf16.mxu0 %v5205
      %5232 = vmatpush1.bf16.msra.mxu0 %v5204
      %5233 = vmatprep.subr.bf16.mxu0 %v5203
      %5234 = vmatpush1.bf16.msra.mxu0 %v5202
      %5235 = vmatprep.subr.bf16.mxu0 %v5201
      %5236 = vmatpush1.bf16.msra.mxu0 %v5200
      %5237 = vmatprep.subr.bf16.mxu0 %v5199
      %5238 = vmatpush1.bf16.msra.mxu0 %v5198
      %5239 = vmatprep.subr.bf16.mxu0 0
      %5240 = vmatpush2.bf16.msra.mxu0 0
      %5241 = vmatprep.subr.bf16.mxu0 0
      %5242 = vmatpush2.bf16.msra.mxu0 0
      %5243 = vmatprep.subr.bf16.mxu0 0
      %5244 = vmatpush2.bf16.msra.mxu0 0
      %5245 = vmatprep.subr.bf16.mxu0 0
      %5246 = vmatpush2.bf16.msra.mxu0 0
      %5247 = vmatprep.subr.bf16.mxu0 0
      %5248 = vmatpush2.bf16.msra.mxu0 0
      %5249 = vmatprep.subr.bf16.mxu0 0
      %5250 = vmatpush2.bf16.msra.mxu0 0
      %5251 = vmatprep.subr.bf16.mxu0 0
      %5252 = vmatpush2.bf16.msra.mxu0 0
      %5253 = vmatprep.subr.bf16.mxu0 0
      %5254 = vmatpush2.bf16.msra.mxu0 0
      %5255 = vmatprep.mubr.bf16.mxu0 0
      %5256 = vmatmul.mubr.bf16.gmra.mxu0 %v5215
      %v5257 = vpop.f32.mrf.mxu0
      %v5258 = vadd.f32 %v5212, %v5257
      %v5259 = vpop.f32.mrf.mxu0
      %v5260 = vadd.f32 %v5212, %v5259
      %v5261 = vpop.f32.mrf.mxu0
      %v5262 = vpop.f32.mrf.mxu0
      %5263 = vdwg.mxu0
      %v5264 = vmax.f32 %v5258, 0.0
      %v5265 = vmax.f32 %v5260, 0.0
      %5267 = vrot.lane.b32.xlu0 %v5265, 17
      %v5268 = vpop.permute.xlu0 %5267
      %5271 = vrot.lane.b32.xlu0 %v5264, 17
      %v5272 = vpop.permute.xlu0 %5271
      %v5273 = vsel %vm1284, %v5272, %v5268
      %v5276 = vsel %vm1284, %v5268, %v5272
      %v5277 = vmul.f32 %v5276, %v1546
      %v5278 = vmul.f32 %v5273, %v1550
      %5279 = vrot.lane.b32.xlu0 %v5265, 16
      %v5280 = vpop.permute.xlu0 %5279
      %5282 = vrot.lane.b32.xlu0 %v5264, 16
      %v5283 = vpop.permute.xlu0 %5282
      %v5284 = vsel %vm1296, %v5283, %v5280
      %v5287 = vsel %vm1296, %v5280, %v5283
      %v5288 = vmul.f32 %v5287, %v1565
      %v5289 = vmul.f32 %v5284, %v1569
      %5290 = vrot.lane.b32.xlu0 %v5265, 15
      %v5291 = vpop.permute.xlu0 %5290
      %5293 = vrot.lane.b32.xlu0 %v5264, 15
      %v5294 = vpop.permute.xlu0 %5293
      %v5295 = vsel %vm1314, %v5294, %v5291
      %v5298 = vsel %vm1314, %v5291, %v5294
      %v5299 = vmul.f32 %v5298, %v1584
      %v5300 = vmul.f32 %v5295, %v1588
      %5301 = vrot.lane.b32.xlu0 %v5265, 1
      %v5302 = vpop.permute.xlu0 %5301
      %5304 = vrot.lane.b32.xlu0 %v5264, 1
      %v5305 = vpop.permute.xlu0 %5304
      %v5306 = vsel %vm1330, %v5305, %v5302
      %v5309 = vsel %vm1330, %v5302, %v5305
      %v5310 = vmul.f32 %v5309, %v1603
      %v5311 = vmul.f32 %v5306, %v1607
      %5312 = vrot.lane.b32.xlu0 %v5264, 127
      %v5313 = vpop.permute.xlu0 %5312
      %5314 = vrot.lane.b32.xlu0 %v5265, 127
      %v5315 = vpop.permute.xlu0 %5314
      %v5316 = vsel %vm1345, %v5313, %v5315
      %v5320 = vsel %vm1345, %v5315, %v5313
      %v5321 = vmul.f32 %v5316, %v1622
      %v5322 = vmul.f32 %v5320, %v1626
      %5323 = vrot.lane.b32.xlu0 %v5264, 113
      %v5324 = vpop.permute.xlu0 %5323
      %5325 = vrot.lane.b32.xlu0 %v5265, 113
      %v5326 = vpop.permute.xlu0 %5325
      %v5327 = vsel %vm1361, %v5324, %v5326
      %v5331 = vsel %vm1361, %v5326, %v5324
      %v5332 = vmul.f32 %v5327, %v1641
      %v5333 = vmul.f32 %v5331, %v1645
      %5334 = vrot.lane.b32.xlu0 %v5264, 112
      %v5335 = vpop.permute.xlu0 %5334
      %5336 = vrot.lane.b32.xlu0 %v5265, 112
      %v5337 = vpop.permute.xlu0 %5336
      %v5338 = vsel %vm1377, %v5335, %v5337
      %v5342 = vsel %vm1377, %v5337, %v5335
      %v5343 = vmul.f32 %v5338, %v1660
      %v5344 = vmul.f32 %v5342, %v1664
      %5345 = vrot.lane.b32.xlu0 %v5264, 111
      %v5346 = vpop.permute.xlu0 %5345
      %5347 = vrot.lane.b32.xlu0 %v5265, 111
      %v5348 = vpop.permute.xlu0 %5347
      %v5349 = vsel %vm1393, %v5346, %v5348
      %v5353 = vsel %vm1393, %v5348, %v5346
      %v5354 = vmul.f32 %v5349, %v1679
      %v5355 = vmul.f32 %v5353, %v1683
      %v5356 = vld [vmem:[%s63] sm:$0xf]
      %v5357 = vld [vmem:[%s63 + $0x4] sm:$0xf]
      %v5358 = vpack.c.bf16 %v5288, %v5277
      %v5359 = vpack.c.bf16 %v5289, %v5278
      %v5360 = vpack.c.bf16 %v5310, %v5299
      %v5361 = vpack.c.bf16 %v5311, %v5300
      %v5362 = vpack.c.bf16 %v5321, %v5264
      %v5363 = vpack.c.bf16 %v5322, %v5265
      %v5364 = vpack.c.bf16 %v5343, %v5332
      %v5365 = vpack.c.bf16 %v5344, %v5333
      %v5366 = vpack.c.bf16 %v5354, %v5354
      %v5367 = vpack.c.bf16 %v5355, %v5355
      %v5368 = vld [vmem:[%s65] sm:$0xff]
      %v5369 = vld [vmem:[%s65 + $0x8] sm:$0xff]
      %5371 = vset.pattern.permute.xlu0 0
      %5372 = vperm.xlu0 %5371, %v5368
      %v5373 = vpop.permute.xlu0 %5372
      %5376 = vset.pattern.permute.xlu0 0
      %5377 = vperm.xlu0 %5376, %v5369
      %v5378 = vpop.permute.xlu0 %5377
      %v5382 = vunpack.c.l.b16 %v5356
      %v5383 = vunpack.c.l.b16 %v5357
      %v5384 = vpack.c.b16 %v5383, %v5382
      %v5386 = vsel %vm2114, %v5384, 0
      %v5389 = vsel %vm1452, %v5366, 0
      %v5392 = vsel %vm1452, %v5367, 0
      %5394 = vmatprep.subr.bf16.mxu0 0
      %5395 = vmatpush1.bf16.msra.mxu0 0
      %5396 = vmatprep.subr.bf16.mxu0 0
      %5397 = vmatpush1.bf16.msra.mxu0 0
      %5398 = vmatprep.subr.bf16.mxu0 0
      %5399 = vmatpush1.bf16.msra.mxu0 0
      %5400 = vmatprep.subr.bf16.mxu0 %v5392
      %5401 = vmatpush1.bf16.msra.mxu0 %v5389
      %5402 = vmatprep.subr.bf16.mxu0 %v5365
      %5403 = vmatpush1.bf16.msra.mxu0 %v5364
      %5404 = vmatprep.subr.bf16.mxu0 %v5363
      %5405 = vmatpush1.bf16.msra.mxu0 %v5362
      %5406 = vmatprep.subr.bf16.mxu0 %v5361
      %5407 = vmatpush1.bf16.msra.mxu0 %v5360
      %5408 = vmatprep.subr.bf16.mxu0 %v5359
      %5409 = vmatpush1.bf16.msra.mxu0 %v5358
      %5410 = vmatprep.subr.bf16.mxu0 0
      %5411 = vmatpush2.bf16.msra.mxu0 0
      %5412 = vmatprep.subr.bf16.mxu0 0
      %5413 = vmatpush2.bf16.msra.mxu0 0
      %5414 = vmatprep.subr.bf16.mxu0 0
      %5415 = vmatpush2.bf16.msra.mxu0 0
      %5416 = vmatprep.subr.bf16.mxu0 0
      %5417 = vmatpush2.bf16.msra.mxu0 0
      %5418 = vmatprep.subr.bf16.mxu0 0
      %5419 = vmatpush2.bf16.msra.mxu0 0
      %5420 = vmatprep.subr.bf16.mxu0 0
      %5421 = vmatpush2.bf16.msra.mxu0 0
      %5422 = vmatprep.subr.bf16.mxu0 0
      %5423 = vmatpush2.bf16.msra.mxu0 0
      %5424 = vmatprep.subr.bf16.mxu0 0
      %5425 = vmatpush2.bf16.msra.mxu0 0
      %5426 = vmatprep.mubr.bf16.mxu0 0
      %5427 = vmatmul.mubr.bf16.gmra.mxu0 %v5386
      %v5428 = vpop.f32.mrf.mxu0
      %v5429 = vadd.f32 %v5373, %v5428
      %v5430 = vpop.f32.mrf.mxu0
      %v5431 = vadd.f32 %v5373, %v5430
      %v5432 = vpop.f32.mrf.mxu0
      %v5433 = vadd.f32 %v5378, %v5432
      %v5434 = vpop.f32.mrf.mxu0
      %v5435 = vadd.f32 %v5378, %v5434
      %5436 = vdwg.mxu0
      %v5437 = vmax.f32 %v5429, 0.0
      %v5438 = vmax.f32 %v5431, 0.0
      %v5439 = vmax.f32 %v5433, 0.0
      %v5440 = vmax.f32 %v5435, 0.0
      %v5441 = vld [vmem:[%s67] sm:$0x1]
      %v5442 = vpack.c.bf16 %v5439, %v5437
      %v5443 = vpack.c.bf16 %v5440, %v5438
      %v5444 = vld [vmem:[#allocation2] sm:$0x1]
      %5446 = vset.pattern.permute.xlu0 0
      %5447 = vperm.xlu0 %5446, %v5444
      %v5448 = vpop.permute.xlu0 %5447
      %v5450 = vlaneseq
      %v5451 = vshrl.u32 %v5450, 7
      %v5452 = vsub.s32 0, %v5451
      %v5453 = vrot.slane %v5448, %v5452
      %v5455 = vsel %vm1296, %v5441, 0
      %5457 = vmatprep.subr.bf16.mxu0 0
      %5458 = vmatpush1.bf16.msra.mxu0 0
      %5459 = vmatprep.subr.bf16.mxu0 0
      %5460 = vmatpush1.bf16.msra.mxu0 0
      %5461 = vmatprep.subr.bf16.mxu0 0
      %5462 = vmatpush1.bf16.msra.mxu0 0
      %5463 = vmatprep.subr.bf16.mxu0 0
      %5464 = vmatpush1.bf16.msra.mxu0 0
      %5465 = vmatprep.subr.bf16.mxu0 0
      %5466 = vmatpush1.bf16.msra.mxu0 0
      %5467 = vmatprep.subr.bf16.mxu0 0
      %5468 = vmatpush1.bf16.msra.mxu0 0
      %5469 = vmatprep.subr.bf16.mxu0 0
      %5470 = vmatpush1.bf16.msra.mxu0 0
      %5471 = vmatprep.subr.bf16.mxu0 %v5443
      %5472 = vmatpush1.bf16.msra.mxu0 %v5442
      %5473 = vmatprep.subr.bf16.mxu0 0
      %5474 = vmatpush2.bf16.msra.mxu0 0
      %5475 = vmatprep.subr.bf16.mxu0 0
      %5476 = vmatpush2.bf16.msra.mxu0 0
      %5477 = vmatprep.subr.bf16.mxu0 0
      %5478 = vmatpush2.bf16.msra.mxu0 0
      %5479 = vmatprep.subr.bf16.mxu0 0
      %5480 = vmatpush2.bf16.msra.mxu0 0
      %5481 = vmatprep.subr.bf16.mxu0 0
      %5482 = vmatpush2.bf16.msra.mxu0 0
      %5483 = vmatprep.subr.bf16.mxu0 0
      %5484 = vmatpush2.bf16.msra.mxu0 0
      %5485 = vmatprep.subr.bf16.mxu0 0
      %5486 = vmatpush2.bf16.msra.mxu0 0
      %5487 = vmatprep.subr.bf16.mxu0 0
      %5488 = vmatpush2.bf16.msra.mxu0 0
      %5489 = vmatprep.mubr.bf16.mxu0 0
      %5490 = vmatmul.mubr.bf16.gmra.mxu0 %v5455
      %v5491 = vpop.f32.mrf.mxu0
      %v5492 = vadd.f32 %v5453, %v5491
      %v5493 = vpop.f32.mrf.mxu0
      %v5494 = vadd.f32 %v5453, %v5493
      %v5495 = vpop.f32.mrf.mxu0
      %v5496 = vpop.f32.mrf.mxu0
      %5497 = vdwg.mxu0
      %v5498 = vsub.f32 0.0, %v5492
      %v5499 = vsub.f32 0.0, %v5494
      %v5500 = vmul.f32 %v5498, 1.442695
      %v5501 = vpow.pop %v5500
      %v5502 = vmul.f32 %v5499, 1.442695
      %v5503 = vpow.pop %v5502
      %v5504 = vadd.f32 %v5501, 1.0
      %v5505 = vadd.f32 %v5503, 1.0
      %v5506 = vrcp.pop %v5504
      %v5507 = vrcp.pop %v5505
      %v5510 = vcombine.low %v5506, %v5507
      %v5512 = vunpack.c.l.s4 1966171168
      %v5513 = vunpack.c.0.s8 %v5512
      %v5514 = vlaneseq
      %v5515 = vshrl.u32 %v5514, 7
      %v5516 = vsub.s32 %v5513, %v5515
      %v5517 = vrot.slane %v5510, %v5516
      %v5519 = vunpack.c.l.s4 1966171168
      %v5520 = vunpack.c.0.s8 %v5519
      %v5521 = vlaneseq
      %v5522 = vshrl.u32 %v5521, 7
      %v5523 = vsub.s32 %v5520, %v5522
      %v5524 = vrot.slane %v5517, %v5523
      %v5526 = vlaneseq
      %vm5527 = vcmp.ge.s32.totalorder %v5526, 0
      %vm5528 = vcmp.lt.s32.totalorder %v5526, 256
      %vm5529 = vmand %vm5527, %vm5528
      %5530 = vst.msk [vmem:[%s1263] sm:$0x3] %vm5529, %v5524
      %p5531 = scmp.lt.s32.totalorder %s98, 1
      %s5532 = scalar_select %p5531, %s98, 1
      %s5533 = smul.addr %s5532, 2
      %s5534 = scalar_lea.vmem %s85, %s5533
      // Predicated region
      $region189: #{_lambda_.1} parent=187 // pred_check
        %p5535 = pneg %p1003
      $region190: #{_lambda_.1} parent=187 // pred_check_branch
        %5537 = sbr.rel (%p5535) target = $region192
      $region191: #{_lambda_.1} parent=187 // pred_region
        _
      $region192: #{_lambda_.1} parent=187 // pred_fallthru
        _
    $region188: #{_lambda_.1} parent=5 // pred_fallthru
      _
    %p5538 = scmp.le.s32.totalorder 2, %s93
    // Predicated region
    $region193: #{_lambda_.1} parent=5 // pred_check
      %p5539 = pneg %p5538
    $region194: #{_lambda_.1} parent=5 // pred_check_branch
      %5541 = sbr.rel (%p5539) target = $region196
    $region195: #{_lambda_.1} parent=5 // pred_region
      %s5542 = ssub.s32 %s93, 2
      // Predicated region
      $region197: #{_lambda_.1} parent=195 // pred_check
        %p5543 = pneg %p1009
      $region198: #{_lambda_.1} parent=195 // pred_check_branch
        %5545 = sbr.rel (%p5543) target = $region200
      $region199: #{_lambda_.1} parent=195 // pred_region
        %p5546 = scmp.lt.s32.totalorder %s99, 1
        %s5547 = scalar_select %p5546, %s99, 1
        %s5548 = smul.addr %s5547, 2
        %s5549 = scalar_lea.vmem %s85, %s5548
      $region200: #{_lambda_.1} parent=195 // pred_fallthru
        _
    $region196: #{_lambda_.1} parent=5 // pred_fallthru
      _
  $region6: #{_lambda_.1} parent=0 // loop_footer
    %s97 = sadd.s32 1, %s93
  $region7: #{_lambda_.1} parent=0 // loop_footer_branch
    %92 = sbr.rel target = $region3
  $region8: #{_lambda_.1} parent=0 // loop_exit
    _

</llo_original>
